<compile_context>
chip_gen: v7x
topology: tpu7x:2x2x1
jax: 0.10.0
libtpu: 0.0.40
codegen_flags: <defaults>
</compile_context>

<pallas_src>
import math
from functools import partial

import jax
import jax.numpy as jnp
from jax.experimental import pallas as pl
from jax.experimental.pallas import tpu as pltpu


# ------------------------- in-kernel helpers -------------------------

def _torch_layernorm(x, a, b, eps):
    # Matches the custom PyTorch LayerNorm: std uses Bessel correction (N-1),
    # formula a * (x - mean) / (std + eps) + b.  Exact divide (bf16 matmuls
    # elsewhere tighten the error budget; see review).
    n = x.shape[-1]
    mean = jnp.mean(x, axis=-1, keepdims=True)
    var = jnp.sum((x - mean) ** 2, axis=-1, keepdims=True) * (1.0 / (n - 1))
    return a * (x - mean) / (jnp.sqrt(var) + eps) + b


def _softmax_last(x):
    m = jnp.max(x, axis=-1, keepdims=True)
    e = jnp.exp(x - m)
    return e * pl.reciprocal(jnp.sum(e, axis=-1, keepdims=True), approx=True)


# ------------------------- the fused kernel -------------------------

def encoder_kernel(n_heads, d_k, eps,
                   x_ref, adj_ref, dist_ref, maskb_ref, pe_ref,
                   w_emb_ref, b_emb_ref, a1_ref, b1_ref,
                   wqkv_ref, wfc_ref,
                   w1_ref, w2_ref, a2_ref, b2_ref,
                   conv_ref,                    # SMEM: [w_scores, w_dist, w_adj, bias]
                   out_ref, attn_ref,
                   ctx_ref):                    # VMEM scratch (Bt*S, D) f32
    Bt, S, _ = adj_ref.shape
    D = n_heads * d_k
    bf16 = jnp.bfloat16

    x = x_ref[...]                               # (Bt*S, F)   rows stacked
    adj = adj_ref[...]                           # (Bt, S, S)
    dist = dist_ref[...]                         # (Bt, S, S)
    mask_bias = maskb_ref[...]                   # (Bt, S, S) f32: 0 or -1e9

    # --- Embeddings: Linear + ReLU (dropout = identity) + positional enc ---
    emb = jnp.dot(x.astype(bf16), w_emb_ref[...],
                  preferred_element_type=jnp.float32) + b_emb_ref[...]
    emb = jnp.maximum(emb, 0.0)
    emb = (emb.reshape(Bt, S, D) + pe_ref[...]).reshape(Bt * S, D)

    residual = emb
    h = _torch_layernorm(emb, a1_ref[...], b1_ref[...], eps)   # (Bt*S, D)

    # --- distance kernel: masked_fill then softmax(-x, dim=-1) ---
    dist_soft = _softmax_last(mask_bias - dist)                # (Bt, S, S)

    cw0 = conv_ref[0]
    cw1 = conv_ref[1]
    cw2 = conv_ref[2]
    cb = conv_ref[3]
    # Head-invariant part of the 1x1-conv combine + mask bias, hoisted.
    base = cw1 * dist_soft + cw2 * adj + cb + mask_bias        # (Bt, S, S)
    scale = 1.0 / math.sqrt(d_k)

    # --- fused Q/K/V projection: one (Bt*S, D) x (D, 3D) matmul ---
    qkv = jnp.dot(h.astype(bf16), wqkv_ref[...],
                  preferred_element_type=jnp.float32)          # (Bt*S, 3D)

    for hd in range(n_heads):
        q0 = hd * d_k
        qh = qkv[:, q0:q0 + d_k].reshape(Bt, S, d_k)
        kh = qkv[:, D + q0:D + q0 + d_k].reshape(Bt, S, d_k)
        vh = qkv[:, 2 * D + q0:2 * D + q0 + d_k].reshape(Bt, S, d_k)

        # scores = Q K^T / sqrt(d_k), batched over Bt molecules.
        s = jnp.einsum('bqd,bkd->bqk', qh.astype(bf16), kh.astype(bf16),
                       preferred_element_type=jnp.float32) * scale
        s = _softmax_last(s + mask_bias)

        # 1x1 conv combine: only the head-dependent term left in the loop.
        attn_h = _softmax_last(cw0 * s + base)                 # dropout = identity

        # Store this head's attention weights now (frees its vregs).
        attn_ref[:, :, hd * S:(hd + 1) * S] = attn_h

        ctx_h = jnp.einsum('bqk,bkd->bqd', attn_h.astype(bf16), vh.astype(bf16),
                           preferred_element_type=jnp.float32)  # (Bt, S, d_k)
        ctx_ref[:, q0:q0 + d_k] = ctx_h.reshape(Bt * S, d_k)

    # --- fused output projection: one (Bt*S, D) x (D, D) matmul ---
    attn_out = jnp.dot(ctx_ref[...].astype(bf16), wfc_ref[...],
                       preferred_element_type=jnp.float32)

    # --- residual + position-wise FFN + final LayerNorm ---
    res2 = residual + attn_out
    ffn_in = _torch_layernorm(res2, a1_ref[...], b1_ref[...], eps)
    hid = jnp.maximum(jnp.dot(ffn_in.astype(bf16), w1_ref[...],
                              preferred_element_type=jnp.float32), 0.0)
    ffn_out = jnp.dot(hid.astype(bf16), w2_ref[...],
                      preferred_element_type=jnp.float32)

    out_ref[...] = _torch_layernorm(res2 + ffn_out, a2_ref[...], b2_ref[...], eps)


# ------------------------- wrapper / glue -------------------------

def positional_encoding(seq_len, d_model):
    position = jnp.arange(seq_len, dtype=jnp.float32)[:, None]
    div_term = jnp.exp(jnp.arange(0, d_model, 2, dtype=jnp.float32)
                       * (-math.log(10000.0) / d_model))
    pe = jnp.zeros((seq_len, d_model), jnp.float32)
    pe = pe.at[:, 0::2].set(jnp.sin(position * div_term))
    pe = pe.at[:, 1::2].set(jnp.cos(position * div_term))
    return pe


def _pick_batch_tile(B, S, target_rows=256):
    """Pick Bt so Bt*S ~ target_rows while keeping >= 2 grid steps (v7x has 2 TCs).

    For single-TC v6e, pass block_b=B explicitly to get one 256-row step.
    """
    bt = max(1, min(B, max(1, target_rows // S)))
    if B >= 2:
        bt = min(bt, max(1, B // 2))      # keep at least 2 grid steps
    while B % bt:
        bt -= 1
    return bt


def encoder_forward(params, x, adj, dist, mask, *, n_heads, eps=1e-6, block_b=None):
    B, S, F_in = x.shape
    D = params["w_emb"].shape[1]
    d_k = D // n_heads
    d_ffn = params["w1"].shape[1]

    Bt = _pick_batch_tile(B, S) if block_b is None else block_b
    assert B % Bt == 0
    grid = (B // Bt,)

    pe = positional_encoding(S, D)                              # (S, D)
    x_flat = x.reshape(B * S, F_in)
    mask_bias = jnp.where(mask, jnp.float32(-1e9), jnp.float32(0.0))

    bf16 = jnp.bfloat16
    # Fused QKV weight (D, 3D); head hd of Q/K/V lives at columns
    # [hd*d_k:(hd+1)*d_k], [D + hd*d_k:...], [2D + hd*d_k:...] respectively,
    # matching the PyTorch view(B,S,H,d_k) head split.
    wqkv = jnp.concatenate([params["wq"], params["wk"], params["wv"]],
                           axis=1).astype(bf16)                 # (D, 3D)
    wfc = params["wfc"].astype(bf16)                            # (D, D), head-major rows
    w_emb = params["w_emb"].astype(bf16)
    w1 = params["w1"].astype(bf16)
    w2 = params["w2"].astype(bf16)

    kernel = partial(encoder_kernel, n_heads, d_k, eps)

    def full2(s0, s1):
        return pl.BlockSpec((s0, s1), lambda b: (0, 0))

    grid_spec = pltpu.PrefetchScalarGridSpec(
        num_scalar_prefetch=0,
        grid=grid,
        in_specs=[
            pl.BlockSpec((Bt * S, F_in), lambda b: (b, 0)),        # x rows
            pl.BlockSpec((Bt, S, S), lambda b: (b, 0, 0)),         # adj
            pl.BlockSpec((Bt, S, S), lambda b: (b, 0, 0)),         # dist
            pl.BlockSpec((Bt, S, S), lambda b: (b, 0, 0)),         # mask bias (f32)
            full2(S, D),                                           # pe (broadcast in-kernel)
            full2(F_in, D), full2(1, D),                           # emb W^T (bf16), bias
            full2(1, D), full2(1, D),                              # norm a/b
            full2(D, 3 * D),                                       # fused Wqkv (bf16)
            full2(D, D),                                           # Wfc (bf16)
            full2(D, d_ffn), full2(d_ffn, D),                      # ffn W1^T, W2^T (bf16)
            full2(1, D), full2(1, D),                              # layer_norm a/b
            pl.BlockSpec(memory_space=pltpu.MemorySpace.SMEM),     # conv [w0,w1,w2,b]
        ],
        out_specs=[
            pl.BlockSpec((Bt * S, D), lambda b: (b, 0)),           # encoder output
            pl.BlockSpec((Bt, S, n_heads * S), lambda b: (b, 0, 0)),  # attn (per-head lane slices)
        ],
        scratch_shapes=[pltpu.VMEM((Bt * S, D), jnp.float32)],     # context scratch
    )

    flops = int(2 * B * S * (F_in * D + 3 * D * D + D * D + 2 * D * d_ffn)
                + 4 * B * n_heads * S * S * d_k)
    transcendentals = int(B * S * S * (2 * n_heads + 1))
    bytes_accessed = int(4 * (B * S * F_in + 3 * B * S * S + 2 * B * S * D
                              + B * S * n_heads * S + S * D + 6 * D)
                         + 2 * (F_in * D + 3 * D * D + D * D + 2 * D * d_ffn))

    out_flat, attn_dense = pl.pallas_call(
        kernel,
        out_shape=(
            jax.ShapeDtypeStruct((B * S, D), jnp.float32),
            jax.ShapeDtypeStruct((B, S, n_heads * S), jnp.float32),
        ),
        grid_spec=grid_spec,
        compiler_params=pltpu.CompilerParams(
            dimension_semantics=("parallel",),
            vmem_limit_bytes=32 * 1024 * 1024,
        ),
        cost_estimate=pl.CostEstimate(flops=flops,
                                      transcendentals=transcendentals,
                                      bytes_accessed=bytes_accessed),
    )(x_flat, adj, dist, mask_bias, pe,
      w_emb, params["b_emb"], params["a1"], params["b1"],
      wqkv, wfc, w1, w2, params["a2"], params["b2"],
      params["conv"])

    out = out_flat.reshape(B, S, D)
    attn = attn_dense.reshape(B, S, n_heads, S).transpose(0, 2, 1, 3)
    return out, attn


# ------------------------- deterministic params -------------------------

def init_params(key, d_feature, d_model, d_ffn):
    ks = jax.random.split(key, 10)

    def lin(k, fan_in, shape):
        bound = 1.0 / math.sqrt(fan_in)
        return jax.random.uniform(k, shape, jnp.float32, -bound, bound)

    return {
        # Linear weights stored pre-transposed as [in, out] so kernel does x @ W
        "w_emb": lin(ks[0], d_feature, (d_feature, d_model)),
        "b_emb": lin(ks[1], d_feature, (1, d_model)),
        "a1": jnp.ones((1, d_model), jnp.float32),
        "b1": jnp.zeros((1, d_model), jnp.float32),
        "wq": lin(ks[2], d_model, (d_model, d_model)),
        "wk": lin(ks[3], d_model, (d_model, d_model)),
        "wv": lin(ks[4], d_model, (d_model, d_model)),
        "wfc": lin(ks[5], d_model, (d_model, d_model)),
        "w1": lin(ks[6], d_model, (d_model, d_ffn)),
        "w2": lin(ks[7], d_ffn, (d_ffn, d_model)),
        "a2": jnp.ones((1, d_model), jnp.float32),
        "b2": jnp.zeros((1, d_model), jnp.float32),
        # Conv2d(3,1,1x1): [w_scores, w_dist, w_adj, bias]
        "conv": jnp.concatenate([lin(ks[8], 3, (3,)), lin(ks[9], 3, (1,))]),
    }


# ------------------------- pure-JAX reference -------------------------

def encoder_reference(params, x, adj, dist, mask, *, n_heads, eps=1e-6):
    B, S, _ = x.shape
    D = params["w_emb"].shape[1]
    d_k = D // n_heads
    pe = positional_encoding(S, D)

    def ln(y, a, b):
        n = y.shape[-1]
        mean = jnp.mean(y, axis=-1, keepdims=True)
        std = jnp.sqrt(jnp.sum((y - mean) ** 2, -1, keepdims=True) / (n - 1))
        return a * (y - mean) / (std + eps) + b

    emb = jnp.maximum(x @ params["w_emb"] + params["b_emb"], 0.0) + pe
    residual = emb
    h = ln(emb, params["a1"], params["b1"])

    def heads(w):
        return (h @ w).reshape(B, S, n_heads, d_k).transpose(0, 2, 1, 3)

    Q, K, V = heads(params["wq"]), heads(params["wk"]), heads(params["wv"])
    maskh = mask[:, None, :, :]
    scores = jnp.einsum("bhqd,bhkd->bhqk", Q, K) / math.sqrt(d_k)
    scores = jax.nn.softmax(jnp.where(maskh, -1e9, scores), axis=-1)
    dist_soft = jax.nn.softmax(jnp.where(mask, -jnp.inf, -dist), axis=-1)[:, None]
    cw = params["conv"]
    comb = cw[0] * scores + cw[1] * dist_soft + cw[2] * adj[:, None] + cw[3]
    attn = jax.nn.softmax(jnp.where(maskh, -1e9, comb), axis=-1)
    ctx = jnp.einsum("bhqk,bhkd->bhqd", attn, V).transpose(0, 2, 1, 3).reshape(B, S, D)
    res2 = residual + ctx @ params["wfc"]
    ffn_in = ln(res2, params["a1"], params["b1"])
    ffn = jnp.maximum(ffn_in @ params["w1"], 0.0) @ params["w2"]
    return ln(res2 + ffn, params["a2"], params["b2"]), attn


# ------------------------- main -------------------------

if __name__ == "__main__":
    B, S, F_in = 16, 16, 16        # batch, seq (atoms), atom-feature dim (cpd_atom)
    D, H, FFN = 32, 4, 64          # d_model, n_heads, d_ffn

    key = jax.random.PRNGKey(0)
    k1, k2, k3, k4, kp = jax.random.split(key, 5)
    x = jax.random.normal(k1, (B, S, F_in), jnp.float32)
    dist = jax.random.uniform(k2, (B, S, S), jnp.float32, 0.1, 5.0)
    adj = (jax.random.uniform(k3, (B, S, S)) > 0.5).astype(jnp.float32)
    valid = jax.random.randint(k4, (B,), 4, S + 1)   # padding lengths per molecule
    mask = jnp.broadcast_to(jnp.arange(S)[None, None, :] >= valid[:, None, None],
                            (B, S, S))               # True = masked (padding cols)

    params = init_params(kp, F_in, D, FFN)

    out, attn = encoder_forward(params, x, adj, dist, mask, n_heads=H)
    jax.block_until_ready((out, attn))

    ref_out, ref_attn = encoder_reference(params, x, adj, dist, mask, n_heads=H)
    assert out.shape == (B, S, D) and attn.shape == (B, H, S, S)
    assert bool(jnp.all(jnp.isfinite(out))) and bool(jnp.all(jnp.isfinite(attn)))
    # bf16 MXU operands (f32 accumulation) vs. the all-f32 reference: the attn
    # weights stay within 1e-2; the encoder output is checked at 2e-2.
    assert jnp.allclose(attn, ref_attn, atol=1e-2, rtol=1e-2)
    assert jnp.allclose(out, ref_out, atol=2e-2, rtol=2e-2)
    print("KERNEL_OK")
</pallas_src>

<mosaic_0001>
module attributes {stable_mosaic.version = 11 : i64} {
  func.func @encoder_kernel(%arg0: i32, %arg1: memref<128x16xf32, #tpu.memory_space<vmem>>, %arg2: memref<8x16x16xf32, #tpu.memory_space<vmem>>, %arg3: memref<8x16x16xf32, #tpu.memory_space<vmem>>, %arg4: memref<8x16x16xf32, #tpu.memory_space<vmem>>, %arg5: memref<16x32xf32, #tpu.memory_space<vmem>>, %arg6: memref<16x32xbf16, #tpu.memory_space<vmem>>, %arg7: memref<1x32xf32, #tpu.memory_space<vmem>>, %arg8: memref<1x32xf32, #tpu.memory_space<vmem>>, %arg9: memref<1x32xf32, #tpu.memory_space<vmem>>, %arg10: memref<32x96xbf16, #tpu.memory_space<vmem>>, %arg11: memref<32x32xbf16, #tpu.memory_space<vmem>>, %arg12: memref<32x64xbf16, #tpu.memory_space<vmem>>, %arg13: memref<64x32xbf16, #tpu.memory_space<vmem>>, %arg14: memref<1x32xf32, #tpu.memory_space<vmem>>, %arg15: memref<1x32xf32, #tpu.memory_space<vmem>>, %arg16: memref<4xf32, #tpu.memory_space<smem>>, %arg17: memref<128x32xf32, #tpu.memory_space<vmem>>, %arg18: memref<8x16x64xf32, #tpu.memory_space<vmem>>, %arg19: memref<128x32xf32, #tpu.memory_space<vmem>>) attributes {dimension_semantics = [#tpu.dimension_semantics<parallel>], iteration_bounds = array<i64: 2>, scalar_prefetch = 0 : i64, scratch_operands = 1 : i64, tpu.core_type = #tpu.core_type<tc>, window_params = [{transform_indices = @transform_0, window_bounds = array<i64: 128, 16>}, {transform_indices = @transform_1, window_bounds = array<i64: 8, 16, 16>}, {transform_indices = @transform_2, window_bounds = array<i64: 8, 16, 16>}, {transform_indices = @transform_3, window_bounds = array<i64: 8, 16, 16>}, {pipeline_mode = #tpu.pipeline_mode<synchronous>, transform_indices = @transform_4, window_bounds = array<i64: 16, 32>}, {pipeline_mode = #tpu.pipeline_mode<synchronous>, transform_indices = @transform_5, window_bounds = array<i64: 16, 32>}, {pipeline_mode = #tpu.pipeline_mode<synchronous>, transform_indices = @transform_6, window_bounds = array<i64: 1, 32>}, {pipeline_mode = #tpu.pipeline_mode<synchronous>, transform_indices = @transform_7, window_bounds = array<i64: 1, 32>}, {pipeline_mode = #tpu.pipeline_mode<synchronous>, transform_indices = @transform_8, window_bounds = array<i64: 1, 32>}, {pipeline_mode = #tpu.pipeline_mode<synchronous>, transform_indices = @transform_9, window_bounds = array<i64: 32, 96>}, {pipeline_mode = #tpu.pipeline_mode<synchronous>, transform_indices = @transform_10, window_bounds = array<i64: 32, 32>}, {pipeline_mode = #tpu.pipeline_mode<synchronous>, transform_indices = @transform_11, window_bounds = array<i64: 32, 64>}, {pipeline_mode = #tpu.pipeline_mode<synchronous>, transform_indices = @transform_12, window_bounds = array<i64: 64, 32>}, {pipeline_mode = #tpu.pipeline_mode<synchronous>, transform_indices = @transform_13, window_bounds = array<i64: 1, 32>}, {pipeline_mode = #tpu.pipeline_mode<synchronous>, transform_indices = @transform_14, window_bounds = array<i64: 1, 32>}, {transform_indices = @transform_15, window_bounds = array<i64: 4>}, {transform_indices = @transform_16, window_bounds = array<i64: 128, 32>}, {transform_indices = @transform_17, window_bounds = array<i64: 8, 16, 64>}]} {
    %c0 = arith.constant 0 : index
    %c0_0 = arith.constant 0 : index
    %0 = vector.load %arg1[%c0, %c0_0] : memref<128x16xf32, #tpu.memory_space<vmem>>, vector<128x16xf32>
    %c0_1 = arith.constant 0 : index
    %c0_2 = arith.constant 0 : index
    %c0_3 = arith.constant 0 : index
    %1 = vector.load %arg2[%c0_1, %c0_2, %c0_3] : memref<8x16x16xf32, #tpu.memory_space<vmem>>, vector<8x16x16xf32>
    %c0_4 = arith.constant 0 : index
    %c0_5 = arith.constant 0 : index
    %c0_6 = arith.constant 0 : index
    %2 = vector.load %arg3[%c0_4, %c0_5, %c0_6] : memref<8x16x16xf32, #tpu.memory_space<vmem>>, vector<8x16x16xf32>
    %c0_7 = arith.constant 0 : index
    %c0_8 = arith.constant 0 : index
    %c0_9 = arith.constant 0 : index
    %3 = vector.load %arg4[%c0_7, %c0_8, %c0_9] : memref<8x16x16xf32, #tpu.memory_space<vmem>>, vector<8x16x16xf32>
    %4 = arith.truncf %0 : vector<128x16xf32> to vector<128x16xbf16>
    %c0_10 = arith.constant 0 : index
    %c0_11 = arith.constant 0 : index
    %5 = vector.load %arg6[%c0_10, %c0_11] : memref<16x32xbf16, #tpu.memory_space<vmem>>, vector<16x32xbf16>
    %cst = arith.constant dense<0.000000e+00> : vector<128x32xf32>
    %6 = tpu.matmul %4, %5, %cst {dimension_numbers = #tpu.dot_dimension_numbers<[1], [0], [0], [1], [0, 0, 1, 1], [], []>} : vector<128x16xbf16>, vector<16x32xbf16>, vector<128x32xf32> -> vector<128x32xf32>
    %c0_12 = arith.constant 0 : index
    %c0_13 = arith.constant 0 : index
    %7 = vector.load %arg7[%c0_12, %c0_13] : memref<1x32xf32, #tpu.memory_space<vmem>>, vector<1x32xf32>
    %8 = vector.broadcast %7 : vector<1x32xf32> to vector<128x32xf32>
    %9 = arith.addf %6, %8 : vector<128x32xf32>
    %cst_14 = arith.constant 0.000000e+00 : f32
    %10 = vector.broadcast %cst_14 : f32 to vector<128x32xf32>
    %11 = arith.maximumf %9, %10 : vector<128x32xf32>
    %12 = vector.shape_cast %11 : vector<128x32xf32> to vector<8x16x32xf32>
    %c0_15 = arith.constant 0 : index
    %c0_16 = arith.constant 0 : index
    %13 = vector.load %arg5[%c0_15, %c0_16] : memref<16x32xf32, #tpu.memory_space<vmem>>, vector<16x32xf32>
    %14 = vector.shape_cast %13 : vector<16x32xf32> to vector<1x16x32xf32>
    %15 = vector.broadcast %14 : vector<1x16x32xf32> to vector<8x16x32xf32>
    %16 = arith.addf %12, %15 : vector<8x16x32xf32>
    %17 = vector.shape_cast %16 : vector<8x16x32xf32> to vector<128x32xf32>
    %c0_17 = arith.constant 0 : index
    %c0_18 = arith.constant 0 : index
    %18 = vector.load %arg8[%c0_17, %c0_18] : memref<1x32xf32, #tpu.memory_space<vmem>>, vector<1x32xf32>
    %c0_19 = arith.constant 0 : index
    %c0_20 = arith.constant 0 : index
    %19 = vector.load %arg9[%c0_19, %c0_20] : memref<1x32xf32, #tpu.memory_space<vmem>>, vector<1x32xf32>
    %cst_21 = arith.constant dense<0.000000e+00> : vector<128xf32>
    %20 = vector.multi_reduction <add>, %17, %cst_21 [1] : vector<128x32xf32> to vector<128xf32>
    %21 = vector.shape_cast %20 : vector<128xf32> to vector<128x1xf32>
    %cst_22 = arith.constant 3.200000e+01 : f32
    %22 = vector.broadcast %cst_22 : f32 to vector<128x1xf32>
    %23 = arith.divf %21, %22 : vector<128x1xf32>
    %24 = vector.broadcast %23 : vector<128x1xf32> to vector<128x32xf32>
    %25 = arith.subf %17, %24 : vector<128x32xf32>
    %26 = arith.mulf %25, %25 : vector<128x32xf32>
    %cst_23 = arith.constant dense<0.000000e+00> : vector<128xf32>
    %27 = vector.multi_reduction <add>, %26, %cst_23 [1] : vector<128x32xf32> to vector<128xf32>
    %28 = vector.shape_cast %27 : vector<128xf32> to vector<128x1xf32>
    %cst_24 = arith.constant 0.0322580636 : f32
    %29 = vector.broadcast %cst_24 : f32 to vector<128x1xf32>
    %30 = arith.mulf %28, %29 : vector<128x1xf32>
    %31 = vector.broadcast %23 : vector<128x1xf32> to vector<128x32xf32>
    %32 = arith.subf %17, %31 : vector<128x32xf32>
    %33 = vector.broadcast %18 : vector<1x32xf32> to vector<128x32xf32>
    %34 = arith.mulf %33, %32 : vector<128x32xf32>
    %35 = math.sqrt %30 : vector<128x1xf32>
    %cst_25 = arith.constant 9.99999997E-7 : f32
    %36 = vector.broadcast %cst_25 : f32 to vector<128x1xf32>
    %37 = arith.addf %35, %36 : vector<128x1xf32>
    %38 = vector.broadcast %37 : vector<128x1xf32> to vector<128x32xf32>
    %39 = arith.divf %34, %38 : vector<128x32xf32>
    %40 = vector.broadcast %19 : vector<1x32xf32> to vector<128x32xf32>
    %41 = arith.addf %39, %40 : vector<128x32xf32>
    %42 = arith.subf %3, %2 : vector<8x16x16xf32>
    %cst_26 = arith.constant dense<0xFF800000> : vector<8x16xf32>
    %43 = vector.multi_reduction <maximumf>, %42, %cst_26 [2] : vector<8x16x16xf32> to vector<8x16xf32>
    %44 = vector.shape_cast %43 : vector<8x16xf32> to vector<8x16x1xf32>
    %45 = vector.broadcast %44 : vector<8x16x1xf32> to vector<8x16x16xf32>
    %46 = arith.subf %42, %45 : vector<8x16x16xf32>
    %47 = math.exp %46 : vector<8x16x16xf32>
    %cst_27 = arith.constant dense<0.000000e+00> : vector<8x16xf32>
    %48 = vector.multi_reduction <add>, %47, %cst_27 [2] : vector<8x16x16xf32> to vector<8x16xf32>
    %49 = vector.shape_cast %48 : vector<8x16xf32> to vector<8x16x1xf32>
    %50 = tpu.reciprocal %49 {approx = true} : vector<8x16x1xf32> -> vector<8x16x1xf32>
    %51 = vector.broadcast %50 : vector<8x16x1xf32> to vector<8x16x16xf32>
    %52 = arith.mulf %47, %51 : vector<8x16x16xf32>
    %c0_28 = arith.constant 0 : index
    %53 = memref.load %arg16[%c0_28] : memref<4xf32, #tpu.memory_space<smem>>
    %c1 = arith.constant 1 : index
    %54 = memref.load %arg16[%c1] : memref<4xf32, #tpu.memory_space<smem>>
    %c2 = arith.constant 2 : index
    %55 = memref.load %arg16[%c2] : memref<4xf32, #tpu.memory_space<smem>>
    %c3 = arith.constant 3 : index
    %56 = memref.load %arg16[%c3] : memref<4xf32, #tpu.memory_space<smem>>
    %57 = vector.broadcast %54 : f32 to vector<8x16x16xf32>
    %58 = arith.mulf %57, %52 : vector<8x16x16xf32>
    %59 = vector.broadcast %55 : f32 to vector<8x16x16xf32>
    %60 = arith.mulf %59, %1 : vector<8x16x16xf32>
    %61 = arith.addf %58, %60 : vector<8x16x16xf32>
    %62 = vector.broadcast %56 : f32 to vector<8x16x16xf32>
    %63 = arith.addf %61, %62 : vector<8x16x16xf32>
    %64 = arith.addf %63, %3 : vector<8x16x16xf32>
    %65 = arith.truncf %41 : vector<128x32xf32> to vector<128x32xbf16>
    %c0_29 = arith.constant 0 : index
    %c0_30 = arith.constant 0 : index
    %66 = vector.load %arg10[%c0_29, %c0_30] : memref<32x96xbf16, #tpu.memory_space<vmem>>, vector<32x96xbf16>
    %cst_31 = arith.constant dense<0.000000e+00> : vector<128x96xf32>
    %67 = tpu.matmul %65, %66, %cst_31 {dimension_numbers = #tpu.dot_dimension_numbers<[1], [0], [0], [1], [0, 0, 1, 1], [], []>} : vector<128x32xbf16>, vector<32x96xbf16>, vector<128x96xf32> -> vector<128x96xf32>
    %68 = vector.extract_strided_slice %67 {offsets = [0, 0], sizes = [128, 8], strides = [1, 1]} : vector<128x96xf32> to vector<128x8xf32>
    %69 = vector.shape_cast %68 : vector<128x8xf32> to vector<8x16x8xf32>
    %70 = vector.extract_strided_slice %67 {offsets = [0, 32], sizes = [128, 8], strides = [1, 1]} : vector<128x96xf32> to vector<128x8xf32>
    %71 = vector.shape_cast %70 : vector<128x8xf32> to vector<8x16x8xf32>
    %72 = vector.extract_strided_slice %67 {offsets = [0, 64], sizes = [128, 8], strides = [1, 1]} : vector<128x96xf32> to vector<128x8xf32>
    %73 = vector.shape_cast %72 : vector<128x8xf32> to vector<8x16x8xf32>
    %74 = arith.truncf %69 : vector<8x16x8xf32> to vector<8x16x8xbf16>
    %75 = arith.truncf %71 : vector<8x16x8xf32> to vector<8x16x8xbf16>
    "tpu.trace_start"() <{level = 10 : i32, message = "bqd,bkd->bqk"}> : () -> ()
    %cst_32 = arith.constant dense<0.000000e+00> : vector<8x16x16xf32>
    %76 = tpu.matmul %74, %75, %cst_32 {dimension_numbers = #tpu.dot_dimension_numbers<[2], [2], [1], [1], [0, 0, 0, 1, 1, 1], [0], [0]>} : vector<8x16x8xbf16>, vector<8x16x8xbf16>, vector<8x16x16xf32> -> vector<8x16x16xf32>
    "tpu.trace_stop"() : () -> ()
    %cst_33 = arith.constant 0.353553385 : f32
    %77 = vector.broadcast %cst_33 : f32 to vector<8x16x16xf32>
    %78 = arith.mulf %76, %77 : vector<8x16x16xf32>
    %79 = arith.addf %78, %3 : vector<8x16x16xf32>
    %cst_34 = arith.constant dense<0xFF800000> : vector<8x16xf32>
    %80 = vector.multi_reduction <maximumf>, %79, %cst_34 [2] : vector<8x16x16xf32> to vector<8x16xf32>
    %81 = vector.shape_cast %80 : vector<8x16xf32> to vector<8x16x1xf32>
    %82 = vector.broadcast %81 : vector<8x16x1xf32> to vector<8x16x16xf32>
    %83 = arith.subf %79, %82 : vector<8x16x16xf32>
    %84 = math.exp %83 : vector<8x16x16xf32>
    %cst_35 = arith.constant dense<0.000000e+00> : vector<8x16xf32>
    %85 = vector.multi_reduction <add>, %84, %cst_35 [2] : vector<8x16x16xf32> to vector<8x16xf32>
    %86 = vector.shape_cast %85 : vector<8x16xf32> to vector<8x16x1xf32>
    %87 = tpu.reciprocal %86 {approx = true} : vector<8x16x1xf32> -> vector<8x16x1xf32>
    %88 = vector.broadcast %87 : vector<8x16x1xf32> to vector<8x16x16xf32>
    %89 = arith.mulf %84, %88 : vector<8x16x16xf32>
    %90 = vector.broadcast %53 : f32 to vector<8x16x16xf32>
    %91 = arith.mulf %90, %89 : vector<8x16x16xf32>
    %92 = arith.addf %91, %64 : vector<8x16x16xf32>
    %cst_36 = arith.constant dense<0xFF800000> : vector<8x16xf32>
    %93 = vector.multi_reduction <maximumf>, %92, %cst_36 [2] : vector<8x16x16xf32> to vector<8x16xf32>
    %94 = vector.shape_cast %93 : vector<8x16xf32> to vector<8x16x1xf32>
    %95 = vector.broadcast %94 : vector<8x16x1xf32> to vector<8x16x16xf32>
    %96 = arith.subf %92, %95 : vector<8x16x16xf32>
    %97 = math.exp %96 : vector<8x16x16xf32>
    %cst_37 = arith.constant dense<0.000000e+00> : vector<8x16xf32>
    %98 = vector.multi_reduction <add>, %97, %cst_37 [2] : vector<8x16x16xf32> to vector<8x16xf32>
    %99 = vector.shape_cast %98 : vector<8x16xf32> to vector<8x16x1xf32>
    %100 = tpu.reciprocal %99 {approx = true} : vector<8x16x1xf32> -> vector<8x16x1xf32>
    %101 = vector.broadcast %100 : vector<8x16x1xf32> to vector<8x16x16xf32>
    %102 = arith.mulf %97, %101 : vector<8x16x16xf32>
    %c0_38 = arith.constant 0 : index
    %c0_39 = arith.constant 0 : index
    %c0_40 = arith.constant 0 : index
    %103 = vector.load %arg18[%c0_38, %c0_39, %c0_40] : memref<8x16x64xf32, #tpu.memory_space<vmem>>, vector<8x16x16xf32>
    tpu.vector_store %arg18[%c0_38, %c0_39, %c0_40], %102 {strides = array<i32>} : memref<8x16x64xf32, #tpu.memory_space<vmem>>, vector<8x16x16xf32>,
    %104 = arith.truncf %102 : vector<8x16x16xf32> to vector<8x16x16xbf16>
    %105 = arith.truncf %73 : vector<8x16x8xf32> to vector<8x16x8xbf16>
    "tpu.trace_start"() <{level = 10 : i32, message = "bqk,bkd->bqd"}> : () -> ()
    %cst_41 = arith.constant dense<0.000000e+00> : vector<8x16x8xf32>
    %106 = tpu.matmul %104, %105, %cst_41 {dimension_numbers = #tpu.dot_dimension_numbers<[2], [1], [1], [2], [0, 0, 0, 1, 1, 2], [0], [0]>} : vector<8x16x16xbf16>, vector<8x16x8xbf16>, vector<8x16x8xf32> -> vector<8x16x8xf32>
    "tpu.trace_stop"() : () -> ()
    %107 = vector.shape_cast %106 : vector<8x16x8xf32> to vector<128x8xf32>
    %c0_42 = arith.constant 0 : index
    %c0_43 = arith.constant 0 : index
    %108 = vector.load %arg19[%c0_42, %c0_43] : memref<128x32xf32, #tpu.memory_space<vmem>>, vector<128x8xf32>
    tpu.vector_store %arg19[%c0_42, %c0_43], %107 {strides = array<i32>} : memref<128x32xf32, #tpu.memory_space<vmem>>, vector<128x8xf32>,
    %109 = vector.extract_strided_slice %67 {offsets = [0, 8], sizes = [128, 8], strides = [1, 1]} : vector<128x96xf32> to vector<128x8xf32>
    %110 = vector.shape_cast %109 : vector<128x8xf32> to vector<8x16x8xf32>
    %111 = vector.extract_strided_slice %67 {offsets = [0, 40], sizes = [128, 8], strides = [1, 1]} : vector<128x96xf32> to vector<128x8xf32>
    %112 = vector.shape_cast %111 : vector<128x8xf32> to vector<8x16x8xf32>
    %113 = vector.extract_strided_slice %67 {offsets = [0, 72], sizes = [128, 8], strides = [1, 1]} : vector<128x96xf32> to vector<128x8xf32>
    %114 = vector.shape_cast %113 : vector<128x8xf32> to vector<8x16x8xf32>
    %115 = arith.truncf %110 : vector<8x16x8xf32> to vector<8x16x8xbf16>
    %116 = arith.truncf %112 : vector<8x16x8xf32> to vector<8x16x8xbf16>
    "tpu.trace_start"() <{level = 10 : i32, message = "bqd,bkd->bqk"}> : () -> ()
    %cst_44 = arith.constant dense<0.000000e+00> : vector<8x16x16xf32>
    %117 = tpu.matmul %115, %116, %cst_44 {dimension_numbers = #tpu.dot_dimension_numbers<[2], [2], [1], [1], [0, 0, 0, 1, 1, 1], [0], [0]>} : vector<8x16x8xbf16>, vector<8x16x8xbf16>, vector<8x16x16xf32> -> vector<8x16x16xf32>
    "tpu.trace_stop"() : () -> ()
    %cst_45 = arith.constant 0.353553385 : f32
    %118 = vector.broadcast %cst_45 : f32 to vector<8x16x16xf32>
    %119 = arith.mulf %117, %118 : vector<8x16x16xf32>
    %120 = arith.addf %119, %3 : vector<8x16x16xf32>
    %cst_46 = arith.constant dense<0xFF800000> : vector<8x16xf32>
    %121 = vector.multi_reduction <maximumf>, %120, %cst_46 [2] : vector<8x16x16xf32> to vector<8x16xf32>
    %122 = vector.shape_cast %121 : vector<8x16xf32> to vector<8x16x1xf32>
    %123 = vector.broadcast %122 : vector<8x16x1xf32> to vector<8x16x16xf32>
    %124 = arith.subf %120, %123 : vector<8x16x16xf32>
    %125 = math.exp %124 : vector<8x16x16xf32>
    %cst_47 = arith.constant dense<0.000000e+00> : vector<8x16xf32>
    %126 = vector.multi_reduction <add>, %125, %cst_47 [2] : vector<8x16x16xf32> to vector<8x16xf32>
    %127 = vector.shape_cast %126 : vector<8x16xf32> to vector<8x16x1xf32>
    %128 = tpu.reciprocal %127 {approx = true} : vector<8x16x1xf32> -> vector<8x16x1xf32>
    %129 = vector.broadcast %128 : vector<8x16x1xf32> to vector<8x16x16xf32>
    %130 = arith.mulf %125, %129 : vector<8x16x16xf32>
    %131 = vector.broadcast %53 : f32 to vector<8x16x16xf32>
    %132 = arith.mulf %131, %130 : vector<8x16x16xf32>
    %133 = arith.addf %132, %64 : vector<8x16x16xf32>
    %cst_48 = arith.constant dense<0xFF800000> : vector<8x16xf32>
    %134 = vector.multi_reduction <maximumf>, %133, %cst_48 [2] : vector<8x16x16xf32> to vector<8x16xf32>
    %135 = vector.shape_cast %134 : vector<8x16xf32> to vector<8x16x1xf32>
    %136 = vector.broadcast %135 : vector<8x16x1xf32> to vector<8x16x16xf32>
    %137 = arith.subf %133, %136 : vector<8x16x16xf32>
    %138 = math.exp %137 : vector<8x16x16xf32>
    %cst_49 = arith.constant dense<0.000000e+00> : vector<8x16xf32>
    %139 = vector.multi_reduction <add>, %138, %cst_49 [2] : vector<8x16x16xf32> to vector<8x16xf32>
    %140 = vector.shape_cast %139 : vector<8x16xf32> to vector<8x16x1xf32>
    %141 = tpu.reciprocal %140 {approx = true} : vector<8x16x1xf32> -> vector<8x16x1xf32>
    %142 = vector.broadcast %141 : vector<8x16x1xf32> to vector<8x16x16xf32>
    %143 = arith.mulf %138, %142 : vector<8x16x16xf32>
    %c0_50 = arith.constant 0 : index
    %c0_51 = arith.constant 0 : index
    %c16 = arith.constant 16 : index
    %144 = vector.load %arg18[%c0_50, %c0_51, %c16] : memref<8x16x64xf32, #tpu.memory_space<vmem>>, vector<8x16x16xf32>
    tpu.vector_store %arg18[%c0_50, %c0_51, %c16], %143 {strides = array<i32>} : memref<8x16x64xf32, #tpu.memory_space<vmem>>, vector<8x16x16xf32>,
    %145 = arith.truncf %143 : vector<8x16x16xf32> to vector<8x16x16xbf16>
    %146 = arith.truncf %114 : vector<8x16x8xf32> to vector<8x16x8xbf16>
    "tpu.trace_start"() <{level = 10 : i32, message = "bqk,bkd->bqd"}> : () -> ()
    %cst_52 = arith.constant dense<0.000000e+00> : vector<8x16x8xf32>
    %147 = tpu.matmul %145, %146, %cst_52 {dimension_numbers = #tpu.dot_dimension_numbers<[2], [1], [1], [2], [0, 0, 0, 1, 1, 2], [0], [0]>} : vector<8x16x16xbf16>, vector<8x16x8xbf16>, vector<8x16x8xf32> -> vector<8x16x8xf32>
    "tpu.trace_stop"() : () -> ()
    %148 = vector.shape_cast %147 : vector<8x16x8xf32> to vector<128x8xf32>
    %c0_53 = arith.constant 0 : index
    %c8 = arith.constant 8 : index
    %149 = vector.load %arg19[%c0_53, %c8] : memref<128x32xf32, #tpu.memory_space<vmem>>, vector<128x8xf32>
    tpu.vector_store %arg19[%c0_53, %c8], %148 {strides = array<i32>} : memref<128x32xf32, #tpu.memory_space<vmem>>, vector<128x8xf32>,
    %150 = vector.extract_strided_slice %67 {offsets = [0, 16], sizes = [128, 8], strides = [1, 1]} : vector<128x96xf32> to vector<128x8xf32>
    %151 = vector.shape_cast %150 : vector<128x8xf32> to vector<8x16x8xf32>
    %152 = vector.extract_strided_slice %67 {offsets = [0, 48], sizes = [128, 8], strides = [1, 1]} : vector<128x96xf32> to vector<128x8xf32>
    %153 = vector.shape_cast %152 : vector<128x8xf32> to vector<8x16x8xf32>
    %154 = vector.extract_strided_slice %67 {offsets = [0, 80], sizes = [128, 8], strides = [1, 1]} : vector<128x96xf32> to vector<128x8xf32>
    %155 = vector.shape_cast %154 : vector<128x8xf32> to vector<8x16x8xf32>
    %156 = arith.truncf %151 : vector<8x16x8xf32> to vector<8x16x8xbf16>
    %157 = arith.truncf %153 : vector<8x16x8xf32> to vector<8x16x8xbf16>
    "tpu.trace_start"() <{level = 10 : i32, message = "bqd,bkd->bqk"}> : () -> ()
    %cst_54 = arith.constant dense<0.000000e+00> : vector<8x16x16xf32>
    %158 = tpu.matmul %156, %157, %cst_54 {dimension_numbers = #tpu.dot_dimension_numbers<[2], [2], [1], [1], [0, 0, 0, 1, 1, 1], [0], [0]>} : vector<8x16x8xbf16>, vector<8x16x8xbf16>, vector<8x16x16xf32> -> vector<8x16x16xf32>
    "tpu.trace_stop"() : () -> ()
    %cst_55 = arith.constant 0.353553385 : f32
    %159 = vector.broadcast %cst_55 : f32 to vector<8x16x16xf32>
    %160 = arith.mulf %158, %159 : vector<8x16x16xf32>
    %161 = arith.addf %160, %3 : vector<8x16x16xf32>
    %cst_56 = arith.constant dense<0xFF800000> : vector<8x16xf32>
    %162 = vector.multi_reduction <maximumf>, %161, %cst_56 [2] : vector<8x16x16xf32> to vector<8x16xf32>
    %163 = vector.shape_cast %162 : vector<8x16xf32> to vector<8x16x1xf32>
    %164 = vector.broadcast %163 : vector<8x16x1xf32> to vector<8x16x16xf32>
    %165 = arith.subf %161, %164 : vector<8x16x16xf32>
    %166 = math.exp %165 : vector<8x16x16xf32>
    %cst_57 = arith.constant dense<0.000000e+00> : vector<8x16xf32>
    %167 = vector.multi_reduction <add>, %166, %cst_57 [2] : vector<8x16x16xf32> to vector<8x16xf32>
    %168 = vector.shape_cast %167 : vector<8x16xf32> to vector<8x16x1xf32>
    %169 = tpu.reciprocal %168 {approx = true} : vector<8x16x1xf32> -> vector<8x16x1xf32>
    %170 = vector.broadcast %169 : vector<8x16x1xf32> to vector<8x16x16xf32>
    %171 = arith.mulf %166, %170 : vector<8x16x16xf32>
    %172 = vector.broadcast %53 : f32 to vector<8x16x16xf32>
    %173 = arith.mulf %172, %171 : vector<8x16x16xf32>
    %174 = arith.addf %173, %64 : vector<8x16x16xf32>
    %cst_58 = arith.constant dense<0xFF800000> : vector<8x16xf32>
    %175 = vector.multi_reduction <maximumf>, %174, %cst_58 [2] : vector<8x16x16xf32> to vector<8x16xf32>
    %176 = vector.shape_cast %175 : vector<8x16xf32> to vector<8x16x1xf32>
    %177 = vector.broadcast %176 : vector<8x16x1xf32> to vector<8x16x16xf32>
    %178 = arith.subf %174, %177 : vector<8x16x16xf32>
    %179 = math.exp %178 : vector<8x16x16xf32>
    %cst_59 = arith.constant dense<0.000000e+00> : vector<8x16xf32>
    %180 = vector.multi_reduction <add>, %179, %cst_59 [2] : vector<8x16x16xf32> to vector<8x16xf32>
    %181 = vector.shape_cast %180 : vector<8x16xf32> to vector<8x16x1xf32>
    %182 = tpu.reciprocal %181 {approx = true} : vector<8x16x1xf32> -> vector<8x16x1xf32>
    %183 = vector.broadcast %182 : vector<8x16x1xf32> to vector<8x16x16xf32>
    %184 = arith.mulf %179, %183 : vector<8x16x16xf32>
    %c0_60 = arith.constant 0 : index
    %c0_61 = arith.constant 0 : index
    %c32 = arith.constant 32 : index
    %185 = vector.load %arg18[%c0_60, %c0_61, %c32] : memref<8x16x64xf32, #tpu.memory_space<vmem>>, vector<8x16x16xf32>
    tpu.vector_store %arg18[%c0_60, %c0_61, %c32], %184 {strides = array<i32>} : memref<8x16x64xf32, #tpu.memory_space<vmem>>, vector<8x16x16xf32>,
    %186 = arith.truncf %184 : vector<8x16x16xf32> to vector<8x16x16xbf16>
    %187 = arith.truncf %155 : vector<8x16x8xf32> to vector<8x16x8xbf16>
    "tpu.trace_start"() <{level = 10 : i32, message = "bqk,bkd->bqd"}> : () -> ()
    %cst_62 = arith.constant dense<0.000000e+00> : vector<8x16x8xf32>
    %188 = tpu.matmul %186, %187, %cst_62 {dimension_numbers = #tpu.dot_dimension_numbers<[2], [1], [1], [2], [0, 0, 0, 1, 1, 2], [0], [0]>} : vector<8x16x16xbf16>, vector<8x16x8xbf16>, vector<8x16x8xf32> -> vector<8x16x8xf32>
    "tpu.trace_stop"() : () -> ()
    %189 = vector.shape_cast %188 : vector<8x16x8xf32> to vector<128x8xf32>
    %c0_63 = arith.constant 0 : index
    %c16_64 = arith.constant 16 : index
    %190 = vector.load %arg19[%c0_63, %c16_64] : memref<128x32xf32, #tpu.memory_space<vmem>>, vector<128x8xf32>
    tpu.vector_store %arg19[%c0_63, %c16_64], %189 {strides = array<i32>} : memref<128x32xf32, #tpu.memory_space<vmem>>, vector<128x8xf32>,
    %191 = vector.extract_strided_slice %67 {offsets = [0, 24], sizes = [128, 8], strides = [1, 1]} : vector<128x96xf32> to vector<128x8xf32>
    %192 = vector.shape_cast %191 : vector<128x8xf32> to vector<8x16x8xf32>
    %193 = vector.extract_strided_slice %67 {offsets = [0, 56], sizes = [128, 8], strides = [1, 1]} : vector<128x96xf32> to vector<128x8xf32>
    %194 = vector.shape_cast %193 : vector<128x8xf32> to vector<8x16x8xf32>
    %195 = vector.extract_strided_slice %67 {offsets = [0, 88], sizes = [128, 8], strides = [1, 1]} : vector<128x96xf32> to vector<128x8xf32>
    %196 = vector.shape_cast %195 : vector<128x8xf32> to vector<8x16x8xf32>
    %197 = arith.truncf %192 : vector<8x16x8xf32> to vector<8x16x8xbf16>
    %198 = arith.truncf %194 : vector<8x16x8xf32> to vector<8x16x8xbf16>
    "tpu.trace_start"() <{level = 10 : i32, message = "bqd,bkd->bqk"}> : () -> ()
    %cst_65 = arith.constant dense<0.000000e+00> : vector<8x16x16xf32>
    %199 = tpu.matmul %197, %198, %cst_65 {dimension_numbers = #tpu.dot_dimension_numbers<[2], [2], [1], [1], [0, 0, 0, 1, 1, 1], [0], [0]>} : vector<8x16x8xbf16>, vector<8x16x8xbf16>, vector<8x16x16xf32> -> vector<8x16x16xf32>
    "tpu.trace_stop"() : () -> ()
    %cst_66 = arith.constant 0.353553385 : f32
    %200 = vector.broadcast %cst_66 : f32 to vector<8x16x16xf32>
    %201 = arith.mulf %199, %200 : vector<8x16x16xf32>
    %202 = arith.addf %201, %3 : vector<8x16x16xf32>
    %cst_67 = arith.constant dense<0xFF800000> : vector<8x16xf32>
    %203 = vector.multi_reduction <maximumf>, %202, %cst_67 [2] : vector<8x16x16xf32> to vector<8x16xf32>
    %204 = vector.shape_cast %203 : vector<8x16xf32> to vector<8x16x1xf32>
    %205 = vector.broadcast %204 : vector<8x16x1xf32> to vector<8x16x16xf32>
    %206 = arith.subf %202, %205 : vector<8x16x16xf32>
    %207 = math.exp %206 : vector<8x16x16xf32>
    %cst_68 = arith.constant dense<0.000000e+00> : vector<8x16xf32>
    %208 = vector.multi_reduction <add>, %207, %cst_68 [2] : vector<8x16x16xf32> to vector<8x16xf32>
    %209 = vector.shape_cast %208 : vector<8x16xf32> to vector<8x16x1xf32>
    %210 = tpu.reciprocal %209 {approx = true} : vector<8x16x1xf32> -> vector<8x16x1xf32>
    %211 = vector.broadcast %210 : vector<8x16x1xf32> to vector<8x16x16xf32>
    %212 = arith.mulf %207, %211 : vector<8x16x16xf32>
    %213 = vector.broadcast %53 : f32 to vector<8x16x16xf32>
    %214 = arith.mulf %213, %212 : vector<8x16x16xf32>
    %215 = arith.addf %214, %64 : vector<8x16x16xf32>
    %cst_69 = arith.constant dense<0xFF800000> : vector<8x16xf32>
    %216 = vector.multi_reduction <maximumf>, %215, %cst_69 [2] : vector<8x16x16xf32> to vector<8x16xf32>
    %217 = vector.shape_cast %216 : vector<8x16xf32> to vector<8x16x1xf32>
    %218 = vector.broadcast %217 : vector<8x16x1xf32> to vector<8x16x16xf32>
    %219 = arith.subf %215, %218 : vector<8x16x16xf32>
    %220 = math.exp %219 : vector<8x16x16xf32>
    %cst_70 = arith.constant dense<0.000000e+00> : vector<8x16xf32>
    %221 = vector.multi_reduction <add>, %220, %cst_70 [2] : vector<8x16x16xf32> to vector<8x16xf32>
    %222 = vector.shape_cast %221 : vector<8x16xf32> to vector<8x16x1xf32>
    %223 = tpu.reciprocal %222 {approx = true} : vector<8x16x1xf32> -> vector<8x16x1xf32>
    %224 = vector.broadcast %223 : vector<8x16x1xf32> to vector<8x16x16xf32>
    %225 = arith.mulf %220, %224 : vector<8x16x16xf32>
    %c0_71 = arith.constant 0 : index
    %c0_72 = arith.constant 0 : index
    %c48 = arith.constant 48 : index
    %226 = vector.load %arg18[%c0_71, %c0_72, %c48] : memref<8x16x64xf32, #tpu.memory_space<vmem>>, vector<8x16x16xf32>
    tpu.vector_store %arg18[%c0_71, %c0_72, %c48], %225 {strides = array<i32>} : memref<8x16x64xf32, #tpu.memory_space<vmem>>, vector<8x16x16xf32>,
    %227 = arith.truncf %225 : vector<8x16x16xf32> to vector<8x16x16xbf16>
    %228 = arith.truncf %196 : vector<8x16x8xf32> to vector<8x16x8xbf16>
    "tpu.trace_start"() <{level = 10 : i32, message = "bqk,bkd->bqd"}> : () -> ()
    %cst_73 = arith.constant dense<0.000000e+00> : vector<8x16x8xf32>
    %229 = tpu.matmul %227, %228, %cst_73 {dimension_numbers = #tpu.dot_dimension_numbers<[2], [1], [1], [2], [0, 0, 0, 1, 1, 2], [0], [0]>} : vector<8x16x16xbf16>, vector<8x16x8xbf16>, vector<8x16x8xf32> -> vector<8x16x8xf32>
    "tpu.trace_stop"() : () -> ()
    %230 = vector.shape_cast %229 : vector<8x16x8xf32> to vector<128x8xf32>
    %c0_74 = arith.constant 0 : index
    %c24 = arith.constant 24 : index
    %231 = vector.load %arg19[%c0_74, %c24] : memref<128x32xf32, #tpu.memory_space<vmem>>, vector<128x8xf32>
    tpu.vector_store %arg19[%c0_74, %c24], %230 {strides = array<i32>} : memref<128x32xf32, #tpu.memory_space<vmem>>, vector<128x8xf32>,
    %c0_75 = arith.constant 0 : index
    %c0_76 = arith.constant 0 : index
    %232 = vector.load %arg19[%c0_75, %c0_76] : memref<128x32xf32, #tpu.memory_space<vmem>>, vector<128x32xf32>
    %233 = arith.truncf %232 : vector<128x32xf32> to vector<128x32xbf16>
    %c0_77 = arith.constant 0 : index
    %c0_78 = arith.constant 0 : index
    %234 = vector.load %arg11[%c0_77, %c0_78] : memref<32x32xbf16, #tpu.memory_space<vmem>>, vector<32x32xbf16>
    %cst_79 = arith.constant dense<0.000000e+00> : vector<128x32xf32>
    %235 = tpu.matmul %233, %234, %cst_79 {dimension_numbers = #tpu.dot_dimension_numbers<[1], [0], [0], [1], [0, 0, 1, 1], [], []>} : vector<128x32xbf16>, vector<32x32xbf16>, vector<128x32xf32> -> vector<128x32xf32>
    %236 = arith.addf %17, %235 : vector<128x32xf32>
    %c0_80 = arith.constant 0 : index
    %c0_81 = arith.constant 0 : index
    %237 = vector.load %arg8[%c0_80, %c0_81] : memref<1x32xf32, #tpu.memory_space<vmem>>, vector<1x32xf32>
    %c0_82 = arith.constant 0 : index
    %c0_83 = arith.constant 0 : index
    %238 = vector.load %arg9[%c0_82, %c0_83] : memref<1x32xf32, #tpu.memory_space<vmem>>, vector<1x32xf32>
    %cst_84 = arith.constant dense<0.000000e+00> : vector<128xf32>
    %239 = vector.multi_reduction <add>, %236, %cst_84 [1] : vector<128x32xf32> to vector<128xf32>
    %240 = vector.shape_cast %239 : vector<128xf32> to vector<128x1xf32>
    %cst_85 = arith.constant 3.200000e+01 : f32
    %241 = vector.broadcast %cst_85 : f32 to vector<128x1xf32>
    %242 = arith.divf %240, %241 : vector<128x1xf32>
    %243 = vector.broadcast %242 : vector<128x1xf32> to vector<128x32xf32>
    %244 = arith.subf %236, %243 : vector<128x32xf32>
    %245 = arith.mulf %244, %244 : vector<128x32xf32>
    %cst_86 = arith.constant dense<0.000000e+00> : vector<128xf32>
    %246 = vector.multi_reduction <add>, %245, %cst_86 [1] : vector<128x32xf32> to vector<128xf32>
    %247 = vector.shape_cast %246 : vector<128xf32> to vector<128x1xf32>
    %cst_87 = arith.constant 0.0322580636 : f32
    %248 = vector.broadcast %cst_87 : f32 to vector<128x1xf32>
    %249 = arith.mulf %247, %248 : vector<128x1xf32>
    %250 = vector.broadcast %242 : vector<128x1xf32> to vector<128x32xf32>
    %251 = arith.subf %236, %250 : vector<128x32xf32>
    %252 = vector.broadcast %237 : vector<1x32xf32> to vector<128x32xf32>
    %253 = arith.mulf %252, %251 : vector<128x32xf32>
    %254 = math.sqrt %249 : vector<128x1xf32>
    %cst_88 = arith.constant 9.99999997E-7 : f32
    %255 = vector.broadcast %cst_88 : f32 to vector<128x1xf32>
    %256 = arith.addf %254, %255 : vector<128x1xf32>
    %257 = vector.broadcast %256 : vector<128x1xf32> to vector<128x32xf32>
    %258 = arith.divf %253, %257 : vector<128x32xf32>
    %259 = vector.broadcast %238 : vector<1x32xf32> to vector<128x32xf32>
    %260 = arith.addf %258, %259 : vector<128x32xf32>
    %261 = arith.truncf %260 : vector<128x32xf32> to vector<128x32xbf16>
    %c0_89 = arith.constant 0 : index
    %c0_90 = arith.constant 0 : index
    %262 = vector.load %arg12[%c0_89, %c0_90] : memref<32x64xbf16, #tpu.memory_space<vmem>>, vector<32x64xbf16>
    %cst_91 = arith.constant dense<0.000000e+00> : vector<128x64xf32>
    %263 = tpu.matmul %261, %262, %cst_91 {dimension_numbers = #tpu.dot_dimension_numbers<[1], [0], [0], [1], [0, 0, 1, 1], [], []>} : vector<128x32xbf16>, vector<32x64xbf16>, vector<128x64xf32> -> vector<128x64xf32>
    %cst_92 = arith.constant 0.000000e+00 : f32
    %264 = vector.broadcast %cst_92 : f32 to vector<128x64xf32>
    %265 = arith.maximumf %263, %264 : vector<128x64xf32>
    %266 = arith.truncf %265 : vector<128x64xf32> to vector<128x64xbf16>
    %c0_93 = arith.constant 0 : index
    %c0_94 = arith.constant 0 : index
    %267 = vector.load %arg13[%c0_93, %c0_94] : memref<64x32xbf16, #tpu.memory_space<vmem>>, vector<64x32xbf16>
    %cst_95 = arith.constant dense<0.000000e+00> : vector<128x32xf32>
    %268 = tpu.matmul %266, %267, %cst_95 {dimension_numbers = #tpu.dot_dimension_numbers<[1], [0], [0], [1], [0, 0, 1, 1], [], []>} : vector<128x64xbf16>, vector<64x32xbf16>, vector<128x32xf32> -> vector<128x32xf32>
    %269 = arith.addf %236, %268 : vector<128x32xf32>
    %c0_96 = arith.constant 0 : index
    %c0_97 = arith.constant 0 : index
    %270 = vector.load %arg14[%c0_96, %c0_97] : memref<1x32xf32, #tpu.memory_space<vmem>>, vector<1x32xf32>
    %c0_98 = arith.constant 0 : index
    %c0_99 = arith.constant 0 : index
    %271 = vector.load %arg15[%c0_98, %c0_99] : memref<1x32xf32, #tpu.memory_space<vmem>>, vector<1x32xf32>
    %cst_100 = arith.constant dense<0.000000e+00> : vector<128xf32>
    %272 = vector.multi_reduction <add>, %269, %cst_100 [1] : vector<128x32xf32> to vector<128xf32>
    %273 = vector.shape_cast %272 : vector<128xf32> to vector<128x1xf32>
    %cst_101 = arith.constant 3.200000e+01 : f32
    %274 = vector.broadcast %cst_101 : f32 to vector<128x1xf32>
    %275 = arith.divf %273, %274 : vector<128x1xf32>
    %276 = vector.broadcast %275 : vector<128x1xf32> to vector<128x32xf32>
    %277 = arith.subf %269, %276 : vector<128x32xf32>
    %278 = arith.mulf %277, %277 : vector<128x32xf32>
    %cst_102 = arith.constant dense<0.000000e+00> : vector<128xf32>
    %279 = vector.multi_reduction <add>, %278, %cst_102 [1] : vector<128x32xf32> to vector<128xf32>
    %280 = vector.shape_cast %279 : vector<128xf32> to vector<128x1xf32>
    %cst_103 = arith.constant 0.0322580636 : f32
    %281 = vector.broadcast %cst_103 : f32 to vector<128x1xf32>
    %282 = arith.mulf %280, %281 : vector<128x1xf32>
    %283 = vector.broadcast %275 : vector<128x1xf32> to vector<128x32xf32>
    %284 = arith.subf %269, %283 : vector<128x32xf32>
    %285 = vector.broadcast %270 : vector<1x32xf32> to vector<128x32xf32>
    %286 = arith.mulf %285, %284 : vector<128x32xf32>
    %287 = math.sqrt %282 : vector<128x1xf32>
    %cst_104 = arith.constant 9.99999997E-7 : f32
    %288 = vector.broadcast %cst_104 : f32 to vector<128x1xf32>
    %289 = arith.addf %287, %288 : vector<128x1xf32>
    %290 = vector.broadcast %289 : vector<128x1xf32> to vector<128x32xf32>
    %291 = arith.divf %286, %290 : vector<128x32xf32>
    %292 = vector.broadcast %271 : vector<1x32xf32> to vector<128x32xf32>
    %293 = arith.addf %291, %292 : vector<128x32xf32>
    %c0_105 = arith.constant 0 : index
    %c0_106 = arith.constant 0 : index
    %294 = vector.load %arg17[%c0_105, %c0_106] : memref<128x32xf32, #tpu.memory_space<vmem>>, vector<128x32xf32>
    tpu.vector_store %arg17[%c0_105, %c0_106], %293 {strides = array<i32>} : memref<128x32xf32, #tpu.memory_space<vmem>>, vector<128x32xf32>,
    return
  }
  func.func @transform_0(%arg0: i32) -> (i32, i32) {
    %c0_i32 = arith.constant 0 : i32
    %c0_i32_0 = arith.constant 0 : i32
    return %arg0, %c0_i32 : i32, i32
  }
  func.func @transform_1(%arg0: i32) -> (i32, i32, i32) {
    %c0_i32 = arith.constant 0 : i32
    %c0_i32_0 = arith.constant 0 : i32
    %c0_i32_1 = arith.constant 0 : i32
    return %arg0, %c0_i32, %c0_i32_0 : i32, i32, i32
  }
  func.func @transform_2(%arg0: i32) -> (i32, i32, i32) {
    %c0_i32 = arith.constant 0 : i32
    %c0_i32_0 = arith.constant 0 : i32
    %c0_i32_1 = arith.constant 0 : i32
    return %arg0, %c0_i32, %c0_i32_0 : i32, i32, i32
  }
  func.func @transform_3(%arg0: i32) -> (i32, i32, i32) {
    %c0_i32 = arith.constant 0 : i32
    %c0_i32_0 = arith.constant 0 : i32
    %c0_i32_1 = arith.constant 0 : i32
    return %arg0, %c0_i32, %c0_i32_0 : i32, i32, i32
  }
  func.func @transform_4(%arg0: i32) -> (i32, i32) {
    %c0_i32 = arith.constant 0 : i32
    %c0_i32_0 = arith.constant 0 : i32
    %c0_i32_1 = arith.constant 0 : i32
    return %c0_i32, %c0_i32_0 : i32, i32
  }
  func.func @transform_5(%arg0: i32) -> (i32, i32) {
    %c0_i32 = arith.constant 0 : i32
    %c0_i32_0 = arith.constant 0 : i32
    %c0_i32_1 = arith.constant 0 : i32
    return %c0_i32, %c0_i32_0 : i32, i32
  }
  func.func @transform_6(%arg0: i32) -> (i32, i32) {
    %c0_i32 = arith.constant 0 : i32
    %c0_i32_0 = arith.constant 0 : i32
    %c0_i32_1 = arith.constant 0 : i32
    return %c0_i32, %c0_i32_0 : i32, i32
  }
  func.func @transform_7(%arg0: i32) -> (i32, i32) {
    %c0_i32 = arith.constant 0 : i32
    %c0_i32_0 = arith.constant 0 : i32
    %c0_i32_1 = arith.constant 0 : i32
    return %c0_i32, %c0_i32_0 : i32, i32
  }
  func.func @transform_8(%arg0: i32) -> (i32, i32) {
    %c0_i32 = arith.constant 0 : i32
    %c0_i32_0 = arith.constant 0 : i32
    %c0_i32_1 = arith.constant 0 : i32
    return %c0_i32, %c0_i32_0 : i32, i32
  }
  func.func @transform_9(%arg0: i32) -> (i32, i32) {
    %c0_i32 = arith.constant 0 : i32
    %c0_i32_0 = arith.constant 0 : i32
    %c0_i32_1 = arith.constant 0 : i32
    return %c0_i32, %c0_i32_0 : i32, i32
  }
  func.func @transform_10(%arg0: i32) -> (i32, i32) {
    %c0_i32 = arith.constant 0 : i32
    %c0_i32_0 = arith.constant 0 : i32
    %c0_i32_1 = arith.constant 0 : i32
    return %c0_i32, %c0_i32_0 : i32, i32
  }
  func.func @transform_11(%arg0: i32) -> (i32, i32) {
    %c0_i32 = arith.constant 0 : i32
    %c0_i32_0 = arith.constant 0 : i32
    %c0_i32_1 = arith.constant 0 : i32
    return %c0_i32, %c0_i32_0 : i32, i32
  }
  func.func @transform_12(%arg0: i32) -> (i32, i32) {
    %c0_i32 = arith.constant 0 : i32
    %c0_i32_0 = arith.constant 0 : i32
    %c0_i32_1 = arith.constant 0 : i32
    return %c0_i32, %c0_i32_0 : i32, i32
  }
  func.func @transform_13(%arg0: i32) -> (i32, i32) {
    %c0_i32 = arith.constant 0 : i32
    %c0_i32_0 = arith.constant 0 : i32
    %c0_i32_1 = arith.constant 0 : i32
    return %c0_i32, %c0_i32_0 : i32, i32
  }
  func.func @transform_14(%arg0: i32) -> (i32, i32) {
    %c0_i32 = arith.constant 0 : i32
    %c0_i32_0 = arith.constant 0 : i32
    %c0_i32_1 = arith.constant 0 : i32
    return %c0_i32, %c0_i32_0 : i32, i32
  }
  func.func @transform_15(%arg0: i32) -> i32 {
    %c0_i32 = arith.constant 0 : i32
    %c0_i32_0 = arith.constant 0 : i32
    return %c0_i32 : i32
  }
  func.func @transform_16(%arg0: i32) -> (i32, i32) {
    %c0_i32 = arith.constant 0 : i32
    %c0_i32_0 = arith.constant 0 : i32
    return %arg0, %c0_i32 : i32, i32
  }
  func.func @transform_17(%arg0: i32) -> (i32, i32, i32) {
    %c0_i32 = arith.constant 0 : i32
    %c0_i32_0 = arith.constant 0 : i32
    %c0_i32_1 = arith.constant 0 : i32
    return %arg0, %c0_i32, %c0_i32_0 : i32, i32, i32
  }
}

</mosaic_0001>

<llo_original>
// kernel: tpu_custom_call.1
$region0: #{tpu_custom_call.1}
  #allocation0 [shape = 'u32[]', space=smem, size = 0x4, offset = 0x4, fixed_abs, tag = 'smem constant byte address 0x4 - core index']
  #allocation1 [shape = 'u32[144,128]{1,0:T(1,128)}', space=vmem, size = 0x12000, scoped, tag = 'internal scratch']
  #allocation2 [shape = 'f32[128,32]{1,0:T(8,128)}', space=vmem, size = 0x10000, scoped, tag = 'scratch operand']
  %s0 = inlined_call_operand.vmem [shape: f32[256,16], index: 0, kind: input, shape index: {}]
  %s1 = inlined_call_operand.vmem [shape: f32[16,16,16], index: 1, kind: input, shape index: {}]
  %s2 = inlined_call_operand.hbm [shape: f32[16,16,16], index: 2, kind: input, shape index: {}]
  %s3 = inlined_call_operand.hbm [shape: f32[16,16,16], index: 3, kind: input, shape index: {}]
  %s4 = inlined_call_operand.vmem [shape: f32[16,32], index: 4, kind: input, shape index: {}]
  %s5 = inlined_call_operand.vmem [shape: bf16[16,32], index: 5, kind: input, shape index: {}]
  %s6 = inlined_call_operand.vmem [shape: f32[1,32], index: 6, kind: input, shape index: {}]
  %s7 = inlined_call_operand.vmem [shape: f32[1,32], index: 7, kind: input, shape index: {}]
  %s8 = inlined_call_operand.vmem [shape: f32[1,32], index: 8, kind: input, shape index: {}]
  %s9 = inlined_call_operand.vmem [shape: bf16[32,96], index: 9, kind: input, shape index: {}]
  %s10 = inlined_call_operand.vmem [shape: bf16[32,32], index: 10, kind: input, shape index: {}]
  %s11 = inlined_call_operand.vmem [shape: bf16[32,64], index: 11, kind: input, shape index: {}]
  %s12 = inlined_call_operand.vmem [shape: bf16[64,32], index: 12, kind: input, shape index: {}]
  %s13 = inlined_call_operand.vmem [shape: f32[1,32], index: 13, kind: input, shape index: {}]
  %s14 = inlined_call_operand.vmem [shape: f32[1,32], index: 14, kind: input, shape index: {}]
  %s15 = inlined_call_operand.vmem [shape: f32[4], index: 15, kind: input, shape index: {}]
  %s16 = inlined_call_operand.vmem [shape: f32[256,32], index: 16, kind: output, shape index: {0}]
  %s17 = inlined_call_operand.hbm [shape: f32[16,16,64], index: 17, kind: output, shape index: {1}]
  %18 = xla_tuple %s16, %s17
  %s19 = sld [smem:[#allocation0]]
  $region117: #{tpu_custom_call.1} parent=0
    _
  %s21 = ssub.s32 1, %s19
  %s22 = scalar_select 0, %s21, %s19
  $region1: #{tpu_custom_call.1} parent=0
    #allocation3 [shape = 'u8[131072]{0}', space=vmem, size = 0x20000, scoped, tag = 'input window, operand 2']
    #allocation4 [shape = 's32[2]{0}', space=sflag, size = 0x8, scoped, tag = 'scoped memory for tpu_custom_call.1']
    #allocation5 [shape = 's32[2]{0}', space=sflag, size = 0x8, scoped, tag = 'scoped memory for tpu_custom_call.1']
    #allocation6 [shape = 's32[2]{0}', space=sflag, size = 0x8, scoped, tag = 'scoped memory for tpu_custom_call.1']
    #allocation7 [shape = 'u8[131072]{0}', space=vmem, size = 0x20000, scoped, tag = 'input window, operand 3']
    #allocation8 [shape = 's32[2]{0}', space=sflag, size = 0x8, scoped, tag = 'scoped memory for tpu_custom_call.1']
    #allocation9 [shape = 'u8[512]{0}', space=smem, size = 0x200, scoped, tag = 'input window, operand 15, single buffered']
    #allocation10 [shape = 'u8[131072]{0}', space=vmem, size = 0x20000, scoped, tag = 'output window, operand 1']
    %23 = vsyncpa [#allocation4], 0
    %s24 = scalar_lea.sflag [#allocation4], 1
    %25 = vsyncpa %s24, 0
    %26 = vsyncpa [#allocation8], 0
    %s27 = scalar_lea.sflag [#allocation8], 1
    %28 = vsyncpa %s27, 0
    %29 = vsyncpa [#allocation6], 0
    %30 = vsyncpa [#allocation5], 0
    %s31 = scalar_lea.sflag [#allocation5], 1
    %32 = vsyncpa %s31, 0
    loop: start=0, step=1, limit=4
    $region2: #{tpu_custom_call.1} parent=1 // loop_pre_header
      _
    $region3: #{tpu_custom_call.1} parent=1 // loop_header
      %s34 = sphi 0, %s38
      %p35 = scmp.ge.s32.totalorder %s34, 4
      %s44 = sphi 0, %s46
      %s47 = sphi 0, %s44
      %s48 = sphi 0, %s47
      %s64 = sphi 0, %s48
      %s70 = sphi 0, %s72
      %s73 = sphi 0, %s70
      %s74 = sphi 0, %s73
      %s90 = sphi 0, %s74
      %s96 = sphi 0, %s98
      %s99 = sphi 0, %s96
      %s100 = sphi 0, %s99
      %s116 = sphi 0, %s100
      %s122 = sphi 0, %s124
      %s125 = sphi 0, %s122
      %s126 = sphi 0, %s125
      %s142 = sphi 0, %s126
      %s146 = sphi 0, %s146
      %s148 = sphi 0, %s146
      %s149 = sphi 0, %s148
      %s163 = sphi 0, %s149
      %s167 = sphi 0, %s167
      %s169 = sphi 0, %s167
      %s170 = sphi 0, %s169
      %s184 = sphi 0, %s170
      %s188 = sphi 0, %s188
      %s190 = sphi 0, %s188
      %s191 = sphi 0, %s190
      %s205 = sphi 0, %s191
      %s209 = sphi 0, %s209
      %s211 = sphi 0, %s209
      %s212 = sphi 0, %s211
      %s226 = sphi 0, %s212
      %s230 = sphi 0, %s230
      %s232 = sphi 0, %s230
      %s233 = sphi 0, %s232
      %s247 = sphi 0, %s233
      %s251 = sphi 0, %s251
      %s253 = sphi 0, %s251
      %s254 = sphi 0, %s253
      %s268 = sphi 0, %s254
      %s272 = sphi 0, %s272
      %s274 = sphi 0, %s272
      %s275 = sphi 0, %s274
      %s289 = sphi 0, %s275
      %s293 = sphi 0, %s293
      %s295 = sphi 0, %s293
      %s296 = sphi 0, %s295
      %s310 = sphi 0, %s296
      %s314 = sphi 0, %s314
      %s316 = sphi 0, %s314
      %s317 = sphi 0, %s316
      %s331 = sphi 0, %s317
      %s335 = sphi 0, %s335
      %s337 = sphi 0, %s335
      %s338 = sphi 0, %s337
      %s352 = sphi 0, %s338
      %s356 = sphi 0, %s356
      %s358 = sphi 0, %s356
      %s359 = sphi 0, %s358
      %s373 = sphi 0, %s359
      %s377 = sphi 0, %s377
      %s379 = sphi 0, %s377
      %s380 = sphi 0, %s379
      %s394 = sphi 0, %s380
      %s400 = sphi 0, %s402
      %s403 = sphi 0, %s400
      %s404 = sphi 0, %s403
      %s420 = sphi 0, %s404
      %s426 = sphi 0, %s428
      %s429 = sphi 0, %s426
      %s430 = sphi 0, %s429
      %s446 = sphi 0, %s430
    $region4: #{tpu_custom_call.1} parent=1 // loop_header_branch
      %37 = sbr.rel (%p35) target = $region8
    $region5: #{tpu_custom_call.1} parent=1 // loop_body
      %s39 = ssub.s32 %s34, 1
      %s40 = ssub.s32 %s34, 2
      %s41 = sadd.s32 %s34, 1
      %s42 = ssub.s32 %s34, %s41
      %p43 = scmp.eq.s32.totalorder %s42, 0
      %s45 = sadd.s32 %s44, 1
      %s46 = scalar_select %p43, %s44, %s45
      %p49 = pneg %p43
      %p50 = scmp.eq.s32.totalorder %s34, 1
      %p51 = por %p49, %p50
      %p52 = scmp.ne.s32.totalorder %s44, %s47
      %p53 = scmp.eq.s32.totalorder %s34, 0
      %p54 = por %p52, %p53
      %p55 = scmp.ne.s32.totalorder %s44, %s47
      %p56 = scmp.eq.s32.totalorder %s39, 1
      %p57 = por %p55, %p56
      %p58 = scmp.ne.s32.totalorder %s47, %s48
      %p59 = scmp.eq.s32.totalorder %s39, 0
      %p60 = por %p58, %p59
      %p61 = scmp.ne.s32.totalorder %s47, %s48
      %p62 = scmp.eq.s32.totalorder %s40, 1
      %p63 = por %p61, %p62
      %p65 = scmp.ne.s32.totalorder %s48, %s64
      %p66 = scmp.eq.s32.totalorder %s40, 0
      %p67 = por %p65, %p66
      %s68 = ssub.s32 %s34, %s41
      %p69 = scmp.eq.s32.totalorder %s68, 0
      %s71 = sadd.s32 %s70, 1
      %s72 = scalar_select %p69, %s70, %s71
      %p75 = pneg %p69
      %p76 = scmp.eq.s32.totalorder %s34, 1
      %p77 = por %p75, %p76
      %p78 = scmp.ne.s32.totalorder %s70, %s73
      %p79 = scmp.eq.s32.totalorder %s34, 0
      %p80 = por %p78, %p79
      %p81 = scmp.ne.s32.totalorder %s70, %s73
      %p82 = scmp.eq.s32.totalorder %s39, 1
      %p83 = por %p81, %p82
      %p84 = scmp.ne.s32.totalorder %s73, %s74
      %p85 = scmp.eq.s32.totalorder %s39, 0
      %p86 = por %p84, %p85
      %p87 = scmp.ne.s32.totalorder %s73, %s74
      %p88 = scmp.eq.s32.totalorder %s40, 1
      %p89 = por %p87, %p88
      %p91 = scmp.ne.s32.totalorder %s74, %s90
      %p92 = scmp.eq.s32.totalorder %s40, 0
      %p93 = por %p91, %p92
      %s94 = ssub.s32 %s34, %s41
      %p95 = scmp.eq.s32.totalorder %s94, 0
      %s97 = sadd.s32 %s96, 1
      %s98 = scalar_select %p95, %s96, %s97
      %p101 = pneg %p95
      %p102 = scmp.eq.s32.totalorder %s34, 1
      %p103 = por %p101, %p102
      %p104 = scmp.ne.s32.totalorder %s96, %s99
      %p105 = scmp.eq.s32.totalorder %s34, 0
      %p106 = por %p104, %p105
      %p107 = scmp.ne.s32.totalorder %s96, %s99
      %p108 = scmp.eq.s32.totalorder %s39, 1
      %p109 = por %p107, %p108
      %p110 = scmp.ne.s32.totalorder %s99, %s100
      %p111 = scmp.eq.s32.totalorder %s39, 0
      %p112 = por %p110, %p111
      %p113 = scmp.ne.s32.totalorder %s99, %s100
      %p114 = scmp.eq.s32.totalorder %s40, 1
      %p115 = por %p113, %p114
      %p117 = scmp.ne.s32.totalorder %s100, %s116
      %p118 = scmp.eq.s32.totalorder %s40, 0
      %p119 = por %p117, %p118
      %s120 = ssub.s32 %s34, %s41
      %p121 = scmp.eq.s32.totalorder %s120, 0
      %s123 = sadd.s32 %s122, 1
      %s124 = scalar_select %p121, %s122, %s123
      %p127 = pneg %p121
      %p128 = scmp.eq.s32.totalorder %s34, 1
      %p129 = por %p127, %p128
      %p130 = scmp.ne.s32.totalorder %s122, %s125
      %p131 = scmp.eq.s32.totalorder %s34, 0
      %p132 = por %p130, %p131
      %p133 = scmp.ne.s32.totalorder %s122, %s125
      %p134 = scmp.eq.s32.totalorder %s39, 1
      %p135 = por %p133, %p134
      %p136 = scmp.ne.s32.totalorder %s125, %s126
      %p137 = scmp.eq.s32.totalorder %s39, 0
      %p138 = por %p136, %p137
      %p139 = scmp.ne.s32.totalorder %s125, %s126
      %p140 = scmp.eq.s32.totalorder %s40, 1
      %p141 = por %p139, %p140
      %p143 = scmp.ne.s32.totalorder %s126, %s142
      %p144 = scmp.eq.s32.totalorder %s40, 0
      %p145 = por %p143, %p144
      %s147 = sadd.s32 %s146, 1
      %p150 = scmp.eq.s32.totalorder %s34, 1
      %p151 = scmp.ne.s32.totalorder %s146, %s148
      %p152 = scmp.eq.s32.totalorder %s34, 0
      %p153 = por %p151, %p152
      %p154 = scmp.ne.s32.totalorder %s146, %s148
      %p155 = scmp.eq.s32.totalorder %s39, 1
      %p156 = por %p154, %p155
      %p157 = scmp.ne.s32.totalorder %s148, %s149
      %p158 = scmp.eq.s32.totalorder %s39, 0
      %p159 = por %p157, %p158
      %p160 = scmp.ne.s32.totalorder %s148, %s149
      %p161 = scmp.eq.s32.totalorder %s40, 1
      %p162 = por %p160, %p161
      %p164 = scmp.ne.s32.totalorder %s149, %s163
      %p165 = scmp.eq.s32.totalorder %s40, 0
      %p166 = por %p164, %p165
      %s168 = sadd.s32 %s167, 1
      %p171 = scmp.eq.s32.totalorder %s34, 1
      %p172 = scmp.ne.s32.totalorder %s167, %s169
      %p173 = scmp.eq.s32.totalorder %s34, 0
      %p174 = por %p172, %p173
      %p175 = scmp.ne.s32.totalorder %s167, %s169
      %p176 = scmp.eq.s32.totalorder %s39, 1
      %p177 = por %p175, %p176
      %p178 = scmp.ne.s32.totalorder %s169, %s170
      %p179 = scmp.eq.s32.totalorder %s39, 0
      %p180 = por %p178, %p179
      %p181 = scmp.ne.s32.totalorder %s169, %s170
      %p182 = scmp.eq.s32.totalorder %s40, 1
      %p183 = por %p181, %p182
      %p185 = scmp.ne.s32.totalorder %s170, %s184
      %p186 = scmp.eq.s32.totalorder %s40, 0
      %p187 = por %p185, %p186
      %s189 = sadd.s32 %s188, 1
      %p192 = scmp.eq.s32.totalorder %s34, 1
      %p193 = scmp.ne.s32.totalorder %s188, %s190
      %p194 = scmp.eq.s32.totalorder %s34, 0
      %p195 = por %p193, %p194
      %p196 = scmp.ne.s32.totalorder %s188, %s190
      %p197 = scmp.eq.s32.totalorder %s39, 1
      %p198 = por %p196, %p197
      %p199 = scmp.ne.s32.totalorder %s190, %s191
      %p200 = scmp.eq.s32.totalorder %s39, 0
      %p201 = por %p199, %p200
      %p202 = scmp.ne.s32.totalorder %s190, %s191
      %p203 = scmp.eq.s32.totalorder %s40, 1
      %p204 = por %p202, %p203
      %p206 = scmp.ne.s32.totalorder %s191, %s205
      %p207 = scmp.eq.s32.totalorder %s40, 0
      %p208 = por %p206, %p207
      %s210 = sadd.s32 %s209, 1
      %p213 = scmp.eq.s32.totalorder %s34, 1
      %p214 = scmp.ne.s32.totalorder %s209, %s211
      %p215 = scmp.eq.s32.totalorder %s34, 0
      %p216 = por %p214, %p215
      %p217 = scmp.ne.s32.totalorder %s209, %s211
      %p218 = scmp.eq.s32.totalorder %s39, 1
      %p219 = por %p217, %p218
      %p220 = scmp.ne.s32.totalorder %s211, %s212
      %p221 = scmp.eq.s32.totalorder %s39, 0
      %p222 = por %p220, %p221
      %p223 = scmp.ne.s32.totalorder %s211, %s212
      %p224 = scmp.eq.s32.totalorder %s40, 1
      %p225 = por %p223, %p224
      %p227 = scmp.ne.s32.totalorder %s212, %s226
      %p228 = scmp.eq.s32.totalorder %s40, 0
      %p229 = por %p227, %p228
      %s231 = sadd.s32 %s230, 1
      %p234 = scmp.eq.s32.totalorder %s34, 1
      %p235 = scmp.ne.s32.totalorder %s230, %s232
      %p236 = scmp.eq.s32.totalorder %s34, 0
      %p237 = por %p235, %p236
      %p238 = scmp.ne.s32.totalorder %s230, %s232
      %p239 = scmp.eq.s32.totalorder %s39, 1
      %p240 = por %p238, %p239
      %p241 = scmp.ne.s32.totalorder %s232, %s233
      %p242 = scmp.eq.s32.totalorder %s39, 0
      %p243 = por %p241, %p242
      %p244 = scmp.ne.s32.totalorder %s232, %s233
      %p245 = scmp.eq.s32.totalorder %s40, 1
      %p246 = por %p244, %p245
      %p248 = scmp.ne.s32.totalorder %s233, %s247
      %p249 = scmp.eq.s32.totalorder %s40, 0
      %p250 = por %p248, %p249
      %s252 = sadd.s32 %s251, 1
      %p255 = scmp.eq.s32.totalorder %s34, 1
      %p256 = scmp.ne.s32.totalorder %s251, %s253
      %p257 = scmp.eq.s32.totalorder %s34, 0
      %p258 = por %p256, %p257
      %p259 = scmp.ne.s32.totalorder %s251, %s253
      %p260 = scmp.eq.s32.totalorder %s39, 1
      %p261 = por %p259, %p260
      %p262 = scmp.ne.s32.totalorder %s253, %s254
      %p263 = scmp.eq.s32.totalorder %s39, 0
      %p264 = por %p262, %p263
      %p265 = scmp.ne.s32.totalorder %s253, %s254
      %p266 = scmp.eq.s32.totalorder %s40, 1
      %p267 = por %p265, %p266
      %p269 = scmp.ne.s32.totalorder %s254, %s268
      %p270 = scmp.eq.s32.totalorder %s40, 0
      %p271 = por %p269, %p270
      %s273 = sadd.s32 %s272, 1
      %p276 = scmp.eq.s32.totalorder %s34, 1
      %p277 = scmp.ne.s32.totalorder %s272, %s274
      %p278 = scmp.eq.s32.totalorder %s34, 0
      %p279 = por %p277, %p278
      %p280 = scmp.ne.s32.totalorder %s272, %s274
      %p281 = scmp.eq.s32.totalorder %s39, 1
      %p282 = por %p280, %p281
      %p283 = scmp.ne.s32.totalorder %s274, %s275
      %p284 = scmp.eq.s32.totalorder %s39, 0
      %p285 = por %p283, %p284
      %p286 = scmp.ne.s32.totalorder %s274, %s275
      %p287 = scmp.eq.s32.totalorder %s40, 1
      %p288 = por %p286, %p287
      %p290 = scmp.ne.s32.totalorder %s275, %s289
      %p291 = scmp.eq.s32.totalorder %s40, 0
      %p292 = por %p290, %p291
      %s294 = sadd.s32 %s293, 1
      %p297 = scmp.eq.s32.totalorder %s34, 1
      %p298 = scmp.ne.s32.totalorder %s293, %s295
      %p299 = scmp.eq.s32.totalorder %s34, 0
      %p300 = por %p298, %p299
      %p301 = scmp.ne.s32.totalorder %s293, %s295
      %p302 = scmp.eq.s32.totalorder %s39, 1
      %p303 = por %p301, %p302
      %p304 = scmp.ne.s32.totalorder %s295, %s296
      %p305 = scmp.eq.s32.totalorder %s39, 0
      %p306 = por %p304, %p305
      %p307 = scmp.ne.s32.totalorder %s295, %s296
      %p308 = scmp.eq.s32.totalorder %s40, 1
      %p309 = por %p307, %p308
      %p311 = scmp.ne.s32.totalorder %s296, %s310
      %p312 = scmp.eq.s32.totalorder %s40, 0
      %p313 = por %p311, %p312
      %s315 = sadd.s32 %s314, 1
      %p318 = scmp.eq.s32.totalorder %s34, 1
      %p319 = scmp.ne.s32.totalorder %s314, %s316
      %p320 = scmp.eq.s32.totalorder %s34, 0
      %p321 = por %p319, %p320
      %p322 = scmp.ne.s32.totalorder %s314, %s316
      %p323 = scmp.eq.s32.totalorder %s39, 1
      %p324 = por %p322, %p323
      %p325 = scmp.ne.s32.totalorder %s316, %s317
      %p326 = scmp.eq.s32.totalorder %s39, 0
      %p327 = por %p325, %p326
      %p328 = scmp.ne.s32.totalorder %s316, %s317
      %p329 = scmp.eq.s32.totalorder %s40, 1
      %p330 = por %p328, %p329
      %p332 = scmp.ne.s32.totalorder %s317, %s331
      %p333 = scmp.eq.s32.totalorder %s40, 0
      %p334 = por %p332, %p333
      %s336 = sadd.s32 %s335, 1
      %p339 = scmp.eq.s32.totalorder %s34, 1
      %p340 = scmp.ne.s32.totalorder %s335, %s337
      %p341 = scmp.eq.s32.totalorder %s34, 0
      %p342 = por %p340, %p341
      %p343 = scmp.ne.s32.totalorder %s335, %s337
      %p344 = scmp.eq.s32.totalorder %s39, 1
      %p345 = por %p343, %p344
      %p346 = scmp.ne.s32.totalorder %s337, %s338
      %p347 = scmp.eq.s32.totalorder %s39, 0
      %p348 = por %p346, %p347
      %p349 = scmp.ne.s32.totalorder %s337, %s338
      %p350 = scmp.eq.s32.totalorder %s40, 1
      %p351 = por %p349, %p350
      %p353 = scmp.ne.s32.totalorder %s338, %s352
      %p354 = scmp.eq.s32.totalorder %s40, 0
      %p355 = por %p353, %p354
      %s357 = sadd.s32 %s356, 1
      %p360 = scmp.eq.s32.totalorder %s34, 1
      %p361 = scmp.ne.s32.totalorder %s356, %s358
      %p362 = scmp.eq.s32.totalorder %s34, 0
      %p363 = por %p361, %p362
      %p364 = scmp.ne.s32.totalorder %s356, %s358
      %p365 = scmp.eq.s32.totalorder %s39, 1
      %p366 = por %p364, %p365
      %p367 = scmp.ne.s32.totalorder %s358, %s359
      %p368 = scmp.eq.s32.totalorder %s39, 0
      %p369 = por %p367, %p368
      %p370 = scmp.ne.s32.totalorder %s358, %s359
      %p371 = scmp.eq.s32.totalorder %s40, 1
      %p372 = por %p370, %p371
      %p374 = scmp.ne.s32.totalorder %s359, %s373
      %p375 = scmp.eq.s32.totalorder %s40, 0
      %p376 = por %p374, %p375
      %s378 = sadd.s32 %s377, 1
      %p381 = scmp.eq.s32.totalorder %s34, 1
      %p382 = scmp.ne.s32.totalorder %s377, %s379
      %p383 = scmp.eq.s32.totalorder %s34, 0
      %p384 = por %p382, %p383
      %p385 = scmp.ne.s32.totalorder %s377, %s379
      %p386 = scmp.eq.s32.totalorder %s39, 1
      %p387 = por %p385, %p386
      %p388 = scmp.ne.s32.totalorder %s379, %s380
      %p389 = scmp.eq.s32.totalorder %s39, 0
      %p390 = por %p388, %p389
      %p391 = scmp.ne.s32.totalorder %s379, %s380
      %p392 = scmp.eq.s32.totalorder %s40, 1
      %p393 = por %p391, %p392
      %p395 = scmp.ne.s32.totalorder %s380, %s394
      %p396 = scmp.eq.s32.totalorder %s40, 0
      %p397 = por %p395, %p396
      %s398 = ssub.s32 %s34, %s41
      %p399 = scmp.eq.s32.totalorder %s398, 0
      %s401 = sadd.s32 %s400, 1
      %s402 = scalar_select %p399, %s400, %s401
      %p405 = pneg %p399
      %p406 = scmp.eq.s32.totalorder %s34, 1
      %p407 = por %p405, %p406
      %p408 = scmp.ne.s32.totalorder %s400, %s403
      %p409 = scmp.eq.s32.totalorder %s34, 0
      %p410 = por %p408, %p409
      %p411 = scmp.ne.s32.totalorder %s400, %s403
      %p412 = scmp.eq.s32.totalorder %s39, 1
      %p413 = por %p411, %p412
      %p414 = scmp.ne.s32.totalorder %s403, %s404
      %p415 = scmp.eq.s32.totalorder %s39, 0
      %p416 = por %p414, %p415
      %p417 = scmp.ne.s32.totalorder %s403, %s404
      %p418 = scmp.eq.s32.totalorder %s40, 1
      %p419 = por %p417, %p418
      %p421 = scmp.ne.s32.totalorder %s404, %s420
      %p422 = scmp.eq.s32.totalorder %s40, 0
      %p423 = por %p421, %p422
      %s424 = ssub.s32 %s34, %s41
      %p425 = scmp.eq.s32.totalorder %s424, 0
      %s427 = sadd.s32 %s426, 1
      %s428 = scalar_select %p425, %s426, %s427
      %p431 = pneg %p425
      %p432 = scmp.eq.s32.totalorder %s34, 1
      %p433 = por %p431, %p432
      %p434 = scmp.ne.s32.totalorder %s426, %s429
      %p435 = scmp.eq.s32.totalorder %s34, 0
      %p436 = por %p434, %p435
      %p437 = scmp.ne.s32.totalorder %s426, %s429
      %p438 = scmp.eq.s32.totalorder %s39, 1
      %p439 = por %p437, %p438
      %p440 = scmp.ne.s32.totalorder %s429, %s430
      %p441 = scmp.eq.s32.totalorder %s39, 0
      %p442 = por %p440, %p441
      %p443 = scmp.ne.s32.totalorder %s429, %s430
      %p444 = scmp.eq.s32.totalorder %s40, 1
      %p445 = por %p443, %p444
      %p447 = scmp.ne.s32.totalorder %s430, %s446
      %p448 = scmp.eq.s32.totalorder %s40, 0
      %p449 = por %p447, %p448
      %p450 = scmp.le.s32.totalorder 1, %s34
      %p451 = scmp.lt.s32.totalorder %s34, 3
      %p452 = pnand %p450, %p451
      %p453 = pneg %p452
      // Predicated region
      $region9: #{tpu_custom_call.1} parent=5 // pred_check
        _
      $region10: #{tpu_custom_call.1} parent=5 // pred_check_branch
        %455 = sbr.rel (%p452) target = $region12
      $region11: #{tpu_custom_call.1} parent=5 // pred_region
        %s456 = ssub.s32 %s34, 1
        // Predicated region
        $region13: #{tpu_custom_call.1} parent=11 // pred_check
          %p457 = pneg %p159
        $region14: #{tpu_custom_call.1} parent=11 // pred_check_branch
          %459 = sbr.rel (%p457) target = $region16
        $region15: #{tpu_custom_call.1} parent=11 // pred_region
          _
        $region16: #{tpu_custom_call.1} parent=11 // pred_fallthru
          _
        // Predicated region
        $region17: #{tpu_custom_call.1} parent=11 // pred_check
          %p460 = pneg %p180
        $region18: #{tpu_custom_call.1} parent=11 // pred_check_branch
          %462 = sbr.rel (%p460) target = $region20
        $region19: #{tpu_custom_call.1} parent=11 // pred_region
          _
        $region20: #{tpu_custom_call.1} parent=11 // pred_fallthru
          _
        // Predicated region
        $region21: #{tpu_custom_call.1} parent=11 // pred_check
          %p463 = pneg %p201
        $region22: #{tpu_custom_call.1} parent=11 // pred_check_branch
          %465 = sbr.rel (%p463) target = $region24
        $region23: #{tpu_custom_call.1} parent=11 // pred_region
          _
        $region24: #{tpu_custom_call.1} parent=11 // pred_fallthru
          _
        // Predicated region
        $region25: #{tpu_custom_call.1} parent=11 // pred_check
          %p466 = pneg %p222
        $region26: #{tpu_custom_call.1} parent=11 // pred_check_branch
          %468 = sbr.rel (%p466) target = $region28
        $region27: #{tpu_custom_call.1} parent=11 // pred_region
          _
        $region28: #{tpu_custom_call.1} parent=11 // pred_fallthru
          _
        // Predicated region
        $region29: #{tpu_custom_call.1} parent=11 // pred_check
          %p469 = pneg %p243
        $region30: #{tpu_custom_call.1} parent=11 // pred_check_branch
          %471 = sbr.rel (%p469) target = $region32
        $region31: #{tpu_custom_call.1} parent=11 // pred_region
          _
        $region32: #{tpu_custom_call.1} parent=11 // pred_fallthru
          _
        // Predicated region
        $region33: #{tpu_custom_call.1} parent=11 // pred_check
          %p472 = pneg %p264
        $region34: #{tpu_custom_call.1} parent=11 // pred_check_branch
          %474 = sbr.rel (%p472) target = $region36
        $region35: #{tpu_custom_call.1} parent=11 // pred_region
          _
        $region36: #{tpu_custom_call.1} parent=11 // pred_fallthru
          _
        // Predicated region
        $region37: #{tpu_custom_call.1} parent=11 // pred_check
          %p475 = pneg %p285
        $region38: #{tpu_custom_call.1} parent=11 // pred_check_branch
          %477 = sbr.rel (%p475) target = $region40
        $region39: #{tpu_custom_call.1} parent=11 // pred_region
          _
        $region40: #{tpu_custom_call.1} parent=11 // pred_fallthru
          _
        // Predicated region
        $region41: #{tpu_custom_call.1} parent=11 // pred_check
          %p478 = pneg %p306
        $region42: #{tpu_custom_call.1} parent=11 // pred_check_branch
          %480 = sbr.rel (%p478) target = $region44
        $region43: #{tpu_custom_call.1} parent=11 // pred_region
          _
        $region44: #{tpu_custom_call.1} parent=11 // pred_fallthru
          _
        // Predicated region
        $region45: #{tpu_custom_call.1} parent=11 // pred_check
          %p481 = pneg %p327
        $region46: #{tpu_custom_call.1} parent=11 // pred_check_branch
          %483 = sbr.rel (%p481) target = $region48
        $region47: #{tpu_custom_call.1} parent=11 // pred_region
          _
        $region48: #{tpu_custom_call.1} parent=11 // pred_fallthru
          _
        // Predicated region
        $region49: #{tpu_custom_call.1} parent=11 // pred_check
          %p484 = pneg %p348
        $region50: #{tpu_custom_call.1} parent=11 // pred_check_branch
          %486 = sbr.rel (%p484) target = $region52
        $region51: #{tpu_custom_call.1} parent=11 // pred_region
          _
        $region52: #{tpu_custom_call.1} parent=11 // pred_fallthru
          _
        // Predicated region
        $region53: #{tpu_custom_call.1} parent=11 // pred_check
          %p487 = pneg %p369
        $region54: #{tpu_custom_call.1} parent=11 // pred_check_branch
          %489 = sbr.rel (%p487) target = $region56
        $region55: #{tpu_custom_call.1} parent=11 // pred_region
          _
        $region56: #{tpu_custom_call.1} parent=11 // pred_fallthru
          _
        // Predicated region
        $region57: #{tpu_custom_call.1} parent=11 // pred_check
          %p490 = pneg %p390
        $region58: #{tpu_custom_call.1} parent=11 // pred_check_branch
          %492 = sbr.rel (%p490) target = $region60
        $region59: #{tpu_custom_call.1} parent=11 // pred_region
          %s494 = ssub.s32 16, 16
          %495 = vsyncadd [#allocation6], %s494
          %s497 = sshll.u32 %s15, 4
          %s498 = int_to_ptr.vmem [resolvable:$true] %s497
          %500 = dma.vmem_to_smem %s498, 16, [#allocation9], [#allocation6]
        $region60: #{tpu_custom_call.1} parent=11 // pred_fallthru
          _
      $region12: #{tpu_custom_call.1} parent=5 // pred_fallthru
        _
      %p501 = scmp.lt.s32.totalorder %s34, 2
      // Predicated region
      $region61: #{tpu_custom_call.1} parent=5 // pred_check
        %p502 = pneg %p501
      $region62: #{tpu_custom_call.1} parent=5 // pred_check_branch
        %504 = sbr.rel (%p502) target = $region64
      $region63: #{tpu_custom_call.1} parent=5 // pred_region
        // Predicated region
        $region65: #{tpu_custom_call.1} parent=63 // pred_check
          %p505 = pneg %p54
        $region66: #{tpu_custom_call.1} parent=63 // pred_check_branch
          %507 = sbr.rel (%p505) target = $region68
        $region67: #{tpu_custom_call.1} parent=63 // pred_region
          %s508 = smul.u32 16, %s34
          %p509 = scmp.lt.s32.totalorder %s508, 31
          %s510 = scalar_select %p509, %s508, 31
          %s511 = smul.addr %s510, 8
          %s512 = scalar_lea.vmem %s0, %s511
          %s513 = smul.u32 16, %s34
        $region68: #{tpu_custom_call.1} parent=63 // pred_fallthru
          _
        // Predicated region
        $region69: #{tpu_custom_call.1} parent=63 // pred_check
          %p514 = pneg %p80
        $region70: #{tpu_custom_call.1} parent=63 // pred_check_branch
          %516 = sbr.rel (%p514) target = $region72
        $region71: #{tpu_custom_call.1} parent=63 // pred_region
          %s517 = smul.u32 8, %s34
          %p518 = scmp.lt.s32.totalorder %s517, 15
          %s519 = scalar_select %p518, %s517, 15
          %s520 = smul.addr %s519, 2
          %s521 = smul.addr %s520, 8
          %s522 = scalar_lea.vmem %s1, %s521
          %s523 = smul.u32 8, %s34
        $region72: #{tpu_custom_call.1} parent=63 // pred_fallthru
          _
        // Predicated region
        $region73: #{tpu_custom_call.1} parent=63 // pred_check
          %p524 = pneg %p106
        $region74: #{tpu_custom_call.1} parent=63 // pred_check_branch
          %526 = sbr.rel (%p524) target = $region76
        $region75: #{tpu_custom_call.1} parent=63 // pred_region
          %s527 = sand.u32 %s96, 1
          %s528 = scalar_lea.sflag [#allocation4], %s527
          %s529 = sand.u32 %s96, 1
          %s530 = smul.addr %s529, 128
          %s531 = scalar_lea.vmem [#allocation3], %s530
          %s532 = smul.u32 8, %s34
          %s534 = ssub.s32 2048, 2048
          %535 = vsyncadd %s528, %s534
          %s536 = smul.addr %s532, 2
          %s537 = smul.addr %s536, 128
          %s538 = scalar_lea.hbm %s2, %s537
          %s539 = sshll.u32 %s531, 4
          %s540 = int_to_ptr.vmem [resolvable:$true] %s539
          %545 = dma.hbm_to_vmem [thread:$0]  %s538, 2048, %s540, %s528, 128, 128, 8
        $region76: #{tpu_custom_call.1} parent=63 // pred_fallthru
          _
        // Predicated region
        $region77: #{tpu_custom_call.1} parent=63 // pred_check
          %p546 = pneg %p132
        $region78: #{tpu_custom_call.1} parent=63 // pred_check_branch
          %548 = sbr.rel (%p546) target = $region80
        $region79: #{tpu_custom_call.1} parent=63 // pred_region
          %s549 = sand.u32 %s122, 1
          %s550 = scalar_lea.sflag [#allocation8], %s549
          %s551 = sand.u32 %s122, 1
          %s552 = smul.addr %s551, 128
          %s553 = scalar_lea.vmem [#allocation7], %s552
          %s554 = smul.u32 8, %s34
          %s556 = ssub.s32 2048, 2048
          %557 = vsyncadd %s550, %s556
          %s558 = smul.addr %s554, 2
          %s559 = smul.addr %s558, 128
          %s560 = scalar_lea.hbm %s3, %s559
          %s561 = sshll.u32 %s553, 4
          %s562 = int_to_ptr.vmem [resolvable:$true] %s561
          %567 = dma.hbm_to_vmem [thread:$0]  %s560, 2048, %s562, %s550, 128, 128, 8
        $region80: #{tpu_custom_call.1} parent=63 // pred_fallthru
          _
      $region64: #{tpu_custom_call.1} parent=5 // pred_fallthru
        _
      %p568 = scmp.le.s32.totalorder 1, %s34
      %p569 = scmp.lt.s32.totalorder %s34, 3
      %p570 = pnand %p568, %p569
      %p571 = pneg %p570
      // Predicated region
      $region81: #{tpu_custom_call.1} parent=5 // pred_check
        _
      $region82: #{tpu_custom_call.1} parent=5 // pred_check_branch
        %573 = sbr.rel (%p570) target = $region84
      $region83: #{tpu_custom_call.1} parent=5 // pred_region
        %s574 = ssub.s32 %s34, 1
        %s575 = sand.u32 %s99, 1
        %s576 = scalar_lea.sflag [#allocation4], %s575
        %s577 = sand.u32 %s99, 1
        %s578 = smul.addr %s577, 128
        %s579 = scalar_lea.vmem [#allocation3], %s578
        // Predicated region
        $region85: #{tpu_custom_call.1} parent=83 // pred_check
          %p580 = pneg %p112
        $region86: #{tpu_custom_call.1} parent=83 // pred_check_branch
          %582 = sbr.rel (%p580) target = $region88
        $region87: #{tpu_custom_call.1} parent=83 // pred_region
          %583 = dma.done %s576, 2048
        $region88: #{tpu_custom_call.1} parent=83 // pred_fallthru
          _
        %s584 = sand.u32 %s125, 1
        %s585 = scalar_lea.sflag [#allocation8], %s584
        %s586 = sand.u32 %s125, 1
        %s587 = smul.addr %s586, 128
        %s588 = scalar_lea.vmem [#allocation7], %s587
        // Predicated region
        $region89: #{tpu_custom_call.1} parent=83 // pred_check
          %p589 = pneg %p138
        $region90: #{tpu_custom_call.1} parent=83 // pred_check_branch
          %591 = sbr.rel (%p589) target = $region92
        $region91: #{tpu_custom_call.1} parent=83 // pred_region
          %592 = dma.done %s585, 2048
        $region92: #{tpu_custom_call.1} parent=83 // pred_fallthru
          _
        // Predicated region
        $region93: #{tpu_custom_call.1} parent=83 // pred_check
          %p593 = pneg %p390
        $region94: #{tpu_custom_call.1} parent=83 // pred_check_branch
          %595 = sbr.rel (%p593) target = $region96
        $region95: #{tpu_custom_call.1} parent=83 // pred_region
          %596 = dma.done [#allocation6], 16
        $region96: #{tpu_custom_call.1} parent=83 // pred_fallthru
          _
        %597 = sfence
        %s598 = smul.u32 16, %s39
        %p599 = scmp.lt.s32.totalorder %s598, 31
        %s600 = scalar_select %p599, %s598, 31
        %s601 = smul.addr %s600, 8
        %s602 = scalar_lea.vmem %s0, %s601
        %p603 = pneg %p60
        %p604 = pneg %p57
        %s605 = smul.u32 8, %s39
        %p606 = scmp.lt.s32.totalorder %s605, 15
        %s607 = scalar_select %p606, %s605, 15
        %s608 = smul.addr %s607, 2
        %s609 = smul.addr %s608, 8
        %s610 = scalar_lea.vmem %s1, %s609
        %p611 = pneg %p86
        %p612 = pneg %p83
        %s613 = sand.u32 %s99, 1
        %s614 = scalar_lea.sflag [#allocation4], %s613
        %s615 = sand.u32 %s99, 1
        %s616 = smul.addr %s615, 128
        %s617 = scalar_lea.vmem [#allocation3], %s616
        %p618 = pneg %p112
        %p619 = pneg %p109
        %s620 = sand.u32 %s125, 1
        %s621 = scalar_lea.sflag [#allocation8], %s620
        %s622 = sand.u32 %s125, 1
        %s623 = smul.addr %s622, 128
        %s624 = scalar_lea.vmem [#allocation7], %s623
        %p625 = pneg %p138
        %p626 = pneg %p135
        %p627 = pneg %p159
        %p628 = pneg %p156
        %p629 = pneg %p180
        %p630 = pneg %p177
        %p631 = pneg %p201
        %p632 = pneg %p198
        %p633 = pneg %p222
        %p634 = pneg %p219
        %p635 = pneg %p243
        %p636 = pneg %p240
        %p637 = pneg %p264
        %p638 = pneg %p261
        %p639 = pneg %p285
        %p640 = pneg %p282
        %p641 = pneg %p306
        %p642 = pneg %p303
        %p643 = pneg %p327
        %p644 = pneg %p324
        %p645 = pneg %p348
        %p646 = pneg %p345
        %p647 = pneg %p369
        %p648 = pneg %p366
        %p649 = pneg %p390
        %p650 = pneg %p387
        %p651 = pneg %p416
        %p652 = pneg %p413
        %s653 = smul.u32 16, %s39
        %p654 = scmp.lt.s32.totalorder %s653, 31
        %s655 = scalar_select %p654, %s653, 31
        %s656 = smul.addr %s655, 8
        %s657 = scalar_lea.vmem %s16, %s656
        %p658 = pneg %p442
        %p659 = pneg %p439
        %s660 = sand.u32 %s429, 1
        %s661 = scalar_lea.sflag [#allocation5], %s660
        %s662 = sand.u32 %s429, 1
        %s663 = smul.addr %s662, 128
        %s664 = scalar_lea.vmem [#allocation10], %s663
        %s665 = smul.u32 16, %s39
        %p666 = scmp.lt.s32.totalorder %s665, 31
        %s667 = scalar_select %p666, %s665, 31
        %s668 = smul.addr %s667, 8
        %s669 = scalar_lea.vmem %s0, %s668
        %s670 = smul.u32 16, %s39
        %s671 = smul.u32 8, %s39
        %p672 = scmp.lt.s32.totalorder %s671, 15
        %s673 = scalar_select %p672, %s671, 15
        %s674 = smul.addr %s673, 2
        %s675 = smul.addr %s674, 8
        %s676 = scalar_lea.vmem %s1, %s675
        %s677 = smul.u32 8, %s39
        %s678 = smul.u32 8, %s39
        %s679 = smul.u32 8, %s39
        %s680 = smul.u32 16, %s39
        %p681 = scmp.lt.s32.totalorder %s680, 31
        %s682 = scalar_select %p681, %s680, 31
        %s683 = smul.addr %s682, 8
        %s684 = scalar_lea.vmem %s16, %s683
        %s685 = smul.u32 16, %s39
        %s686 = smul.u32 8, %s39
        %v688 = vld [vmem:[%s669] sm:$0xff]
        %v689 = vld [vmem:[%s669 + $0x8] sm:$0xff]
        %v690 = vld [vmem:[%s669 + $0x10] sm:$0xff]
        %v691 = vld [vmem:[%s669 + $0x18] sm:$0xff]
        %v692 = vld [vmem:[%s669 + $0x20] sm:$0xff]
        %v693 = vld [vmem:[%s669 + $0x28] sm:$0xff]
        %v694 = vld [vmem:[%s669 + $0x30] sm:$0xff]
        %v695 = vld [vmem:[%s669 + $0x38] sm:$0xff]
        %v696 = vld [vmem:[%s669 + $0x40] sm:$0xff]
        %v697 = vld [vmem:[%s669 + $0x48] sm:$0xff]
        %v698 = vld [vmem:[%s669 + $0x50] sm:$0xff]
        %v699 = vld [vmem:[%s669 + $0x58] sm:$0xff]
        %v700 = vld [vmem:[%s669 + $0x60] sm:$0xff]
        %v701 = vld [vmem:[%s669 + $0x68] sm:$0xff]
        %v702 = vld [vmem:[%s669 + $0x70] sm:$0xff]
        %v703 = vld [vmem:[%s669 + $0x78] sm:$0xff]
        %v704 = vld [vmem:[%s676] sm:$0xff]
        %v705 = vld [vmem:[%s676 + $0x8] sm:$0xff]
        %v706 = vld [vmem:[%s676 + $0x10] sm:$0xff]
        %v707 = vld [vmem:[%s676 + $0x18] sm:$0xff]
        %v708 = vld [vmem:[%s676 + $0x20] sm:$0xff]
        %v709 = vld [vmem:[%s676 + $0x28] sm:$0xff]
        %v710 = vld [vmem:[%s676 + $0x30] sm:$0xff]
        %v711 = vld [vmem:[%s676 + $0x38] sm:$0xff]
        %v712 = vld [vmem:[%s676 + $0x40] sm:$0xff]
        %v713 = vld [vmem:[%s676 + $0x48] sm:$0xff]
        %v714 = vld [vmem:[%s676 + $0x50] sm:$0xff]
        %v715 = vld [vmem:[%s676 + $0x58] sm:$0xff]
        %v716 = vld [vmem:[%s676 + $0x60] sm:$0xff]
        %v717 = vld [vmem:[%s676 + $0x68] sm:$0xff]
        %v718 = vld [vmem:[%s676 + $0x70] sm:$0xff]
        %v719 = vld [vmem:[%s676 + $0x78] sm:$0xff]
        %v720 = vld [vmem:[%s579] sm:$0xff]
        %v721 = vld [vmem:[%s579 + $0x8] sm:$0xff]
        %v722 = vld [vmem:[%s579 + $0x10] sm:$0xff]
        %v723 = vld [vmem:[%s579 + $0x18] sm:$0xff]
        %v724 = vld [vmem:[%s579 + $0x20] sm:$0xff]
        %v725 = vld [vmem:[%s579 + $0x28] sm:$0xff]
        %v726 = vld [vmem:[%s579 + $0x30] sm:$0xff]
        %v727 = vld [vmem:[%s579 + $0x38] sm:$0xff]
        %v728 = vld [vmem:[%s579 + $0x40] sm:$0xff]
        %v729 = vld [vmem:[%s579 + $0x48] sm:$0xff]
        %v730 = vld [vmem:[%s579 + $0x50] sm:$0xff]
        %v731 = vld [vmem:[%s579 + $0x58] sm:$0xff]
        %v732 = vld [vmem:[%s579 + $0x60] sm:$0xff]
        %v733 = vld [vmem:[%s579 + $0x68] sm:$0xff]
        %v734 = vld [vmem:[%s579 + $0x70] sm:$0xff]
        %v735 = vld [vmem:[%s579 + $0x78] sm:$0xff]
        %v736 = vld [vmem:[%s588] sm:$0xff]
        %v737 = vld [vmem:[%s588 + $0x8] sm:$0xff]
        %v738 = vld [vmem:[%s588 + $0x10] sm:$0xff]
        %v739 = vld [vmem:[%s588 + $0x18] sm:$0xff]
        %v740 = vld [vmem:[%s588 + $0x20] sm:$0xff]
        %v741 = vld [vmem:[%s588 + $0x28] sm:$0xff]
        %v742 = vld [vmem:[%s588 + $0x30] sm:$0xff]
        %v743 = vld [vmem:[%s588 + $0x38] sm:$0xff]
        %v744 = vld [vmem:[%s588 + $0x40] sm:$0xff]
        %v745 = vld [vmem:[%s588 + $0x48] sm:$0xff]
        %v746 = vld [vmem:[%s588 + $0x50] sm:$0xff]
        %v747 = vld [vmem:[%s588 + $0x58] sm:$0xff]
        %v748 = vld [vmem:[%s588 + $0x60] sm:$0xff]
        %v749 = vld [vmem:[%s588 + $0x68] sm:$0xff]
        %v750 = vld [vmem:[%s588 + $0x70] sm:$0xff]
        %v751 = vld [vmem:[%s588 + $0x78] sm:$0xff]
        %v752 = vpack.c.bf16 %v689, %v688
        %v753 = vpack.c.bf16 %v691, %v690
        %v754 = vpack.c.bf16 %v693, %v692
        %v755 = vpack.c.bf16 %v695, %v694
        %v756 = vpack.c.bf16 %v697, %v696
        %v757 = vpack.c.bf16 %v699, %v698
        %v758 = vpack.c.bf16 %v701, %v700
        %v759 = vpack.c.bf16 %v703, %v702
        %v760 = vld [vmem:[%s5] sm:$0xf]
        %v761 = vld [vmem:[%s5 + $0x4] sm:$0xf]
        %v762 = vld [vmem:[%s6] sm:$0x1]
        %v764 = vlaneseq
        %v765 = vshrl.u32 %v764, 7
        %v766 = vsub.s32 0, %v765
        %v767 = vrot.slane %v762, %v766
        %v771 = vunpack.c.l.b16 %v760
        %v772 = vunpack.c.l.b16 %v761
        %v773 = vpack.c.b16 %v772, %v771
        %vm775 = vcmask 130048
        %v777 = vsel %vm775, %v752, 0
        %v780 = vsel %vm775, %v753, 0
        %v783 = vsel %vm775, %v754, 0
        %v786 = vsel %vm775, %v755, 0
        %v789 = vsel %vm775, %v756, 0
        %v792 = vsel %vm775, %v757, 0
        %v795 = vsel %vm775, %v758, 0
        %v798 = vsel %vm775, %v759, 0
        %800 = vmatprep.subr.bf16.mxu0 0
        %801 = vmatpush1.bf16.msra.mxu0 %v773
        %802 = vmatprep.subr.bf16.mxu0 0
        %803 = vmatpush1.bf16.msra.mxu0 0
        %804 = vmatprep.subr.bf16.mxu0 0
        %805 = vmatpush1.bf16.msra.mxu0 0
        %806 = vmatprep.subr.bf16.mxu0 0
        %807 = vmatpush1.bf16.msra.mxu0 0
        %808 = vmatprep.subr.bf16.mxu0 0
        %809 = vmatpush1.bf16.msra.mxu0 0
        %810 = vmatprep.subr.bf16.mxu0 0
        %811 = vmatpush1.bf16.msra.mxu0 0
        %812 = vmatprep.subr.bf16.mxu0 0
        %813 = vmatpush1.bf16.msra.mxu0 0
        %814 = vmatprep.subr.bf16.mxu0 0
        %815 = vmatpush1.bf16.msra.mxu0 0
        %816 = vmatprep.subr.bf16.mxu0 0
        %817 = vmatpush1.bf16.msra.mxu0 0
        %818 = vmatprep.subr.bf16.mxu0 0
        %819 = vmatpush1.bf16.msra.mxu0 0
        %820 = vmatprep.subr.bf16.mxu0 0
        %821 = vmatpush1.bf16.msra.mxu0 0
        %822 = vmatprep.subr.bf16.mxu0 0
        %823 = vmatpush1.bf16.msra.mxu0 0
        %824 = vmatprep.subr.bf16.mxu0 0
        %825 = vmatpush1.bf16.msra.mxu0 0
        %826 = vmatprep.subr.bf16.mxu0 0
        %827 = vmatpush1.bf16.msra.mxu0 0
        %828 = vmatprep.subr.bf16.mxu0 0
        %829 = vmatpush1.bf16.msra.mxu0 0
        %830 = vmatprep.subr.bf16.mxu0 0
        %831 = vmatpush1.bf16.msra.mxu0 0
        %832 = vmatprep.mubr.bf16.mxu0 0
        %833 = vmatmul.mubr.bf16.gmra.mrb[0].mxu0 %v777
        %v834 = vpop.f32.mrb[0].mxu0
        %v835 = vadd.f32 %v767, %v834
        %v836 = vpop.f32.mrb[0].mxu0
        %v837 = vpop.f32.mrb[0].mxu0
        %v838 = vadd.f32 %v767, %v837
        %v839 = vpop.f32.mrb[0].mxu0
        %840 = vmatprep.mubr.bf16.mxu0 0
        %841 = vmatmul.mubr.bf16.gmra.mrb[0].mxu0 %v780
        %v842 = vpop.f32.mrb[0].mxu0
        %v843 = vadd.f32 %v767, %v842
        %v844 = vpop.f32.mrb[0].mxu0
        %v845 = vpop.f32.mrb[0].mxu0
        %v846 = vadd.f32 %v767, %v845
        %v847 = vpop.f32.mrb[0].mxu0
        %848 = vmatprep.mubr.bf16.mxu0 0
        %849 = vmatmul.mubr.bf16.gmra.mrb[0].mxu0 %v783
        %v850 = vpop.f32.mrb[0].mxu0
        %v851 = vadd.f32 %v767, %v850
        %v852 = vpop.f32.mrb[0].mxu0
        %v853 = vpop.f32.mrb[0].mxu0
        %v854 = vadd.f32 %v767, %v853
        %v855 = vpop.f32.mrb[0].mxu0
        %856 = vmatprep.mubr.bf16.mxu0 0
        %857 = vmatmul.mubr.bf16.gmra.mrb[0].mxu0 %v786
        %v858 = vpop.f32.mrb[0].mxu0
        %v859 = vadd.f32 %v767, %v858
        %v860 = vpop.f32.mrb[0].mxu0
        %v861 = vpop.f32.mrb[0].mxu0
        %v862 = vadd.f32 %v767, %v861
        %v863 = vpop.f32.mrb[0].mxu0
        %864 = vmatprep.mubr.bf16.mxu0 0
        %865 = vmatmul.mubr.bf16.gmra.mrb[0].mxu0 %v789
        %v866 = vpop.f32.mrb[0].mxu0
        %v867 = vadd.f32 %v767, %v866
        %v868 = vpop.f32.mrb[0].mxu0
        %v869 = vpop.f32.mrb[0].mxu0
        %v870 = vadd.f32 %v767, %v869
        %v871 = vpop.f32.mrb[0].mxu0
        %872 = vmatprep.mubr.bf16.mxu0 0
        %873 = vmatmul.mubr.bf16.gmra.mrb[0].mxu0 %v792
        %v874 = vpop.f32.mrb[0].mxu0
        %v875 = vadd.f32 %v767, %v874
        %v876 = vpop.f32.mrb[0].mxu0
        %v877 = vpop.f32.mrb[0].mxu0
        %v878 = vadd.f32 %v767, %v877
        %v879 = vpop.f32.mrb[0].mxu0
        %880 = vmatprep.mubr.bf16.mxu0 0
        %881 = vmatmul.mubr.bf16.gmra.mrb[0].mxu0 %v795
        %v882 = vpop.f32.mrb[0].mxu0
        %v883 = vadd.f32 %v767, %v882
        %v884 = vpop.f32.mrb[0].mxu0
        %v885 = vpop.f32.mrb[0].mxu0
        %v886 = vadd.f32 %v767, %v885
        %v887 = vpop.f32.mrb[0].mxu0
        %888 = vmatprep.mubr.bf16.mxu0 0
        %889 = vmatmul.mubr.bf16.gmra.mrb[0].mxu0 %v798
        %v890 = vpop.f32.mrb[0].mxu0
        %v891 = vadd.f32 %v767, %v890
        %v892 = vpop.f32.mrb[0].mxu0
        %v893 = vpop.f32.mrb[0].mxu0
        %v894 = vadd.f32 %v767, %v893
        %v895 = vpop.f32.mrb[0].mxu0
        %896 = vdwg.mxu0
        %v897 = vmax.f32 %v835, 0.0
        %v898 = vmax.f32 %v838, 0.0
        %v899 = vmax.f32 %v843, 0.0
        %v900 = vmax.f32 %v846, 0.0
        %v901 = vmax.f32 %v851, 0.0
        %v902 = vmax.f32 %v854, 0.0
        %v903 = vmax.f32 %v859, 0.0
        %v904 = vmax.f32 %v862, 0.0
        %v905 = vmax.f32 %v867, 0.0
        %v906 = vmax.f32 %v870, 0.0
        %v907 = vmax.f32 %v875, 0.0
        %v908 = vmax.f32 %v878, 0.0
        %v909 = vmax.f32 %v883, 0.0
        %v910 = vmax.f32 %v886, 0.0
        %v911 = vmax.f32 %v891, 0.0
        %v912 = vmax.f32 %v894, 0.0
        %v913 = vld [vmem:[%s4] sm:$0xff]
        %v914 = vld [vmem:[%s4 + $0x8] sm:$0xff]
        %v915 = vadd.f32 %v897, %v913
        %v916 = vadd.f32 %v898, %v914
        %v917 = vadd.f32 %v899, %v913
        %v918 = vadd.f32 %v900, %v914
        %v919 = vadd.f32 %v901, %v913
        %v920 = vadd.f32 %v902, %v914
        %v921 = vadd.f32 %v903, %v913
        %v922 = vadd.f32 %v904, %v914
        %v923 = vadd.f32 %v905, %v913
        %v924 = vadd.f32 %v906, %v914
        %v925 = vadd.f32 %v907, %v913
        %v926 = vadd.f32 %v908, %v914
        %v927 = vadd.f32 %v909, %v913
        %v928 = vadd.f32 %v910, %v914
        %v929 = vadd.f32 %v911, %v913
        %v930 = vadd.f32 %v912, %v914
        %v931 = vld [vmem:[%s7] sm:$0x1]
        %v932 = vld [vmem:[%s8] sm:$0x1]
        %vm933 = vcmask 261120
        %v934 = vsel %vm933, %v915, 0.0
        %935 = vadd.xlane.f32.xlu0 %v934
        %v936 = vpop.xlane.xlu0 %935
        %v937 = vsel %vm933, %v916, 0.0
        %938 = vadd.xlane.f32.xlu0 %v937
        %v939 = vpop.xlane.xlu0 %938
        %v940 = vsel %vm933, %v917, 0.0
        %941 = vadd.xlane.f32.xlu0 %v940
        %v942 = vpop.xlane.xlu0 %941
        %v943 = vsel %vm933, %v918, 0.0
        %944 = vadd.xlane.f32.xlu0 %v943
        %v945 = vpop.xlane.xlu0 %944
        %v946 = vsel %vm933, %v919, 0.0
        %947 = vadd.xlane.f32.xlu0 %v946
        %v948 = vpop.xlane.xlu0 %947
        %v949 = vsel %vm933, %v920, 0.0
        %950 = vadd.xlane.f32.xlu0 %v949
        %v951 = vpop.xlane.xlu0 %950
        %v952 = vsel %vm933, %v921, 0.0
        %953 = vadd.xlane.f32.xlu0 %v952
        %v954 = vpop.xlane.xlu0 %953
        %v955 = vsel %vm933, %v922, 0.0
        %956 = vadd.xlane.f32.xlu0 %v955
        %v957 = vpop.xlane.xlu0 %956
        %v958 = vsel %vm933, %v923, 0.0
        %959 = vadd.xlane.f32.xlu0 %v958
        %v960 = vpop.xlane.xlu0 %959
        %v961 = vsel %vm933, %v924, 0.0
        %962 = vadd.xlane.f32.xlu0 %v961
        %v963 = vpop.xlane.xlu0 %962
        %v964 = vsel %vm933, %v925, 0.0
        %965 = vadd.xlane.f32.xlu0 %v964
        %v966 = vpop.xlane.xlu0 %965
        %v967 = vsel %vm933, %v926, 0.0
        %968 = vadd.xlane.f32.xlu0 %v967
        %v969 = vpop.xlane.xlu0 %968
        %v970 = vsel %vm933, %v927, 0.0
        %971 = vadd.xlane.f32.xlu0 %v970
        %v972 = vpop.xlane.xlu0 %971
        %v973 = vsel %vm933, %v928, 0.0
        %974 = vadd.xlane.f32.xlu0 %v973
        %v975 = vpop.xlane.xlu0 %974
        %v976 = vsel %vm933, %v929, 0.0
        %977 = vadd.xlane.f32.xlu0 %v976
        %v978 = vpop.xlane.xlu0 %977
        %v979 = vsel %vm933, %v930, 0.0
        %980 = vadd.xlane.f32.xlu0 %v979
        %v981 = vpop.xlane.xlu0 %980
        %v982 = vrcp.pop 32.0
        %v983 = vmul.f32 %v936, %v982
        %v984 = vmul.f32 %v939, %v982
        %v985 = vmul.f32 %v942, %v982
        %v986 = vmul.f32 %v945, %v982
        %v987 = vmul.f32 %v948, %v982
        %v988 = vmul.f32 %v951, %v982
        %v989 = vmul.f32 %v954, %v982
        %v990 = vmul.f32 %v957, %v982
        %v991 = vmul.f32 %v960, %v982
        %v992 = vmul.f32 %v963, %v982
        %v993 = vmul.f32 %v966, %v982
        %v994 = vmul.f32 %v969, %v982
        %v995 = vmul.f32 %v972, %v982
        %v996 = vmul.f32 %v975, %v982
        %v997 = vmul.f32 %v978, %v982
        %v998 = vmul.f32 %v981, %v982
        %v999 = vsub.f32 %v915, %v983
        %v1000 = vsub.f32 %v916, %v984
        %v1001 = vsub.f32 %v917, %v985
        %v1002 = vsub.f32 %v918, %v986
        %v1003 = vsub.f32 %v919, %v987
        %v1004 = vsub.f32 %v920, %v988
        %v1005 = vsub.f32 %v921, %v989
        %v1006 = vsub.f32 %v922, %v990
        %v1007 = vsub.f32 %v923, %v991
        %v1008 = vsub.f32 %v924, %v992
        %v1009 = vsub.f32 %v925, %v993
        %v1010 = vsub.f32 %v926, %v994
        %v1011 = vsub.f32 %v927, %v995
        %v1012 = vsub.f32 %v928, %v996
        %v1013 = vsub.f32 %v929, %v997
        %v1014 = vsub.f32 %v930, %v998
        %v1015 = vmul.f32 %v999, %v999
        %v1016 = vmul.f32 %v1000, %v1000
        %v1017 = vmul.f32 %v1001, %v1001
        %v1018 = vmul.f32 %v1002, %v1002
        %v1019 = vmul.f32 %v1003, %v1003
        %v1020 = vmul.f32 %v1004, %v1004
        %v1021 = vmul.f32 %v1005, %v1005
        %v1022 = vmul.f32 %v1006, %v1006
        %v1023 = vmul.f32 %v1007, %v1007
        %v1024 = vmul.f32 %v1008, %v1008
        %v1025 = vmul.f32 %v1009, %v1009
        %v1026 = vmul.f32 %v1010, %v1010
        %v1027 = vmul.f32 %v1011, %v1011
        %v1028 = vmul.f32 %v1012, %v1012
        %v1029 = vmul.f32 %v1013, %v1013
        %v1030 = vmul.f32 %v1014, %v1014
        %v1031 = vsel %vm933, %v1015, 0.0
        %1032 = vadd.xlane.f32.xlu0 %v1031
        %v1033 = vpop.xlane.xlu0 %1032
        %v1034 = vsel %vm933, %v1016, 0.0
        %1035 = vadd.xlane.f32.xlu0 %v1034
        %v1036 = vpop.xlane.xlu0 %1035
        %v1037 = vsel %vm933, %v1017, 0.0
        %1038 = vadd.xlane.f32.xlu0 %v1037
        %v1039 = vpop.xlane.xlu0 %1038
        %v1040 = vsel %vm933, %v1018, 0.0
        %1041 = vadd.xlane.f32.xlu0 %v1040
        %v1042 = vpop.xlane.xlu0 %1041
        %v1043 = vsel %vm933, %v1019, 0.0
        %1044 = vadd.xlane.f32.xlu0 %v1043
        %v1045 = vpop.xlane.xlu0 %1044
        %v1046 = vsel %vm933, %v1020, 0.0
        %1047 = vadd.xlane.f32.xlu0 %v1046
        %v1048 = vpop.xlane.xlu0 %1047
        %v1049 = vsel %vm933, %v1021, 0.0
        %1050 = vadd.xlane.f32.xlu0 %v1049
        %v1051 = vpop.xlane.xlu0 %1050
        %v1052 = vsel %vm933, %v1022, 0.0
        %1053 = vadd.xlane.f32.xlu0 %v1052
        %v1054 = vpop.xlane.xlu0 %1053
        %v1055 = vsel %vm933, %v1023, 0.0
        %1056 = vadd.xlane.f32.xlu0 %v1055
        %v1057 = vpop.xlane.xlu0 %1056
        %v1058 = vsel %vm933, %v1024, 0.0
        %1059 = vadd.xlane.f32.xlu0 %v1058
        %v1060 = vpop.xlane.xlu0 %1059
        %v1061 = vsel %vm933, %v1025, 0.0
        %1062 = vadd.xlane.f32.xlu0 %v1061
        %v1063 = vpop.xlane.xlu0 %1062
        %v1064 = vsel %vm933, %v1026, 0.0
        %1065 = vadd.xlane.f32.xlu0 %v1064
        %v1066 = vpop.xlane.xlu0 %1065
        %v1067 = vsel %vm933, %v1027, 0.0
        %1068 = vadd.xlane.f32.xlu0 %v1067
        %v1069 = vpop.xlane.xlu0 %1068
        %v1070 = vsel %vm933, %v1028, 0.0
        %1071 = vadd.xlane.f32.xlu0 %v1070
        %v1072 = vpop.xlane.xlu0 %1071
        %v1073 = vsel %vm933, %v1029, 0.0
        %1074 = vadd.xlane.f32.xlu0 %v1073
        %v1075 = vpop.xlane.xlu0 %1074
        %v1076 = vsel %vm933, %v1030, 0.0
        %1077 = vadd.xlane.f32.xlu0 %v1076
        %v1078 = vpop.xlane.xlu0 %1077
        %v1079 = vmul.f32 %v1033, 0.032258064
        %v1080 = vmul.f32 %v1036, 0.032258064
        %v1081 = vmul.f32 %v1039, 0.032258064
        %v1082 = vmul.f32 %v1042, 0.032258064
        %v1083 = vmul.f32 %v1045, 0.032258064
        %v1084 = vmul.f32 %v1048, 0.032258064
        %v1085 = vmul.f32 %v1051, 0.032258064
        %v1086 = vmul.f32 %v1054, 0.032258064
        %v1087 = vmul.f32 %v1057, 0.032258064
        %v1088 = vmul.f32 %v1060, 0.032258064
        %v1089 = vmul.f32 %v1063, 0.032258064
        %v1090 = vmul.f32 %v1066, 0.032258064
        %v1091 = vmul.f32 %v1069, 0.032258064
        %v1092 = vmul.f32 %v1072, 0.032258064
        %v1093 = vmul.f32 %v1075, 0.032258064
        %v1094 = vmul.f32 %v1078, 0.032258064
        %v1096 = vlaneseq
        %v1097 = vshrl.u32 %v1096, 7
        %v1098 = vsub.s32 0, %v1097
        %v1099 = vrot.slane %v931, %v1098
        %v1101 = vmul.f32 %v1099, %v999
        %v1102 = vmul.f32 %v1099, %v1000
        %v1103 = vmul.f32 %v1099, %v1001
        %v1104 = vmul.f32 %v1099, %v1002
        %v1105 = vmul.f32 %v1099, %v1003
        %v1106 = vmul.f32 %v1099, %v1004
        %v1107 = vmul.f32 %v1099, %v1005
        %v1108 = vmul.f32 %v1099, %v1006
        %v1109 = vmul.f32 %v1099, %v1007
        %v1110 = vmul.f32 %v1099, %v1008
        %v1111 = vmul.f32 %v1099, %v1009
        %v1112 = vmul.f32 %v1099, %v1010
        %v1113 = vmul.f32 %v1099, %v1011
        %v1114 = vmul.f32 %v1099, %v1012
        %v1115 = vmul.f32 %v1099, %v1013
        %v1116 = vmul.f32 %v1099, %v1014
        %v1117 = vrsqrt.pop %v1079
        %v1118 = vmul.f32 %v1079, %v1117
        %vm1119 = vcmp.eq.f32.partialorder %v1079, inf
        %v1120 = vsel %vm1119, %v1079, %v1118
        %vm1121 = vcmp.eq.f32.partialorder %v1079, 0.0
        %v1122 = vand.u32 %v1079, 2147483648
        %v1123 = vsel %vm1121, %v1122, %v1120
        %v1124 = vrsqrt.pop %v1080
        %v1125 = vmul.f32 %v1080, %v1124
        %vm1126 = vcmp.eq.f32.partialorder %v1080, inf
        %v1127 = vsel %vm1126, %v1080, %v1125
        %vm1128 = vcmp.eq.f32.partialorder %v1080, 0.0
        %v1129 = vand.u32 %v1080, 2147483648
        %v1130 = vsel %vm1128, %v1129, %v1127
        %v1131 = vrsqrt.pop %v1081
        %v1132 = vmul.f32 %v1081, %v1131
        %vm1133 = vcmp.eq.f32.partialorder %v1081, inf
        %v1134 = vsel %vm1133, %v1081, %v1132
        %vm1135 = vcmp.eq.f32.partialorder %v1081, 0.0
        %v1136 = vand.u32 %v1081, 2147483648
        %v1137 = vsel %vm1135, %v1136, %v1134
        %v1138 = vrsqrt.pop %v1082
        %v1139 = vmul.f32 %v1082, %v1138
        %vm1140 = vcmp.eq.f32.partialorder %v1082, inf
        %v1141 = vsel %vm1140, %v1082, %v1139
        %vm1142 = vcmp.eq.f32.partialorder %v1082, 0.0
        %v1143 = vand.u32 %v1082, 2147483648
        %v1144 = vsel %vm1142, %v1143, %v1141
        %v1145 = vrsqrt.pop %v1083
        %v1146 = vmul.f32 %v1083, %v1145
        %vm1147 = vcmp.eq.f32.partialorder %v1083, inf
        %v1148 = vsel %vm1147, %v1083, %v1146
        %vm1149 = vcmp.eq.f32.partialorder %v1083, 0.0
        %v1150 = vand.u32 %v1083, 2147483648
        %v1151 = vsel %vm1149, %v1150, %v1148
        %v1152 = vrsqrt.pop %v1084
        %v1153 = vmul.f32 %v1084, %v1152
        %vm1154 = vcmp.eq.f32.partialorder %v1084, inf
        %v1155 = vsel %vm1154, %v1084, %v1153
        %vm1156 = vcmp.eq.f32.partialorder %v1084, 0.0
        %v1157 = vand.u32 %v1084, 2147483648
        %v1158 = vsel %vm1156, %v1157, %v1155
        %v1159 = vrsqrt.pop %v1085
        %v1160 = vmul.f32 %v1085, %v1159
        %vm1161 = vcmp.eq.f32.partialorder %v1085, inf
        %v1162 = vsel %vm1161, %v1085, %v1160
        %vm1163 = vcmp.eq.f32.partialorder %v1085, 0.0
        %v1164 = vand.u32 %v1085, 2147483648
        %v1165 = vsel %vm1163, %v1164, %v1162
        %v1166 = vrsqrt.pop %v1086
        %v1167 = vmul.f32 %v1086, %v1166
        %vm1168 = vcmp.eq.f32.partialorder %v1086, inf
        %v1169 = vsel %vm1168, %v1086, %v1167
        %vm1170 = vcmp.eq.f32.partialorder %v1086, 0.0
        %v1171 = vand.u32 %v1086, 2147483648
        %v1172 = vsel %vm1170, %v1171, %v1169
        %v1173 = vrsqrt.pop %v1087
        %v1174 = vmul.f32 %v1087, %v1173
        %vm1175 = vcmp.eq.f32.partialorder %v1087, inf
        %v1176 = vsel %vm1175, %v1087, %v1174
        %vm1177 = vcmp.eq.f32.partialorder %v1087, 0.0
        %v1178 = vand.u32 %v1087, 2147483648
        %v1179 = vsel %vm1177, %v1178, %v1176
        %v1180 = vrsqrt.pop %v1088
        %v1181 = vmul.f32 %v1088, %v1180
        %vm1182 = vcmp.eq.f32.partialorder %v1088, inf
        %v1183 = vsel %vm1182, %v1088, %v1181
        %vm1184 = vcmp.eq.f32.partialorder %v1088, 0.0
        %v1185 = vand.u32 %v1088, 2147483648
        %v1186 = vsel %vm1184, %v1185, %v1183
        %v1187 = vrsqrt.pop %v1089
        %v1188 = vmul.f32 %v1089, %v1187
        %vm1189 = vcmp.eq.f32.partialorder %v1089, inf
        %v1190 = vsel %vm1189, %v1089, %v1188
        %vm1191 = vcmp.eq.f32.partialorder %v1089, 0.0
        %v1192 = vand.u32 %v1089, 2147483648
        %v1193 = vsel %vm1191, %v1192, %v1190
        %v1194 = vrsqrt.pop %v1090
        %v1195 = vmul.f32 %v1090, %v1194
        %vm1196 = vcmp.eq.f32.partialorder %v1090, inf
        %v1197 = vsel %vm1196, %v1090, %v1195
        %vm1198 = vcmp.eq.f32.partialorder %v1090, 0.0
        %v1199 = vand.u32 %v1090, 2147483648
        %v1200 = vsel %vm1198, %v1199, %v1197
        %v1201 = vrsqrt.pop %v1091
        %v1202 = vmul.f32 %v1091, %v1201
        %vm1203 = vcmp.eq.f32.partialorder %v1091, inf
        %v1204 = vsel %vm1203, %v1091, %v1202
        %vm1205 = vcmp.eq.f32.partialorder %v1091, 0.0
        %v1206 = vand.u32 %v1091, 2147483648
        %v1207 = vsel %vm1205, %v1206, %v1204
        %v1208 = vrsqrt.pop %v1092
        %v1209 = vmul.f32 %v1092, %v1208
        %vm1210 = vcmp.eq.f32.partialorder %v1092, inf
        %v1211 = vsel %vm1210, %v1092, %v1209
        %vm1212 = vcmp.eq.f32.partialorder %v1092, 0.0
        %v1213 = vand.u32 %v1092, 2147483648
        %v1214 = vsel %vm1212, %v1213, %v1211
        %v1215 = vrsqrt.pop %v1093
        %v1216 = vmul.f32 %v1093, %v1215
        %vm1217 = vcmp.eq.f32.partialorder %v1093, inf
        %v1218 = vsel %vm1217, %v1093, %v1216
        %vm1219 = vcmp.eq.f32.partialorder %v1093, 0.0
        %v1220 = vand.u32 %v1093, 2147483648
        %v1221 = vsel %vm1219, %v1220, %v1218
        %v1222 = vrsqrt.pop %v1094
        %v1223 = vmul.f32 %v1094, %v1222
        %vm1224 = vcmp.eq.f32.partialorder %v1094, inf
        %v1225 = vsel %vm1224, %v1094, %v1223
        %vm1226 = vcmp.eq.f32.partialorder %v1094, 0.0
        %v1227 = vand.u32 %v1094, 2147483648
        %v1228 = vsel %vm1226, %v1227, %v1225
        %v1229 = vadd.f32 %v1123, 1e-06
        %v1230 = vadd.f32 %v1130, 1e-06
        %v1231 = vadd.f32 %v1137, 1e-06
        %v1232 = vadd.f32 %v1144, 1e-06
        %v1233 = vadd.f32 %v1151, 1e-06
        %v1234 = vadd.f32 %v1158, 1e-06
        %v1235 = vadd.f32 %v1165, 1e-06
        %v1236 = vadd.f32 %v1172, 1e-06
        %v1237 = vadd.f32 %v1179, 1e-06
        %v1238 = vadd.f32 %v1186, 1e-06
        %v1239 = vadd.f32 %v1193, 1e-06
        %v1240 = vadd.f32 %v1200, 1e-06
        %v1241 = vadd.f32 %v1207, 1e-06
        %v1242 = vadd.f32 %v1214, 1e-06
        %v1243 = vadd.f32 %v1221, 1e-06
        %v1244 = vadd.f32 %v1228, 1e-06
        %v1245 = vrcp.pop %v1229
        %v1246 = vmul.f32 %v1101, %v1245
        %v1247 = vrcp.pop %v1230
        %v1248 = vmul.f32 %v1102, %v1247
        %v1249 = vrcp.pop %v1231
        %v1250 = vmul.f32 %v1103, %v1249
        %v1251 = vrcp.pop %v1232
        %v1252 = vmul.f32 %v1104, %v1251
        %v1253 = vrcp.pop %v1233
        %v1254 = vmul.f32 %v1105, %v1253
        %v1255 = vrcp.pop %v1234
        %v1256 = vmul.f32 %v1106, %v1255
        %v1257 = vrcp.pop %v1235
        %v1258 = vmul.f32 %v1107, %v1257
        %v1259 = vrcp.pop %v1236
        %v1260 = vmul.f32 %v1108, %v1259
        %v1261 = vrcp.pop %v1237
        %v1262 = vmul.f32 %v1109, %v1261
        %v1263 = vrcp.pop %v1238
        %v1264 = vmul.f32 %v1110, %v1263
        %v1265 = vrcp.pop %v1239
        %v1266 = vmul.f32 %v1111, %v1265
        %v1267 = vrcp.pop %v1240
        %v1268 = vmul.f32 %v1112, %v1267
        %v1269 = vrcp.pop %v1241
        %v1270 = vmul.f32 %v1113, %v1269
        %v1271 = vrcp.pop %v1242
        %v1272 = vmul.f32 %v1114, %v1271
        %v1273 = vrcp.pop %v1243
        %v1274 = vmul.f32 %v1115, %v1273
        %v1275 = vrcp.pop %v1244
        %v1276 = vmul.f32 %v1116, %v1275
        %v1278 = vlaneseq
        %v1279 = vshrl.u32 %v1278, 7
        %v1280 = vsub.s32 0, %v1279
        %v1281 = vrot.slane %v932, %v1280
        %v1283 = vadd.f32 %v1246, %v1281
        %v1284 = vadd.f32 %v1248, %v1281
        %v1285 = vadd.f32 %v1250, %v1281
        %v1286 = vadd.f32 %v1252, %v1281
        %v1287 = vadd.f32 %v1254, %v1281
        %v1288 = vadd.f32 %v1256, %v1281
        %v1289 = vadd.f32 %v1258, %v1281
        %v1290 = vadd.f32 %v1260, %v1281
        %v1291 = vadd.f32 %v1262, %v1281
        %v1292 = vadd.f32 %v1264, %v1281
        %v1293 = vadd.f32 %v1266, %v1281
        %v1294 = vadd.f32 %v1268, %v1281
        %v1295 = vadd.f32 %v1270, %v1281
        %v1296 = vadd.f32 %v1272, %v1281
        %v1297 = vadd.f32 %v1274, %v1281
        %v1298 = vadd.f32 %v1276, %v1281
        %v1299 = vsub.f32 %v736, %v720
        %v1300 = vsub.f32 %v737, %v721
        %v1301 = vsub.f32 %v738, %v722
        %v1302 = vsub.f32 %v739, %v723
        %v1303 = vsub.f32 %v740, %v724
        %v1304 = vsub.f32 %v741, %v725
        %v1305 = vsub.f32 %v742, %v726
        %v1306 = vsub.f32 %v743, %v727
        %v1307 = vsub.f32 %v744, %v728
        %v1308 = vsub.f32 %v745, %v729
        %v1309 = vsub.f32 %v746, %v730
        %v1310 = vsub.f32 %v747, %v731
        %v1311 = vsub.f32 %v748, %v732
        %v1312 = vsub.f32 %v749, %v733
        %v1313 = vsub.f32 %v750, %v734
        %v1314 = vsub.f32 %v751, %v735
        %v1315 = vsel %vm775, %v1299, -inf
        %1316 = vmax.xlane.f32.xlu0 %v1315
        %v1317 = vpop.xlane.xlu0 %1316
        %v1318 = vsel %vm775, %v1300, -inf
        %1319 = vmax.xlane.f32.xlu0 %v1318
        %v1320 = vpop.xlane.xlu0 %1319
        %v1321 = vsel %vm775, %v1301, -inf
        %1322 = vmax.xlane.f32.xlu0 %v1321
        %v1323 = vpop.xlane.xlu0 %1322
        %v1324 = vsel %vm775, %v1302, -inf
        %1325 = vmax.xlane.f32.xlu0 %v1324
        %v1326 = vpop.xlane.xlu0 %1325
        %v1327 = vsel %vm775, %v1303, -inf
        %1328 = vmax.xlane.f32.xlu0 %v1327
        %v1329 = vpop.xlane.xlu0 %1328
        %v1330 = vsel %vm775, %v1304, -inf
        %1331 = vmax.xlane.f32.xlu0 %v1330
        %v1332 = vpop.xlane.xlu0 %1331
        %v1333 = vsel %vm775, %v1305, -inf
        %1334 = vmax.xlane.f32.xlu0 %v1333
        %v1335 = vpop.xlane.xlu0 %1334
        %v1336 = vsel %vm775, %v1306, -inf
        %1337 = vmax.xlane.f32.xlu0 %v1336
        %v1338 = vpop.xlane.xlu0 %1337
        %v1339 = vsel %vm775, %v1307, -inf
        %1340 = vmax.xlane.f32.xlu0 %v1339
        %v1341 = vpop.xlane.xlu0 %1340
        %v1342 = vsel %vm775, %v1308, -inf
        %1343 = vmax.xlane.f32.xlu0 %v1342
        %v1344 = vpop.xlane.xlu0 %1343
        %v1345 = vsel %vm775, %v1309, -inf
        %1346 = vmax.xlane.f32.xlu0 %v1345
        %v1347 = vpop.xlane.xlu0 %1346
        %v1348 = vsel %vm775, %v1310, -inf
        %1349 = vmax.xlane.f32.xlu0 %v1348
        %v1350 = vpop.xlane.xlu0 %1349
        %v1351 = vsel %vm775, %v1311, -inf
        %1352 = vmax.xlane.f32.xlu0 %v1351
        %v1353 = vpop.xlane.xlu0 %1352
        %v1354 = vsel %vm775, %v1312, -inf
        %1355 = vmax.xlane.f32.xlu0 %v1354
        %v1356 = vpop.xlane.xlu0 %1355
        %v1357 = vsel %vm775, %v1313, -inf
        %1358 = vmax.xlane.f32.xlu0 %v1357
        %v1359 = vpop.xlane.xlu0 %1358
        %v1360 = vsel %vm775, %v1314, -inf
        %1361 = vmax.xlane.f32.xlu0 %v1360
        %v1362 = vpop.xlane.xlu0 %1361
        %v1363 = vsub.f32 %v1299, %v1317
        %v1364 = vsub.f32 %v1300, %v1320
        %v1365 = vsub.f32 %v1301, %v1323
        %v1366 = vsub.f32 %v1302, %v1326
        %v1367 = vsub.f32 %v1303, %v1329
        %v1368 = vsub.f32 %v1304, %v1332
        %v1369 = vsub.f32 %v1305, %v1335
        %v1370 = vsub.f32 %v1306, %v1338
        %v1371 = vsub.f32 %v1307, %v1341
        %v1372 = vsub.f32 %v1308, %v1344
        %v1373 = vsub.f32 %v1309, %v1347
        %v1374 = vsub.f32 %v1310, %v1350
        %v1375 = vsub.f32 %v1311, %v1353
        %v1376 = vsub.f32 %v1312, %v1356
        %v1377 = vsub.f32 %v1313, %v1359
        %v1378 = vsub.f32 %v1314, %v1362
        %v1379 = vmul.f32 %v1363, 1.442695
        %v1380 = vpow.pop %v1379
        %v1381 = vmul.f32 %v1364, 1.442695
        %v1382 = vpow.pop %v1381
        %v1383 = vmul.f32 %v1365, 1.442695
        %v1384 = vpow.pop %v1383
        %v1385 = vmul.f32 %v1366, 1.442695
        %v1386 = vpow.pop %v1385
        %v1387 = vmul.f32 %v1367, 1.442695
        %v1388 = vpow.pop %v1387
        %v1389 = vmul.f32 %v1368, 1.442695
        %v1390 = vpow.pop %v1389
        %v1391 = vmul.f32 %v1369, 1.442695
        %v1392 = vpow.pop %v1391
        %v1393 = vmul.f32 %v1370, 1.442695
        %v1394 = vpow.pop %v1393
        %v1395 = vmul.f32 %v1371, 1.442695
        %v1396 = vpow.pop %v1395
        %v1397 = vmul.f32 %v1372, 1.442695
        %v1398 = vpow.pop %v1397
        %v1399 = vmul.f32 %v1373, 1.442695
        %v1400 = vpow.pop %v1399
        %v1401 = vmul.f32 %v1374, 1.442695
        %v1402 = vpow.pop %v1401
        %v1403 = vmul.f32 %v1375, 1.442695
        %v1404 = vpow.pop %v1403
        %v1405 = vmul.f32 %v1376, 1.442695
        %v1406 = vpow.pop %v1405
        %v1407 = vmul.f32 %v1377, 1.442695
        %v1408 = vpow.pop %v1407
        %v1409 = vmul.f32 %v1378, 1.442695
        %v1410 = vpow.pop %v1409
        %v1411 = vsel %vm775, %v1380, 0.0
        %1412 = vadd.xlane.f32.xlu0 %v1411
        %v1413 = vpop.xlane.xlu0 %1412
        %v1414 = vsel %vm775, %v1382, 0.0
        %1415 = vadd.xlane.f32.xlu0 %v1414
        %v1416 = vpop.xlane.xlu0 %1415
        %v1417 = vsel %vm775, %v1384, 0.0
        %1418 = vadd.xlane.f32.xlu0 %v1417
        %v1419 = vpop.xlane.xlu0 %1418
        %v1420 = vsel %vm775, %v1386, 0.0
        %1421 = vadd.xlane.f32.xlu0 %v1420
        %v1422 = vpop.xlane.xlu0 %1421
        %v1423 = vsel %vm775, %v1388, 0.0
        %1424 = vadd.xlane.f32.xlu0 %v1423
        %v1425 = vpop.xlane.xlu0 %1424
        %v1426 = vsel %vm775, %v1390, 0.0
        %1427 = vadd.xlane.f32.xlu0 %v1426
        %v1428 = vpop.xlane.xlu0 %1427
        %v1429 = vsel %vm775, %v1392, 0.0
        %1430 = vadd.xlane.f32.xlu0 %v1429
        %v1431 = vpop.xlane.xlu0 %1430
        %v1432 = vsel %vm775, %v1394, 0.0
        %1433 = vadd.xlane.f32.xlu0 %v1432
        %v1434 = vpop.xlane.xlu0 %1433
        %v1435 = vsel %vm775, %v1396, 0.0
        %1436 = vadd.xlane.f32.xlu0 %v1435
        %v1437 = vpop.xlane.xlu0 %1436
        %v1438 = vsel %vm775, %v1398, 0.0
        %1439 = vadd.xlane.f32.xlu0 %v1438
        %v1440 = vpop.xlane.xlu0 %1439
        %v1441 = vsel %vm775, %v1400, 0.0
        %1442 = vadd.xlane.f32.xlu0 %v1441
        %v1443 = vpop.xlane.xlu0 %1442
        %v1444 = vsel %vm775, %v1402, 0.0
        %1445 = vadd.xlane.f32.xlu0 %v1444
        %v1446 = vpop.xlane.xlu0 %1445
        %v1447 = vsel %vm775, %v1404, 0.0
        %1448 = vadd.xlane.f32.xlu0 %v1447
        %v1449 = vpop.xlane.xlu0 %1448
        %v1450 = vsel %vm775, %v1406, 0.0
        %1451 = vadd.xlane.f32.xlu0 %v1450
        %v1452 = vpop.xlane.xlu0 %1451
        %v1453 = vsel %vm775, %v1408, 0.0
        %1454 = vadd.xlane.f32.xlu0 %v1453
        %v1455 = vpop.xlane.xlu0 %1454
        %v1456 = vsel %vm775, %v1410, 0.0
        %1457 = vadd.xlane.f32.xlu0 %v1456
        %v1458 = vpop.xlane.xlu0 %1457
        %v1459 = vrcp.pop %v1413
        %v1460 = vrcp.pop %v1416
        %v1461 = vrcp.pop %v1419
        %v1462 = vrcp.pop %v1422
        %v1463 = vrcp.pop %v1425
        %v1464 = vrcp.pop %v1428
        %v1465 = vrcp.pop %v1431
        %v1466 = vrcp.pop %v1434
        %v1467 = vrcp.pop %v1437
        %v1468 = vrcp.pop %v1440
        %v1469 = vrcp.pop %v1443
        %v1470 = vrcp.pop %v1446
        %v1471 = vrcp.pop %v1449
        %v1472 = vrcp.pop %v1452
        %v1473 = vrcp.pop %v1455
        %v1474 = vrcp.pop %v1458
        %v1475 = vmul.f32 %v1380, %v1459
        %v1476 = vmul.f32 %v1382, %v1460
        %v1477 = vmul.f32 %v1384, %v1461
        %v1478 = vmul.f32 %v1386, %v1462
        %v1479 = vmul.f32 %v1388, %v1463
        %v1480 = vmul.f32 %v1390, %v1464
        %v1481 = vmul.f32 %v1392, %v1465
        %v1482 = vmul.f32 %v1394, %v1466
        %v1483 = vmul.f32 %v1396, %v1467
        %v1484 = vmul.f32 %v1398, %v1468
        %v1485 = vmul.f32 %v1400, %v1469
        %v1486 = vmul.f32 %v1402, %v1470
        %v1487 = vmul.f32 %v1404, %v1471
        %v1488 = vmul.f32 %v1406, %v1472
        %v1489 = vmul.f32 %v1408, %v1473
        %v1490 = vmul.f32 %v1410, %v1474
        %s1491 = sld [smem:[#allocation9]]
        %s1492 = sld [smem:[#allocation9 + $0x1]]
        %s1493 = sld [smem:[#allocation9 + $0x2]]
        %s1494 = sld [smem:[#allocation9 + $0x3]]
        %v1495 = vstv %s1492
        %v1496 = vmul.f32 %v1495, %v1475
        %v1497 = vmul.f32 %v1495, %v1476
        %v1498 = vmul.f32 %v1495, %v1477
        %v1499 = vmul.f32 %v1495, %v1478
        %v1500 = vmul.f32 %v1495, %v1479
        %v1501 = vmul.f32 %v1495, %v1480
        %v1502 = vmul.f32 %v1495, %v1481
        %v1503 = vmul.f32 %v1495, %v1482
        %v1504 = vmul.f32 %v1495, %v1483
        %v1505 = vmul.f32 %v1495, %v1484
        %v1506 = vmul.f32 %v1495, %v1485
        %v1507 = vmul.f32 %v1495, %v1486
        %v1508 = vmul.f32 %v1495, %v1487
        %v1509 = vmul.f32 %v1495, %v1488
        %v1510 = vmul.f32 %v1495, %v1489
        %v1511 = vmul.f32 %v1495, %v1490
        %v1512 = vstv %s1493
        %v1513 = vmul.f32 %v1512, %v704
        %v1514 = vmul.f32 %v1512, %v705
        %v1515 = vmul.f32 %v1512, %v706
        %v1516 = vmul.f32 %v1512, %v707
        %v1517 = vmul.f32 %v1512, %v708
        %v1518 = vmul.f32 %v1512, %v709
        %v1519 = vmul.f32 %v1512, %v710
        %v1520 = vmul.f32 %v1512, %v711
        %v1521 = vmul.f32 %v1512, %v712
        %v1522 = vmul.f32 %v1512, %v713
        %v1523 = vmul.f32 %v1512, %v714
        %v1524 = vmul.f32 %v1512, %v715
        %v1525 = vmul.f32 %v1512, %v716
        %v1526 = vmul.f32 %v1512, %v717
        %v1527 = vmul.f32 %v1512, %v718
        %v1528 = vmul.f32 %v1512, %v719
        %v1529 = vadd.f32 %v1496, %v1513
        %v1530 = vadd.f32 %v1497, %v1514
        %v1531 = vadd.f32 %v1498, %v1515
        %v1532 = vadd.f32 %v1499, %v1516
        %v1533 = vadd.f32 %v1500, %v1517
        %v1534 = vadd.f32 %v1501, %v1518
        %v1535 = vadd.f32 %v1502, %v1519
        %v1536 = vadd.f32 %v1503, %v1520
        %v1537 = vadd.f32 %v1504, %v1521
        %v1538 = vadd.f32 %v1505, %v1522
        %v1539 = vadd.f32 %v1506, %v1523
        %v1540 = vadd.f32 %v1507, %v1524
        %v1541 = vadd.f32 %v1508, %v1525
        %v1542 = vadd.f32 %v1509, %v1526
        %v1543 = vadd.f32 %v1510, %v1527
        %v1544 = vadd.f32 %v1511, %v1528
        %v1545 = vstv %s1494
        %v1546 = vadd.f32 %v1529, %v1545
        %v1547 = vadd.f32 %v1530, %v1545
        %v1548 = vadd.f32 %v1531, %v1545
        %v1549 = vadd.f32 %v1532, %v1545
        %v1550 = vadd.f32 %v1533, %v1545
        %v1551 = vadd.f32 %v1534, %v1545
        %v1552 = vadd.f32 %v1535, %v1545
        %v1553 = vadd.f32 %v1536, %v1545
        %v1554 = vadd.f32 %v1537, %v1545
        %v1555 = vadd.f32 %v1538, %v1545
        %v1556 = vadd.f32 %v1539, %v1545
        %v1557 = vadd.f32 %v1540, %v1545
        %v1558 = vadd.f32 %v1541, %v1545
        %v1559 = vadd.f32 %v1542, %v1545
        %v1560 = vadd.f32 %v1543, %v1545
        %v1561 = vadd.f32 %v1544, %v1545
        %v1562 = vadd.f32 %v1546, %v736
        %v1563 = vadd.f32 %v1547, %v737
        %v1564 = vadd.f32 %v1548, %v738
        %v1565 = vadd.f32 %v1549, %v739
        %v1566 = vadd.f32 %v1550, %v740
        %v1567 = vadd.f32 %v1551, %v741
        %v1568 = vadd.f32 %v1552, %v742
        %v1569 = vadd.f32 %v1553, %v743
        %v1570 = vadd.f32 %v1554, %v744
        %v1571 = vadd.f32 %v1555, %v745
        %v1572 = vadd.f32 %v1556, %v746
        %v1573 = vadd.f32 %v1557, %v747
        %v1574 = vadd.f32 %v1558, %v748
        %v1575 = vadd.f32 %v1559, %v749
        %v1576 = vadd.f32 %v1560, %v750
        %v1577 = vadd.f32 %v1561, %v751
        %v1578 = vpack.c.bf16 %v1284, %v1283
        %v1579 = vpack.c.bf16 %v1286, %v1285
        %v1580 = vpack.c.bf16 %v1288, %v1287
        %v1581 = vpack.c.bf16 %v1290, %v1289
        %v1582 = vpack.c.bf16 %v1292, %v1291
        %v1583 = vpack.c.bf16 %v1294, %v1293
        %v1584 = vpack.c.bf16 %v1296, %v1295
        %v1585 = vpack.c.bf16 %v1298, %v1297
        %v1586 = vld [vmem:[%s9] sm:$0xf]
        %v1587 = vld [vmem:[%s9 + $0x4] sm:$0xf]
        %v1588 = vld [vmem:[%s9 + $0x8] sm:$0xf]
        %v1589 = vld [vmem:[%s9 + $0xc] sm:$0xf]
        %v1594 = vunpack.c.l.b16 %v1586
        %v1595 = vunpack.c.l.b16 %v1587
        %v1596 = vunpack.c.l.b16 %v1588
        %v1597 = vunpack.c.l.b16 %v1589
        %v1598 = vpack.c.b16 %v1595, %v1594
        %v1599 = vpack.c.b16 %v1597, %v1596
        %v1603 = vsel %vm933, %v1578, 0
        %v1606 = vsel %vm933, %v1579, 0
        %v1609 = vsel %vm933, %v1580, 0
        %v1612 = vsel %vm933, %v1581, 0
        %v1615 = vsel %vm933, %v1582, 0
        %v1618 = vsel %vm933, %v1583, 0
        %v1621 = vsel %vm933, %v1584, 0
        %v1624 = vsel %vm933, %v1585, 0
        %1626 = vmatprep.subr.bf16.mxu0 0
        %1627 = vmatpush1.bf16.msra.mxu0 %v1598
        %1628 = vmatprep.subr.bf16.mxu0 0
        %1629 = vmatpush1.bf16.msra.mxu0 %v1599
        %1630 = vmatprep.subr.bf16.mxu0 0
        %1631 = vmatpush1.bf16.msra.mxu0 0
        %1632 = vmatprep.subr.bf16.mxu0 0
        %1633 = vmatpush1.bf16.msra.mxu0 0
        %1634 = vmatprep.subr.bf16.mxu0 0
        %1635 = vmatpush1.bf16.msra.mxu0 0
        %1636 = vmatprep.subr.bf16.mxu0 0
        %1637 = vmatpush1.bf16.msra.mxu0 0
        %1638 = vmatprep.subr.bf16.mxu0 0
        %1639 = vmatpush1.bf16.msra.mxu0 0
        %1640 = vmatprep.subr.bf16.mxu0 0
        %1641 = vmatpush1.bf16.msra.mxu0 0
        %1642 = vmatprep.subr.bf16.mxu0 0
        %1643 = vmatpush1.bf16.msra.mxu0 0
        %1644 = vmatprep.subr.bf16.mxu0 0
        %1645 = vmatpush1.bf16.msra.mxu0 0
        %1646 = vmatprep.subr.bf16.mxu0 0
        %1647 = vmatpush1.bf16.msra.mxu0 0
        %1648 = vmatprep.subr.bf16.mxu0 0
        %1649 = vmatpush1.bf16.msra.mxu0 0
        %1650 = vmatprep.subr.bf16.mxu0 0
        %1651 = vmatpush1.bf16.msra.mxu0 0
        %1652 = vmatprep.subr.bf16.mxu0 0
        %1653 = vmatpush1.bf16.msra.mxu0 0
        %1654 = vmatprep.subr.bf16.mxu0 0
        %1655 = vmatpush1.bf16.msra.mxu0 0
        %1656 = vmatprep.subr.bf16.mxu0 0
        %1657 = vmatpush1.bf16.msra.mxu0 0
        %1658 = vmatprep.mubr.bf16.mxu0 0
        %1659 = vmatmul.mubr.bf16.gmra.mrb[0].mxu0 %v1603
        %v1660 = vpop.f32.mrb[0].mxu0
        %v1661 = vadd.f32 0.0, %v1660
        %v1662 = vpop.f32.mrb[0].mxu0
        %v1663 = vpop.f32.mrb[0].mxu0
        %v1664 = vadd.f32 0.0, %v1663
        %v1665 = vpop.f32.mrb[0].mxu0
        %1666 = vmatprep.mubr.bf16.mxu0 0
        %1667 = vmatmul.mubr.bf16.gmra.mrb[0].mxu0 %v1606
        %v1668 = vpop.f32.mrb[0].mxu0
        %v1669 = vadd.f32 0.0, %v1668
        %v1670 = vpop.f32.mrb[0].mxu0
        %v1671 = vpop.f32.mrb[0].mxu0
        %v1672 = vadd.f32 0.0, %v1671
        %v1673 = vpop.f32.mrb[0].mxu0
        %1674 = vmatprep.mubr.bf16.mxu0 0
        %1675 = vmatmul.mubr.bf16.gmra.mrb[0].mxu0 %v1609
        %v1676 = vpop.f32.mrb[0].mxu0
        %v1677 = vadd.f32 0.0, %v1676
        %v1678 = vpop.f32.mrb[0].mxu0
        %v1679 = vpop.f32.mrb[0].mxu0
        %v1680 = vadd.f32 0.0, %v1679
        %v1681 = vpop.f32.mrb[0].mxu0
        %1682 = vmatprep.mubr.bf16.mxu0 0
        %1683 = vmatmul.mubr.bf16.gmra.mrb[0].mxu0 %v1612
        %v1684 = vpop.f32.mrb[0].mxu0
        %v1685 = vadd.f32 0.0, %v1684
        %v1686 = vpop.f32.mrb[0].mxu0
        %v1687 = vpop.f32.mrb[0].mxu0
        %v1688 = vadd.f32 0.0, %v1687
        %v1689 = vpop.f32.mrb[0].mxu0
        %1690 = vmatprep.mubr.bf16.mxu0 0
        %1691 = vmatmul.mubr.bf16.gmra.mrb[0].mxu0 %v1615
        %v1692 = vpop.f32.mrb[0].mxu0
        %v1693 = vadd.f32 0.0, %v1692
        %v1694 = vpop.f32.mrb[0].mxu0
        %v1695 = vpop.f32.mrb[0].mxu0
        %v1696 = vadd.f32 0.0, %v1695
        %v1697 = vpop.f32.mrb[0].mxu0
        %1698 = vmatprep.mubr.bf16.mxu0 0
        %1699 = vmatmul.mubr.bf16.gmra.mrb[0].mxu0 %v1618
        %v1700 = vpop.f32.mrb[0].mxu0
        %v1701 = vadd.f32 0.0, %v1700
        %v1702 = vpop.f32.mrb[0].mxu0
        %v1703 = vpop.f32.mrb[0].mxu0
        %v1704 = vadd.f32 0.0, %v1703
        %v1705 = vpop.f32.mrb[0].mxu0
        %1706 = vmatprep.mubr.bf16.mxu0 0
        %1707 = vmatmul.mubr.bf16.gmra.mrb[0].mxu0 %v1621
        %v1708 = vpop.f32.mrb[0].mxu0
        %v1709 = vadd.f32 0.0, %v1708
        %v1710 = vpop.f32.mrb[0].mxu0
        %v1711 = vpop.f32.mrb[0].mxu0
        %v1712 = vadd.f32 0.0, %v1711
        %v1713 = vpop.f32.mrb[0].mxu0
        %1714 = vmatprep.mubr.bf16.mxu0 0
        %1715 = vmatmul.mubr.bf16.gmra.mrb[0].mxu0 %v1624
        %v1716 = vpop.f32.mrb[0].mxu0
        %v1717 = vadd.f32 0.0, %v1716
        %v1718 = vpop.f32.mrb[0].mxu0
        %v1719 = vpop.f32.mrb[0].mxu0
        %v1720 = vadd.f32 0.0, %v1719
        %v1721 = vpop.f32.mrb[0].mxu0
        %1722 = vdwg.mxu0
        %v1723 = vpack.c.bf16 %v1664, %v1661
        %v1724 = vpack.c.bf16 %v1672, %v1669
        %v1725 = vpack.c.bf16 %v1680, %v1677
        %v1726 = vpack.c.bf16 %v1688, %v1685
        %v1727 = vpack.c.bf16 %v1696, %v1693
        %v1728 = vpack.c.bf16 %v1704, %v1701
        %v1729 = vpack.c.bf16 %v1712, %v1709
        %v1730 = vpack.c.bf16 %v1720, %v1717
        %1732 = vrot.lane.b32.xlu0 %v1723, 96
        %v1733 = vpop.permute.xlu0 %1732
        %vm1734 = vcmask 64512
        %v1736 = vsel %vm1734, %v1723, 0
        %v1739 = vsel %vm1734, %v1733, 0
        %1741 = vmatprep.subr.bf16.mxu0 0
        %1742 = vmatpush1.bf16.xpose.msra.mxu0 %v1739
        %1743 = vmatprep.subr.bf16.mxu0 0
        %1744 = vmatpush1.bf16.xpose.msra.mxu0 0
        %1745 = vmatprep.subr.bf16.mxu0 0
        %1746 = vmatpush1.bf16.xpose.msra.mxu0 0
        %1747 = vmatprep.subr.bf16.mxu0 0
        %1748 = vmatpush1.bf16.xpose.msra.mxu0 0
        %1749 = vmatprep.subr.bf16.mxu0 0
        %1750 = vmatpush1.bf16.xpose.msra.mxu0 0
        %1751 = vmatprep.subr.bf16.mxu0 0
        %1752 = vmatpush1.bf16.xpose.msra.mxu0 0
        %1753 = vmatprep.subr.bf16.mxu0 0
        %1754 = vmatpush1.bf16.xpose.msra.mxu0 0
        %1755 = vmatprep.subr.bf16.mxu0 0
        %1756 = vmatpush1.bf16.xpose.msra.mxu0 0
        %1757 = vmatprep.subr.bf16.mxu0 0
        %1758 = vmatpush1.bf16.xpose.msra.mxu0 0
        %1759 = vmatprep.subr.bf16.mxu0 0
        %1760 = vmatpush1.bf16.xpose.msra.mxu0 0
        %1761 = vmatprep.subr.bf16.mxu0 0
        %1762 = vmatpush1.bf16.xpose.msra.mxu0 0
        %1763 = vmatprep.subr.bf16.mxu0 0
        %1764 = vmatpush1.bf16.xpose.msra.mxu0 0
        %1765 = vmatprep.subr.bf16.mxu0 0
        %1766 = vmatpush1.bf16.xpose.msra.mxu0 0
        %1767 = vmatprep.subr.bf16.mxu0 0
        %1768 = vmatpush1.bf16.xpose.msra.mxu0 0
        %1769 = vmatprep.subr.bf16.mxu0 0
        %1770 = vmatpush1.bf16.xpose.msra.mxu0 0
        %1771 = vmatprep.subr.bf16.mxu0 0
        %1772 = vmatpush1.bf16.xpose.msra.mxu0 0
        %1773 = vmatprep.mubr.bf16.mxu0 0
        %1774 = vmatmul.mubr.bf16.gmra.mrb[0].mxu0 %v1736
        %v1775 = vpop.f32.mrb[0].mxu0
        %v1776 = vadd.f32 0.0, %v1775
        %v1777 = vpop.f32.mrb[0].mxu0
        %v1778 = vpop.f32.mrb[0].mxu0
        %v1779 = vadd.f32 0.0, %v1778
        %v1780 = vpop.f32.mrb[0].mxu0
        %1781 = vdwg.mxu0
        %1783 = vrot.lane.b32.xlu0 %v1724, 96
        %v1784 = vpop.permute.xlu0 %1783
        %v1786 = vsel %vm1734, %v1724, 0
        %v1789 = vsel %vm1734, %v1784, 0
        %1791 = vmatprep.subr.bf16.mxu0 0
        %1792 = vmatpush1.bf16.xpose.msra.mxu0 %v1789
        %1793 = vmatprep.subr.bf16.mxu0 0
        %1794 = vmatpush1.bf16.xpose.msra.mxu0 0
        %1795 = vmatprep.subr.bf16.mxu0 0
        %1796 = vmatpush1.bf16.xpose.msra.mxu0 0
        %1797 = vmatprep.subr.bf16.mxu0 0
        %1798 = vmatpush1.bf16.xpose.msra.mxu0 0
        %1799 = vmatprep.subr.bf16.mxu0 0
        %1800 = vmatpush1.bf16.xpose.msra.mxu0 0
        %1801 = vmatprep.subr.bf16.mxu0 0
        %1802 = vmatpush1.bf16.xpose.msra.mxu0 0
        %1803 = vmatprep.subr.bf16.mxu0 0
        %1804 = vmatpush1.bf16.xpose.msra.mxu0 0
        %1805 = vmatprep.subr.bf16.mxu0 0
        %1806 = vmatpush1.bf16.xpose.msra.mxu0 0
        %1807 = vmatprep.subr.bf16.mxu0 0
        %1808 = vmatpush1.bf16.xpose.msra.mxu0 0
        %1809 = vmatprep.subr.bf16.mxu0 0
        %1810 = vmatpush1.bf16.xpose.msra.mxu0 0
        %1811 = vmatprep.subr.bf16.mxu0 0
        %1812 = vmatpush1.bf16.xpose.msra.mxu0 0
        %1813 = vmatprep.subr.bf16.mxu0 0
        %1814 = vmatpush1.bf16.xpose.msra.mxu0 0
        %1815 = vmatprep.subr.bf16.mxu0 0
        %1816 = vmatpush1.bf16.xpose.msra.mxu0 0
        %1817 = vmatprep.subr.bf16.mxu0 0
        %1818 = vmatpush1.bf16.xpose.msra.mxu0 0
        %1819 = vmatprep.subr.bf16.mxu0 0
        %1820 = vmatpush1.bf16.xpose.msra.mxu0 0
        %1821 = vmatprep.subr.bf16.mxu0 0
        %1822 = vmatpush1.bf16.xpose.msra.mxu0 0
        %1823 = vmatprep.mubr.bf16.mxu0 0
        %1824 = vmatmul.mubr.bf16.gmra.mrb[0].mxu0 %v1786
        %v1825 = vpop.f32.mrb[0].mxu0
        %v1826 = vadd.f32 0.0, %v1825
        %v1827 = vpop.f32.mrb[0].mxu0
        %v1828 = vpop.f32.mrb[0].mxu0
        %v1829 = vadd.f32 0.0, %v1828
        %v1830 = vpop.f32.mrb[0].mxu0
        %1831 = vdwg.mxu0
        %1833 = vrot.lane.b32.xlu0 %v1725, 96
        %v1834 = vpop.permute.xlu0 %1833
        %v1836 = vsel %vm1734, %v1725, 0
        %v1839 = vsel %vm1734, %v1834, 0
        %1841 = vmatprep.subr.bf16.mxu0 0
        %1842 = vmatpush1.bf16.xpose.msra.mxu0 %v1839
        %1843 = vmatprep.subr.bf16.mxu0 0
        %1844 = vmatpush1.bf16.xpose.msra.mxu0 0
        %1845 = vmatprep.subr.bf16.mxu0 0
        %1846 = vmatpush1.bf16.xpose.msra.mxu0 0
        %1847 = vmatprep.subr.bf16.mxu0 0
        %1848 = vmatpush1.bf16.xpose.msra.mxu0 0
        %1849 = vmatprep.subr.bf16.mxu0 0
        %1850 = vmatpush1.bf16.xpose.msra.mxu0 0
        %1851 = vmatprep.subr.bf16.mxu0 0
        %1852 = vmatpush1.bf16.xpose.msra.mxu0 0
        %1853 = vmatprep.subr.bf16.mxu0 0
        %1854 = vmatpush1.bf16.xpose.msra.mxu0 0
        %1855 = vmatprep.subr.bf16.mxu0 0
        %1856 = vmatpush1.bf16.xpose.msra.mxu0 0
        %1857 = vmatprep.subr.bf16.mxu0 0
        %1858 = vmatpush1.bf16.xpose.msra.mxu0 0
        %1859 = vmatprep.subr.bf16.mxu0 0
        %1860 = vmatpush1.bf16.xpose.msra.mxu0 0
        %1861 = vmatprep.subr.bf16.mxu0 0
        %1862 = vmatpush1.bf16.xpose.msra.mxu0 0
        %1863 = vmatprep.subr.bf16.mxu0 0
        %1864 = vmatpush1.bf16.xpose.msra.mxu0 0
        %1865 = vmatprep.subr.bf16.mxu0 0
        %1866 = vmatpush1.bf16.xpose.msra.mxu0 0
        %1867 = vmatprep.subr.bf16.mxu0 0
        %1868 = vmatpush1.bf16.xpose.msra.mxu0 0
        %1869 = vmatprep.subr.bf16.mxu0 0
        %1870 = vmatpush1.bf16.xpose.msra.mxu0 0
        %1871 = vmatprep.subr.bf16.mxu0 0
        %1872 = vmatpush1.bf16.xpose.msra.mxu0 0
        %1873 = vmatprep.mubr.bf16.mxu0 0
        %1874 = vmatmul.mubr.bf16.gmra.mrb[0].mxu0 %v1836
        %v1875 = vpop.f32.mrb[0].mxu0
        %v1876 = vadd.f32 0.0, %v1875
        %v1877 = vpop.f32.mrb[0].mxu0
        %v1878 = vpop.f32.mrb[0].mxu0
        %v1879 = vadd.f32 0.0, %v1878
        %v1880 = vpop.f32.mrb[0].mxu0
        %1881 = vdwg.mxu0
        %1883 = vrot.lane.b32.xlu0 %v1726, 96
        %v1884 = vpop.permute.xlu0 %1883
        %v1886 = vsel %vm1734, %v1726, 0
        %v1889 = vsel %vm1734, %v1884, 0
        %1891 = vmatprep.subr.bf16.mxu0 0
        %1892 = vmatpush1.bf16.xpose.msra.mxu0 %v1889
        %1893 = vmatprep.subr.bf16.mxu0 0
        %1894 = vmatpush1.bf16.xpose.msra.mxu0 0
        %1895 = vmatprep.subr.bf16.mxu0 0
        %1896 = vmatpush1.bf16.xpose.msra.mxu0 0
        %1897 = vmatprep.subr.bf16.mxu0 0
        %1898 = vmatpush1.bf16.xpose.msra.mxu0 0
        %1899 = vmatprep.subr.bf16.mxu0 0
        %1900 = vmatpush1.bf16.xpose.msra.mxu0 0
        %1901 = vmatprep.subr.bf16.mxu0 0
        %1902 = vmatpush1.bf16.xpose.msra.mxu0 0
        %1903 = vmatprep.subr.bf16.mxu0 0
        %1904 = vmatpush1.bf16.xpose.msra.mxu0 0
        %1905 = vmatprep.subr.bf16.mxu0 0
        %1906 = vmatpush1.bf16.xpose.msra.mxu0 0
        %1907 = vmatprep.subr.bf16.mxu0 0
        %1908 = vmatpush1.bf16.xpose.msra.mxu0 0
        %1909 = vmatprep.subr.bf16.mxu0 0
        %1910 = vmatpush1.bf16.xpose.msra.mxu0 0
        %1911 = vmatprep.subr.bf16.mxu0 0
        %1912 = vmatpush1.bf16.xpose.msra.mxu0 0
        %1913 = vmatprep.subr.bf16.mxu0 0
        %1914 = vmatpush1.bf16.xpose.msra.mxu0 0
        %1915 = vmatprep.subr.bf16.mxu0 0
        %1916 = vmatpush1.bf16.xpose.msra.mxu0 0
        %1917 = vmatprep.subr.bf16.mxu0 0
        %1918 = vmatpush1.bf16.xpose.msra.mxu0 0
        %1919 = vmatprep.subr.bf16.mxu0 0
        %1920 = vmatpush1.bf16.xpose.msra.mxu0 0
        %1921 = vmatprep.subr.bf16.mxu0 0
        %1922 = vmatpush1.bf16.xpose.msra.mxu0 0
        %1923 = vmatprep.mubr.bf16.mxu0 0
        %1924 = vmatmul.mubr.bf16.gmra.mrb[0].mxu0 %v1886
        %v1925 = vpop.f32.mrb[0].mxu0
        %v1926 = vadd.f32 0.0, %v1925
        %v1927 = vpop.f32.mrb[0].mxu0
        %v1928 = vpop.f32.mrb[0].mxu0
        %v1929 = vadd.f32 0.0, %v1928
        %v1930 = vpop.f32.mrb[0].mxu0
        %1931 = vdwg.mxu0
        %1933 = vrot.lane.b32.xlu0 %v1727, 96
        %v1934 = vpop.permute.xlu0 %1933
        %v1936 = vsel %vm1734, %v1727, 0
        %v1939 = vsel %vm1734, %v1934, 0
        %1941 = vmatprep.subr.bf16.mxu0 0
        %1942 = vmatpush1.bf16.xpose.msra.mxu0 %v1939
        %1943 = vmatprep.subr.bf16.mxu0 0
        %1944 = vmatpush1.bf16.xpose.msra.mxu0 0
        %1945 = vmatprep.subr.bf16.mxu0 0
        %1946 = vmatpush1.bf16.xpose.msra.mxu0 0
        %1947 = vmatprep.subr.bf16.mxu0 0
        %1948 = vmatpush1.bf16.xpose.msra.mxu0 0
        %1949 = vmatprep.subr.bf16.mxu0 0
        %1950 = vmatpush1.bf16.xpose.msra.mxu0 0
        %1951 = vmatprep.subr.bf16.mxu0 0
        %1952 = vmatpush1.bf16.xpose.msra.mxu0 0
        %1953 = vmatprep.subr.bf16.mxu0 0
        %1954 = vmatpush1.bf16.xpose.msra.mxu0 0
        %1955 = vmatprep.subr.bf16.mxu0 0
        %1956 = vmatpush1.bf16.xpose.msra.mxu0 0
        %1957 = vmatprep.subr.bf16.mxu0 0
        %1958 = vmatpush1.bf16.xpose.msra.mxu0 0
        %1959 = vmatprep.subr.bf16.mxu0 0
        %1960 = vmatpush1.bf16.xpose.msra.mxu0 0
        %1961 = vmatprep.subr.bf16.mxu0 0
        %1962 = vmatpush1.bf16.xpose.msra.mxu0 0
        %1963 = vmatprep.subr.bf16.mxu0 0
        %1964 = vmatpush1.bf16.xpose.msra.mxu0 0
        %1965 = vmatprep.subr.bf16.mxu0 0
        %1966 = vmatpush1.bf16.xpose.msra.mxu0 0
        %1967 = vmatprep.subr.bf16.mxu0 0
        %1968 = vmatpush1.bf16.xpose.msra.mxu0 0
        %1969 = vmatprep.subr.bf16.mxu0 0
        %1970 = vmatpush1.bf16.xpose.msra.mxu0 0
        %1971 = vmatprep.subr.bf16.mxu0 0
        %1972 = vmatpush1.bf16.xpose.msra.mxu0 0
        %1973 = vmatprep.mubr.bf16.mxu0 0
        %1974 = vmatmul.mubr.bf16.gmra.mrb[0].mxu0 %v1936
        %v1975 = vpop.f32.mrb[0].mxu0
        %v1976 = vadd.f32 0.0, %v1975
        %v1977 = vpop.f32.mrb[0].mxu0
        %v1978 = vpop.f32.mrb[0].mxu0
        %v1979 = vadd.f32 0.0, %v1978
        %v1980 = vpop.f32.mrb[0].mxu0
        %1981 = vdwg.mxu0
        %1983 = vrot.lane.b32.xlu0 %v1728, 96
        %v1984 = vpop.permute.xlu0 %1983
        %v1986 = vsel %vm1734, %v1728, 0
        %v1989 = vsel %vm1734, %v1984, 0
        %1991 = vmatprep.subr.bf16.mxu0 0
        %1992 = vmatpush1.bf16.xpose.msra.mxu0 %v1989
        %1993 = vmatprep.subr.bf16.mxu0 0
        %1994 = vmatpush1.bf16.xpose.msra.mxu0 0
        %1995 = vmatprep.subr.bf16.mxu0 0
        %1996 = vmatpush1.bf16.xpose.msra.mxu0 0
        %1997 = vmatprep.subr.bf16.mxu0 0
        %1998 = vmatpush1.bf16.xpose.msra.mxu0 0
        %1999 = vmatprep.subr.bf16.mxu0 0
        %2000 = vmatpush1.bf16.xpose.msra.mxu0 0
        %2001 = vmatprep.subr.bf16.mxu0 0
        %2002 = vmatpush1.bf16.xpose.msra.mxu0 0
        %2003 = vmatprep.subr.bf16.mxu0 0
        %2004 = vmatpush1.bf16.xpose.msra.mxu0 0
        %2005 = vmatprep.subr.bf16.mxu0 0
        %2006 = vmatpush1.bf16.xpose.msra.mxu0 0
        %2007 = vmatprep.subr.bf16.mxu0 0
        %2008 = vmatpush1.bf16.xpose.msra.mxu0 0
        %2009 = vmatprep.subr.bf16.mxu0 0
        %2010 = vmatpush1.bf16.xpose.msra.mxu0 0
        %2011 = vmatprep.subr.bf16.mxu0 0
        %2012 = vmatpush1.bf16.xpose.msra.mxu0 0
        %2013 = vmatprep.subr.bf16.mxu0 0
        %2014 = vmatpush1.bf16.xpose.msra.mxu0 0
        %2015 = vmatprep.subr.bf16.mxu0 0
        %2016 = vmatpush1.bf16.xpose.msra.mxu0 0
        %2017 = vmatprep.subr.bf16.mxu0 0
        %2018 = vmatpush1.bf16.xpose.msra.mxu0 0
        %2019 = vmatprep.subr.bf16.mxu0 0
        %2020 = vmatpush1.bf16.xpose.msra.mxu0 0
        %2021 = vmatprep.subr.bf16.mxu0 0
        %2022 = vmatpush1.bf16.xpose.msra.mxu0 0
        %2023 = vmatprep.mubr.bf16.mxu0 0
        %2024 = vmatmul.mubr.bf16.gmra.mrb[0].mxu0 %v1986
        %v2025 = vpop.f32.mrb[0].mxu0
        %v2026 = vadd.f32 0.0, %v2025
        %v2027 = vpop.f32.mrb[0].mxu0
        %v2028 = vpop.f32.mrb[0].mxu0
        %v2029 = vadd.f32 0.0, %v2028
        %v2030 = vpop.f32.mrb[0].mxu0
        %2031 = vdwg.mxu0
        %2033 = vrot.lane.b32.xlu0 %v1729, 96
        %v2034 = vpop.permute.xlu0 %2033
        %v2036 = vsel %vm1734, %v1729, 0
        %v2039 = vsel %vm1734, %v2034, 0
        %2041 = vmatprep.subr.bf16.mxu0 0
        %2042 = vmatpush1.bf16.xpose.msra.mxu0 %v2039
        %2043 = vmatprep.subr.bf16.mxu0 0
        %2044 = vmatpush1.bf16.xpose.msra.mxu0 0
        %2045 = vmatprep.subr.bf16.mxu0 0
        %2046 = vmatpush1.bf16.xpose.msra.mxu0 0
        %2047 = vmatprep.subr.bf16.mxu0 0
        %2048 = vmatpush1.bf16.xpose.msra.mxu0 0
        %2049 = vmatprep.subr.bf16.mxu0 0
        %2050 = vmatpush1.bf16.xpose.msra.mxu0 0
        %2051 = vmatprep.subr.bf16.mxu0 0
        %2052 = vmatpush1.bf16.xpose.msra.mxu0 0
        %2053 = vmatprep.subr.bf16.mxu0 0
        %2054 = vmatpush1.bf16.xpose.msra.mxu0 0
        %2055 = vmatprep.subr.bf16.mxu0 0
        %2056 = vmatpush1.bf16.xpose.msra.mxu0 0
        %2057 = vmatprep.subr.bf16.mxu0 0
        %2058 = vmatpush1.bf16.xpose.msra.mxu0 0
        %2059 = vmatprep.subr.bf16.mxu0 0
        %2060 = vmatpush1.bf16.xpose.msra.mxu0 0
        %2061 = vmatprep.subr.bf16.mxu0 0
        %2062 = vmatpush1.bf16.xpose.msra.mxu0 0
        %2063 = vmatprep.subr.bf16.mxu0 0
        %2064 = vmatpush1.bf16.xpose.msra.mxu0 0
        %2065 = vmatprep.subr.bf16.mxu0 0
        %2066 = vmatpush1.bf16.xpose.msra.mxu0 0
        %2067 = vmatprep.subr.bf16.mxu0 0
        %2068 = vmatpush1.bf16.xpose.msra.mxu0 0
        %2069 = vmatprep.subr.bf16.mxu0 0
        %2070 = vmatpush1.bf16.xpose.msra.mxu0 0
        %2071 = vmatprep.subr.bf16.mxu0 0
        %2072 = vmatpush1.bf16.xpose.msra.mxu0 0
        %2073 = vmatprep.mubr.bf16.mxu0 0
        %2074 = vmatmul.mubr.bf16.gmra.mrb[0].mxu0 %v2036
        %v2075 = vpop.f32.mrb[0].mxu0
        %v2076 = vadd.f32 0.0, %v2075
        %v2077 = vpop.f32.mrb[0].mxu0
        %v2078 = vpop.f32.mrb[0].mxu0
        %v2079 = vadd.f32 0.0, %v2078
        %v2080 = vpop.f32.mrb[0].mxu0
        %2081 = vdwg.mxu0
        %2083 = vrot.lane.b32.xlu0 %v1730, 96
        %v2084 = vpop.permute.xlu0 %2083
        %v2086 = vsel %vm1734, %v1730, 0
        %v2089 = vsel %vm1734, %v2084, 0
        %2091 = vmatprep.subr.bf16.mxu0 0
        %2092 = vmatpush1.bf16.xpose.msra.mxu0 %v2089
        %2093 = vmatprep.subr.bf16.mxu0 0
        %2094 = vmatpush1.bf16.xpose.msra.mxu0 0
        %2095 = vmatprep.subr.bf16.mxu0 0
        %2096 = vmatpush1.bf16.xpose.msra.mxu0 0
        %2097 = vmatprep.subr.bf16.mxu0 0
        %2098 = vmatpush1.bf16.xpose.msra.mxu0 0
        %2099 = vmatprep.subr.bf16.mxu0 0
        %2100 = vmatpush1.bf16.xpose.msra.mxu0 0
        %2101 = vmatprep.subr.bf16.mxu0 0
        %2102 = vmatpush1.bf16.xpose.msra.mxu0 0
        %2103 = vmatprep.subr.bf16.mxu0 0
        %2104 = vmatpush1.bf16.xpose.msra.mxu0 0
        %2105 = vmatprep.subr.bf16.mxu0 0
        %2106 = vmatpush1.bf16.xpose.msra.mxu0 0
        %2107 = vmatprep.subr.bf16.mxu0 0
        %2108 = vmatpush1.bf16.xpose.msra.mxu0 0
        %2109 = vmatprep.subr.bf16.mxu0 0
        %2110 = vmatpush1.bf16.xpose.msra.mxu0 0
        %2111 = vmatprep.subr.bf16.mxu0 0
        %2112 = vmatpush1.bf16.xpose.msra.mxu0 0
        %2113 = vmatprep.subr.bf16.mxu0 0
        %2114 = vmatpush1.bf16.xpose.msra.mxu0 0
        %2115 = vmatprep.subr.bf16.mxu0 0
        %2116 = vmatpush1.bf16.xpose.msra.mxu0 0
        %2117 = vmatprep.subr.bf16.mxu0 0
        %2118 = vmatpush1.bf16.xpose.msra.mxu0 0
        %2119 = vmatprep.subr.bf16.mxu0 0
        %2120 = vmatpush1.bf16.xpose.msra.mxu0 0
        %2121 = vmatprep.subr.bf16.mxu0 0
        %2122 = vmatpush1.bf16.xpose.msra.mxu0 0
        %2123 = vmatprep.mubr.bf16.mxu0 0
        %2124 = vmatmul.mubr.bf16.gmra.mrb[0].mxu0 %v2086
        %v2125 = vpop.f32.mrb[0].mxu0
        %v2126 = vadd.f32 0.0, %v2125
        %v2127 = vpop.f32.mrb[0].mxu0
        %v2128 = vpop.f32.mrb[0].mxu0
        %v2129 = vadd.f32 0.0, %v2128
        %v2130 = vpop.f32.mrb[0].mxu0
        %2131 = vdwg.mxu0
        %v2132 = vmul.f32 %v1776, 0.35355338
        %v2133 = vmul.f32 %v1779, 0.35355338
        %v2134 = vmul.f32 %v1826, 0.35355338
        %v2135 = vmul.f32 %v1829, 0.35355338
        %v2136 = vmul.f32 %v1876, 0.35355338
        %v2137 = vmul.f32 %v1879, 0.35355338
        %v2138 = vmul.f32 %v1926, 0.35355338
        %v2139 = vmul.f32 %v1929, 0.35355338
        %v2140 = vmul.f32 %v1976, 0.35355338
        %v2141 = vmul.f32 %v1979, 0.35355338
        %v2142 = vmul.f32 %v2026, 0.35355338
        %v2143 = vmul.f32 %v2029, 0.35355338
        %v2144 = vmul.f32 %v2076, 0.35355338
        %v2145 = vmul.f32 %v2079, 0.35355338
        %v2146 = vmul.f32 %v2126, 0.35355338
        %v2147 = vmul.f32 %v2129, 0.35355338
        %v2148 = vadd.f32 %v2132, %v736
        %v2149 = vadd.f32 %v2133, %v737
        %v2150 = vadd.f32 %v2134, %v738
        %v2151 = vadd.f32 %v2135, %v739
        %v2152 = vadd.f32 %v2136, %v740
        %v2153 = vadd.f32 %v2137, %v741
        %v2154 = vadd.f32 %v2138, %v742
        %v2155 = vadd.f32 %v2139, %v743
        %v2156 = vadd.f32 %v2140, %v744
        %v2157 = vadd.f32 %v2141, %v745
        %v2158 = vadd.f32 %v2142, %v746
        %v2159 = vadd.f32 %v2143, %v747
        %v2160 = vadd.f32 %v2144, %v748
        %v2161 = vadd.f32 %v2145, %v749
        %v2162 = vadd.f32 %v2146, %v750
        %v2163 = vadd.f32 %v2147, %v751
        %v2164 = vsel %vm775, %v2148, -inf
        %2165 = vmax.xlane.f32.xlu0 %v2164
        %v2166 = vpop.xlane.xlu0 %2165
        %v2167 = vsel %vm775, %v2149, -inf
        %2168 = vmax.xlane.f32.xlu0 %v2167
        %v2169 = vpop.xlane.xlu0 %2168
        %v2170 = vsel %vm775, %v2150, -inf
        %2171 = vmax.xlane.f32.xlu0 %v2170
        %v2172 = vpop.xlane.xlu0 %2171
        %v2173 = vsel %vm775, %v2151, -inf
        %2174 = vmax.xlane.f32.xlu0 %v2173
        %v2175 = vpop.xlane.xlu0 %2174
        %v2176 = vsel %vm775, %v2152, -inf
        %2177 = vmax.xlane.f32.xlu0 %v2176
        %v2178 = vpop.xlane.xlu0 %2177
        %v2179 = vsel %vm775, %v2153, -inf
        %2180 = vmax.xlane.f32.xlu0 %v2179
        %v2181 = vpop.xlane.xlu0 %2180
        %v2182 = vsel %vm775, %v2154, -inf
        %2183 = vmax.xlane.f32.xlu0 %v2182
        %v2184 = vpop.xlane.xlu0 %2183
        %v2185 = vsel %vm775, %v2155, -inf
        %2186 = vmax.xlane.f32.xlu0 %v2185
        %v2187 = vpop.xlane.xlu0 %2186
        %v2188 = vsel %vm775, %v2156, -inf
        %2189 = vmax.xlane.f32.xlu0 %v2188
        %v2190 = vpop.xlane.xlu0 %2189
        %v2191 = vsel %vm775, %v2157, -inf
        %2192 = vmax.xlane.f32.xlu0 %v2191
        %v2193 = vpop.xlane.xlu0 %2192
        %v2194 = vsel %vm775, %v2158, -inf
        %2195 = vmax.xlane.f32.xlu0 %v2194
        %v2196 = vpop.xlane.xlu0 %2195
        %v2197 = vsel %vm775, %v2159, -inf
        %2198 = vmax.xlane.f32.xlu0 %v2197
        %v2199 = vpop.xlane.xlu0 %2198
        %v2200 = vsel %vm775, %v2160, -inf
        %2201 = vmax.xlane.f32.xlu0 %v2200
        %v2202 = vpop.xlane.xlu0 %2201
        %v2203 = vsel %vm775, %v2161, -inf
        %2204 = vmax.xlane.f32.xlu0 %v2203
        %v2205 = vpop.xlane.xlu0 %2204
        %v2206 = vsel %vm775, %v2162, -inf
        %2207 = vmax.xlane.f32.xlu0 %v2206
        %v2208 = vpop.xlane.xlu0 %2207
        %v2209 = vsel %vm775, %v2163, -inf
        %2210 = vmax.xlane.f32.xlu0 %v2209
        %v2211 = vpop.xlane.xlu0 %2210
        %v2212 = vsub.f32 %v2148, %v2166
        %v2213 = vsub.f32 %v2149, %v2169
        %v2214 = vsub.f32 %v2150, %v2172
        %v2215 = vsub.f32 %v2151, %v2175
        %v2216 = vsub.f32 %v2152, %v2178
        %v2217 = vsub.f32 %v2153, %v2181
        %v2218 = vsub.f32 %v2154, %v2184
        %v2219 = vsub.f32 %v2155, %v2187
        %v2220 = vsub.f32 %v2156, %v2190
        %v2221 = vsub.f32 %v2157, %v2193
        %v2222 = vsub.f32 %v2158, %v2196
        %v2223 = vsub.f32 %v2159, %v2199
        %v2224 = vsub.f32 %v2160, %v2202
        %v2225 = vsub.f32 %v2161, %v2205
        %v2226 = vsub.f32 %v2162, %v2208
        %v2227 = vsub.f32 %v2163, %v2211
        %v2228 = vmul.f32 %v2212, 1.442695
        %v2229 = vpow.pop %v2228
        %v2230 = vmul.f32 %v2213, 1.442695
        %v2231 = vpow.pop %v2230
        %v2232 = vmul.f32 %v2214, 1.442695
        %v2233 = vpow.pop %v2232
        %v2234 = vmul.f32 %v2215, 1.442695
        %v2235 = vpow.pop %v2234
        %v2236 = vmul.f32 %v2216, 1.442695
        %v2237 = vpow.pop %v2236
        %v2238 = vmul.f32 %v2217, 1.442695
        %v2239 = vpow.pop %v2238
        %v2240 = vmul.f32 %v2218, 1.442695
        %v2241 = vpow.pop %v2240
        %v2242 = vmul.f32 %v2219, 1.442695
        %v2243 = vpow.pop %v2242
        %v2244 = vmul.f32 %v2220, 1.442695
        %v2245 = vpow.pop %v2244
        %v2246 = vmul.f32 %v2221, 1.442695
        %v2247 = vpow.pop %v2246
        %v2248 = vmul.f32 %v2222, 1.442695
        %v2249 = vpow.pop %v2248
        %v2250 = vmul.f32 %v2223, 1.442695
        %v2251 = vpow.pop %v2250
        %v2252 = vmul.f32 %v2224, 1.442695
        %v2253 = vpow.pop %v2252
        %v2254 = vmul.f32 %v2225, 1.442695
        %v2255 = vpow.pop %v2254
        %v2256 = vmul.f32 %v2226, 1.442695
        %v2257 = vpow.pop %v2256
        %v2258 = vmul.f32 %v2227, 1.442695
        %v2259 = vpow.pop %v2258
        %v2260 = vsel %vm775, %v2229, 0.0
        %2261 = vadd.xlane.f32.xlu0 %v2260
        %v2262 = vpop.xlane.xlu0 %2261
        %v2263 = vsel %vm775, %v2231, 0.0
        %2264 = vadd.xlane.f32.xlu0 %v2263
        %v2265 = vpop.xlane.xlu0 %2264
        %v2266 = vsel %vm775, %v2233, 0.0
        %2267 = vadd.xlane.f32.xlu0 %v2266
        %v2268 = vpop.xlane.xlu0 %2267
        %v2269 = vsel %vm775, %v2235, 0.0
        %2270 = vadd.xlane.f32.xlu0 %v2269
        %v2271 = vpop.xlane.xlu0 %2270
        %v2272 = vsel %vm775, %v2237, 0.0
        %2273 = vadd.xlane.f32.xlu0 %v2272
        %v2274 = vpop.xlane.xlu0 %2273
        %v2275 = vsel %vm775, %v2239, 0.0
        %2276 = vadd.xlane.f32.xlu0 %v2275
        %v2277 = vpop.xlane.xlu0 %2276
        %v2278 = vsel %vm775, %v2241, 0.0
        %2279 = vadd.xlane.f32.xlu0 %v2278
        %v2280 = vpop.xlane.xlu0 %2279
        %v2281 = vsel %vm775, %v2243, 0.0
        %2282 = vadd.xlane.f32.xlu0 %v2281
        %v2283 = vpop.xlane.xlu0 %2282
        %v2284 = vsel %vm775, %v2245, 0.0
        %2285 = vadd.xlane.f32.xlu0 %v2284
        %v2286 = vpop.xlane.xlu0 %2285
        %v2287 = vsel %vm775, %v2247, 0.0
        %2288 = vadd.xlane.f32.xlu0 %v2287
        %v2289 = vpop.xlane.xlu0 %2288
        %v2290 = vsel %vm775, %v2249, 0.0
        %2291 = vadd.xlane.f32.xlu0 %v2290
        %v2292 = vpop.xlane.xlu0 %2291
        %v2293 = vsel %vm775, %v2251, 0.0
        %2294 = vadd.xlane.f32.xlu0 %v2293
        %v2295 = vpop.xlane.xlu0 %2294
        %v2296 = vsel %vm775, %v2253, 0.0
        %2297 = vadd.xlane.f32.xlu0 %v2296
        %v2298 = vpop.xlane.xlu0 %2297
        %v2299 = vsel %vm775, %v2255, 0.0
        %2300 = vadd.xlane.f32.xlu0 %v2299
        %v2301 = vpop.xlane.xlu0 %2300
        %v2302 = vsel %vm775, %v2257, 0.0
        %2303 = vadd.xlane.f32.xlu0 %v2302
        %v2304 = vpop.xlane.xlu0 %2303
        %v2305 = vsel %vm775, %v2259, 0.0
        %2306 = vadd.xlane.f32.xlu0 %v2305
        %v2307 = vpop.xlane.xlu0 %2306
        %v2308 = vrcp.pop %v2262
        %v2309 = vrcp.pop %v2265
        %v2310 = vrcp.pop %v2268
        %v2311 = vrcp.pop %v2271
        %v2312 = vrcp.pop %v2274
        %v2313 = vrcp.pop %v2277
        %v2314 = vrcp.pop %v2280
        %v2315 = vrcp.pop %v2283
        %v2316 = vrcp.pop %v2286
        %v2317 = vrcp.pop %v2289
        %v2318 = vrcp.pop %v2292
        %v2319 = vrcp.pop %v2295
        %v2320 = vrcp.pop %v2298
        %v2321 = vrcp.pop %v2301
        %v2322 = vrcp.pop %v2304
        %v2323 = vrcp.pop %v2307
        %v2324 = vmul.f32 %v2229, %v2308
        %v2325 = vmul.f32 %v2231, %v2309
        %v2326 = vmul.f32 %v2233, %v2310
        %v2327 = vmul.f32 %v2235, %v2311
        %v2328 = vmul.f32 %v2237, %v2312
        %v2329 = vmul.f32 %v2239, %v2313
        %v2330 = vmul.f32 %v2241, %v2314
        %v2331 = vmul.f32 %v2243, %v2315
        %v2332 = vmul.f32 %v2245, %v2316
        %v2333 = vmul.f32 %v2247, %v2317
        %v2334 = vmul.f32 %v2249, %v2318
        %v2335 = vmul.f32 %v2251, %v2319
        %v2336 = vmul.f32 %v2253, %v2320
        %v2337 = vmul.f32 %v2255, %v2321
        %v2338 = vmul.f32 %v2257, %v2322
        %v2339 = vmul.f32 %v2259, %v2323
        %v2340 = vstv %s1491
        %v2341 = vmul.f32 %v2340, %v2324
        %v2342 = vmul.f32 %v2340, %v2325
        %v2343 = vmul.f32 %v2340, %v2326
        %v2344 = vmul.f32 %v2340, %v2327
        %v2345 = vmul.f32 %v2340, %v2328
        %v2346 = vmul.f32 %v2340, %v2329
        %v2347 = vmul.f32 %v2340, %v2330
        %v2348 = vmul.f32 %v2340, %v2331
        %v2349 = vmul.f32 %v2340, %v2332
        %v2350 = vmul.f32 %v2340, %v2333
        %v2351 = vmul.f32 %v2340, %v2334
        %v2352 = vmul.f32 %v2340, %v2335
        %v2353 = vmul.f32 %v2340, %v2336
        %v2354 = vmul.f32 %v2340, %v2337
        %v2355 = vmul.f32 %v2340, %v2338
        %v2356 = vmul.f32 %v2340, %v2339
        %v2357 = vadd.f32 %v2341, %v1562
        %v2358 = vadd.f32 %v2342, %v1563
        %v2359 = vadd.f32 %v2343, %v1564
        %v2360 = vadd.f32 %v2344, %v1565
        %v2361 = vadd.f32 %v2345, %v1566
        %v2362 = vadd.f32 %v2346, %v1567
        %v2363 = vadd.f32 %v2347, %v1568
        %v2364 = vadd.f32 %v2348, %v1569
        %v2365 = vadd.f32 %v2349, %v1570
        %v2366 = vadd.f32 %v2350, %v1571
        %v2367 = vadd.f32 %v2351, %v1572
        %v2368 = vadd.f32 %v2352, %v1573
        %v2369 = vadd.f32 %v2353, %v1574
        %v2370 = vadd.f32 %v2354, %v1575
        %v2371 = vadd.f32 %v2355, %v1576
        %v2372 = vadd.f32 %v2356, %v1577
        %v2373 = vsel %vm775, %v2357, -inf
        %2374 = vmax.xlane.f32.xlu0 %v2373
        %v2375 = vpop.xlane.xlu0 %2374
        %v2376 = vsel %vm775, %v2358, -inf
        %2377 = vmax.xlane.f32.xlu0 %v2376
        %v2378 = vpop.xlane.xlu0 %2377
        %v2379 = vsel %vm775, %v2359, -inf
        %2380 = vmax.xlane.f32.xlu0 %v2379
        %v2381 = vpop.xlane.xlu0 %2380
        %v2382 = vsel %vm775, %v2360, -inf
        %2383 = vmax.xlane.f32.xlu0 %v2382
        %v2384 = vpop.xlane.xlu0 %2383
        %v2385 = vsel %vm775, %v2361, -inf
        %2386 = vmax.xlane.f32.xlu0 %v2385
        %v2387 = vpop.xlane.xlu0 %2386
        %v2388 = vsel %vm775, %v2362, -inf
        %2389 = vmax.xlane.f32.xlu0 %v2388
        %v2390 = vpop.xlane.xlu0 %2389
        %v2391 = vsel %vm775, %v2363, -inf
        %2392 = vmax.xlane.f32.xlu0 %v2391
        %v2393 = vpop.xlane.xlu0 %2392
        %v2394 = vsel %vm775, %v2364, -inf
        %2395 = vmax.xlane.f32.xlu0 %v2394
        %v2396 = vpop.xlane.xlu0 %2395
        %v2397 = vsel %vm775, %v2365, -inf
        %2398 = vmax.xlane.f32.xlu0 %v2397
        %v2399 = vpop.xlane.xlu0 %2398
        %v2400 = vsel %vm775, %v2366, -inf
        %2401 = vmax.xlane.f32.xlu0 %v2400
        %v2402 = vpop.xlane.xlu0 %2401
        %v2403 = vsel %vm775, %v2367, -inf
        %2404 = vmax.xlane.f32.xlu0 %v2403
        %v2405 = vpop.xlane.xlu0 %2404
        %v2406 = vsel %vm775, %v2368, -inf
        %2407 = vmax.xlane.f32.xlu0 %v2406
        %v2408 = vpop.xlane.xlu0 %2407
        %v2409 = vsel %vm775, %v2369, -inf
        %2410 = vmax.xlane.f32.xlu0 %v2409
        %v2411 = vpop.xlane.xlu0 %2410
        %v2412 = vsel %vm775, %v2370, -inf
        %2413 = vmax.xlane.f32.xlu0 %v2412
        %v2414 = vpop.xlane.xlu0 %2413
        %v2415 = vsel %vm775, %v2371, -inf
        %2416 = vmax.xlane.f32.xlu0 %v2415
        %v2417 = vpop.xlane.xlu0 %2416
        %v2418 = vsel %vm775, %v2372, -inf
        %2419 = vmax.xlane.f32.xlu0 %v2418
        %v2420 = vpop.xlane.xlu0 %2419
        %v2421 = vsub.f32 %v2357, %v2375
        %v2422 = vsub.f32 %v2358, %v2378
        %v2423 = vsub.f32 %v2359, %v2381
        %v2424 = vsub.f32 %v2360, %v2384
        %v2425 = vsub.f32 %v2361, %v2387
        %v2426 = vsub.f32 %v2362, %v2390
        %v2427 = vsub.f32 %v2363, %v2393
        %v2428 = vsub.f32 %v2364, %v2396
        %v2429 = vsub.f32 %v2365, %v2399
        %v2430 = vsub.f32 %v2366, %v2402
        %v2431 = vsub.f32 %v2367, %v2405
        %v2432 = vsub.f32 %v2368, %v2408
        %v2433 = vsub.f32 %v2369, %v2411
        %v2434 = vsub.f32 %v2370, %v2414
        %v2435 = vsub.f32 %v2371, %v2417
        %v2436 = vsub.f32 %v2372, %v2420
        %v2437 = vmul.f32 %v2421, 1.442695
        %v2438 = vpow.pop %v2437
        %v2439 = vmul.f32 %v2422, 1.442695
        %v2440 = vpow.pop %v2439
        %v2441 = vmul.f32 %v2423, 1.442695
        %v2442 = vpow.pop %v2441
        %v2443 = vmul.f32 %v2424, 1.442695
        %v2444 = vpow.pop %v2443
        %v2445 = vmul.f32 %v2425, 1.442695
        %v2446 = vpow.pop %v2445
        %v2447 = vmul.f32 %v2426, 1.442695
        %v2448 = vpow.pop %v2447
        %v2449 = vmul.f32 %v2427, 1.442695
        %v2450 = vpow.pop %v2449
        %v2451 = vmul.f32 %v2428, 1.442695
        %v2452 = vpow.pop %v2451
        %v2453 = vmul.f32 %v2429, 1.442695
        %v2454 = vpow.pop %v2453
        %v2455 = vmul.f32 %v2430, 1.442695
        %v2456 = vpow.pop %v2455
        %v2457 = vmul.f32 %v2431, 1.442695
        %v2458 = vpow.pop %v2457
        %v2459 = vmul.f32 %v2432, 1.442695
        %v2460 = vpow.pop %v2459
        %v2461 = vmul.f32 %v2433, 1.442695
        %v2462 = vpow.pop %v2461
        %v2463 = vmul.f32 %v2434, 1.442695
        %v2464 = vpow.pop %v2463
        %v2465 = vmul.f32 %v2435, 1.442695
        %v2466 = vpow.pop %v2465
        %v2467 = vmul.f32 %v2436, 1.442695
        %v2468 = vpow.pop %v2467
        %v2469 = vsel %vm775, %v2438, 0.0
        %2470 = vadd.xlane.f32.xlu0 %v2469
        %v2471 = vpop.xlane.xlu0 %2470
        %v2472 = vsel %vm775, %v2440, 0.0
        %2473 = vadd.xlane.f32.xlu0 %v2472
        %v2474 = vpop.xlane.xlu0 %2473
        %v2475 = vsel %vm775, %v2442, 0.0
        %2476 = vadd.xlane.f32.xlu0 %v2475
        %v2477 = vpop.xlane.xlu0 %2476
        %v2478 = vsel %vm775, %v2444, 0.0
        %2479 = vadd.xlane.f32.xlu0 %v2478
        %v2480 = vpop.xlane.xlu0 %2479
        %v2481 = vsel %vm775, %v2446, 0.0
        %2482 = vadd.xlane.f32.xlu0 %v2481
        %v2483 = vpop.xlane.xlu0 %2482
        %v2484 = vsel %vm775, %v2448, 0.0
        %2485 = vadd.xlane.f32.xlu0 %v2484
        %v2486 = vpop.xlane.xlu0 %2485
        %v2487 = vsel %vm775, %v2450, 0.0
        %2488 = vadd.xlane.f32.xlu0 %v2487
        %v2489 = vpop.xlane.xlu0 %2488
        %v2490 = vsel %vm775, %v2452, 0.0
        %2491 = vadd.xlane.f32.xlu0 %v2490
        %v2492 = vpop.xlane.xlu0 %2491
        %v2493 = vsel %vm775, %v2454, 0.0
        %2494 = vadd.xlane.f32.xlu0 %v2493
        %v2495 = vpop.xlane.xlu0 %2494
        %v2496 = vsel %vm775, %v2456, 0.0
        %2497 = vadd.xlane.f32.xlu0 %v2496
        %v2498 = vpop.xlane.xlu0 %2497
        %v2499 = vsel %vm775, %v2458, 0.0
        %2500 = vadd.xlane.f32.xlu0 %v2499
        %v2501 = vpop.xlane.xlu0 %2500
        %v2502 = vsel %vm775, %v2460, 0.0
        %2503 = vadd.xlane.f32.xlu0 %v2502
        %v2504 = vpop.xlane.xlu0 %2503
        %v2505 = vsel %vm775, %v2462, 0.0
        %2506 = vadd.xlane.f32.xlu0 %v2505
        %v2507 = vpop.xlane.xlu0 %2506
        %v2508 = vsel %vm775, %v2464, 0.0
        %2509 = vadd.xlane.f32.xlu0 %v2508
        %v2510 = vpop.xlane.xlu0 %2509
        %v2511 = vsel %vm775, %v2466, 0.0
        %2512 = vadd.xlane.f32.xlu0 %v2511
        %v2513 = vpop.xlane.xlu0 %2512
        %v2514 = vsel %vm775, %v2468, 0.0
        %2515 = vadd.xlane.f32.xlu0 %v2514
        %v2516 = vpop.xlane.xlu0 %2515
        %v2517 = vrcp.pop %v2471
        %v2518 = vrcp.pop %v2474
        %v2519 = vrcp.pop %v2477
        %v2520 = vrcp.pop %v2480
        %v2521 = vrcp.pop %v2483
        %v2522 = vrcp.pop %v2486
        %v2523 = vrcp.pop %v2489
        %v2524 = vrcp.pop %v2492
        %v2525 = vrcp.pop %v2495
        %v2526 = vrcp.pop %v2498
        %v2527 = vrcp.pop %v2501
        %v2528 = vrcp.pop %v2504
        %v2529 = vrcp.pop %v2507
        %v2530 = vrcp.pop %v2510
        %v2531 = vrcp.pop %v2513
        %v2532 = vrcp.pop %v2516
        %v2533 = vmul.f32 %v2438, %v2517
        %v2534 = vmul.f32 %v2440, %v2518
        %v2535 = vmul.f32 %v2442, %v2519
        %v2536 = vmul.f32 %v2444, %v2520
        %v2537 = vmul.f32 %v2446, %v2521
        %v2538 = vmul.f32 %v2448, %v2522
        %v2539 = vmul.f32 %v2450, %v2523
        %v2540 = vmul.f32 %v2452, %v2524
        %v2541 = vmul.f32 %v2454, %v2525
        %v2542 = vmul.f32 %v2456, %v2526
        %v2543 = vmul.f32 %v2458, %v2527
        %v2544 = vmul.f32 %v2460, %v2528
        %v2545 = vmul.f32 %v2462, %v2529
        %v2546 = vmul.f32 %v2464, %v2530
        %v2547 = vmul.f32 %v2466, %v2531
        %v2548 = vmul.f32 %v2468, %v2532
        %2549 = vst.msk [vmem:[%s664] sm:$0xff] %vm775, %v2533
        %2550 = vst.msk [vmem:[%s664 + $0x8] sm:$0xff] %vm775, %v2534
        %2551 = vst.msk [vmem:[%s664 + $0x10] sm:$0xff] %vm775, %v2535
        %2552 = vst.msk [vmem:[%s664 + $0x18] sm:$0xff] %vm775, %v2536
        %2553 = vst.msk [vmem:[%s664 + $0x20] sm:$0xff] %vm775, %v2537
        %2554 = vst.msk [vmem:[%s664 + $0x28] sm:$0xff] %vm775, %v2538
        %2555 = vst.msk [vmem:[%s664 + $0x30] sm:$0xff] %vm775, %v2539
        %2556 = vst.msk [vmem:[%s664 + $0x38] sm:$0xff] %vm775, %v2540
        %2557 = vst.msk [vmem:[%s664 + $0x40] sm:$0xff] %vm775, %v2541
        %2558 = vst.msk [vmem:[%s664 + $0x48] sm:$0xff] %vm775, %v2542
        %2559 = vst.msk [vmem:[%s664 + $0x50] sm:$0xff] %vm775, %v2543
        %2560 = vst.msk [vmem:[%s664 + $0x58] sm:$0xff] %vm775, %v2544
        %2561 = vst.msk [vmem:[%s664 + $0x60] sm:$0xff] %vm775, %v2545
        %2562 = vst.msk [vmem:[%s664 + $0x68] sm:$0xff] %vm775, %v2546
        %2563 = vst.msk [vmem:[%s664 + $0x70] sm:$0xff] %vm775, %v2547
        %2564 = vst.msk [vmem:[%s664 + $0x78] sm:$0xff] %vm775, %v2548
        %v2565 = vpack.c.bf16 %v2534, %v2533
        %v2566 = vpack.c.bf16 %v2536, %v2535
        %v2567 = vpack.c.bf16 %v2538, %v2537
        %v2568 = vpack.c.bf16 %v2540, %v2539
        %v2569 = vpack.c.bf16 %v2542, %v2541
        %v2570 = vpack.c.bf16 %v2544, %v2543
        %v2571 = vpack.c.bf16 %v2546, %v2545
        %v2572 = vpack.c.bf16 %v2548, %v2547
        %2573 = vrot.lane.b32.xlu0 %v1723, 64
        %v2574 = vpop.permute.xlu0 %2573
        %v2577 = vsel %vm775, %v2565, 0
        %2579 = vmatprep.subr.bf16.mxu0 0
        %2580 = vmatpush1.bf16.msra.mxu0 %v2574
        %2581 = vmatprep.subr.bf16.mxu0 0
        %2582 = vmatpush1.bf16.msra.mxu0 0
        %2583 = vmatprep.subr.bf16.mxu0 0
        %2584 = vmatpush1.bf16.msra.mxu0 0
        %2585 = vmatprep.subr.bf16.mxu0 0
        %2586 = vmatpush1.bf16.msra.mxu0 0
        %2587 = vmatprep.subr.bf16.mxu0 0
        %2588 = vmatpush1.bf16.msra.mxu0 0
        %2589 = vmatprep.subr.bf16.mxu0 0
        %2590 = vmatpush1.bf16.msra.mxu0 0
        %2591 = vmatprep.subr.bf16.mxu0 0
        %2592 = vmatpush1.bf16.msra.mxu0 0
        %2593 = vmatprep.subr.bf16.mxu0 0
        %2594 = vmatpush1.bf16.msra.mxu0 0
        %2595 = vmatprep.subr.bf16.mxu0 0
        %2596 = vmatpush1.bf16.msra.mxu0 0
        %2597 = vmatprep.subr.bf16.mxu0 0
        %2598 = vmatpush1.bf16.msra.mxu0 0
        %2599 = vmatprep.subr.bf16.mxu0 0
        %2600 = vmatpush1.bf16.msra.mxu0 0
        %2601 = vmatprep.subr.bf16.mxu0 0
        %2602 = vmatpush1.bf16.msra.mxu0 0
        %2603 = vmatprep.subr.bf16.mxu0 0
        %2604 = vmatpush1.bf16.msra.mxu0 0
        %2605 = vmatprep.subr.bf16.mxu0 0
        %2606 = vmatpush1.bf16.msra.mxu0 0
        %2607 = vmatprep.subr.bf16.mxu0 0
        %2608 = vmatpush1.bf16.msra.mxu0 0
        %2609 = vmatprep.subr.bf16.mxu0 0
        %2610 = vmatpush1.bf16.msra.mxu0 0
        %2611 = vmatprep.mubr.bf16.mxu0 0
        %2612 = vmatmul.mubr.bf16.gmra.mrb[0].mxu0 %v2577
        %v2613 = vpop.f32.mrb[0].mxu0
        %v2614 = vadd.f32 0.0, %v2613
        %v2615 = vpop.f32.mrb[0].mxu0
        %v2616 = vpop.f32.mrb[0].mxu0
        %v2617 = vadd.f32 0.0, %v2616
        %v2618 = vpop.f32.mrb[0].mxu0
        %2619 = vdwg.mxu0
        %2620 = vrot.lane.b32.xlu0 %v1724, 64
        %v2621 = vpop.permute.xlu0 %2620
        %v2624 = vsel %vm775, %v2566, 0
        %2626 = vmatprep.subr.bf16.mxu0 0
        %2627 = vmatpush1.bf16.msra.mxu0 %v2621
        %2628 = vmatprep.subr.bf16.mxu0 0
        %2629 = vmatpush1.bf16.msra.mxu0 0
        %2630 = vmatprep.subr.bf16.mxu0 0
        %2631 = vmatpush1.bf16.msra.mxu0 0
        %2632 = vmatprep.subr.bf16.mxu0 0
        %2633 = vmatpush1.bf16.msra.mxu0 0
        %2634 = vmatprep.subr.bf16.mxu0 0
        %2635 = vmatpush1.bf16.msra.mxu0 0
        %2636 = vmatprep.subr.bf16.mxu0 0
        %2637 = vmatpush1.bf16.msra.mxu0 0
        %2638 = vmatprep.subr.bf16.mxu0 0
        %2639 = vmatpush1.bf16.msra.mxu0 0
        %2640 = vmatprep.subr.bf16.mxu0 0
        %2641 = vmatpush1.bf16.msra.mxu0 0
        %2642 = vmatprep.subr.bf16.mxu0 0
        %2643 = vmatpush1.bf16.msra.mxu0 0
        %2644 = vmatprep.subr.bf16.mxu0 0
        %2645 = vmatpush1.bf16.msra.mxu0 0
        %2646 = vmatprep.subr.bf16.mxu0 0
        %2647 = vmatpush1.bf16.msra.mxu0 0
        %2648 = vmatprep.subr.bf16.mxu0 0
        %2649 = vmatpush1.bf16.msra.mxu0 0
        %2650 = vmatprep.subr.bf16.mxu0 0
        %2651 = vmatpush1.bf16.msra.mxu0 0
        %2652 = vmatprep.subr.bf16.mxu0 0
        %2653 = vmatpush1.bf16.msra.mxu0 0
        %2654 = vmatprep.subr.bf16.mxu0 0
        %2655 = vmatpush1.bf16.msra.mxu0 0
        %2656 = vmatprep.subr.bf16.mxu0 0
        %2657 = vmatpush1.bf16.msra.mxu0 0
        %2658 = vmatprep.mubr.bf16.mxu0 0
        %2659 = vmatmul.mubr.bf16.gmra.mrb[0].mxu0 %v2624
        %v2660 = vpop.f32.mrb[0].mxu0
        %v2661 = vadd.f32 0.0, %v2660
        %v2662 = vpop.f32.mrb[0].mxu0
        %v2663 = vpop.f32.mrb[0].mxu0
        %v2664 = vadd.f32 0.0, %v2663
        %v2665 = vpop.f32.mrb[0].mxu0
        %2666 = vdwg.mxu0
        %2667 = vrot.lane.b32.xlu0 %v1725, 64
        %v2668 = vpop.permute.xlu0 %2667
        %v2671 = vsel %vm775, %v2567, 0
        %2673 = vmatprep.subr.bf16.mxu0 0
        %2674 = vmatpush1.bf16.msra.mxu0 %v2668
        %2675 = vmatprep.subr.bf16.mxu0 0
        %2676 = vmatpush1.bf16.msra.mxu0 0
        %2677 = vmatprep.subr.bf16.mxu0 0
        %2678 = vmatpush1.bf16.msra.mxu0 0
        %2679 = vmatprep.subr.bf16.mxu0 0
        %2680 = vmatpush1.bf16.msra.mxu0 0
        %2681 = vmatprep.subr.bf16.mxu0 0
        %2682 = vmatpush1.bf16.msra.mxu0 0
        %2683 = vmatprep.subr.bf16.mxu0 0
        %2684 = vmatpush1.bf16.msra.mxu0 0
        %2685 = vmatprep.subr.bf16.mxu0 0
        %2686 = vmatpush1.bf16.msra.mxu0 0
        %2687 = vmatprep.subr.bf16.mxu0 0
        %2688 = vmatpush1.bf16.msra.mxu0 0
        %2689 = vmatprep.subr.bf16.mxu0 0
        %2690 = vmatpush1.bf16.msra.mxu0 0
        %2691 = vmatprep.subr.bf16.mxu0 0
        %2692 = vmatpush1.bf16.msra.mxu0 0
        %2693 = vmatprep.subr.bf16.mxu0 0
        %2694 = vmatpush1.bf16.msra.mxu0 0
        %2695 = vmatprep.subr.bf16.mxu0 0
        %2696 = vmatpush1.bf16.msra.mxu0 0
        %2697 = vmatprep.subr.bf16.mxu0 0
        %2698 = vmatpush1.bf16.msra.mxu0 0
        %2699 = vmatprep.subr.bf16.mxu0 0
        %2700 = vmatpush1.bf16.msra.mxu0 0
        %2701 = vmatprep.subr.bf16.mxu0 0
        %2702 = vmatpush1.bf16.msra.mxu0 0
        %2703 = vmatprep.subr.bf16.mxu0 0
        %2704 = vmatpush1.bf16.msra.mxu0 0
        %2705 = vmatprep.mubr.bf16.mxu0 0
        %2706 = vmatmul.mubr.bf16.gmra.mrb[0].mxu0 %v2671
        %v2707 = vpop.f32.mrb[0].mxu0
        %v2708 = vadd.f32 0.0, %v2707
        %v2709 = vpop.f32.mrb[0].mxu0
        %v2710 = vpop.f32.mrb[0].mxu0
        %v2711 = vadd.f32 0.0, %v2710
        %v2712 = vpop.f32.mrb[0].mxu0
        %2713 = vdwg.mxu0
        %2714 = vrot.lane.b32.xlu0 %v1726, 64
        %v2715 = vpop.permute.xlu0 %2714
        %v2718 = vsel %vm775, %v2568, 0
        %2720 = vmatprep.subr.bf16.mxu0 0
        %2721 = vmatpush1.bf16.msra.mxu0 %v2715
        %2722 = vmatprep.subr.bf16.mxu0 0
        %2723 = vmatpush1.bf16.msra.mxu0 0
        %2724 = vmatprep.subr.bf16.mxu0 0
        %2725 = vmatpush1.bf16.msra.mxu0 0
        %2726 = vmatprep.subr.bf16.mxu0 0
        %2727 = vmatpush1.bf16.msra.mxu0 0
        %2728 = vmatprep.subr.bf16.mxu0 0
        %2729 = vmatpush1.bf16.msra.mxu0 0
        %2730 = vmatprep.subr.bf16.mxu0 0
        %2731 = vmatpush1.bf16.msra.mxu0 0
        %2732 = vmatprep.subr.bf16.mxu0 0
        %2733 = vmatpush1.bf16.msra.mxu0 0
        %2734 = vmatprep.subr.bf16.mxu0 0
        %2735 = vmatpush1.bf16.msra.mxu0 0
        %2736 = vmatprep.subr.bf16.mxu0 0
        %2737 = vmatpush1.bf16.msra.mxu0 0
        %2738 = vmatprep.subr.bf16.mxu0 0
        %2739 = vmatpush1.bf16.msra.mxu0 0
        %2740 = vmatprep.subr.bf16.mxu0 0
        %2741 = vmatpush1.bf16.msra.mxu0 0
        %2742 = vmatprep.subr.bf16.mxu0 0
        %2743 = vmatpush1.bf16.msra.mxu0 0
        %2744 = vmatprep.subr.bf16.mxu0 0
        %2745 = vmatpush1.bf16.msra.mxu0 0
        %2746 = vmatprep.subr.bf16.mxu0 0
        %2747 = vmatpush1.bf16.msra.mxu0 0
        %2748 = vmatprep.subr.bf16.mxu0 0
        %2749 = vmatpush1.bf16.msra.mxu0 0
        %2750 = vmatprep.subr.bf16.mxu0 0
        %2751 = vmatpush1.bf16.msra.mxu0 0
        %2752 = vmatprep.mubr.bf16.mxu0 0
        %2753 = vmatmul.mubr.bf16.gmra.mrb[0].mxu0 %v2718
        %v2754 = vpop.f32.mrb[0].mxu0
        %v2755 = vadd.f32 0.0, %v2754
        %v2756 = vpop.f32.mrb[0].mxu0
        %v2757 = vpop.f32.mrb[0].mxu0
        %v2758 = vadd.f32 0.0, %v2757
        %v2759 = vpop.f32.mrb[0].mxu0
        %2760 = vdwg.mxu0
        %2761 = vrot.lane.b32.xlu0 %v1727, 64
        %v2762 = vpop.permute.xlu0 %2761
        %v2765 = vsel %vm775, %v2569, 0
        %2767 = vmatprep.subr.bf16.mxu0 0
        %2768 = vmatpush1.bf16.msra.mxu0 %v2762
        %2769 = vmatprep.subr.bf16.mxu0 0
        %2770 = vmatpush1.bf16.msra.mxu0 0
        %2771 = vmatprep.subr.bf16.mxu0 0
        %2772 = vmatpush1.bf16.msra.mxu0 0
        %2773 = vmatprep.subr.bf16.mxu0 0
        %2774 = vmatpush1.bf16.msra.mxu0 0
        %2775 = vmatprep.subr.bf16.mxu0 0
        %2776 = vmatpush1.bf16.msra.mxu0 0
        %2777 = vmatprep.subr.bf16.mxu0 0
        %2778 = vmatpush1.bf16.msra.mxu0 0
        %2779 = vmatprep.subr.bf16.mxu0 0
        %2780 = vmatpush1.bf16.msra.mxu0 0
        %2781 = vmatprep.subr.bf16.mxu0 0
        %2782 = vmatpush1.bf16.msra.mxu0 0
        %2783 = vmatprep.subr.bf16.mxu0 0
        %2784 = vmatpush1.bf16.msra.mxu0 0
        %2785 = vmatprep.subr.bf16.mxu0 0
        %2786 = vmatpush1.bf16.msra.mxu0 0
        %2787 = vmatprep.subr.bf16.mxu0 0
        %2788 = vmatpush1.bf16.msra.mxu0 0
        %2789 = vmatprep.subr.bf16.mxu0 0
        %2790 = vmatpush1.bf16.msra.mxu0 0
        %2791 = vmatprep.subr.bf16.mxu0 0
        %2792 = vmatpush1.bf16.msra.mxu0 0
        %2793 = vmatprep.subr.bf16.mxu0 0
        %2794 = vmatpush1.bf16.msra.mxu0 0
        %2795 = vmatprep.subr.bf16.mxu0 0
        %2796 = vmatpush1.bf16.msra.mxu0 0
        %2797 = vmatprep.subr.bf16.mxu0 0
        %2798 = vmatpush1.bf16.msra.mxu0 0
        %2799 = vmatprep.mubr.bf16.mxu0 0
        %2800 = vmatmul.mubr.bf16.gmra.mrb[0].mxu0 %v2765
        %v2801 = vpop.f32.mrb[0].mxu0
        %v2802 = vadd.f32 0.0, %v2801
        %v2803 = vpop.f32.mrb[0].mxu0
        %v2804 = vpop.f32.mrb[0].mxu0
        %v2805 = vadd.f32 0.0, %v2804
        %v2806 = vpop.f32.mrb[0].mxu0
        %2807 = vdwg.mxu0
        %2808 = vrot.lane.b32.xlu0 %v1728, 64
        %v2809 = vpop.permute.xlu0 %2808
        %v2812 = vsel %vm775, %v2570, 0
        %2814 = vmatprep.subr.bf16.mxu0 0
        %2815 = vmatpush1.bf16.msra.mxu0 %v2809
        %2816 = vmatprep.subr.bf16.mxu0 0
        %2817 = vmatpush1.bf16.msra.mxu0 0
        %2818 = vmatprep.subr.bf16.mxu0 0
        %2819 = vmatpush1.bf16.msra.mxu0 0
        %2820 = vmatprep.subr.bf16.mxu0 0
        %2821 = vmatpush1.bf16.msra.mxu0 0
        %2822 = vmatprep.subr.bf16.mxu0 0
        %2823 = vmatpush1.bf16.msra.mxu0 0
        %2824 = vmatprep.subr.bf16.mxu0 0
        %2825 = vmatpush1.bf16.msra.mxu0 0
        %2826 = vmatprep.subr.bf16.mxu0 0
        %2827 = vmatpush1.bf16.msra.mxu0 0
        %2828 = vmatprep.subr.bf16.mxu0 0
        %2829 = vmatpush1.bf16.msra.mxu0 0
        %2830 = vmatprep.subr.bf16.mxu0 0
        %2831 = vmatpush1.bf16.msra.mxu0 0
        %2832 = vmatprep.subr.bf16.mxu0 0
        %2833 = vmatpush1.bf16.msra.mxu0 0
        %2834 = vmatprep.subr.bf16.mxu0 0
        %2835 = vmatpush1.bf16.msra.mxu0 0
        %2836 = vmatprep.subr.bf16.mxu0 0
        %2837 = vmatpush1.bf16.msra.mxu0 0
        %2838 = vmatprep.subr.bf16.mxu0 0
        %2839 = vmatpush1.bf16.msra.mxu0 0
        %2840 = vmatprep.subr.bf16.mxu0 0
        %2841 = vmatpush1.bf16.msra.mxu0 0
        %2842 = vmatprep.subr.bf16.mxu0 0
        %2843 = vmatpush1.bf16.msra.mxu0 0
        %2844 = vmatprep.subr.bf16.mxu0 0
        %2845 = vmatpush1.bf16.msra.mxu0 0
        %2846 = vmatprep.mubr.bf16.mxu0 0
        %2847 = vmatmul.mubr.bf16.gmra.mrb[0].mxu0 %v2812
        %v2848 = vpop.f32.mrb[0].mxu0
        %v2849 = vadd.f32 0.0, %v2848
        %v2850 = vpop.f32.mrb[0].mxu0
        %v2851 = vpop.f32.mrb[0].mxu0
        %v2852 = vadd.f32 0.0, %v2851
        %v2853 = vpop.f32.mrb[0].mxu0
        %2854 = vdwg.mxu0
        %2855 = vrot.lane.b32.xlu0 %v1729, 64
        %v2856 = vpop.permute.xlu0 %2855
        %v2859 = vsel %vm775, %v2571, 0
        %2861 = vmatprep.subr.bf16.mxu0 0
        %2862 = vmatpush1.bf16.msra.mxu0 %v2856
        %2863 = vmatprep.subr.bf16.mxu0 0
        %2864 = vmatpush1.bf16.msra.mxu0 0
        %2865 = vmatprep.subr.bf16.mxu0 0
        %2866 = vmatpush1.bf16.msra.mxu0 0
        %2867 = vmatprep.subr.bf16.mxu0 0
        %2868 = vmatpush1.bf16.msra.mxu0 0
        %2869 = vmatprep.subr.bf16.mxu0 0
        %2870 = vmatpush1.bf16.msra.mxu0 0
        %2871 = vmatprep.subr.bf16.mxu0 0
        %2872 = vmatpush1.bf16.msra.mxu0 0
        %2873 = vmatprep.subr.bf16.mxu0 0
        %2874 = vmatpush1.bf16.msra.mxu0 0
        %2875 = vmatprep.subr.bf16.mxu0 0
        %2876 = vmatpush1.bf16.msra.mxu0 0
        %2877 = vmatprep.subr.bf16.mxu0 0
        %2878 = vmatpush1.bf16.msra.mxu0 0
        %2879 = vmatprep.subr.bf16.mxu0 0
        %2880 = vmatpush1.bf16.msra.mxu0 0
        %2881 = vmatprep.subr.bf16.mxu0 0
        %2882 = vmatpush1.bf16.msra.mxu0 0
        %2883 = vmatprep.subr.bf16.mxu0 0
        %2884 = vmatpush1.bf16.msra.mxu0 0
        %2885 = vmatprep.subr.bf16.mxu0 0
        %2886 = vmatpush1.bf16.msra.mxu0 0
        %2887 = vmatprep.subr.bf16.mxu0 0
        %2888 = vmatpush1.bf16.msra.mxu0 0
        %2889 = vmatprep.subr.bf16.mxu0 0
        %2890 = vmatpush1.bf16.msra.mxu0 0
        %2891 = vmatprep.subr.bf16.mxu0 0
        %2892 = vmatpush1.bf16.msra.mxu0 0
        %2893 = vmatprep.mubr.bf16.mxu0 0
        %2894 = vmatmul.mubr.bf16.gmra.mrb[0].mxu0 %v2859
        %v2895 = vpop.f32.mrb[0].mxu0
        %v2896 = vadd.f32 0.0, %v2895
        %v2897 = vpop.f32.mrb[0].mxu0
        %v2898 = vpop.f32.mrb[0].mxu0
        %v2899 = vadd.f32 0.0, %v2898
        %v2900 = vpop.f32.mrb[0].mxu0
        %2901 = vdwg.mxu0
        %2902 = vrot.lane.b32.xlu0 %v1730, 64
        %v2903 = vpop.permute.xlu0 %2902
        %v2906 = vsel %vm775, %v2572, 0
        %2908 = vmatprep.subr.bf16.mxu0 0
        %2909 = vmatpush1.bf16.msra.mxu0 %v2903
        %2910 = vmatprep.subr.bf16.mxu0 0
        %2911 = vmatpush1.bf16.msra.mxu0 0
        %2912 = vmatprep.subr.bf16.mxu0 0
        %2913 = vmatpush1.bf16.msra.mxu0 0
        %2914 = vmatprep.subr.bf16.mxu0 0
        %2915 = vmatpush1.bf16.msra.mxu0 0
        %2916 = vmatprep.subr.bf16.mxu0 0
        %2917 = vmatpush1.bf16.msra.mxu0 0
        %2918 = vmatprep.subr.bf16.mxu0 0
        %2919 = vmatpush1.bf16.msra.mxu0 0
        %2920 = vmatprep.subr.bf16.mxu0 0
        %2921 = vmatpush1.bf16.msra.mxu0 0
        %2922 = vmatprep.subr.bf16.mxu0 0
        %2923 = vmatpush1.bf16.msra.mxu0 0
        %2924 = vmatprep.subr.bf16.mxu0 0
        %2925 = vmatpush1.bf16.msra.mxu0 0
        %2926 = vmatprep.subr.bf16.mxu0 0
        %2927 = vmatpush1.bf16.msra.mxu0 0
        %2928 = vmatprep.subr.bf16.mxu0 0
        %2929 = vmatpush1.bf16.msra.mxu0 0
        %2930 = vmatprep.subr.bf16.mxu0 0
        %2931 = vmatpush1.bf16.msra.mxu0 0
        %2932 = vmatprep.subr.bf16.mxu0 0
        %2933 = vmatpush1.bf16.msra.mxu0 0
        %2934 = vmatprep.subr.bf16.mxu0 0
        %2935 = vmatpush1.bf16.msra.mxu0 0
        %2936 = vmatprep.subr.bf16.mxu0 0
        %2937 = vmatpush1.bf16.msra.mxu0 0
        %2938 = vmatprep.subr.bf16.mxu0 0
        %2939 = vmatpush1.bf16.msra.mxu0 0
        %2940 = vmatprep.mubr.bf16.mxu0 0
        %2941 = vmatmul.mubr.bf16.gmra.mrb[0].mxu0 %v2906
        %v2942 = vpop.f32.mrb[0].mxu0
        %v2943 = vadd.f32 0.0, %v2942
        %v2944 = vpop.f32.mrb[0].mxu0
        %v2945 = vpop.f32.mrb[0].mxu0
        %v2946 = vadd.f32 0.0, %v2945
        %v2947 = vpop.f32.mrb[0].mxu0
        %2948 = vdwg.mxu0
        %2949 = vst.msk [vmem:[#allocation2] sm:$0xff] %vm1734, %v2614
        %2950 = vst.msk [vmem:[#allocation2 + $0x8] sm:$0xff] %vm1734, %v2617
        %2951 = vst.msk [vmem:[#allocation2 + $0x10] sm:$0xff] %vm1734, %v2661
        %2952 = vst.msk [vmem:[#allocation2 + $0x18] sm:$0xff] %vm1734, %v2664
        %2953 = vst.msk [vmem:[#allocation2 + $0x20] sm:$0xff] %vm1734, %v2708
        %2954 = vst.msk [vmem:[#allocation2 + $0x28] sm:$0xff] %vm1734, %v2711
        %2955 = vst.msk [vmem:[#allocation2 + $0x30] sm:$0xff] %vm1734, %v2755
        %2956 = vst.msk [vmem:[#allocation2 + $0x38] sm:$0xff] %vm1734, %v2758
        %2957 = vst.msk [vmem:[#allocation2 + $0x40] sm:$0xff] %vm1734, %v2802
        %2958 = vst.msk [vmem:[#allocation2 + $0x48] sm:$0xff] %vm1734, %v2805
        %2959 = vst.msk [vmem:[#allocation2 + $0x50] sm:$0xff] %vm1734, %v2849
        %2960 = vst.msk [vmem:[#allocation2 + $0x58] sm:$0xff] %vm1734, %v2852
        %2961 = vst.msk [vmem:[#allocation2 + $0x60] sm:$0xff] %vm1734, %v2896
        %2962 = vst.msk [vmem:[#allocation2 + $0x68] sm:$0xff] %vm1734, %v2899
        %2963 = vst.msk [vmem:[#allocation2 + $0x70] sm:$0xff] %vm1734, %v2943
        %2964 = vst.msk [vmem:[#allocation2 + $0x78] sm:$0xff] %vm1734, %v2946
        %2965 = vrot.lane.b32.xlu0 %v1723, 120
        %v2966 = vpop.permute.xlu0 %2965
        %2967 = vrot.lane.b32.xlu0 %v1723, 88
        %v2968 = vpop.permute.xlu0 %2967
        %v2970 = vsel %vm1734, %v2966, 0
        %v2973 = vsel %vm1734, %v2968, 0
        %2975 = vmatprep.subr.bf16.mxu0 0
        %2976 = vmatpush1.bf16.xpose.msra.mxu0 %v2973
        %2977 = vmatprep.subr.bf16.mxu0 0
        %2978 = vmatpush1.bf16.xpose.msra.mxu0 0
        %2979 = vmatprep.subr.bf16.mxu0 0
        %2980 = vmatpush1.bf16.xpose.msra.mxu0 0
        %2981 = vmatprep.subr.bf16.mxu0 0
        %2982 = vmatpush1.bf16.xpose.msra.mxu0 0
        %2983 = vmatprep.subr.bf16.mxu0 0
        %2984 = vmatpush1.bf16.xpose.msra.mxu0 0
        %2985 = vmatprep.subr.bf16.mxu0 0
        %2986 = vmatpush1.bf16.xpose.msra.mxu0 0
        %2987 = vmatprep.subr.bf16.mxu0 0
        %2988 = vmatpush1.bf16.xpose.msra.mxu0 0
        %2989 = vmatprep.subr.bf16.mxu0 0
        %2990 = vmatpush1.bf16.xpose.msra.mxu0 0
        %2991 = vmatprep.subr.bf16.mxu0 0
        %2992 = vmatpush1.bf16.xpose.msra.mxu0 0
        %2993 = vmatprep.subr.bf16.mxu0 0
        %2994 = vmatpush1.bf16.xpose.msra.mxu0 0
        %2995 = vmatprep.subr.bf16.mxu0 0
        %2996 = vmatpush1.bf16.xpose.msra.mxu0 0
        %2997 = vmatprep.subr.bf16.mxu0 0
        %2998 = vmatpush1.bf16.xpose.msra.mxu0 0
        %2999 = vmatprep.subr.bf16.mxu0 0
        %3000 = vmatpush1.bf16.xpose.msra.mxu0 0
        %3001 = vmatprep.subr.bf16.mxu0 0
        %3002 = vmatpush1.bf16.xpose.msra.mxu0 0
        %3003 = vmatprep.subr.bf16.mxu0 0
        %3004 = vmatpush1.bf16.xpose.msra.mxu0 0
        %3005 = vmatprep.subr.bf16.mxu0 0
        %3006 = vmatpush1.bf16.xpose.msra.mxu0 0
        %3007 = vmatprep.mubr.bf16.mxu0 0
        %3008 = vmatmul.mubr.bf16.gmra.mrb[0].mxu0 %v2970
        %v3009 = vpop.f32.mrb[0].mxu0
        %v3010 = vadd.f32 0.0, %v3009
        %v3011 = vpop.f32.mrb[0].mxu0
        %v3012 = vpop.f32.mrb[0].mxu0
        %v3013 = vadd.f32 0.0, %v3012
        %v3014 = vpop.f32.mrb[0].mxu0
        %3015 = vdwg.mxu0
        %3016 = vrot.lane.b32.xlu0 %v1724, 120
        %v3017 = vpop.permute.xlu0 %3016
        %3018 = vrot.lane.b32.xlu0 %v1724, 88
        %v3019 = vpop.permute.xlu0 %3018
        %v3021 = vsel %vm1734, %v3017, 0
        %v3024 = vsel %vm1734, %v3019, 0
        %3026 = vmatprep.subr.bf16.mxu0 0
        %3027 = vmatpush1.bf16.xpose.msra.mxu0 %v3024
        %3028 = vmatprep.subr.bf16.mxu0 0
        %3029 = vmatpush1.bf16.xpose.msra.mxu0 0
        %3030 = vmatprep.subr.bf16.mxu0 0
        %3031 = vmatpush1.bf16.xpose.msra.mxu0 0
        %3032 = vmatprep.subr.bf16.mxu0 0
        %3033 = vmatpush1.bf16.xpose.msra.mxu0 0
        %3034 = vmatprep.subr.bf16.mxu0 0
        %3035 = vmatpush1.bf16.xpose.msra.mxu0 0
        %3036 = vmatprep.subr.bf16.mxu0 0
        %3037 = vmatpush1.bf16.xpose.msra.mxu0 0
        %3038 = vmatprep.subr.bf16.mxu0 0
        %3039 = vmatpush1.bf16.xpose.msra.mxu0 0
        %3040 = vmatprep.subr.bf16.mxu0 0
        %3041 = vmatpush1.bf16.xpose.msra.mxu0 0
        %3042 = vmatprep.subr.bf16.mxu0 0
        %3043 = vmatpush1.bf16.xpose.msra.mxu0 0
        %3044 = vmatprep.subr.bf16.mxu0 0
        %3045 = vmatpush1.bf16.xpose.msra.mxu0 0
        %3046 = vmatprep.subr.bf16.mxu0 0
        %3047 = vmatpush1.bf16.xpose.msra.mxu0 0
        %3048 = vmatprep.subr.bf16.mxu0 0
        %3049 = vmatpush1.bf16.xpose.msra.mxu0 0
        %3050 = vmatprep.subr.bf16.mxu0 0
        %3051 = vmatpush1.bf16.xpose.msra.mxu0 0
        %3052 = vmatprep.subr.bf16.mxu0 0
        %3053 = vmatpush1.bf16.xpose.msra.mxu0 0
        %3054 = vmatprep.subr.bf16.mxu0 0
        %3055 = vmatpush1.bf16.xpose.msra.mxu0 0
        %3056 = vmatprep.subr.bf16.mxu0 0
        %3057 = vmatpush1.bf16.xpose.msra.mxu0 0
        %3058 = vmatprep.mubr.bf16.mxu0 0
        %3059 = vmatmul.mubr.bf16.gmra.mrb[0].mxu0 %v3021
        %v3060 = vpop.f32.mrb[0].mxu0
        %v3061 = vadd.f32 0.0, %v3060
        %v3062 = vpop.f32.mrb[0].mxu0
        %v3063 = vpop.f32.mrb[0].mxu0
        %v3064 = vadd.f32 0.0, %v3063
        %v3065 = vpop.f32.mrb[0].mxu0
        %3066 = vdwg.mxu0
        %3067 = vrot.lane.b32.xlu0 %v1725, 120
        %v3068 = vpop.permute.xlu0 %3067
        %3069 = vrot.lane.b32.xlu0 %v1725, 88
        %v3070 = vpop.permute.xlu0 %3069
        %v3072 = vsel %vm1734, %v3068, 0
        %v3075 = vsel %vm1734, %v3070, 0
        %3077 = vmatprep.subr.bf16.mxu0 0
        %3078 = vmatpush1.bf16.xpose.msra.mxu0 %v3075
        %3079 = vmatprep.subr.bf16.mxu0 0
        %3080 = vmatpush1.bf16.xpose.msra.mxu0 0
        %3081 = vmatprep.subr.bf16.mxu0 0
        %3082 = vmatpush1.bf16.xpose.msra.mxu0 0
        %3083 = vmatprep.subr.bf16.mxu0 0
        %3084 = vmatpush1.bf16.xpose.msra.mxu0 0
        %3085 = vmatprep.subr.bf16.mxu0 0
        %3086 = vmatpush1.bf16.xpose.msra.mxu0 0
        %3087 = vmatprep.subr.bf16.mxu0 0
        %3088 = vmatpush1.bf16.xpose.msra.mxu0 0
        %3089 = vmatprep.subr.bf16.mxu0 0
        %3090 = vmatpush1.bf16.xpose.msra.mxu0 0
        %3091 = vmatprep.subr.bf16.mxu0 0
        %3092 = vmatpush1.bf16.xpose.msra.mxu0 0
        %3093 = vmatprep.subr.bf16.mxu0 0
        %3094 = vmatpush1.bf16.xpose.msra.mxu0 0
        %3095 = vmatprep.subr.bf16.mxu0 0
        %3096 = vmatpush1.bf16.xpose.msra.mxu0 0
        %3097 = vmatprep.subr.bf16.mxu0 0
        %3098 = vmatpush1.bf16.xpose.msra.mxu0 0
        %3099 = vmatprep.subr.bf16.mxu0 0
        %3100 = vmatpush1.bf16.xpose.msra.mxu0 0
        %3101 = vmatprep.subr.bf16.mxu0 0
        %3102 = vmatpush1.bf16.xpose.msra.mxu0 0
        %3103 = vmatprep.subr.bf16.mxu0 0
        %3104 = vmatpush1.bf16.xpose.msra.mxu0 0
        %3105 = vmatprep.subr.bf16.mxu0 0
        %3106 = vmatpush1.bf16.xpose.msra.mxu0 0
        %3107 = vmatprep.subr.bf16.mxu0 0
        %3108 = vmatpush1.bf16.xpose.msra.mxu0 0
        %3109 = vmatprep.mubr.bf16.mxu0 0
        %3110 = vmatmul.mubr.bf16.gmra.mrb[0].mxu0 %v3072
        %v3111 = vpop.f32.mrb[0].mxu0
        %v3112 = vadd.f32 0.0, %v3111
        %v3113 = vpop.f32.mrb[0].mxu0
        %v3114 = vpop.f32.mrb[0].mxu0
        %v3115 = vadd.f32 0.0, %v3114
        %v3116 = vpop.f32.mrb[0].mxu0
        %3117 = vdwg.mxu0
        %3118 = vrot.lane.b32.xlu0 %v1726, 120
        %v3119 = vpop.permute.xlu0 %3118
        %3120 = vrot.lane.b32.xlu0 %v1726, 88
        %v3121 = vpop.permute.xlu0 %3120
        %v3123 = vsel %vm1734, %v3119, 0
        %v3126 = vsel %vm1734, %v3121, 0
        %3128 = vmatprep.subr.bf16.mxu0 0
        %3129 = vmatpush1.bf16.xpose.msra.mxu0 %v3126
        %3130 = vmatprep.subr.bf16.mxu0 0
        %3131 = vmatpush1.bf16.xpose.msra.mxu0 0
        %3132 = vmatprep.subr.bf16.mxu0 0
        %3133 = vmatpush1.bf16.xpose.msra.mxu0 0
        %3134 = vmatprep.subr.bf16.mxu0 0
        %3135 = vmatpush1.bf16.xpose.msra.mxu0 0
        %3136 = vmatprep.subr.bf16.mxu0 0
        %3137 = vmatpush1.bf16.xpose.msra.mxu0 0
        %3138 = vmatprep.subr.bf16.mxu0 0
        %3139 = vmatpush1.bf16.xpose.msra.mxu0 0
        %3140 = vmatprep.subr.bf16.mxu0 0
        %3141 = vmatpush1.bf16.xpose.msra.mxu0 0
        %3142 = vmatprep.subr.bf16.mxu0 0
        %3143 = vmatpush1.bf16.xpose.msra.mxu0 0
        %3144 = vmatprep.subr.bf16.mxu0 0
        %3145 = vmatpush1.bf16.xpose.msra.mxu0 0
        %3146 = vmatprep.subr.bf16.mxu0 0
        %3147 = vmatpush1.bf16.xpose.msra.mxu0 0
        %3148 = vmatprep.subr.bf16.mxu0 0
        %3149 = vmatpush1.bf16.xpose.msra.mxu0 0
        %3150 = vmatprep.subr.bf16.mxu0 0
        %3151 = vmatpush1.bf16.xpose.msra.mxu0 0
        %3152 = vmatprep.subr.bf16.mxu0 0
        %3153 = vmatpush1.bf16.xpose.msra.mxu0 0
        %3154 = vmatprep.subr.bf16.mxu0 0
        %3155 = vmatpush1.bf16.xpose.msra.mxu0 0
        %3156 = vmatprep.subr.bf16.mxu0 0
        %3157 = vmatpush1.bf16.xpose.msra.mxu0 0
        %3158 = vmatprep.subr.bf16.mxu0 0
        %3159 = vmatpush1.bf16.xpose.msra.mxu0 0
        %3160 = vmatprep.mubr.bf16.mxu0 0
        %3161 = vmatmul.mubr.bf16.gmra.mrb[0].mxu0 %v3123
        %v3162 = vpop.f32.mrb[0].mxu0
        %v3163 = vadd.f32 0.0, %v3162
        %v3164 = vpop.f32.mrb[0].mxu0
        %v3165 = vpop.f32.mrb[0].mxu0
        %v3166 = vadd.f32 0.0, %v3165
        %v3167 = vpop.f32.mrb[0].mxu0
        %3168 = vdwg.mxu0
        %3169 = vrot.lane.b32.xlu0 %v1727, 120
        %v3170 = vpop.permute.xlu0 %3169
        %3171 = vrot.lane.b32.xlu0 %v1727, 88
        %v3172 = vpop.permute.xlu0 %3171
        %v3174 = vsel %vm1734, %v3170, 0
        %v3177 = vsel %vm1734, %v3172, 0
        %3179 = vmatprep.subr.bf16.mxu0 0
        %3180 = vmatpush1.bf16.xpose.msra.mxu0 %v3177
        %3181 = vmatprep.subr.bf16.mxu0 0
        %3182 = vmatpush1.bf16.xpose.msra.mxu0 0
        %3183 = vmatprep.subr.bf16.mxu0 0
        %3184 = vmatpush1.bf16.xpose.msra.mxu0 0
        %3185 = vmatprep.subr.bf16.mxu0 0
        %3186 = vmatpush1.bf16.xpose.msra.mxu0 0
        %3187 = vmatprep.subr.bf16.mxu0 0
        %3188 = vmatpush1.bf16.xpose.msra.mxu0 0
        %3189 = vmatprep.subr.bf16.mxu0 0
        %3190 = vmatpush1.bf16.xpose.msra.mxu0 0
        %3191 = vmatprep.subr.bf16.mxu0 0
        %3192 = vmatpush1.bf16.xpose.msra.mxu0 0
        %3193 = vmatprep.subr.bf16.mxu0 0
        %3194 = vmatpush1.bf16.xpose.msra.mxu0 0
        %3195 = vmatprep.subr.bf16.mxu0 0
        %3196 = vmatpush1.bf16.xpose.msra.mxu0 0
        %3197 = vmatprep.subr.bf16.mxu0 0
        %3198 = vmatpush1.bf16.xpose.msra.mxu0 0
        %3199 = vmatprep.subr.bf16.mxu0 0
        %3200 = vmatpush1.bf16.xpose.msra.mxu0 0
        %3201 = vmatprep.subr.bf16.mxu0 0
        %3202 = vmatpush1.bf16.xpose.msra.mxu0 0
        %3203 = vmatprep.subr.bf16.mxu0 0
        %3204 = vmatpush1.bf16.xpose.msra.mxu0 0
        %3205 = vmatprep.subr.bf16.mxu0 0
        %3206 = vmatpush1.bf16.xpose.msra.mxu0 0
        %3207 = vmatprep.subr.bf16.mxu0 0
        %3208 = vmatpush1.bf16.xpose.msra.mxu0 0
        %3209 = vmatprep.subr.bf16.mxu0 0
        %3210 = vmatpush1.bf16.xpose.msra.mxu0 0
        %3211 = vmatprep.mubr.bf16.mxu0 0
        %3212 = vmatmul.mubr.bf16.gmra.mrb[0].mxu0 %v3174
        %v3213 = vpop.f32.mrb[0].mxu0
        %v3214 = vadd.f32 0.0, %v3213
        %v3215 = vpop.f32.mrb[0].mxu0
        %v3216 = vpop.f32.mrb[0].mxu0
        %v3217 = vadd.f32 0.0, %v3216
        %v3218 = vpop.f32.mrb[0].mxu0
        %3219 = vdwg.mxu0
        %3220 = vrot.lane.b32.xlu0 %v1728, 120
        %v3221 = vpop.permute.xlu0 %3220
        %3222 = vrot.lane.b32.xlu0 %v1728, 88
        %v3223 = vpop.permute.xlu0 %3222
        %v3225 = vsel %vm1734, %v3221, 0
        %v3228 = vsel %vm1734, %v3223, 0
        %3230 = vmatprep.subr.bf16.mxu0 0
        %3231 = vmatpush1.bf16.xpose.msra.mxu0 %v3228
        %3232 = vmatprep.subr.bf16.mxu0 0
        %3233 = vmatpush1.bf16.xpose.msra.mxu0 0
        %3234 = vmatprep.subr.bf16.mxu0 0
        %3235 = vmatpush1.bf16.xpose.msra.mxu0 0
        %3236 = vmatprep.subr.bf16.mxu0 0
        %3237 = vmatpush1.bf16.xpose.msra.mxu0 0
        %3238 = vmatprep.subr.bf16.mxu0 0
        %3239 = vmatpush1.bf16.xpose.msra.mxu0 0
        %3240 = vmatprep.subr.bf16.mxu0 0
        %3241 = vmatpush1.bf16.xpose.msra.mxu0 0
        %3242 = vmatprep.subr.bf16.mxu0 0
        %3243 = vmatpush1.bf16.xpose.msra.mxu0 0
        %3244 = vmatprep.subr.bf16.mxu0 0
        %3245 = vmatpush1.bf16.xpose.msra.mxu0 0
        %3246 = vmatprep.subr.bf16.mxu0 0
        %3247 = vmatpush1.bf16.xpose.msra.mxu0 0
        %3248 = vmatprep.subr.bf16.mxu0 0
        %3249 = vmatpush1.bf16.xpose.msra.mxu0 0
        %3250 = vmatprep.subr.bf16.mxu0 0
        %3251 = vmatpush1.bf16.xpose.msra.mxu0 0
        %3252 = vmatprep.subr.bf16.mxu0 0
        %3253 = vmatpush1.bf16.xpose.msra.mxu0 0
        %3254 = vmatprep.subr.bf16.mxu0 0
        %3255 = vmatpush1.bf16.xpose.msra.mxu0 0
        %3256 = vmatprep.subr.bf16.mxu0 0
        %3257 = vmatpush1.bf16.xpose.msra.mxu0 0
        %3258 = vmatprep.subr.bf16.mxu0 0
        %3259 = vmatpush1.bf16.xpose.msra.mxu0 0
        %3260 = vmatprep.subr.bf16.mxu0 0
        %3261 = vmatpush1.bf16.xpose.msra.mxu0 0
        %3262 = vmatprep.mubr.bf16.mxu0 0
        %3263 = vmatmul.mubr.bf16.gmra.mrb[0].mxu0 %v3225
        %v3264 = vpop.f32.mrb[0].mxu0
        %v3265 = vadd.f32 0.0, %v3264
        %v3266 = vpop.f32.mrb[0].mxu0
        %v3267 = vpop.f32.mrb[0].mxu0
        %v3268 = vadd.f32 0.0, %v3267
        %v3269 = vpop.f32.mrb[0].mxu0
        %3270 = vdwg.mxu0
        %3271 = vrot.lane.b32.xlu0 %v1729, 120
        %v3272 = vpop.permute.xlu0 %3271
        %3273 = vrot.lane.b32.xlu0 %v1729, 88
        %v3274 = vpop.permute.xlu0 %3273
        %v3276 = vsel %vm1734, %v3272, 0
        %v3279 = vsel %vm1734, %v3274, 0
        %3281 = vmatprep.subr.bf16.mxu0 0
        %3282 = vmatpush1.bf16.xpose.msra.mxu0 %v3279
        %3283 = vmatprep.subr.bf16.mxu0 0
        %3284 = vmatpush1.bf16.xpose.msra.mxu0 0
        %3285 = vmatprep.subr.bf16.mxu0 0
        %3286 = vmatpush1.bf16.xpose.msra.mxu0 0
        %3287 = vmatprep.subr.bf16.mxu0 0
        %3288 = vmatpush1.bf16.xpose.msra.mxu0 0
        %3289 = vmatprep.subr.bf16.mxu0 0
        %3290 = vmatpush1.bf16.xpose.msra.mxu0 0
        %3291 = vmatprep.subr.bf16.mxu0 0
        %3292 = vmatpush1.bf16.xpose.msra.mxu0 0
        %3293 = vmatprep.subr.bf16.mxu0 0
        %3294 = vmatpush1.bf16.xpose.msra.mxu0 0
        %3295 = vmatprep.subr.bf16.mxu0 0
        %3296 = vmatpush1.bf16.xpose.msra.mxu0 0
        %3297 = vmatprep.subr.bf16.mxu0 0
        %3298 = vmatpush1.bf16.xpose.msra.mxu0 0
        %3299 = vmatprep.subr.bf16.mxu0 0
        %3300 = vmatpush1.bf16.xpose.msra.mxu0 0
        %3301 = vmatprep.subr.bf16.mxu0 0
        %3302 = vmatpush1.bf16.xpose.msra.mxu0 0
        %3303 = vmatprep.subr.bf16.mxu0 0
        %3304 = vmatpush1.bf16.xpose.msra.mxu0 0
        %3305 = vmatprep.subr.bf16.mxu0 0
        %3306 = vmatpush1.bf16.xpose.msra.mxu0 0
        %3307 = vmatprep.subr.bf16.mxu0 0
        %3308 = vmatpush1.bf16.xpose.msra.mxu0 0
        %3309 = vmatprep.subr.bf16.mxu0 0
        %3310 = vmatpush1.bf16.xpose.msra.mxu0 0
        %3311 = vmatprep.subr.bf16.mxu0 0
        %3312 = vmatpush1.bf16.xpose.msra.mxu0 0
        %3313 = vmatprep.mubr.bf16.mxu0 0
        %3314 = vmatmul.mubr.bf16.gmra.mrb[0].mxu0 %v3276
        %v3315 = vpop.f32.mrb[0].mxu0
        %v3316 = vadd.f32 0.0, %v3315
        %v3317 = vpop.f32.mrb[0].mxu0
        %v3318 = vpop.f32.mrb[0].mxu0
        %v3319 = vadd.f32 0.0, %v3318
        %v3320 = vpop.f32.mrb[0].mxu0
        %3321 = vdwg.mxu0
        %3322 = vrot.lane.b32.xlu0 %v1730, 120
        %v3323 = vpop.permute.xlu0 %3322
        %3324 = vrot.lane.b32.xlu0 %v1730, 88
        %v3325 = vpop.permute.xlu0 %3324
        %v3327 = vsel %vm1734, %v3323, 0
        %v3330 = vsel %vm1734, %v3325, 0
        %3332 = vmatprep.subr.bf16.mxu0 0
        %3333 = vmatpush1.bf16.xpose.msra.mxu0 %v3330
        %3334 = vmatprep.subr.bf16.mxu0 0
        %3335 = vmatpush1.bf16.xpose.msra.mxu0 0
        %3336 = vmatprep.subr.bf16.mxu0 0
        %3337 = vmatpush1.bf16.xpose.msra.mxu0 0
        %3338 = vmatprep.subr.bf16.mxu0 0
        %3339 = vmatpush1.bf16.xpose.msra.mxu0 0
        %3340 = vmatprep.subr.bf16.mxu0 0
        %3341 = vmatpush1.bf16.xpose.msra.mxu0 0
        %3342 = vmatprep.subr.bf16.mxu0 0
        %3343 = vmatpush1.bf16.xpose.msra.mxu0 0
        %3344 = vmatprep.subr.bf16.mxu0 0
        %3345 = vmatpush1.bf16.xpose.msra.mxu0 0
        %3346 = vmatprep.subr.bf16.mxu0 0
        %3347 = vmatpush1.bf16.xpose.msra.mxu0 0
        %3348 = vmatprep.subr.bf16.mxu0 0
        %3349 = vmatpush1.bf16.xpose.msra.mxu0 0
        %3350 = vmatprep.subr.bf16.mxu0 0
        %3351 = vmatpush1.bf16.xpose.msra.mxu0 0
        %3352 = vmatprep.subr.bf16.mxu0 0
        %3353 = vmatpush1.bf16.xpose.msra.mxu0 0
        %3354 = vmatprep.subr.bf16.mxu0 0
        %3355 = vmatpush1.bf16.xpose.msra.mxu0 0
        %3356 = vmatprep.subr.bf16.mxu0 0
        %3357 = vmatpush1.bf16.xpose.msra.mxu0 0
        %3358 = vmatprep.subr.bf16.mxu0 0
        %3359 = vmatpush1.bf16.xpose.msra.mxu0 0
        %3360 = vmatprep.subr.bf16.mxu0 0
        %3361 = vmatpush1.bf16.xpose.msra.mxu0 0
        %3362 = vmatprep.subr.bf16.mxu0 0
        %3363 = vmatpush1.bf16.xpose.msra.mxu0 0
        %3364 = vmatprep.mubr.bf16.mxu0 0
        %3365 = vmatmul.mubr.bf16.gmra.mrb[0].mxu0 %v3327
        %v3366 = vpop.f32.mrb[0].mxu0
        %v3367 = vadd.f32 0.0, %v3366
        %v3368 = vpop.f32.mrb[0].mxu0
        %v3369 = vpop.f32.mrb[0].mxu0
        %v3370 = vadd.f32 0.0, %v3369
        %v3371 = vpop.f32.mrb[0].mxu0
        %3372 = vdwg.mxu0
        %v3373 = vmul.f32 %v3010, 0.35355338
        %v3374 = vmul.f32 %v3013, 0.35355338
        %v3375 = vmul.f32 %v3061, 0.35355338
        %v3376 = vmul.f32 %v3064, 0.35355338
        %v3377 = vmul.f32 %v3112, 0.35355338
        %v3378 = vmul.f32 %v3115, 0.35355338
        %v3379 = vmul.f32 %v3163, 0.35355338
        %v3380 = vmul.f32 %v3166, 0.35355338
        %v3381 = vmul.f32 %v3214, 0.35355338
        %v3382 = vmul.f32 %v3217, 0.35355338
        %v3383 = vmul.f32 %v3265, 0.35355338
        %v3384 = vmul.f32 %v3268, 0.35355338
        %v3385 = vmul.f32 %v3316, 0.35355338
        %v3386 = vmul.f32 %v3319, 0.35355338
        %v3387 = vmul.f32 %v3367, 0.35355338
        %v3388 = vmul.f32 %v3370, 0.35355338
        %v3389 = vadd.f32 %v3373, %v736
        %v3390 = vadd.f32 %v3374, %v737
        %v3391 = vadd.f32 %v3375, %v738
        %v3392 = vadd.f32 %v3376, %v739
        %v3393 = vadd.f32 %v3377, %v740
        %v3394 = vadd.f32 %v3378, %v741
        %v3395 = vadd.f32 %v3379, %v742
        %v3396 = vadd.f32 %v3380, %v743
        %v3397 = vadd.f32 %v3381, %v744
        %v3398 = vadd.f32 %v3382, %v745
        %v3399 = vadd.f32 %v3383, %v746
        %v3400 = vadd.f32 %v3384, %v747
        %v3401 = vadd.f32 %v3385, %v748
        %v3402 = vadd.f32 %v3386, %v749
        %v3403 = vadd.f32 %v3387, %v750
        %v3404 = vadd.f32 %v3388, %v751
        %v3405 = vsel %vm775, %v3389, -inf
        %3406 = vmax.xlane.f32.xlu0 %v3405
        %v3407 = vpop.xlane.xlu0 %3406
        %v3408 = vsel %vm775, %v3390, -inf
        %3409 = vmax.xlane.f32.xlu0 %v3408
        %v3410 = vpop.xlane.xlu0 %3409
        %v3411 = vsel %vm775, %v3391, -inf
        %3412 = vmax.xlane.f32.xlu0 %v3411
        %v3413 = vpop.xlane.xlu0 %3412
        %v3414 = vsel %vm775, %v3392, -inf
        %3415 = vmax.xlane.f32.xlu0 %v3414
        %v3416 = vpop.xlane.xlu0 %3415
        %v3417 = vsel %vm775, %v3393, -inf
        %3418 = vmax.xlane.f32.xlu0 %v3417
        %v3419 = vpop.xlane.xlu0 %3418
        %v3420 = vsel %vm775, %v3394, -inf
        %3421 = vmax.xlane.f32.xlu0 %v3420
        %v3422 = vpop.xlane.xlu0 %3421
        %v3423 = vsel %vm775, %v3395, -inf
        %3424 = vmax.xlane.f32.xlu0 %v3423
        %v3425 = vpop.xlane.xlu0 %3424
        %v3426 = vsel %vm775, %v3396, -inf
        %3427 = vmax.xlane.f32.xlu0 %v3426
        %v3428 = vpop.xlane.xlu0 %3427
        %v3429 = vsel %vm775, %v3397, -inf
        %3430 = vmax.xlane.f32.xlu0 %v3429
        %v3431 = vpop.xlane.xlu0 %3430
        %v3432 = vsel %vm775, %v3398, -inf
        %3433 = vmax.xlane.f32.xlu0 %v3432
        %v3434 = vpop.xlane.xlu0 %3433
        %v3435 = vsel %vm775, %v3399, -inf
        %3436 = vmax.xlane.f32.xlu0 %v3435
        %v3437 = vpop.xlane.xlu0 %3436
        %v3438 = vsel %vm775, %v3400, -inf
        %3439 = vmax.xlane.f32.xlu0 %v3438
        %v3440 = vpop.xlane.xlu0 %3439
        %v3441 = vsel %vm775, %v3401, -inf
        %3442 = vmax.xlane.f32.xlu0 %v3441
        %v3443 = vpop.xlane.xlu0 %3442
        %v3444 = vsel %vm775, %v3402, -inf
        %3445 = vmax.xlane.f32.xlu0 %v3444
        %v3446 = vpop.xlane.xlu0 %3445
        %v3447 = vsel %vm775, %v3403, -inf
        %3448 = vmax.xlane.f32.xlu0 %v3447
        %v3449 = vpop.xlane.xlu0 %3448
        %v3450 = vsel %vm775, %v3404, -inf
        %3451 = vmax.xlane.f32.xlu0 %v3450
        %v3452 = vpop.xlane.xlu0 %3451
        %v3453 = vsub.f32 %v3389, %v3407
        %v3454 = vsub.f32 %v3390, %v3410
        %v3455 = vsub.f32 %v3391, %v3413
        %v3456 = vsub.f32 %v3392, %v3416
        %v3457 = vsub.f32 %v3393, %v3419
        %v3458 = vsub.f32 %v3394, %v3422
        %v3459 = vsub.f32 %v3395, %v3425
        %v3460 = vsub.f32 %v3396, %v3428
        %v3461 = vsub.f32 %v3397, %v3431
        %v3462 = vsub.f32 %v3398, %v3434
        %v3463 = vsub.f32 %v3399, %v3437
        %v3464 = vsub.f32 %v3400, %v3440
        %v3465 = vsub.f32 %v3401, %v3443
        %v3466 = vsub.f32 %v3402, %v3446
        %v3467 = vsub.f32 %v3403, %v3449
        %v3468 = vsub.f32 %v3404, %v3452
        %v3469 = vmul.f32 %v3453, 1.442695
        %v3470 = vpow.pop %v3469
        %v3471 = vmul.f32 %v3454, 1.442695
        %v3472 = vpow.pop %v3471
        %v3473 = vmul.f32 %v3455, 1.442695
        %v3474 = vpow.pop %v3473
        %v3475 = vmul.f32 %v3456, 1.442695
        %v3476 = vpow.pop %v3475
        %v3477 = vmul.f32 %v3457, 1.442695
        %v3478 = vpow.pop %v3477
        %v3479 = vmul.f32 %v3458, 1.442695
        %v3480 = vpow.pop %v3479
        %v3481 = vmul.f32 %v3459, 1.442695
        %v3482 = vpow.pop %v3481
        %v3483 = vmul.f32 %v3460, 1.442695
        %v3484 = vpow.pop %v3483
        %v3485 = vmul.f32 %v3461, 1.442695
        %v3486 = vpow.pop %v3485
        %v3487 = vmul.f32 %v3462, 1.442695
        %v3488 = vpow.pop %v3487
        %v3489 = vmul.f32 %v3463, 1.442695
        %v3490 = vpow.pop %v3489
        %v3491 = vmul.f32 %v3464, 1.442695
        %v3492 = vpow.pop %v3491
        %v3493 = vmul.f32 %v3465, 1.442695
        %v3494 = vpow.pop %v3493
        %v3495 = vmul.f32 %v3466, 1.442695
        %v3496 = vpow.pop %v3495
        %v3497 = vmul.f32 %v3467, 1.442695
        %v3498 = vpow.pop %v3497
        %v3499 = vmul.f32 %v3468, 1.442695
        %v3500 = vpow.pop %v3499
        %v3501 = vsel %vm775, %v3470, 0.0
        %3502 = vadd.xlane.f32.xlu0 %v3501
        %v3503 = vpop.xlane.xlu0 %3502
        %v3504 = vsel %vm775, %v3472, 0.0
        %3505 = vadd.xlane.f32.xlu0 %v3504
        %v3506 = vpop.xlane.xlu0 %3505
        %v3507 = vsel %vm775, %v3474, 0.0
        %3508 = vadd.xlane.f32.xlu0 %v3507
        %v3509 = vpop.xlane.xlu0 %3508
        %v3510 = vsel %vm775, %v3476, 0.0
        %3511 = vadd.xlane.f32.xlu0 %v3510
        %v3512 = vpop.xlane.xlu0 %3511
        %v3513 = vsel %vm775, %v3478, 0.0
        %3514 = vadd.xlane.f32.xlu0 %v3513
        %v3515 = vpop.xlane.xlu0 %3514
        %v3516 = vsel %vm775, %v3480, 0.0
        %3517 = vadd.xlane.f32.xlu0 %v3516
        %v3518 = vpop.xlane.xlu0 %3517
        %v3519 = vsel %vm775, %v3482, 0.0
        %3520 = vadd.xlane.f32.xlu0 %v3519
        %v3521 = vpop.xlane.xlu0 %3520
        %v3522 = vsel %vm775, %v3484, 0.0
        %3523 = vadd.xlane.f32.xlu0 %v3522
        %v3524 = vpop.xlane.xlu0 %3523
        %v3525 = vsel %vm775, %v3486, 0.0
        %3526 = vadd.xlane.f32.xlu0 %v3525
        %v3527 = vpop.xlane.xlu0 %3526
        %v3528 = vsel %vm775, %v3488, 0.0
        %3529 = vadd.xlane.f32.xlu0 %v3528
        %v3530 = vpop.xlane.xlu0 %3529
        %v3531 = vsel %vm775, %v3490, 0.0
        %3532 = vadd.xlane.f32.xlu0 %v3531
        %v3533 = vpop.xlane.xlu0 %3532
        %v3534 = vsel %vm775, %v3492, 0.0
        %3535 = vadd.xlane.f32.xlu0 %v3534
        %v3536 = vpop.xlane.xlu0 %3535
        %v3537 = vsel %vm775, %v3494, 0.0
        %3538 = vadd.xlane.f32.xlu0 %v3537
        %v3539 = vpop.xlane.xlu0 %3538
        %v3540 = vsel %vm775, %v3496, 0.0
        %3541 = vadd.xlane.f32.xlu0 %v3540
        %v3542 = vpop.xlane.xlu0 %3541
        %v3543 = vsel %vm775, %v3498, 0.0
        %3544 = vadd.xlane.f32.xlu0 %v3543
        %v3545 = vpop.xlane.xlu0 %3544
        %v3546 = vsel %vm775, %v3500, 0.0
        %3547 = vadd.xlane.f32.xlu0 %v3546
        %v3548 = vpop.xlane.xlu0 %3547
        %v3549 = vrcp.pop %v3503
        %v3550 = vrcp.pop %v3506
        %v3551 = vrcp.pop %v3509
        %v3552 = vrcp.pop %v3512
        %v3553 = vrcp.pop %v3515
        %v3554 = vrcp.pop %v3518
        %v3555 = vrcp.pop %v3521
        %v3556 = vrcp.pop %v3524
        %v3557 = vrcp.pop %v3527
        %v3558 = vrcp.pop %v3530
        %v3559 = vrcp.pop %v3533
        %v3560 = vrcp.pop %v3536
        %v3561 = vrcp.pop %v3539
        %v3562 = vrcp.pop %v3542
        %v3563 = vrcp.pop %v3545
        %v3564 = vrcp.pop %v3548
        %v3565 = vmul.f32 %v3470, %v3549
        %v3566 = vmul.f32 %v3472, %v3550
        %v3567 = vmul.f32 %v3474, %v3551
        %v3568 = vmul.f32 %v3476, %v3552
        %v3569 = vmul.f32 %v3478, %v3553
        %v3570 = vmul.f32 %v3480, %v3554
        %v3571 = vmul.f32 %v3482, %v3555
        %v3572 = vmul.f32 %v3484, %v3556
        %v3573 = vmul.f32 %v3486, %v3557
        %v3574 = vmul.f32 %v3488, %v3558
        %v3575 = vmul.f32 %v3490, %v3559
        %v3576 = vmul.f32 %v3492, %v3560
        %v3577 = vmul.f32 %v3494, %v3561
        %v3578 = vmul.f32 %v3496, %v3562
        %v3579 = vmul.f32 %v3498, %v3563
        %v3580 = vmul.f32 %v3500, %v3564
        %v3581 = vmul.f32 %v2340, %v3565
        %v3582 = vmul.f32 %v2340, %v3566
        %v3583 = vmul.f32 %v2340, %v3567
        %v3584 = vmul.f32 %v2340, %v3568
        %v3585 = vmul.f32 %v2340, %v3569
        %v3586 = vmul.f32 %v2340, %v3570
        %v3587 = vmul.f32 %v2340, %v3571
        %v3588 = vmul.f32 %v2340, %v3572
        %v3589 = vmul.f32 %v2340, %v3573
        %v3590 = vmul.f32 %v2340, %v3574
        %v3591 = vmul.f32 %v2340, %v3575
        %v3592 = vmul.f32 %v2340, %v3576
        %v3593 = vmul.f32 %v2340, %v3577
        %v3594 = vmul.f32 %v2340, %v3578
        %v3595 = vmul.f32 %v2340, %v3579
        %v3596 = vmul.f32 %v2340, %v3580
        %v3597 = vadd.f32 %v3581, %v1562
        %v3598 = vadd.f32 %v3582, %v1563
        %v3599 = vadd.f32 %v3583, %v1564
        %v3600 = vadd.f32 %v3584, %v1565
        %v3601 = vadd.f32 %v3585, %v1566
        %v3602 = vadd.f32 %v3586, %v1567
        %v3603 = vadd.f32 %v3587, %v1568
        %v3604 = vadd.f32 %v3588, %v1569
        %v3605 = vadd.f32 %v3589, %v1570
        %v3606 = vadd.f32 %v3590, %v1571
        %v3607 = vadd.f32 %v3591, %v1572
        %v3608 = vadd.f32 %v3592, %v1573
        %v3609 = vadd.f32 %v3593, %v1574
        %v3610 = vadd.f32 %v3594, %v1575
        %v3611 = vadd.f32 %v3595, %v1576
        %v3612 = vadd.f32 %v3596, %v1577
        %v3613 = vsel %vm775, %v3597, -inf
        %3614 = vmax.xlane.f32.xlu0 %v3613
        %v3615 = vpop.xlane.xlu0 %3614
        %v3616 = vsel %vm775, %v3598, -inf
        %3617 = vmax.xlane.f32.xlu0 %v3616
        %v3618 = vpop.xlane.xlu0 %3617
        %v3619 = vsel %vm775, %v3599, -inf
        %3620 = vmax.xlane.f32.xlu0 %v3619
        %v3621 = vpop.xlane.xlu0 %3620
        %v3622 = vsel %vm775, %v3600, -inf
        %3623 = vmax.xlane.f32.xlu0 %v3622
        %v3624 = vpop.xlane.xlu0 %3623
        %v3625 = vsel %vm775, %v3601, -inf
        %3626 = vmax.xlane.f32.xlu0 %v3625
        %v3627 = vpop.xlane.xlu0 %3626
        %v3628 = vsel %vm775, %v3602, -inf
        %3629 = vmax.xlane.f32.xlu0 %v3628
        %v3630 = vpop.xlane.xlu0 %3629
        %v3631 = vsel %vm775, %v3603, -inf
        %3632 = vmax.xlane.f32.xlu0 %v3631
        %v3633 = vpop.xlane.xlu0 %3632
        %v3634 = vsel %vm775, %v3604, -inf
        %3635 = vmax.xlane.f32.xlu0 %v3634
        %v3636 = vpop.xlane.xlu0 %3635
        %v3637 = vsel %vm775, %v3605, -inf
        %3638 = vmax.xlane.f32.xlu0 %v3637
        %v3639 = vpop.xlane.xlu0 %3638
        %v3640 = vsel %vm775, %v3606, -inf
        %3641 = vmax.xlane.f32.xlu0 %v3640
        %v3642 = vpop.xlane.xlu0 %3641
        %v3643 = vsel %vm775, %v3607, -inf
        %3644 = vmax.xlane.f32.xlu0 %v3643
        %v3645 = vpop.xlane.xlu0 %3644
        %v3646 = vsel %vm775, %v3608, -inf
        %3647 = vmax.xlane.f32.xlu0 %v3646
        %v3648 = vpop.xlane.xlu0 %3647
        %v3649 = vsel %vm775, %v3609, -inf
        %3650 = vmax.xlane.f32.xlu0 %v3649
        %v3651 = vpop.xlane.xlu0 %3650
        %v3652 = vsel %vm775, %v3610, -inf
        %3653 = vmax.xlane.f32.xlu0 %v3652
        %v3654 = vpop.xlane.xlu0 %3653
        %v3655 = vsel %vm775, %v3611, -inf
        %3656 = vmax.xlane.f32.xlu0 %v3655
        %v3657 = vpop.xlane.xlu0 %3656
        %v3658 = vsel %vm775, %v3612, -inf
        %3659 = vmax.xlane.f32.xlu0 %v3658
        %v3660 = vpop.xlane.xlu0 %3659
        %v3661 = vsub.f32 %v3597, %v3615
        %v3662 = vsub.f32 %v3598, %v3618
        %v3663 = vsub.f32 %v3599, %v3621
        %v3664 = vsub.f32 %v3600, %v3624
        %v3665 = vsub.f32 %v3601, %v3627
        %v3666 = vsub.f32 %v3602, %v3630
        %v3667 = vsub.f32 %v3603, %v3633
        %v3668 = vsub.f32 %v3604, %v3636
        %v3669 = vsub.f32 %v3605, %v3639
        %v3670 = vsub.f32 %v3606, %v3642
        %v3671 = vsub.f32 %v3607, %v3645
        %v3672 = vsub.f32 %v3608, %v3648
        %v3673 = vsub.f32 %v3609, %v3651
        %v3674 = vsub.f32 %v3610, %v3654
        %v3675 = vsub.f32 %v3611, %v3657
        %v3676 = vsub.f32 %v3612, %v3660
        %v3677 = vmul.f32 %v3661, 1.442695
        %v3678 = vpow.pop %v3677
        %v3679 = vmul.f32 %v3662, 1.442695
        %v3680 = vpow.pop %v3679
        %v3681 = vmul.f32 %v3663, 1.442695
        %v3682 = vpow.pop %v3681
        %v3683 = vmul.f32 %v3664, 1.442695
        %v3684 = vpow.pop %v3683
        %v3685 = vmul.f32 %v3665, 1.442695
        %v3686 = vpow.pop %v3685
        %v3687 = vmul.f32 %v3666, 1.442695
        %v3688 = vpow.pop %v3687
        %v3689 = vmul.f32 %v3667, 1.442695
        %v3690 = vpow.pop %v3689
        %v3691 = vmul.f32 %v3668, 1.442695
        %v3692 = vpow.pop %v3691
        %v3693 = vmul.f32 %v3669, 1.442695
        %v3694 = vpow.pop %v3693
        %v3695 = vmul.f32 %v3670, 1.442695
        %v3696 = vpow.pop %v3695
        %v3697 = vmul.f32 %v3671, 1.442695
        %v3698 = vpow.pop %v3697
        %v3699 = vmul.f32 %v3672, 1.442695
        %v3700 = vpow.pop %v3699
        %v3701 = vmul.f32 %v3673, 1.442695
        %v3702 = vpow.pop %v3701
        %v3703 = vmul.f32 %v3674, 1.442695
        %v3704 = vpow.pop %v3703
        %v3705 = vmul.f32 %v3675, 1.442695
        %v3706 = vpow.pop %v3705
        %v3707 = vmul.f32 %v3676, 1.442695
        %v3708 = vpow.pop %v3707
        %v3709 = vsel %vm775, %v3678, 0.0
        %3710 = vadd.xlane.f32.xlu0 %v3709
        %v3711 = vpop.xlane.xlu0 %3710
        %v3712 = vsel %vm775, %v3680, 0.0
        %3713 = vadd.xlane.f32.xlu0 %v3712
        %v3714 = vpop.xlane.xlu0 %3713
        %v3715 = vsel %vm775, %v3682, 0.0
        %3716 = vadd.xlane.f32.xlu0 %v3715
        %v3717 = vpop.xlane.xlu0 %3716
        %v3718 = vsel %vm775, %v3684, 0.0
        %3719 = vadd.xlane.f32.xlu0 %v3718
        %v3720 = vpop.xlane.xlu0 %3719
        %v3721 = vsel %vm775, %v3686, 0.0
        %3722 = vadd.xlane.f32.xlu0 %v3721
        %v3723 = vpop.xlane.xlu0 %3722
        %v3724 = vsel %vm775, %v3688, 0.0
        %3725 = vadd.xlane.f32.xlu0 %v3724
        %v3726 = vpop.xlane.xlu0 %3725
        %v3727 = vsel %vm775, %v3690, 0.0
        %3728 = vadd.xlane.f32.xlu0 %v3727
        %v3729 = vpop.xlane.xlu0 %3728
        %v3730 = vsel %vm775, %v3692, 0.0
        %3731 = vadd.xlane.f32.xlu0 %v3730
        %v3732 = vpop.xlane.xlu0 %3731
        %v3733 = vsel %vm775, %v3694, 0.0
        %3734 = vadd.xlane.f32.xlu0 %v3733
        %v3735 = vpop.xlane.xlu0 %3734
        %v3736 = vsel %vm775, %v3696, 0.0
        %3737 = vadd.xlane.f32.xlu0 %v3736
        %v3738 = vpop.xlane.xlu0 %3737
        %v3739 = vsel %vm775, %v3698, 0.0
        %3740 = vadd.xlane.f32.xlu0 %v3739
        %v3741 = vpop.xlane.xlu0 %3740
        %v3742 = vsel %vm775, %v3700, 0.0
        %3743 = vadd.xlane.f32.xlu0 %v3742
        %v3744 = vpop.xlane.xlu0 %3743
        %v3745 = vsel %vm775, %v3702, 0.0
        %3746 = vadd.xlane.f32.xlu0 %v3745
        %v3747 = vpop.xlane.xlu0 %3746
        %v3748 = vsel %vm775, %v3704, 0.0
        %3749 = vadd.xlane.f32.xlu0 %v3748
        %v3750 = vpop.xlane.xlu0 %3749
        %v3751 = vsel %vm775, %v3706, 0.0
        %3752 = vadd.xlane.f32.xlu0 %v3751
        %v3753 = vpop.xlane.xlu0 %3752
        %v3754 = vsel %vm775, %v3708, 0.0
        %3755 = vadd.xlane.f32.xlu0 %v3754
        %v3756 = vpop.xlane.xlu0 %3755
        %v3757 = vrcp.pop %v3711
        %v3758 = vrcp.pop %v3714
        %v3759 = vrcp.pop %v3717
        %v3760 = vrcp.pop %v3720
        %v3761 = vrcp.pop %v3723
        %v3762 = vrcp.pop %v3726
        %v3763 = vrcp.pop %v3729
        %v3764 = vrcp.pop %v3732
        %v3765 = vrcp.pop %v3735
        %v3766 = vrcp.pop %v3738
        %v3767 = vrcp.pop %v3741
        %v3768 = vrcp.pop %v3744
        %v3769 = vrcp.pop %v3747
        %v3770 = vrcp.pop %v3750
        %v3771 = vrcp.pop %v3753
        %v3772 = vrcp.pop %v3756
        %v3773 = vmul.f32 %v3678, %v3757
        %v3774 = vmul.f32 %v3680, %v3758
        %v3775 = vmul.f32 %v3682, %v3759
        %v3776 = vmul.f32 %v3684, %v3760
        %v3777 = vmul.f32 %v3686, %v3761
        %v3778 = vmul.f32 %v3688, %v3762
        %v3779 = vmul.f32 %v3690, %v3763
        %v3780 = vmul.f32 %v3692, %v3764
        %v3781 = vmul.f32 %v3694, %v3765
        %v3782 = vmul.f32 %v3696, %v3766
        %v3783 = vmul.f32 %v3698, %v3767
        %v3784 = vmul.f32 %v3700, %v3768
        %v3785 = vmul.f32 %v3702, %v3769
        %v3786 = vmul.f32 %v3704, %v3770
        %v3787 = vmul.f32 %v3706, %v3771
        %v3788 = vmul.f32 %v3708, %v3772
        %3805 = vrot.lane.b32.xlu0 %v3773, 16
        %v3806 = vpop.permute.xlu0 %3805
        %3807 = vrot.lane.b32.xlu0 %v3774, 16
        %v3808 = vpop.permute.xlu0 %3807
        %3809 = vrot.lane.b32.xlu0 %v3775, 16
        %v3810 = vpop.permute.xlu0 %3809
        %3811 = vrot.lane.b32.xlu0 %v3776, 16
        %v3812 = vpop.permute.xlu0 %3811
        %3813 = vrot.lane.b32.xlu0 %v3777, 16
        %v3814 = vpop.permute.xlu0 %3813
        %3815 = vrot.lane.b32.xlu0 %v3778, 16
        %v3816 = vpop.permute.xlu0 %3815
        %3817 = vrot.lane.b32.xlu0 %v3779, 16
        %v3818 = vpop.permute.xlu0 %3817
        %3819 = vrot.lane.b32.xlu0 %v3780, 16
        %v3820 = vpop.permute.xlu0 %3819
        %3821 = vrot.lane.b32.xlu0 %v3781, 16
        %v3822 = vpop.permute.xlu0 %3821
        %3823 = vrot.lane.b32.xlu0 %v3782, 16
        %v3824 = vpop.permute.xlu0 %3823
        %3825 = vrot.lane.b32.xlu0 %v3783, 16
        %v3826 = vpop.permute.xlu0 %3825
        %3827 = vrot.lane.b32.xlu0 %v3784, 16
        %v3828 = vpop.permute.xlu0 %3827
        %3829 = vrot.lane.b32.xlu0 %v3785, 16
        %v3830 = vpop.permute.xlu0 %3829
        %3831 = vrot.lane.b32.xlu0 %v3786, 16
        %v3832 = vpop.permute.xlu0 %3831
        %3833 = vrot.lane.b32.xlu0 %v3787, 16
        %v3834 = vpop.permute.xlu0 %3833
        %3835 = vrot.lane.b32.xlu0 %v3788, 16
        %v3836 = vpop.permute.xlu0 %3835
        %vm3853 = vcmask 261248
        %3854 = vst.msk [vmem:[%s664] sm:$0xff] %vm3853, %v3806
        %3855 = vst.msk [vmem:[%s664 + $0x8] sm:$0xff] %vm3853, %v3808
        %3856 = vst.msk [vmem:[%s664 + $0x10] sm:$0xff] %vm3853, %v3810
        %3857 = vst.msk [vmem:[%s664 + $0x18] sm:$0xff] %vm3853, %v3812
        %3858 = vst.msk [vmem:[%s664 + $0x20] sm:$0xff] %vm3853, %v3814
        %3859 = vst.msk [vmem:[%s664 + $0x28] sm:$0xff] %vm3853, %v3816
        %3860 = vst.msk [vmem:[%s664 + $0x30] sm:$0xff] %vm3853, %v3818
        %3861 = vst.msk [vmem:[%s664 + $0x38] sm:$0xff] %vm3853, %v3820
        %3862 = vst.msk [vmem:[%s664 + $0x40] sm:$0xff] %vm3853, %v3822
        %3863 = vst.msk [vmem:[%s664 + $0x48] sm:$0xff] %vm3853, %v3824
        %3864 = vst.msk [vmem:[%s664 + $0x50] sm:$0xff] %vm3853, %v3826
        %3865 = vst.msk [vmem:[%s664 + $0x58] sm:$0xff] %vm3853, %v3828
        %3866 = vst.msk [vmem:[%s664 + $0x60] sm:$0xff] %vm3853, %v3830
        %3867 = vst.msk [vmem:[%s664 + $0x68] sm:$0xff] %vm3853, %v3832
        %3868 = vst.msk [vmem:[%s664 + $0x70] sm:$0xff] %vm3853, %v3834
        %3869 = vst.msk [vmem:[%s664 + $0x78] sm:$0xff] %vm3853, %v3836
        %v3870 = vpack.c.bf16 %v3774, %v3773
        %v3871 = vpack.c.bf16 %v3776, %v3775
        %v3872 = vpack.c.bf16 %v3778, %v3777
        %v3873 = vpack.c.bf16 %v3780, %v3779
        %v3874 = vpack.c.bf16 %v3782, %v3781
        %v3875 = vpack.c.bf16 %v3784, %v3783
        %v3876 = vpack.c.bf16 %v3786, %v3785
        %v3877 = vpack.c.bf16 %v3788, %v3787
        %3878 = vrot.lane.b32.xlu0 %v1723, 56
        %v3879 = vpop.permute.xlu0 %3878
        %v3882 = vsel %vm775, %v3870, 0
        %3884 = vmatprep.subr.bf16.mxu0 0
        %3885 = vmatpush1.bf16.msra.mxu0 %v3879
        %3886 = vmatprep.subr.bf16.mxu0 0
        %3887 = vmatpush1.bf16.msra.mxu0 0
        %3888 = vmatprep.subr.bf16.mxu0 0
        %3889 = vmatpush1.bf16.msra.mxu0 0
        %3890 = vmatprep.subr.bf16.mxu0 0
        %3891 = vmatpush1.bf16.msra.mxu0 0
        %3892 = vmatprep.subr.bf16.mxu0 0
        %3893 = vmatpush1.bf16.msra.mxu0 0
        %3894 = vmatprep.subr.bf16.mxu0 0
        %3895 = vmatpush1.bf16.msra.mxu0 0
        %3896 = vmatprep.subr.bf16.mxu0 0
        %3897 = vmatpush1.bf16.msra.mxu0 0
        %3898 = vmatprep.subr.bf16.mxu0 0
        %3899 = vmatpush1.bf16.msra.mxu0 0
        %3900 = vmatprep.subr.bf16.mxu0 0
        %3901 = vmatpush1.bf16.msra.mxu0 0
        %3902 = vmatprep.subr.bf16.mxu0 0
        %3903 = vmatpush1.bf16.msra.mxu0 0
        %3904 = vmatprep.subr.bf16.mxu0 0
        %3905 = vmatpush1.bf16.msra.mxu0 0
        %3906 = vmatprep.subr.bf16.mxu0 0
        %3907 = vmatpush1.bf16.msra.mxu0 0
        %3908 = vmatprep.subr.bf16.mxu0 0
        %3909 = vmatpush1.bf16.msra.mxu0 0
        %3910 = vmatprep.subr.bf16.mxu0 0
        %3911 = vmatpush1.bf16.msra.mxu0 0
        %3912 = vmatprep.subr.bf16.mxu0 0
        %3913 = vmatpush1.bf16.msra.mxu0 0
        %3914 = vmatprep.subr.bf16.mxu0 0
        %3915 = vmatpush1.bf16.msra.mxu0 0
        %3916 = vmatprep.mubr.bf16.mxu0 0
        %3917 = vmatmul.mubr.bf16.gmra.mrb[0].mxu0 %v3882
        %v3918 = vpop.f32.mrb[0].mxu0
        %v3919 = vadd.f32 0.0, %v3918
        %v3920 = vpop.f32.mrb[0].mxu0
        %v3921 = vpop.f32.mrb[0].mxu0
        %v3922 = vadd.f32 0.0, %v3921
        %v3923 = vpop.f32.mrb[0].mxu0
        %3924 = vdwg.mxu0
        %3925 = vrot.lane.b32.xlu0 %v1724, 56
        %v3926 = vpop.permute.xlu0 %3925
        %v3929 = vsel %vm775, %v3871, 0
        %3931 = vmatprep.subr.bf16.mxu0 0
        %3932 = vmatpush1.bf16.msra.mxu0 %v3926
        %3933 = vmatprep.subr.bf16.mxu0 0
        %3934 = vmatpush1.bf16.msra.mxu0 0
        %3935 = vmatprep.subr.bf16.mxu0 0
        %3936 = vmatpush1.bf16.msra.mxu0 0
        %3937 = vmatprep.subr.bf16.mxu0 0
        %3938 = vmatpush1.bf16.msra.mxu0 0
        %3939 = vmatprep.subr.bf16.mxu0 0
        %3940 = vmatpush1.bf16.msra.mxu0 0
        %3941 = vmatprep.subr.bf16.mxu0 0
        %3942 = vmatpush1.bf16.msra.mxu0 0
        %3943 = vmatprep.subr.bf16.mxu0 0
        %3944 = vmatpush1.bf16.msra.mxu0 0
        %3945 = vmatprep.subr.bf16.mxu0 0
        %3946 = vmatpush1.bf16.msra.mxu0 0
        %3947 = vmatprep.subr.bf16.mxu0 0
        %3948 = vmatpush1.bf16.msra.mxu0 0
        %3949 = vmatprep.subr.bf16.mxu0 0
        %3950 = vmatpush1.bf16.msra.mxu0 0
        %3951 = vmatprep.subr.bf16.mxu0 0
        %3952 = vmatpush1.bf16.msra.mxu0 0
        %3953 = vmatprep.subr.bf16.mxu0 0
        %3954 = vmatpush1.bf16.msra.mxu0 0
        %3955 = vmatprep.subr.bf16.mxu0 0
        %3956 = vmatpush1.bf16.msra.mxu0 0
        %3957 = vmatprep.subr.bf16.mxu0 0
        %3958 = vmatpush1.bf16.msra.mxu0 0
        %3959 = vmatprep.subr.bf16.mxu0 0
        %3960 = vmatpush1.bf16.msra.mxu0 0
        %3961 = vmatprep.subr.bf16.mxu0 0
        %3962 = vmatpush1.bf16.msra.mxu0 0
        %3963 = vmatprep.mubr.bf16.mxu0 0
        %3964 = vmatmul.mubr.bf16.gmra.mrb[0].mxu0 %v3929
        %v3965 = vpop.f32.mrb[0].mxu0
        %v3966 = vadd.f32 0.0, %v3965
        %v3967 = vpop.f32.mrb[0].mxu0
        %v3968 = vpop.f32.mrb[0].mxu0
        %v3969 = vadd.f32 0.0, %v3968
        %v3970 = vpop.f32.mrb[0].mxu0
        %3971 = vdwg.mxu0
        %3972 = vrot.lane.b32.xlu0 %v1725, 56
        %v3973 = vpop.permute.xlu0 %3972
        %v3976 = vsel %vm775, %v3872, 0
        %3978 = vmatprep.subr.bf16.mxu0 0
        %3979 = vmatpush1.bf16.msra.mxu0 %v3973
        %3980 = vmatprep.subr.bf16.mxu0 0
        %3981 = vmatpush1.bf16.msra.mxu0 0
        %3982 = vmatprep.subr.bf16.mxu0 0
        %3983 = vmatpush1.bf16.msra.mxu0 0
        %3984 = vmatprep.subr.bf16.mxu0 0
        %3985 = vmatpush1.bf16.msra.mxu0 0
        %3986 = vmatprep.subr.bf16.mxu0 0
        %3987 = vmatpush1.bf16.msra.mxu0 0
        %3988 = vmatprep.subr.bf16.mxu0 0
        %3989 = vmatpush1.bf16.msra.mxu0 0
        %3990 = vmatprep.subr.bf16.mxu0 0
        %3991 = vmatpush1.bf16.msra.mxu0 0
        %3992 = vmatprep.subr.bf16.mxu0 0
        %3993 = vmatpush1.bf16.msra.mxu0 0
        %3994 = vmatprep.subr.bf16.mxu0 0
        %3995 = vmatpush1.bf16.msra.mxu0 0
        %3996 = vmatprep.subr.bf16.mxu0 0
        %3997 = vmatpush1.bf16.msra.mxu0 0
        %3998 = vmatprep.subr.bf16.mxu0 0
        %3999 = vmatpush1.bf16.msra.mxu0 0
        %4000 = vmatprep.subr.bf16.mxu0 0
        %4001 = vmatpush1.bf16.msra.mxu0 0
        %4002 = vmatprep.subr.bf16.mxu0 0
        %4003 = vmatpush1.bf16.msra.mxu0 0
        %4004 = vmatprep.subr.bf16.mxu0 0
        %4005 = vmatpush1.bf16.msra.mxu0 0
        %4006 = vmatprep.subr.bf16.mxu0 0
        %4007 = vmatpush1.bf16.msra.mxu0 0
        %4008 = vmatprep.subr.bf16.mxu0 0
        %4009 = vmatpush1.bf16.msra.mxu0 0
        %4010 = vmatprep.mubr.bf16.mxu0 0
        %4011 = vmatmul.mubr.bf16.gmra.mrb[0].mxu0 %v3976
        %v4012 = vpop.f32.mrb[0].mxu0
        %v4013 = vadd.f32 0.0, %v4012
        %v4014 = vpop.f32.mrb[0].mxu0
        %v4015 = vpop.f32.mrb[0].mxu0
        %v4016 = vadd.f32 0.0, %v4015
        %v4017 = vpop.f32.mrb[0].mxu0
        %4018 = vdwg.mxu0
        %4019 = vrot.lane.b32.xlu0 %v1726, 56
        %v4020 = vpop.permute.xlu0 %4019
        %v4023 = vsel %vm775, %v3873, 0
        %4025 = vmatprep.subr.bf16.mxu0 0
        %4026 = vmatpush1.bf16.msra.mxu0 %v4020
        %4027 = vmatprep.subr.bf16.mxu0 0
        %4028 = vmatpush1.bf16.msra.mxu0 0
        %4029 = vmatprep.subr.bf16.mxu0 0
        %4030 = vmatpush1.bf16.msra.mxu0 0
        %4031 = vmatprep.subr.bf16.mxu0 0
        %4032 = vmatpush1.bf16.msra.mxu0 0
        %4033 = vmatprep.subr.bf16.mxu0 0
        %4034 = vmatpush1.bf16.msra.mxu0 0
        %4035 = vmatprep.subr.bf16.mxu0 0
        %4036 = vmatpush1.bf16.msra.mxu0 0
        %4037 = vmatprep.subr.bf16.mxu0 0
        %4038 = vmatpush1.bf16.msra.mxu0 0
        %4039 = vmatprep.subr.bf16.mxu0 0
        %4040 = vmatpush1.bf16.msra.mxu0 0
        %4041 = vmatprep.subr.bf16.mxu0 0
        %4042 = vmatpush1.bf16.msra.mxu0 0
        %4043 = vmatprep.subr.bf16.mxu0 0
        %4044 = vmatpush1.bf16.msra.mxu0 0
        %4045 = vmatprep.subr.bf16.mxu0 0
        %4046 = vmatpush1.bf16.msra.mxu0 0
        %4047 = vmatprep.subr.bf16.mxu0 0
        %4048 = vmatpush1.bf16.msra.mxu0 0
        %4049 = vmatprep.subr.bf16.mxu0 0
        %4050 = vmatpush1.bf16.msra.mxu0 0
        %4051 = vmatprep.subr.bf16.mxu0 0
        %4052 = vmatpush1.bf16.msra.mxu0 0
        %4053 = vmatprep.subr.bf16.mxu0 0
        %4054 = vmatpush1.bf16.msra.mxu0 0
        %4055 = vmatprep.subr.bf16.mxu0 0
        %4056 = vmatpush1.bf16.msra.mxu0 0
        %4057 = vmatprep.mubr.bf16.mxu0 0
        %4058 = vmatmul.mubr.bf16.gmra.mrb[0].mxu0 %v4023
        %v4059 = vpop.f32.mrb[0].mxu0
        %v4060 = vadd.f32 0.0, %v4059
        %v4061 = vpop.f32.mrb[0].mxu0
        %v4062 = vpop.f32.mrb[0].mxu0
        %v4063 = vadd.f32 0.0, %v4062
        %v4064 = vpop.f32.mrb[0].mxu0
        %4065 = vdwg.mxu0
        %4066 = vrot.lane.b32.xlu0 %v1727, 56
        %v4067 = vpop.permute.xlu0 %4066
        %v4070 = vsel %vm775, %v3874, 0
        %4072 = vmatprep.subr.bf16.mxu0 0
        %4073 = vmatpush1.bf16.msra.mxu0 %v4067
        %4074 = vmatprep.subr.bf16.mxu0 0
        %4075 = vmatpush1.bf16.msra.mxu0 0
        %4076 = vmatprep.subr.bf16.mxu0 0
        %4077 = vmatpush1.bf16.msra.mxu0 0
        %4078 = vmatprep.subr.bf16.mxu0 0
        %4079 = vmatpush1.bf16.msra.mxu0 0
        %4080 = vmatprep.subr.bf16.mxu0 0
        %4081 = vmatpush1.bf16.msra.mxu0 0
        %4082 = vmatprep.subr.bf16.mxu0 0
        %4083 = vmatpush1.bf16.msra.mxu0 0
        %4084 = vmatprep.subr.bf16.mxu0 0
        %4085 = vmatpush1.bf16.msra.mxu0 0
        %4086 = vmatprep.subr.bf16.mxu0 0
        %4087 = vmatpush1.bf16.msra.mxu0 0
        %4088 = vmatprep.subr.bf16.mxu0 0
        %4089 = vmatpush1.bf16.msra.mxu0 0
        %4090 = vmatprep.subr.bf16.mxu0 0
        %4091 = vmatpush1.bf16.msra.mxu0 0
        %4092 = vmatprep.subr.bf16.mxu0 0
        %4093 = vmatpush1.bf16.msra.mxu0 0
        %4094 = vmatprep.subr.bf16.mxu0 0
        %4095 = vmatpush1.bf16.msra.mxu0 0
        %4096 = vmatprep.subr.bf16.mxu0 0
        %4097 = vmatpush1.bf16.msra.mxu0 0
        %4098 = vmatprep.subr.bf16.mxu0 0
        %4099 = vmatpush1.bf16.msra.mxu0 0
        %4100 = vmatprep.subr.bf16.mxu0 0
        %4101 = vmatpush1.bf16.msra.mxu0 0
        %4102 = vmatprep.subr.bf16.mxu0 0
        %4103 = vmatpush1.bf16.msra.mxu0 0
        %4104 = vmatprep.mubr.bf16.mxu0 0
        %4105 = vmatmul.mubr.bf16.gmra.mrb[0].mxu0 %v4070
        %v4106 = vpop.f32.mrb[0].mxu0
        %v4107 = vadd.f32 0.0, %v4106
        %v4108 = vpop.f32.mrb[0].mxu0
        %v4109 = vpop.f32.mrb[0].mxu0
        %v4110 = vadd.f32 0.0, %v4109
        %v4111 = vpop.f32.mrb[0].mxu0
        %4112 = vdwg.mxu0
        %4113 = vrot.lane.b32.xlu0 %v1728, 56
        %v4114 = vpop.permute.xlu0 %4113
        %v4117 = vsel %vm775, %v3875, 0
        %4119 = vmatprep.subr.bf16.mxu0 0
        %4120 = vmatpush1.bf16.msra.mxu0 %v4114
        %4121 = vmatprep.subr.bf16.mxu0 0
        %4122 = vmatpush1.bf16.msra.mxu0 0
        %4123 = vmatprep.subr.bf16.mxu0 0
        %4124 = vmatpush1.bf16.msra.mxu0 0
        %4125 = vmatprep.subr.bf16.mxu0 0
        %4126 = vmatpush1.bf16.msra.mxu0 0
        %4127 = vmatprep.subr.bf16.mxu0 0
        %4128 = vmatpush1.bf16.msra.mxu0 0
        %4129 = vmatprep.subr.bf16.mxu0 0
        %4130 = vmatpush1.bf16.msra.mxu0 0
        %4131 = vmatprep.subr.bf16.mxu0 0
        %4132 = vmatpush1.bf16.msra.mxu0 0
        %4133 = vmatprep.subr.bf16.mxu0 0
        %4134 = vmatpush1.bf16.msra.mxu0 0
        %4135 = vmatprep.subr.bf16.mxu0 0
        %4136 = vmatpush1.bf16.msra.mxu0 0
        %4137 = vmatprep.subr.bf16.mxu0 0
        %4138 = vmatpush1.bf16.msra.mxu0 0
        %4139 = vmatprep.subr.bf16.mxu0 0
        %4140 = vmatpush1.bf16.msra.mxu0 0
        %4141 = vmatprep.subr.bf16.mxu0 0
        %4142 = vmatpush1.bf16.msra.mxu0 0
        %4143 = vmatprep.subr.bf16.mxu0 0
        %4144 = vmatpush1.bf16.msra.mxu0 0
        %4145 = vmatprep.subr.bf16.mxu0 0
        %4146 = vmatpush1.bf16.msra.mxu0 0
        %4147 = vmatprep.subr.bf16.mxu0 0
        %4148 = vmatpush1.bf16.msra.mxu0 0
        %4149 = vmatprep.subr.bf16.mxu0 0
        %4150 = vmatpush1.bf16.msra.mxu0 0
        %4151 = vmatprep.mubr.bf16.mxu0 0
        %4152 = vmatmul.mubr.bf16.gmra.mrb[0].mxu0 %v4117
        %v4153 = vpop.f32.mrb[0].mxu0
        %v4154 = vadd.f32 0.0, %v4153
        %v4155 = vpop.f32.mrb[0].mxu0
        %v4156 = vpop.f32.mrb[0].mxu0
        %v4157 = vadd.f32 0.0, %v4156
        %v4158 = vpop.f32.mrb[0].mxu0
        %4159 = vdwg.mxu0
        %4160 = vrot.lane.b32.xlu0 %v1729, 56
        %v4161 = vpop.permute.xlu0 %4160
        %v4164 = vsel %vm775, %v3876, 0
        %4166 = vmatprep.subr.bf16.mxu0 0
        %4167 = vmatpush1.bf16.msra.mxu0 %v4161
        %4168 = vmatprep.subr.bf16.mxu0 0
        %4169 = vmatpush1.bf16.msra.mxu0 0
        %4170 = vmatprep.subr.bf16.mxu0 0
        %4171 = vmatpush1.bf16.msra.mxu0 0
        %4172 = vmatprep.subr.bf16.mxu0 0
        %4173 = vmatpush1.bf16.msra.mxu0 0
        %4174 = vmatprep.subr.bf16.mxu0 0
        %4175 = vmatpush1.bf16.msra.mxu0 0
        %4176 = vmatprep.subr.bf16.mxu0 0
        %4177 = vmatpush1.bf16.msra.mxu0 0
        %4178 = vmatprep.subr.bf16.mxu0 0
        %4179 = vmatpush1.bf16.msra.mxu0 0
        %4180 = vmatprep.subr.bf16.mxu0 0
        %4181 = vmatpush1.bf16.msra.mxu0 0
        %4182 = vmatprep.subr.bf16.mxu0 0
        %4183 = vmatpush1.bf16.msra.mxu0 0
        %4184 = vmatprep.subr.bf16.mxu0 0
        %4185 = vmatpush1.bf16.msra.mxu0 0
        %4186 = vmatprep.subr.bf16.mxu0 0
        %4187 = vmatpush1.bf16.msra.mxu0 0
        %4188 = vmatprep.subr.bf16.mxu0 0
        %4189 = vmatpush1.bf16.msra.mxu0 0
        %4190 = vmatprep.subr.bf16.mxu0 0
        %4191 = vmatpush1.bf16.msra.mxu0 0
        %4192 = vmatprep.subr.bf16.mxu0 0
        %4193 = vmatpush1.bf16.msra.mxu0 0
        %4194 = vmatprep.subr.bf16.mxu0 0
        %4195 = vmatpush1.bf16.msra.mxu0 0
        %4196 = vmatprep.subr.bf16.mxu0 0
        %4197 = vmatpush1.bf16.msra.mxu0 0
        %4198 = vmatprep.mubr.bf16.mxu0 0
        %4199 = vmatmul.mubr.bf16.gmra.mrb[0].mxu0 %v4164
        %v4200 = vpop.f32.mrb[0].mxu0
        %v4201 = vadd.f32 0.0, %v4200
        %v4202 = vpop.f32.mrb[0].mxu0
        %v4203 = vpop.f32.mrb[0].mxu0
        %v4204 = vadd.f32 0.0, %v4203
        %v4205 = vpop.f32.mrb[0].mxu0
        %4206 = vdwg.mxu0
        %4207 = vrot.lane.b32.xlu0 %v1730, 56
        %v4208 = vpop.permute.xlu0 %4207
        %v4211 = vsel %vm775, %v3877, 0
        %4213 = vmatprep.subr.bf16.mxu0 0
        %4214 = vmatpush1.bf16.msra.mxu0 %v4208
        %4215 = vmatprep.subr.bf16.mxu0 0
        %4216 = vmatpush1.bf16.msra.mxu0 0
        %4217 = vmatprep.subr.bf16.mxu0 0
        %4218 = vmatpush1.bf16.msra.mxu0 0
        %4219 = vmatprep.subr.bf16.mxu0 0
        %4220 = vmatpush1.bf16.msra.mxu0 0
        %4221 = vmatprep.subr.bf16.mxu0 0
        %4222 = vmatpush1.bf16.msra.mxu0 0
        %4223 = vmatprep.subr.bf16.mxu0 0
        %4224 = vmatpush1.bf16.msra.mxu0 0
        %4225 = vmatprep.subr.bf16.mxu0 0
        %4226 = vmatpush1.bf16.msra.mxu0 0
        %4227 = vmatprep.subr.bf16.mxu0 0
        %4228 = vmatpush1.bf16.msra.mxu0 0
        %4229 = vmatprep.subr.bf16.mxu0 0
        %4230 = vmatpush1.bf16.msra.mxu0 0
        %4231 = vmatprep.subr.bf16.mxu0 0
        %4232 = vmatpush1.bf16.msra.mxu0 0
        %4233 = vmatprep.subr.bf16.mxu0 0
        %4234 = vmatpush1.bf16.msra.mxu0 0
        %4235 = vmatprep.subr.bf16.mxu0 0
        %4236 = vmatpush1.bf16.msra.mxu0 0
        %4237 = vmatprep.subr.bf16.mxu0 0
        %4238 = vmatpush1.bf16.msra.mxu0 0
        %4239 = vmatprep.subr.bf16.mxu0 0
        %4240 = vmatpush1.bf16.msra.mxu0 0
        %4241 = vmatprep.subr.bf16.mxu0 0
        %4242 = vmatpush1.bf16.msra.mxu0 0
        %4243 = vmatprep.subr.bf16.mxu0 0
        %4244 = vmatpush1.bf16.msra.mxu0 0
        %4245 = vmatprep.mubr.bf16.mxu0 0
        %4246 = vmatmul.mubr.bf16.gmra.mrb[0].mxu0 %v4211
        %v4247 = vpop.f32.mrb[0].mxu0
        %v4248 = vadd.f32 0.0, %v4247
        %v4249 = vpop.f32.mrb[0].mxu0
        %v4250 = vpop.f32.mrb[0].mxu0
        %v4251 = vadd.f32 0.0, %v4250
        %v4252 = vpop.f32.mrb[0].mxu0
        %4253 = vdwg.mxu0
        %4270 = vrot.lane.b32.xlu0 %v3919, 8
        %v4271 = vpop.permute.xlu0 %4270
        %4272 = vrot.lane.b32.xlu0 %v3922, 8
        %v4273 = vpop.permute.xlu0 %4272
        %4274 = vrot.lane.b32.xlu0 %v3966, 8
        %v4275 = vpop.permute.xlu0 %4274
        %4276 = vrot.lane.b32.xlu0 %v3969, 8
        %v4277 = vpop.permute.xlu0 %4276
        %4278 = vrot.lane.b32.xlu0 %v4013, 8
        %v4279 = vpop.permute.xlu0 %4278
        %4280 = vrot.lane.b32.xlu0 %v4016, 8
        %v4281 = vpop.permute.xlu0 %4280
        %4282 = vrot.lane.b32.xlu0 %v4060, 8
        %v4283 = vpop.permute.xlu0 %4282
        %4284 = vrot.lane.b32.xlu0 %v4063, 8
        %v4285 = vpop.permute.xlu0 %4284
        %4286 = vrot.lane.b32.xlu0 %v4107, 8
        %v4287 = vpop.permute.xlu0 %4286
        %4288 = vrot.lane.b32.xlu0 %v4110, 8
        %v4289 = vpop.permute.xlu0 %4288
        %4290 = vrot.lane.b32.xlu0 %v4154, 8
        %v4291 = vpop.permute.xlu0 %4290
        %4292 = vrot.lane.b32.xlu0 %v4157, 8
        %v4293 = vpop.permute.xlu0 %4292
        %4294 = vrot.lane.b32.xlu0 %v4201, 8
        %v4295 = vpop.permute.xlu0 %4294
        %4296 = vrot.lane.b32.xlu0 %v4204, 8
        %v4297 = vpop.permute.xlu0 %4296
        %4298 = vrot.lane.b32.xlu0 %v4248, 8
        %v4299 = vpop.permute.xlu0 %4298
        %4300 = vrot.lane.b32.xlu0 %v4251, 8
        %v4301 = vpop.permute.xlu0 %4300
        %vm4318 = vcmask 130112
        %4319 = vst.msk [vmem:[#allocation2] sm:$0xff] %vm4318, %v4271
        %4320 = vst.msk [vmem:[#allocation2 + $0x8] sm:$0xff] %vm4318, %v4273
        %4321 = vst.msk [vmem:[#allocation2 + $0x10] sm:$0xff] %vm4318, %v4275
        %4322 = vst.msk [vmem:[#allocation2 + $0x18] sm:$0xff] %vm4318, %v4277
        %4323 = vst.msk [vmem:[#allocation2 + $0x20] sm:$0xff] %vm4318, %v4279
        %4324 = vst.msk [vmem:[#allocation2 + $0x28] sm:$0xff] %vm4318, %v4281
        %4325 = vst.msk [vmem:[#allocation2 + $0x30] sm:$0xff] %vm4318, %v4283
        %4326 = vst.msk [vmem:[#allocation2 + $0x38] sm:$0xff] %vm4318, %v4285
        %4327 = vst.msk [vmem:[#allocation2 + $0x40] sm:$0xff] %vm4318, %v4287
        %4328 = vst.msk [vmem:[#allocation2 + $0x48] sm:$0xff] %vm4318, %v4289
        %4329 = vst.msk [vmem:[#allocation2 + $0x50] sm:$0xff] %vm4318, %v4291
        %4330 = vst.msk [vmem:[#allocation2 + $0x58] sm:$0xff] %vm4318, %v4293
        %4331 = vst.msk [vmem:[#allocation2 + $0x60] sm:$0xff] %vm4318, %v4295
        %4332 = vst.msk [vmem:[#allocation2 + $0x68] sm:$0xff] %vm4318, %v4297
        %4333 = vst.msk [vmem:[#allocation2 + $0x70] sm:$0xff] %vm4318, %v4299
        %4334 = vst.msk [vmem:[#allocation2 + $0x78] sm:$0xff] %vm4318, %v4301
        %4335 = vrot.lane.b32.xlu0 %v1723, 112
        %v4336 = vpop.permute.xlu0 %4335
        %4337 = vrot.lane.b32.xlu0 %v1723, 80
        %v4338 = vpop.permute.xlu0 %4337
        %v4340 = vsel %vm1734, %v4336, 0
        %v4343 = vsel %vm1734, %v4338, 0
        %4345 = vmatprep.subr.bf16.mxu0 0
        %4346 = vmatpush1.bf16.xpose.msra.mxu0 %v4343
        %4347 = vmatprep.subr.bf16.mxu0 0
        %4348 = vmatpush1.bf16.xpose.msra.mxu0 0
        %4349 = vmatprep.subr.bf16.mxu0 0
        %4350 = vmatpush1.bf16.xpose.msra.mxu0 0
        %4351 = vmatprep.subr.bf16.mxu0 0
        %4352 = vmatpush1.bf16.xpose.msra.mxu0 0
        %4353 = vmatprep.subr.bf16.mxu0 0
        %4354 = vmatpush1.bf16.xpose.msra.mxu0 0
        %4355 = vmatprep.subr.bf16.mxu0 0
        %4356 = vmatpush1.bf16.xpose.msra.mxu0 0
        %4357 = vmatprep.subr.bf16.mxu0 0
        %4358 = vmatpush1.bf16.xpose.msra.mxu0 0
        %4359 = vmatprep.subr.bf16.mxu0 0
        %4360 = vmatpush1.bf16.xpose.msra.mxu0 0
        %4361 = vmatprep.subr.bf16.mxu0 0
        %4362 = vmatpush1.bf16.xpose.msra.mxu0 0
        %4363 = vmatprep.subr.bf16.mxu0 0
        %4364 = vmatpush1.bf16.xpose.msra.mxu0 0
        %4365 = vmatprep.subr.bf16.mxu0 0
        %4366 = vmatpush1.bf16.xpose.msra.mxu0 0
        %4367 = vmatprep.subr.bf16.mxu0 0
        %4368 = vmatpush1.bf16.xpose.msra.mxu0 0
        %4369 = vmatprep.subr.bf16.mxu0 0
        %4370 = vmatpush1.bf16.xpose.msra.mxu0 0
        %4371 = vmatprep.subr.bf16.mxu0 0
        %4372 = vmatpush1.bf16.xpose.msra.mxu0 0
        %4373 = vmatprep.subr.bf16.mxu0 0
        %4374 = vmatpush1.bf16.xpose.msra.mxu0 0
        %4375 = vmatprep.subr.bf16.mxu0 0
        %4376 = vmatpush1.bf16.xpose.msra.mxu0 0
        %4377 = vmatprep.mubr.bf16.mxu0 0
        %4378 = vmatmul.mubr.bf16.gmra.mrb[0].mxu0 %v4340
        %v4379 = vpop.f32.mrb[0].mxu0
        %v4380 = vadd.f32 0.0, %v4379
        %v4381 = vpop.f32.mrb[0].mxu0
        %v4382 = vpop.f32.mrb[0].mxu0
        %v4383 = vadd.f32 0.0, %v4382
        %v4384 = vpop.f32.mrb[0].mxu0
        %4385 = vdwg.mxu0
        %4386 = vrot.lane.b32.xlu0 %v1724, 112
        %v4387 = vpop.permute.xlu0 %4386
        %4388 = vrot.lane.b32.xlu0 %v1724, 80
        %v4389 = vpop.permute.xlu0 %4388
        %v4391 = vsel %vm1734, %v4387, 0
        %v4394 = vsel %vm1734, %v4389, 0
        %4396 = vmatprep.subr.bf16.mxu0 0
        %4397 = vmatpush1.bf16.xpose.msra.mxu0 %v4394
        %4398 = vmatprep.subr.bf16.mxu0 0
        %4399 = vmatpush1.bf16.xpose.msra.mxu0 0
        %4400 = vmatprep.subr.bf16.mxu0 0
        %4401 = vmatpush1.bf16.xpose.msra.mxu0 0
        %4402 = vmatprep.subr.bf16.mxu0 0
        %4403 = vmatpush1.bf16.xpose.msra.mxu0 0
        %4404 = vmatprep.subr.bf16.mxu0 0
        %4405 = vmatpush1.bf16.xpose.msra.mxu0 0
        %4406 = vmatprep.subr.bf16.mxu0 0
        %4407 = vmatpush1.bf16.xpose.msra.mxu0 0
        %4408 = vmatprep.subr.bf16.mxu0 0
        %4409 = vmatpush1.bf16.xpose.msra.mxu0 0
        %4410 = vmatprep.subr.bf16.mxu0 0
        %4411 = vmatpush1.bf16.xpose.msra.mxu0 0
        %4412 = vmatprep.subr.bf16.mxu0 0
        %4413 = vmatpush1.bf16.xpose.msra.mxu0 0
        %4414 = vmatprep.subr.bf16.mxu0 0
        %4415 = vmatpush1.bf16.xpose.msra.mxu0 0
        %4416 = vmatprep.subr.bf16.mxu0 0
        %4417 = vmatpush1.bf16.xpose.msra.mxu0 0
        %4418 = vmatprep.subr.bf16.mxu0 0
        %4419 = vmatpush1.bf16.xpose.msra.mxu0 0
        %4420 = vmatprep.subr.bf16.mxu0 0
        %4421 = vmatpush1.bf16.xpose.msra.mxu0 0
        %4422 = vmatprep.subr.bf16.mxu0 0
        %4423 = vmatpush1.bf16.xpose.msra.mxu0 0
        %4424 = vmatprep.subr.bf16.mxu0 0
        %4425 = vmatpush1.bf16.xpose.msra.mxu0 0
        %4426 = vmatprep.subr.bf16.mxu0 0
        %4427 = vmatpush1.bf16.xpose.msra.mxu0 0
        %4428 = vmatprep.mubr.bf16.mxu0 0
        %4429 = vmatmul.mubr.bf16.gmra.mrb[0].mxu0 %v4391
        %v4430 = vpop.f32.mrb[0].mxu0
        %v4431 = vadd.f32 0.0, %v4430
        %v4432 = vpop.f32.mrb[0].mxu0
        %v4433 = vpop.f32.mrb[0].mxu0
        %v4434 = vadd.f32 0.0, %v4433
        %v4435 = vpop.f32.mrb[0].mxu0
        %4436 = vdwg.mxu0
        %4437 = vrot.lane.b32.xlu0 %v1725, 112
        %v4438 = vpop.permute.xlu0 %4437
        %4439 = vrot.lane.b32.xlu0 %v1725, 80
        %v4440 = vpop.permute.xlu0 %4439
        %v4442 = vsel %vm1734, %v4438, 0
        %v4445 = vsel %vm1734, %v4440, 0
        %4447 = vmatprep.subr.bf16.mxu0 0
        %4448 = vmatpush1.bf16.xpose.msra.mxu0 %v4445
        %4449 = vmatprep.subr.bf16.mxu0 0
        %4450 = vmatpush1.bf16.xpose.msra.mxu0 0
        %4451 = vmatprep.subr.bf16.mxu0 0
        %4452 = vmatpush1.bf16.xpose.msra.mxu0 0
        %4453 = vmatprep.subr.bf16.mxu0 0
        %4454 = vmatpush1.bf16.xpose.msra.mxu0 0
        %4455 = vmatprep.subr.bf16.mxu0 0
        %4456 = vmatpush1.bf16.xpose.msra.mxu0 0
        %4457 = vmatprep.subr.bf16.mxu0 0
        %4458 = vmatpush1.bf16.xpose.msra.mxu0 0
        %4459 = vmatprep.subr.bf16.mxu0 0
        %4460 = vmatpush1.bf16.xpose.msra.mxu0 0
        %4461 = vmatprep.subr.bf16.mxu0 0
        %4462 = vmatpush1.bf16.xpose.msra.mxu0 0
        %4463 = vmatprep.subr.bf16.mxu0 0
        %4464 = vmatpush1.bf16.xpose.msra.mxu0 0
        %4465 = vmatprep.subr.bf16.mxu0 0
        %4466 = vmatpush1.bf16.xpose.msra.mxu0 0
        %4467 = vmatprep.subr.bf16.mxu0 0
        %4468 = vmatpush1.bf16.xpose.msra.mxu0 0
        %4469 = vmatprep.subr.bf16.mxu0 0
        %4470 = vmatpush1.bf16.xpose.msra.mxu0 0
        %4471 = vmatprep.subr.bf16.mxu0 0
        %4472 = vmatpush1.bf16.xpose.msra.mxu0 0
        %4473 = vmatprep.subr.bf16.mxu0 0
        %4474 = vmatpush1.bf16.xpose.msra.mxu0 0
        %4475 = vmatprep.subr.bf16.mxu0 0
        %4476 = vmatpush1.bf16.xpose.msra.mxu0 0
        %4477 = vmatprep.subr.bf16.mxu0 0
        %4478 = vmatpush1.bf16.xpose.msra.mxu0 0
        %4479 = vmatprep.mubr.bf16.mxu0 0
        %4480 = vmatmul.mubr.bf16.gmra.mrb[0].mxu0 %v4442
        %v4481 = vpop.f32.mrb[0].mxu0
        %v4482 = vadd.f32 0.0, %v4481
        %v4483 = vpop.f32.mrb[0].mxu0
        %v4484 = vpop.f32.mrb[0].mxu0
        %v4485 = vadd.f32 0.0, %v4484
        %v4486 = vpop.f32.mrb[0].mxu0
        %4487 = vdwg.mxu0
        %4488 = vrot.lane.b32.xlu0 %v1726, 112
        %v4489 = vpop.permute.xlu0 %4488
        %4490 = vrot.lane.b32.xlu0 %v1726, 80
        %v4491 = vpop.permute.xlu0 %4490
        %v4493 = vsel %vm1734, %v4489, 0
        %v4496 = vsel %vm1734, %v4491, 0
        %4498 = vmatprep.subr.bf16.mxu0 0
        %4499 = vmatpush1.bf16.xpose.msra.mxu0 %v4496
        %4500 = vmatprep.subr.bf16.mxu0 0
        %4501 = vmatpush1.bf16.xpose.msra.mxu0 0
        %4502 = vmatprep.subr.bf16.mxu0 0
        %4503 = vmatpush1.bf16.xpose.msra.mxu0 0
        %4504 = vmatprep.subr.bf16.mxu0 0
        %4505 = vmatpush1.bf16.xpose.msra.mxu0 0
        %4506 = vmatprep.subr.bf16.mxu0 0
        %4507 = vmatpush1.bf16.xpose.msra.mxu0 0
        %4508 = vmatprep.subr.bf16.mxu0 0
        %4509 = vmatpush1.bf16.xpose.msra.mxu0 0
        %4510 = vmatprep.subr.bf16.mxu0 0
        %4511 = vmatpush1.bf16.xpose.msra.mxu0 0
        %4512 = vmatprep.subr.bf16.mxu0 0
        %4513 = vmatpush1.bf16.xpose.msra.mxu0 0
        %4514 = vmatprep.subr.bf16.mxu0 0
        %4515 = vmatpush1.bf16.xpose.msra.mxu0 0
        %4516 = vmatprep.subr.bf16.mxu0 0
        %4517 = vmatpush1.bf16.xpose.msra.mxu0 0
        %4518 = vmatprep.subr.bf16.mxu0 0
        %4519 = vmatpush1.bf16.xpose.msra.mxu0 0
        %4520 = vmatprep.subr.bf16.mxu0 0
        %4521 = vmatpush1.bf16.xpose.msra.mxu0 0
        %4522 = vmatprep.subr.bf16.mxu0 0
        %4523 = vmatpush1.bf16.xpose.msra.mxu0 0
        %4524 = vmatprep.subr.bf16.mxu0 0
        %4525 = vmatpush1.bf16.xpose.msra.mxu0 0
        %4526 = vmatprep.subr.bf16.mxu0 0
        %4527 = vmatpush1.bf16.xpose.msra.mxu0 0
        %4528 = vmatprep.subr.bf16.mxu0 0
        %4529 = vmatpush1.bf16.xpose.msra.mxu0 0
        %4530 = vmatprep.mubr.bf16.mxu0 0
        %4531 = vmatmul.mubr.bf16.gmra.mrb[0].mxu0 %v4493
        %v4532 = vpop.f32.mrb[0].mxu0
        %v4533 = vadd.f32 0.0, %v4532
        %v4534 = vpop.f32.mrb[0].mxu0
        %v4535 = vpop.f32.mrb[0].mxu0
        %v4536 = vadd.f32 0.0, %v4535
        %v4537 = vpop.f32.mrb[0].mxu0
        %4538 = vdwg.mxu0
        %4539 = vrot.lane.b32.xlu0 %v1727, 112
        %v4540 = vpop.permute.xlu0 %4539
        %4541 = vrot.lane.b32.xlu0 %v1727, 80
        %v4542 = vpop.permute.xlu0 %4541
        %v4544 = vsel %vm1734, %v4540, 0
        %v4547 = vsel %vm1734, %v4542, 0
        %4549 = vmatprep.subr.bf16.mxu0 0
        %4550 = vmatpush1.bf16.xpose.msra.mxu0 %v4547
        %4551 = vmatprep.subr.bf16.mxu0 0
        %4552 = vmatpush1.bf16.xpose.msra.mxu0 0
        %4553 = vmatprep.subr.bf16.mxu0 0
        %4554 = vmatpush1.bf16.xpose.msra.mxu0 0
        %4555 = vmatprep.subr.bf16.mxu0 0
        %4556 = vmatpush1.bf16.xpose.msra.mxu0 0
        %4557 = vmatprep.subr.bf16.mxu0 0
        %4558 = vmatpush1.bf16.xpose.msra.mxu0 0
        %4559 = vmatprep.subr.bf16.mxu0 0
        %4560 = vmatpush1.bf16.xpose.msra.mxu0 0
        %4561 = vmatprep.subr.bf16.mxu0 0
        %4562 = vmatpush1.bf16.xpose.msra.mxu0 0
        %4563 = vmatprep.subr.bf16.mxu0 0
        %4564 = vmatpush1.bf16.xpose.msra.mxu0 0
        %4565 = vmatprep.subr.bf16.mxu0 0
        %4566 = vmatpush1.bf16.xpose.msra.mxu0 0
        %4567 = vmatprep.subr.bf16.mxu0 0
        %4568 = vmatpush1.bf16.xpose.msra.mxu0 0
        %4569 = vmatprep.subr.bf16.mxu0 0
        %4570 = vmatpush1.bf16.xpose.msra.mxu0 0
        %4571 = vmatprep.subr.bf16.mxu0 0
        %4572 = vmatpush1.bf16.xpose.msra.mxu0 0
        %4573 = vmatprep.subr.bf16.mxu0 0
        %4574 = vmatpush1.bf16.xpose.msra.mxu0 0
        %4575 = vmatprep.subr.bf16.mxu0 0
        %4576 = vmatpush1.bf16.xpose.msra.mxu0 0
        %4577 = vmatprep.subr.bf16.mxu0 0
        %4578 = vmatpush1.bf16.xpose.msra.mxu0 0
        %4579 = vmatprep.subr.bf16.mxu0 0
        %4580 = vmatpush1.bf16.xpose.msra.mxu0 0
        %4581 = vmatprep.mubr.bf16.mxu0 0
        %4582 = vmatmul.mubr.bf16.gmra.mrb[0].mxu0 %v4544
        %v4583 = vpop.f32.mrb[0].mxu0
        %v4584 = vadd.f32 0.0, %v4583
        %v4585 = vpop.f32.mrb[0].mxu0
        %v4586 = vpop.f32.mrb[0].mxu0
        %v4587 = vadd.f32 0.0, %v4586
        %v4588 = vpop.f32.mrb[0].mxu0
        %4589 = vdwg.mxu0
        %4590 = vrot.lane.b32.xlu0 %v1728, 112
        %v4591 = vpop.permute.xlu0 %4590
        %4592 = vrot.lane.b32.xlu0 %v1728, 80
        %v4593 = vpop.permute.xlu0 %4592
        %v4595 = vsel %vm1734, %v4591, 0
        %v4598 = vsel %vm1734, %v4593, 0
        %4600 = vmatprep.subr.bf16.mxu0 0
        %4601 = vmatpush1.bf16.xpose.msra.mxu0 %v4598
        %4602 = vmatprep.subr.bf16.mxu0 0
        %4603 = vmatpush1.bf16.xpose.msra.mxu0 0
        %4604 = vmatprep.subr.bf16.mxu0 0
        %4605 = vmatpush1.bf16.xpose.msra.mxu0 0
        %4606 = vmatprep.subr.bf16.mxu0 0
        %4607 = vmatpush1.bf16.xpose.msra.mxu0 0
        %4608 = vmatprep.subr.bf16.mxu0 0
        %4609 = vmatpush1.bf16.xpose.msra.mxu0 0
        %4610 = vmatprep.subr.bf16.mxu0 0
        %4611 = vmatpush1.bf16.xpose.msra.mxu0 0
        %4612 = vmatprep.subr.bf16.mxu0 0
        %4613 = vmatpush1.bf16.xpose.msra.mxu0 0
        %4614 = vmatprep.subr.bf16.mxu0 0
        %4615 = vmatpush1.bf16.xpose.msra.mxu0 0
        %4616 = vmatprep.subr.bf16.mxu0 0
        %4617 = vmatpush1.bf16.xpose.msra.mxu0 0
        %4618 = vmatprep.subr.bf16.mxu0 0
        %4619 = vmatpush1.bf16.xpose.msra.mxu0 0
        %4620 = vmatprep.subr.bf16.mxu0 0
        %4621 = vmatpush1.bf16.xpose.msra.mxu0 0
        %4622 = vmatprep.subr.bf16.mxu0 0
        %4623 = vmatpush1.bf16.xpose.msra.mxu0 0
        %4624 = vmatprep.subr.bf16.mxu0 0
        %4625 = vmatpush1.bf16.xpose.msra.mxu0 0
        %4626 = vmatprep.subr.bf16.mxu0 0
        %4627 = vmatpush1.bf16.xpose.msra.mxu0 0
        %4628 = vmatprep.subr.bf16.mxu0 0
        %4629 = vmatpush1.bf16.xpose.msra.mxu0 0
        %4630 = vmatprep.subr.bf16.mxu0 0
        %4631 = vmatpush1.bf16.xpose.msra.mxu0 0
        %4632 = vmatprep.mubr.bf16.mxu0 0
        %4633 = vmatmul.mubr.bf16.gmra.mrb[0].mxu0 %v4595
        %v4634 = vpop.f32.mrb[0].mxu0
        %v4635 = vadd.f32 0.0, %v4634
        %v4636 = vpop.f32.mrb[0].mxu0
        %v4637 = vpop.f32.mrb[0].mxu0
        %v4638 = vadd.f32 0.0, %v4637
        %v4639 = vpop.f32.mrb[0].mxu0
        %4640 = vdwg.mxu0
        %4641 = vrot.lane.b32.xlu0 %v1729, 112
        %v4642 = vpop.permute.xlu0 %4641
        %4643 = vrot.lane.b32.xlu0 %v1729, 80
        %v4644 = vpop.permute.xlu0 %4643
        %v4646 = vsel %vm1734, %v4642, 0
        %v4649 = vsel %vm1734, %v4644, 0
        %4651 = vmatprep.subr.bf16.mxu0 0
        %4652 = vmatpush1.bf16.xpose.msra.mxu0 %v4649
        %4653 = vmatprep.subr.bf16.mxu0 0
        %4654 = vmatpush1.bf16.xpose.msra.mxu0 0
        %4655 = vmatprep.subr.bf16.mxu0 0
        %4656 = vmatpush1.bf16.xpose.msra.mxu0 0
        %4657 = vmatprep.subr.bf16.mxu0 0
        %4658 = vmatpush1.bf16.xpose.msra.mxu0 0
        %4659 = vmatprep.subr.bf16.mxu0 0
        %4660 = vmatpush1.bf16.xpose.msra.mxu0 0
        %4661 = vmatprep.subr.bf16.mxu0 0
        %4662 = vmatpush1.bf16.xpose.msra.mxu0 0
        %4663 = vmatprep.subr.bf16.mxu0 0
        %4664 = vmatpush1.bf16.xpose.msra.mxu0 0
        %4665 = vmatprep.subr.bf16.mxu0 0
        %4666 = vmatpush1.bf16.xpose.msra.mxu0 0
        %4667 = vmatprep.subr.bf16.mxu0 0
        %4668 = vmatpush1.bf16.xpose.msra.mxu0 0
        %4669 = vmatprep.subr.bf16.mxu0 0
        %4670 = vmatpush1.bf16.xpose.msra.mxu0 0
        %4671 = vmatprep.subr.bf16.mxu0 0
        %4672 = vmatpush1.bf16.xpose.msra.mxu0 0
        %4673 = vmatprep.subr.bf16.mxu0 0
        %4674 = vmatpush1.bf16.xpose.msra.mxu0 0
        %4675 = vmatprep.subr.bf16.mxu0 0
        %4676 = vmatpush1.bf16.xpose.msra.mxu0 0
        %4677 = vmatprep.subr.bf16.mxu0 0
        %4678 = vmatpush1.bf16.xpose.msra.mxu0 0
        %4679 = vmatprep.subr.bf16.mxu0 0
        %4680 = vmatpush1.bf16.xpose.msra.mxu0 0
        %4681 = vmatprep.subr.bf16.mxu0 0
        %4682 = vmatpush1.bf16.xpose.msra.mxu0 0
        %4683 = vmatprep.mubr.bf16.mxu0 0
        %4684 = vmatmul.mubr.bf16.gmra.mrb[0].mxu0 %v4646
        %v4685 = vpop.f32.mrb[0].mxu0
        %v4686 = vadd.f32 0.0, %v4685
        %v4687 = vpop.f32.mrb[0].mxu0
        %v4688 = vpop.f32.mrb[0].mxu0
        %v4689 = vadd.f32 0.0, %v4688
        %v4690 = vpop.f32.mrb[0].mxu0
        %4691 = vdwg.mxu0
        %4692 = vrot.lane.b32.xlu0 %v1730, 112
        %v4693 = vpop.permute.xlu0 %4692
        %4694 = vrot.lane.b32.xlu0 %v1730, 80
        %v4695 = vpop.permute.xlu0 %4694
        %v4697 = vsel %vm1734, %v4693, 0
        %v4700 = vsel %vm1734, %v4695, 0
        %4702 = vmatprep.subr.bf16.mxu0 0
        %4703 = vmatpush1.bf16.xpose.msra.mxu0 %v4700
        %4704 = vmatprep.subr.bf16.mxu0 0
        %4705 = vmatpush1.bf16.xpose.msra.mxu0 0
        %4706 = vmatprep.subr.bf16.mxu0 0
        %4707 = vmatpush1.bf16.xpose.msra.mxu0 0
        %4708 = vmatprep.subr.bf16.mxu0 0
        %4709 = vmatpush1.bf16.xpose.msra.mxu0 0
        %4710 = vmatprep.subr.bf16.mxu0 0
        %4711 = vmatpush1.bf16.xpose.msra.mxu0 0
        %4712 = vmatprep.subr.bf16.mxu0 0
        %4713 = vmatpush1.bf16.xpose.msra.mxu0 0
        %4714 = vmatprep.subr.bf16.mxu0 0
        %4715 = vmatpush1.bf16.xpose.msra.mxu0 0
        %4716 = vmatprep.subr.bf16.mxu0 0
        %4717 = vmatpush1.bf16.xpose.msra.mxu0 0
        %4718 = vmatprep.subr.bf16.mxu0 0
        %4719 = vmatpush1.bf16.xpose.msra.mxu0 0
        %4720 = vmatprep.subr.bf16.mxu0 0
        %4721 = vmatpush1.bf16.xpose.msra.mxu0 0
        %4722 = vmatprep.subr.bf16.mxu0 0
        %4723 = vmatpush1.bf16.xpose.msra.mxu0 0
        %4724 = vmatprep.subr.bf16.mxu0 0
        %4725 = vmatpush1.bf16.xpose.msra.mxu0 0
        %4726 = vmatprep.subr.bf16.mxu0 0
        %4727 = vmatpush1.bf16.xpose.msra.mxu0 0
        %4728 = vmatprep.subr.bf16.mxu0 0
        %4729 = vmatpush1.bf16.xpose.msra.mxu0 0
        %4730 = vmatprep.subr.bf16.mxu0 0
        %4731 = vmatpush1.bf16.xpose.msra.mxu0 0
        %4732 = vmatprep.subr.bf16.mxu0 0
        %4733 = vmatpush1.bf16.xpose.msra.mxu0 0
        %4734 = vmatprep.mubr.bf16.mxu0 0
        %4735 = vmatmul.mubr.bf16.gmra.mrb[0].mxu0 %v4697
        %v4736 = vpop.f32.mrb[0].mxu0
        %v4737 = vadd.f32 0.0, %v4736
        %v4738 = vpop.f32.mrb[0].mxu0
        %v4739 = vpop.f32.mrb[0].mxu0
        %v4740 = vadd.f32 0.0, %v4739
        %v4741 = vpop.f32.mrb[0].mxu0
        %4742 = vdwg.mxu0
        %v4743 = vmul.f32 %v4380, 0.35355338
        %v4744 = vmul.f32 %v4383, 0.35355338
        %v4745 = vmul.f32 %v4431, 0.35355338
        %v4746 = vmul.f32 %v4434, 0.35355338
        %v4747 = vmul.f32 %v4482, 0.35355338
        %v4748 = vmul.f32 %v4485, 0.35355338
        %v4749 = vmul.f32 %v4533, 0.35355338
        %v4750 = vmul.f32 %v4536, 0.35355338
        %v4751 = vmul.f32 %v4584, 0.35355338
        %v4752 = vmul.f32 %v4587, 0.35355338
        %v4753 = vmul.f32 %v4635, 0.35355338
        %v4754 = vmul.f32 %v4638, 0.35355338
        %v4755 = vmul.f32 %v4686, 0.35355338
        %v4756 = vmul.f32 %v4689, 0.35355338
        %v4757 = vmul.f32 %v4737, 0.35355338
        %v4758 = vmul.f32 %v4740, 0.35355338
        %v4759 = vadd.f32 %v4743, %v736
        %v4760 = vadd.f32 %v4744, %v737
        %v4761 = vadd.f32 %v4745, %v738
        %v4762 = vadd.f32 %v4746, %v739
        %v4763 = vadd.f32 %v4747, %v740
        %v4764 = vadd.f32 %v4748, %v741
        %v4765 = vadd.f32 %v4749, %v742
        %v4766 = vadd.f32 %v4750, %v743
        %v4767 = vadd.f32 %v4751, %v744
        %v4768 = vadd.f32 %v4752, %v745
        %v4769 = vadd.f32 %v4753, %v746
        %v4770 = vadd.f32 %v4754, %v747
        %v4771 = vadd.f32 %v4755, %v748
        %v4772 = vadd.f32 %v4756, %v749
        %v4773 = vadd.f32 %v4757, %v750
        %v4774 = vadd.f32 %v4758, %v751
        %v4775 = vsel %vm775, %v4759, -inf
        %4776 = vmax.xlane.f32.xlu0 %v4775
        %v4777 = vpop.xlane.xlu0 %4776
        %v4778 = vsel %vm775, %v4760, -inf
        %4779 = vmax.xlane.f32.xlu0 %v4778
        %v4780 = vpop.xlane.xlu0 %4779
        %v4781 = vsel %vm775, %v4761, -inf
        %4782 = vmax.xlane.f32.xlu0 %v4781
        %v4783 = vpop.xlane.xlu0 %4782
        %v4784 = vsel %vm775, %v4762, -inf
        %4785 = vmax.xlane.f32.xlu0 %v4784
        %v4786 = vpop.xlane.xlu0 %4785
        %v4787 = vsel %vm775, %v4763, -inf
        %4788 = vmax.xlane.f32.xlu0 %v4787
        %v4789 = vpop.xlane.xlu0 %4788
        %v4790 = vsel %vm775, %v4764, -inf
        %4791 = vmax.xlane.f32.xlu0 %v4790
        %v4792 = vpop.xlane.xlu0 %4791
        %v4793 = vsel %vm775, %v4765, -inf
        %4794 = vmax.xlane.f32.xlu0 %v4793
        %v4795 = vpop.xlane.xlu0 %4794
        %v4796 = vsel %vm775, %v4766, -inf
        %4797 = vmax.xlane.f32.xlu0 %v4796
        %v4798 = vpop.xlane.xlu0 %4797
        %v4799 = vsel %vm775, %v4767, -inf
        %4800 = vmax.xlane.f32.xlu0 %v4799
        %v4801 = vpop.xlane.xlu0 %4800
        %v4802 = vsel %vm775, %v4768, -inf
        %4803 = vmax.xlane.f32.xlu0 %v4802
        %v4804 = vpop.xlane.xlu0 %4803
        %v4805 = vsel %vm775, %v4769, -inf
        %4806 = vmax.xlane.f32.xlu0 %v4805
        %v4807 = vpop.xlane.xlu0 %4806
        %v4808 = vsel %vm775, %v4770, -inf
        %4809 = vmax.xlane.f32.xlu0 %v4808
        %v4810 = vpop.xlane.xlu0 %4809
        %v4811 = vsel %vm775, %v4771, -inf
        %4812 = vmax.xlane.f32.xlu0 %v4811
        %v4813 = vpop.xlane.xlu0 %4812
        %v4814 = vsel %vm775, %v4772, -inf
        %4815 = vmax.xlane.f32.xlu0 %v4814
        %v4816 = vpop.xlane.xlu0 %4815
        %v4817 = vsel %vm775, %v4773, -inf
        %4818 = vmax.xlane.f32.xlu0 %v4817
        %v4819 = vpop.xlane.xlu0 %4818
        %v4820 = vsel %vm775, %v4774, -inf
        %4821 = vmax.xlane.f32.xlu0 %v4820
        %v4822 = vpop.xlane.xlu0 %4821
        %v4823 = vsub.f32 %v4759, %v4777
        %v4824 = vsub.f32 %v4760, %v4780
        %v4825 = vsub.f32 %v4761, %v4783
        %v4826 = vsub.f32 %v4762, %v4786
        %v4827 = vsub.f32 %v4763, %v4789
        %v4828 = vsub.f32 %v4764, %v4792
        %v4829 = vsub.f32 %v4765, %v4795
        %v4830 = vsub.f32 %v4766, %v4798
        %v4831 = vsub.f32 %v4767, %v4801
        %v4832 = vsub.f32 %v4768, %v4804
        %v4833 = vsub.f32 %v4769, %v4807
        %v4834 = vsub.f32 %v4770, %v4810
        %v4835 = vsub.f32 %v4771, %v4813
        %v4836 = vsub.f32 %v4772, %v4816
        %v4837 = vsub.f32 %v4773, %v4819
        %v4838 = vsub.f32 %v4774, %v4822
        %v4839 = vmul.f32 %v4823, 1.442695
        %v4840 = vpow.pop %v4839
        %v4841 = vmul.f32 %v4824, 1.442695
        %v4842 = vpow.pop %v4841
        %v4843 = vmul.f32 %v4825, 1.442695
        %v4844 = vpow.pop %v4843
        %v4845 = vmul.f32 %v4826, 1.442695
        %v4846 = vpow.pop %v4845
        %v4847 = vmul.f32 %v4827, 1.442695
        %v4848 = vpow.pop %v4847
        %v4849 = vmul.f32 %v4828, 1.442695
        %v4850 = vpow.pop %v4849
        %v4851 = vmul.f32 %v4829, 1.442695
        %v4852 = vpow.pop %v4851
        %v4853 = vmul.f32 %v4830, 1.442695
        %v4854 = vpow.pop %v4853
        %v4855 = vmul.f32 %v4831, 1.442695
        %v4856 = vpow.pop %v4855
        %v4857 = vmul.f32 %v4832, 1.442695
        %v4858 = vpow.pop %v4857
        %v4859 = vmul.f32 %v4833, 1.442695
        %v4860 = vpow.pop %v4859
        %v4861 = vmul.f32 %v4834, 1.442695
        %v4862 = vpow.pop %v4861
        %v4863 = vmul.f32 %v4835, 1.442695
        %v4864 = vpow.pop %v4863
        %v4865 = vmul.f32 %v4836, 1.442695
        %v4866 = vpow.pop %v4865
        %v4867 = vmul.f32 %v4837, 1.442695
        %v4868 = vpow.pop %v4867
        %v4869 = vmul.f32 %v4838, 1.442695
        %v4870 = vpow.pop %v4869
        %v4871 = vsel %vm775, %v4840, 0.0
        %4872 = vadd.xlane.f32.xlu0 %v4871
        %v4873 = vpop.xlane.xlu0 %4872
        %v4874 = vsel %vm775, %v4842, 0.0
        %4875 = vadd.xlane.f32.xlu0 %v4874
        %v4876 = vpop.xlane.xlu0 %4875
        %v4877 = vsel %vm775, %v4844, 0.0
        %4878 = vadd.xlane.f32.xlu0 %v4877
        %v4879 = vpop.xlane.xlu0 %4878
        %v4880 = vsel %vm775, %v4846, 0.0
        %4881 = vadd.xlane.f32.xlu0 %v4880
        %v4882 = vpop.xlane.xlu0 %4881
        %v4883 = vsel %vm775, %v4848, 0.0
        %4884 = vadd.xlane.f32.xlu0 %v4883
        %v4885 = vpop.xlane.xlu0 %4884
        %v4886 = vsel %vm775, %v4850, 0.0
        %4887 = vadd.xlane.f32.xlu0 %v4886
        %v4888 = vpop.xlane.xlu0 %4887
        %v4889 = vsel %vm775, %v4852, 0.0
        %4890 = vadd.xlane.f32.xlu0 %v4889
        %v4891 = vpop.xlane.xlu0 %4890
        %v4892 = vsel %vm775, %v4854, 0.0
        %4893 = vadd.xlane.f32.xlu0 %v4892
        %v4894 = vpop.xlane.xlu0 %4893
        %v4895 = vsel %vm775, %v4856, 0.0
        %4896 = vadd.xlane.f32.xlu0 %v4895
        %v4897 = vpop.xlane.xlu0 %4896
        %v4898 = vsel %vm775, %v4858, 0.0
        %4899 = vadd.xlane.f32.xlu0 %v4898
        %v4900 = vpop.xlane.xlu0 %4899
        %v4901 = vsel %vm775, %v4860, 0.0
        %4902 = vadd.xlane.f32.xlu0 %v4901
        %v4903 = vpop.xlane.xlu0 %4902
        %v4904 = vsel %vm775, %v4862, 0.0
        %4905 = vadd.xlane.f32.xlu0 %v4904
        %v4906 = vpop.xlane.xlu0 %4905
        %v4907 = vsel %vm775, %v4864, 0.0
        %4908 = vadd.xlane.f32.xlu0 %v4907
        %v4909 = vpop.xlane.xlu0 %4908
        %v4910 = vsel %vm775, %v4866, 0.0
        %4911 = vadd.xlane.f32.xlu0 %v4910
        %v4912 = vpop.xlane.xlu0 %4911
        %v4913 = vsel %vm775, %v4868, 0.0
        %4914 = vadd.xlane.f32.xlu0 %v4913
        %v4915 = vpop.xlane.xlu0 %4914
        %v4916 = vsel %vm775, %v4870, 0.0
        %4917 = vadd.xlane.f32.xlu0 %v4916
        %v4918 = vpop.xlane.xlu0 %4917
        %v4919 = vrcp.pop %v4873
        %v4920 = vrcp.pop %v4876
        %v4921 = vrcp.pop %v4879
        %v4922 = vrcp.pop %v4882
        %v4923 = vrcp.pop %v4885
        %v4924 = vrcp.pop %v4888
        %v4925 = vrcp.pop %v4891
        %v4926 = vrcp.pop %v4894
        %v4927 = vrcp.pop %v4897
        %v4928 = vrcp.pop %v4900
        %v4929 = vrcp.pop %v4903
        %v4930 = vrcp.pop %v4906
        %v4931 = vrcp.pop %v4909
        %v4932 = vrcp.pop %v4912
        %v4933 = vrcp.pop %v4915
        %v4934 = vrcp.pop %v4918
        %v4935 = vmul.f32 %v4840, %v4919
        %v4936 = vmul.f32 %v4842, %v4920
        %v4937 = vmul.f32 %v4844, %v4921
        %v4938 = vmul.f32 %v4846, %v4922
        %v4939 = vmul.f32 %v4848, %v4923
        %v4940 = vmul.f32 %v4850, %v4924
        %v4941 = vmul.f32 %v4852, %v4925
        %v4942 = vmul.f32 %v4854, %v4926
        %v4943 = vmul.f32 %v4856, %v4927
        %v4944 = vmul.f32 %v4858, %v4928
        %v4945 = vmul.f32 %v4860, %v4929
        %v4946 = vmul.f32 %v4862, %v4930
        %v4947 = vmul.f32 %v4864, %v4931
        %v4948 = vmul.f32 %v4866, %v4932
        %v4949 = vmul.f32 %v4868, %v4933
        %v4950 = vmul.f32 %v4870, %v4934
        %v4951 = vmul.f32 %v2340, %v4935
        %v4952 = vmul.f32 %v2340, %v4936
        %v4953 = vmul.f32 %v2340, %v4937
        %v4954 = vmul.f32 %v2340, %v4938
        %v4955 = vmul.f32 %v2340, %v4939
        %v4956 = vmul.f32 %v2340, %v4940
        %v4957 = vmul.f32 %v2340, %v4941
        %v4958 = vmul.f32 %v2340, %v4942
        %v4959 = vmul.f32 %v2340, %v4943
        %v4960 = vmul.f32 %v2340, %v4944
        %v4961 = vmul.f32 %v2340, %v4945
        %v4962 = vmul.f32 %v2340, %v4946
        %v4963 = vmul.f32 %v2340, %v4947
        %v4964 = vmul.f32 %v2340, %v4948
        %v4965 = vmul.f32 %v2340, %v4949
        %v4966 = vmul.f32 %v2340, %v4950
        %v4967 = vadd.f32 %v4951, %v1562
        %v4968 = vadd.f32 %v4952, %v1563
        %v4969 = vadd.f32 %v4953, %v1564
        %v4970 = vadd.f32 %v4954, %v1565
        %v4971 = vadd.f32 %v4955, %v1566
        %v4972 = vadd.f32 %v4956, %v1567
        %v4973 = vadd.f32 %v4957, %v1568
        %v4974 = vadd.f32 %v4958, %v1569
        %v4975 = vadd.f32 %v4959, %v1570
        %v4976 = vadd.f32 %v4960, %v1571
        %v4977 = vadd.f32 %v4961, %v1572
        %v4978 = vadd.f32 %v4962, %v1573
        %v4979 = vadd.f32 %v4963, %v1574
        %v4980 = vadd.f32 %v4964, %v1575
        %v4981 = vadd.f32 %v4965, %v1576
        %v4982 = vadd.f32 %v4966, %v1577
        %v4983 = vsel %vm775, %v4967, -inf
        %4984 = vmax.xlane.f32.xlu0 %v4983
        %v4985 = vpop.xlane.xlu0 %4984
        %v4986 = vsel %vm775, %v4968, -inf
        %4987 = vmax.xlane.f32.xlu0 %v4986
        %v4988 = vpop.xlane.xlu0 %4987
        %v4989 = vsel %vm775, %v4969, -inf
        %4990 = vmax.xlane.f32.xlu0 %v4989
        %v4991 = vpop.xlane.xlu0 %4990
        %v4992 = vsel %vm775, %v4970, -inf
        %4993 = vmax.xlane.f32.xlu0 %v4992
        %v4994 = vpop.xlane.xlu0 %4993
        %v4995 = vsel %vm775, %v4971, -inf
        %4996 = vmax.xlane.f32.xlu0 %v4995
        %v4997 = vpop.xlane.xlu0 %4996
        %v4998 = vsel %vm775, %v4972, -inf
        %4999 = vmax.xlane.f32.xlu0 %v4998
        %v5000 = vpop.xlane.xlu0 %4999
        %v5001 = vsel %vm775, %v4973, -inf
        %5002 = vmax.xlane.f32.xlu0 %v5001
        %v5003 = vpop.xlane.xlu0 %5002
        %v5004 = vsel %vm775, %v4974, -inf
        %5005 = vmax.xlane.f32.xlu0 %v5004
        %v5006 = vpop.xlane.xlu0 %5005
        %v5007 = vsel %vm775, %v4975, -inf
        %5008 = vmax.xlane.f32.xlu0 %v5007
        %v5009 = vpop.xlane.xlu0 %5008
        %v5010 = vsel %vm775, %v4976, -inf
        %5011 = vmax.xlane.f32.xlu0 %v5010
        %v5012 = vpop.xlane.xlu0 %5011
        %v5013 = vsel %vm775, %v4977, -inf
        %5014 = vmax.xlane.f32.xlu0 %v5013
        %v5015 = vpop.xlane.xlu0 %5014
        %v5016 = vsel %vm775, %v4978, -inf
        %5017 = vmax.xlane.f32.xlu0 %v5016
        %v5018 = vpop.xlane.xlu0 %5017
        %v5019 = vsel %vm775, %v4979, -inf
        %5020 = vmax.xlane.f32.xlu0 %v5019
        %v5021 = vpop.xlane.xlu0 %5020
        %v5022 = vsel %vm775, %v4980, -inf
        %5023 = vmax.xlane.f32.xlu0 %v5022
        %v5024 = vpop.xlane.xlu0 %5023
        %v5025 = vsel %vm775, %v4981, -inf
        %5026 = vmax.xlane.f32.xlu0 %v5025
        %v5027 = vpop.xlane.xlu0 %5026
        %v5028 = vsel %vm775, %v4982, -inf
        %5029 = vmax.xlane.f32.xlu0 %v5028
        %v5030 = vpop.xlane.xlu0 %5029
        %v5031 = vsub.f32 %v4967, %v4985
        %v5032 = vsub.f32 %v4968, %v4988
        %v5033 = vsub.f32 %v4969, %v4991
        %v5034 = vsub.f32 %v4970, %v4994
        %v5035 = vsub.f32 %v4971, %v4997
        %v5036 = vsub.f32 %v4972, %v5000
        %v5037 = vsub.f32 %v4973, %v5003
        %v5038 = vsub.f32 %v4974, %v5006
        %v5039 = vsub.f32 %v4975, %v5009
        %v5040 = vsub.f32 %v4976, %v5012
        %v5041 = vsub.f32 %v4977, %v5015
        %v5042 = vsub.f32 %v4978, %v5018
        %v5043 = vsub.f32 %v4979, %v5021
        %v5044 = vsub.f32 %v4980, %v5024
        %v5045 = vsub.f32 %v4981, %v5027
        %v5046 = vsub.f32 %v4982, %v5030
        %v5047 = vmul.f32 %v5031, 1.442695
        %v5048 = vpow.pop %v5047
        %v5049 = vmul.f32 %v5032, 1.442695
        %v5050 = vpow.pop %v5049
        %v5051 = vmul.f32 %v5033, 1.442695
        %v5052 = vpow.pop %v5051
        %v5053 = vmul.f32 %v5034, 1.442695
        %v5054 = vpow.pop %v5053
        %v5055 = vmul.f32 %v5035, 1.442695
        %v5056 = vpow.pop %v5055
        %v5057 = vmul.f32 %v5036, 1.442695
        %v5058 = vpow.pop %v5057
        %v5059 = vmul.f32 %v5037, 1.442695
        %v5060 = vpow.pop %v5059
        %v5061 = vmul.f32 %v5038, 1.442695
        %v5062 = vpow.pop %v5061
        %v5063 = vmul.f32 %v5039, 1.442695
        %v5064 = vpow.pop %v5063
        %v5065 = vmul.f32 %v5040, 1.442695
        %v5066 = vpow.pop %v5065
        %v5067 = vmul.f32 %v5041, 1.442695
        %v5068 = vpow.pop %v5067
        %v5069 = vmul.f32 %v5042, 1.442695
        %v5070 = vpow.pop %v5069
        %v5071 = vmul.f32 %v5043, 1.442695
        %v5072 = vpow.pop %v5071
        %v5073 = vmul.f32 %v5044, 1.442695
        %v5074 = vpow.pop %v5073
        %v5075 = vmul.f32 %v5045, 1.442695
        %v5076 = vpow.pop %v5075
        %v5077 = vmul.f32 %v5046, 1.442695
        %v5078 = vpow.pop %v5077
        %v5079 = vsel %vm775, %v5048, 0.0
        %5080 = vadd.xlane.f32.xlu0 %v5079
        %v5081 = vpop.xlane.xlu0 %5080
        %v5082 = vsel %vm775, %v5050, 0.0
        %5083 = vadd.xlane.f32.xlu0 %v5082
        %v5084 = vpop.xlane.xlu0 %5083
        %v5085 = vsel %vm775, %v5052, 0.0
        %5086 = vadd.xlane.f32.xlu0 %v5085
        %v5087 = vpop.xlane.xlu0 %5086
        %v5088 = vsel %vm775, %v5054, 0.0
        %5089 = vadd.xlane.f32.xlu0 %v5088
        %v5090 = vpop.xlane.xlu0 %5089
        %v5091 = vsel %vm775, %v5056, 0.0
        %5092 = vadd.xlane.f32.xlu0 %v5091
        %v5093 = vpop.xlane.xlu0 %5092
        %v5094 = vsel %vm775, %v5058, 0.0
        %5095 = vadd.xlane.f32.xlu0 %v5094
        %v5096 = vpop.xlane.xlu0 %5095
        %v5097 = vsel %vm775, %v5060, 0.0
        %5098 = vadd.xlane.f32.xlu0 %v5097
        %v5099 = vpop.xlane.xlu0 %5098
        %v5100 = vsel %vm775, %v5062, 0.0
        %5101 = vadd.xlane.f32.xlu0 %v5100
        %v5102 = vpop.xlane.xlu0 %5101
        %v5103 = vsel %vm775, %v5064, 0.0
        %5104 = vadd.xlane.f32.xlu0 %v5103
        %v5105 = vpop.xlane.xlu0 %5104
        %v5106 = vsel %vm775, %v5066, 0.0
        %5107 = vadd.xlane.f32.xlu0 %v5106
        %v5108 = vpop.xlane.xlu0 %5107
        %v5109 = vsel %vm775, %v5068, 0.0
        %5110 = vadd.xlane.f32.xlu0 %v5109
        %v5111 = vpop.xlane.xlu0 %5110
        %v5112 = vsel %vm775, %v5070, 0.0
        %5113 = vadd.xlane.f32.xlu0 %v5112
        %v5114 = vpop.xlane.xlu0 %5113
        %v5115 = vsel %vm775, %v5072, 0.0
        %5116 = vadd.xlane.f32.xlu0 %v5115
        %v5117 = vpop.xlane.xlu0 %5116
        %v5118 = vsel %vm775, %v5074, 0.0
        %5119 = vadd.xlane.f32.xlu0 %v5118
        %v5120 = vpop.xlane.xlu0 %5119
        %v5121 = vsel %vm775, %v5076, 0.0
        %5122 = vadd.xlane.f32.xlu0 %v5121
        %v5123 = vpop.xlane.xlu0 %5122
        %v5124 = vsel %vm775, %v5078, 0.0
        %5125 = vadd.xlane.f32.xlu0 %v5124
        %v5126 = vpop.xlane.xlu0 %5125
        %v5127 = vrcp.pop %v5081
        %v5128 = vrcp.pop %v5084
        %v5129 = vrcp.pop %v5087
        %v5130 = vrcp.pop %v5090
        %v5131 = vrcp.pop %v5093
        %v5132 = vrcp.pop %v5096
        %v5133 = vrcp.pop %v5099
        %v5134 = vrcp.pop %v5102
        %v5135 = vrcp.pop %v5105
        %v5136 = vrcp.pop %v5108
        %v5137 = vrcp.pop %v5111
        %v5138 = vrcp.pop %v5114
        %v5139 = vrcp.pop %v5117
        %v5140 = vrcp.pop %v5120
        %v5141 = vrcp.pop %v5123
        %v5142 = vrcp.pop %v5126
        %v5143 = vmul.f32 %v5048, %v5127
        %v5144 = vmul.f32 %v5050, %v5128
        %v5145 = vmul.f32 %v5052, %v5129
        %v5146 = vmul.f32 %v5054, %v5130
        %v5147 = vmul.f32 %v5056, %v5131
        %v5148 = vmul.f32 %v5058, %v5132
        %v5149 = vmul.f32 %v5060, %v5133
        %v5150 = vmul.f32 %v5062, %v5134
        %v5151 = vmul.f32 %v5064, %v5135
        %v5152 = vmul.f32 %v5066, %v5136
        %v5153 = vmul.f32 %v5068, %v5137
        %v5154 = vmul.f32 %v5070, %v5138
        %v5155 = vmul.f32 %v5072, %v5139
        %v5156 = vmul.f32 %v5074, %v5140
        %v5157 = vmul.f32 %v5076, %v5141
        %v5158 = vmul.f32 %v5078, %v5142
        %5175 = vrot.lane.b32.xlu0 %v5143, 32
        %v5176 = vpop.permute.xlu0 %5175
        %5177 = vrot.lane.b32.xlu0 %v5144, 32
        %v5178 = vpop.permute.xlu0 %5177
        %5179 = vrot.lane.b32.xlu0 %v5145, 32
        %v5180 = vpop.permute.xlu0 %5179
        %5181 = vrot.lane.b32.xlu0 %v5146, 32
        %v5182 = vpop.permute.xlu0 %5181
        %5183 = vrot.lane.b32.xlu0 %v5147, 32
        %v5184 = vpop.permute.xlu0 %5183
        %5185 = vrot.lane.b32.xlu0 %v5148, 32
        %v5186 = vpop.permute.xlu0 %5185
        %5187 = vrot.lane.b32.xlu0 %v5149, 32
        %v5188 = vpop.permute.xlu0 %5187
        %5189 = vrot.lane.b32.xlu0 %v5150, 32
        %v5190 = vpop.permute.xlu0 %5189
        %5191 = vrot.lane.b32.xlu0 %v5151, 32
        %v5192 = vpop.permute.xlu0 %5191
        %5193 = vrot.lane.b32.xlu0 %v5152, 32
        %v5194 = vpop.permute.xlu0 %5193
        %5195 = vrot.lane.b32.xlu0 %v5153, 32
        %v5196 = vpop.permute.xlu0 %5195
        %5197 = vrot.lane.b32.xlu0 %v5154, 32
        %v5198 = vpop.permute.xlu0 %5197
        %5199 = vrot.lane.b32.xlu0 %v5155, 32
        %v5200 = vpop.permute.xlu0 %5199
        %5201 = vrot.lane.b32.xlu0 %v5156, 32
        %v5202 = vpop.permute.xlu0 %5201
        %5203 = vrot.lane.b32.xlu0 %v5157, 32
        %v5204 = vpop.permute.xlu0 %5203
        %5205 = vrot.lane.b32.xlu0 %v5158, 32
        %v5206 = vpop.permute.xlu0 %5205
        %vm5223 = vcmask 392448
        %5224 = vst.msk [vmem:[%s664] sm:$0xff] %vm5223, %v5176
        %5225 = vst.msk [vmem:[%s664 + $0x8] sm:$0xff] %vm5223, %v5178
        %5226 = vst.msk [vmem:[%s664 + $0x10] sm:$0xff] %vm5223, %v5180
        %5227 = vst.msk [vmem:[%s664 + $0x18] sm:$0xff] %vm5223, %v5182
        %5228 = vst.msk [vmem:[%s664 + $0x20] sm:$0xff] %vm5223, %v5184
        %5229 = vst.msk [vmem:[%s664 + $0x28] sm:$0xff] %vm5223, %v5186
        %5230 = vst.msk [vmem:[%s664 + $0x30] sm:$0xff] %vm5223, %v5188
        %5231 = vst.msk [vmem:[%s664 + $0x38] sm:$0xff] %vm5223, %v5190
        %5232 = vst.msk [vmem:[%s664 + $0x40] sm:$0xff] %vm5223, %v5192
        %5233 = vst.msk [vmem:[%s664 + $0x48] sm:$0xff] %vm5223, %v5194
        %5234 = vst.msk [vmem:[%s664 + $0x50] sm:$0xff] %vm5223, %v5196
        %5235 = vst.msk [vmem:[%s664 + $0x58] sm:$0xff] %vm5223, %v5198
        %5236 = vst.msk [vmem:[%s664 + $0x60] sm:$0xff] %vm5223, %v5200
        %5237 = vst.msk [vmem:[%s664 + $0x68] sm:$0xff] %vm5223, %v5202
        %5238 = vst.msk [vmem:[%s664 + $0x70] sm:$0xff] %vm5223, %v5204
        %5239 = vst.msk [vmem:[%s664 + $0x78] sm:$0xff] %vm5223, %v5206
        %v5240 = vpack.c.bf16 %v5144, %v5143
        %v5241 = vpack.c.bf16 %v5146, %v5145
        %v5242 = vpack.c.bf16 %v5148, %v5147
        %v5243 = vpack.c.bf16 %v5150, %v5149
        %v5244 = vpack.c.bf16 %v5152, %v5151
        %v5245 = vpack.c.bf16 %v5154, %v5153
        %v5246 = vpack.c.bf16 %v5156, %v5155
        %v5247 = vpack.c.bf16 %v5158, %v5157
        %5248 = vrot.lane.b32.xlu0 %v1723, 48
        %v5249 = vpop.permute.xlu0 %5248
        %v5252 = vsel %vm775, %v5240, 0
        %5254 = vmatprep.subr.bf16.mxu0 0
        %5255 = vmatpush1.bf16.msra.mxu0 %v5249
        %5256 = vmatprep.subr.bf16.mxu0 0
        %5257 = vmatpush1.bf16.msra.mxu0 0
        %5258 = vmatprep.subr.bf16.mxu0 0
        %5259 = vmatpush1.bf16.msra.mxu0 0
        %5260 = vmatprep.subr.bf16.mxu0 0
        %5261 = vmatpush1.bf16.msra.mxu0 0
        %5262 = vmatprep.subr.bf16.mxu0 0
        %5263 = vmatpush1.bf16.msra.mxu0 0
        %5264 = vmatprep.subr.bf16.mxu0 0
        %5265 = vmatpush1.bf16.msra.mxu0 0
        %5266 = vmatprep.subr.bf16.mxu0 0
        %5267 = vmatpush1.bf16.msra.mxu0 0
        %5268 = vmatprep.subr.bf16.mxu0 0
        %5269 = vmatpush1.bf16.msra.mxu0 0
        %5270 = vmatprep.subr.bf16.mxu0 0
        %5271 = vmatpush1.bf16.msra.mxu0 0
        %5272 = vmatprep.subr.bf16.mxu0 0
        %5273 = vmatpush1.bf16.msra.mxu0 0
        %5274 = vmatprep.subr.bf16.mxu0 0
        %5275 = vmatpush1.bf16.msra.mxu0 0
        %5276 = vmatprep.subr.bf16.mxu0 0
        %5277 = vmatpush1.bf16.msra.mxu0 0
        %5278 = vmatprep.subr.bf16.mxu0 0
        %5279 = vmatpush1.bf16.msra.mxu0 0
        %5280 = vmatprep.subr.bf16.mxu0 0
        %5281 = vmatpush1.bf16.msra.mxu0 0
        %5282 = vmatprep.subr.bf16.mxu0 0
        %5283 = vmatpush1.bf16.msra.mxu0 0
        %5284 = vmatprep.subr.bf16.mxu0 0
        %5285 = vmatpush1.bf16.msra.mxu0 0
        %5286 = vmatprep.mubr.bf16.mxu0 0
        %5287 = vmatmul.mubr.bf16.gmra.mrb[0].mxu0 %v5252
        %v5288 = vpop.f32.mrb[0].mxu0
        %v5289 = vadd.f32 0.0, %v5288
        %v5290 = vpop.f32.mrb[0].mxu0
        %v5291 = vpop.f32.mrb[0].mxu0
        %v5292 = vadd.f32 0.0, %v5291
        %v5293 = vpop.f32.mrb[0].mxu0
        %5294 = vdwg.mxu0
        %5295 = vrot.lane.b32.xlu0 %v1724, 48
        %v5296 = vpop.permute.xlu0 %5295
        %v5299 = vsel %vm775, %v5241, 0
        %5301 = vmatprep.subr.bf16.mxu0 0
        %5302 = vmatpush1.bf16.msra.mxu0 %v5296
        %5303 = vmatprep.subr.bf16.mxu0 0
        %5304 = vmatpush1.bf16.msra.mxu0 0
        %5305 = vmatprep.subr.bf16.mxu0 0
        %5306 = vmatpush1.bf16.msra.mxu0 0
        %5307 = vmatprep.subr.bf16.mxu0 0
        %5308 = vmatpush1.bf16.msra.mxu0 0
        %5309 = vmatprep.subr.bf16.mxu0 0
        %5310 = vmatpush1.bf16.msra.mxu0 0
        %5311 = vmatprep.subr.bf16.mxu0 0
        %5312 = vmatpush1.bf16.msra.mxu0 0
        %5313 = vmatprep.subr.bf16.mxu0 0
        %5314 = vmatpush1.bf16.msra.mxu0 0
        %5315 = vmatprep.subr.bf16.mxu0 0
        %5316 = vmatpush1.bf16.msra.mxu0 0
        %5317 = vmatprep.subr.bf16.mxu0 0
        %5318 = vmatpush1.bf16.msra.mxu0 0
        %5319 = vmatprep.subr.bf16.mxu0 0
        %5320 = vmatpush1.bf16.msra.mxu0 0
        %5321 = vmatprep.subr.bf16.mxu0 0
        %5322 = vmatpush1.bf16.msra.mxu0 0
        %5323 = vmatprep.subr.bf16.mxu0 0
        %5324 = vmatpush1.bf16.msra.mxu0 0
        %5325 = vmatprep.subr.bf16.mxu0 0
        %5326 = vmatpush1.bf16.msra.mxu0 0
        %5327 = vmatprep.subr.bf16.mxu0 0
        %5328 = vmatpush1.bf16.msra.mxu0 0
        %5329 = vmatprep.subr.bf16.mxu0 0
        %5330 = vmatpush1.bf16.msra.mxu0 0
        %5331 = vmatprep.subr.bf16.mxu0 0
        %5332 = vmatpush1.bf16.msra.mxu0 0
        %5333 = vmatprep.mubr.bf16.mxu0 0
        %5334 = vmatmul.mubr.bf16.gmra.mrb[0].mxu0 %v5299
        %v5335 = vpop.f32.mrb[0].mxu0
        %v5336 = vadd.f32 0.0, %v5335
        %v5337 = vpop.f32.mrb[0].mxu0
        %v5338 = vpop.f32.mrb[0].mxu0
        %v5339 = vadd.f32 0.0, %v5338
        %v5340 = vpop.f32.mrb[0].mxu0
        %5341 = vdwg.mxu0
        %5342 = vrot.lane.b32.xlu0 %v1725, 48
        %v5343 = vpop.permute.xlu0 %5342
        %v5346 = vsel %vm775, %v5242, 0
        %5348 = vmatprep.subr.bf16.mxu0 0
        %5349 = vmatpush1.bf16.msra.mxu0 %v5343
        %5350 = vmatprep.subr.bf16.mxu0 0
        %5351 = vmatpush1.bf16.msra.mxu0 0
        %5352 = vmatprep.subr.bf16.mxu0 0
        %5353 = vmatpush1.bf16.msra.mxu0 0
        %5354 = vmatprep.subr.bf16.mxu0 0
        %5355 = vmatpush1.bf16.msra.mxu0 0
        %5356 = vmatprep.subr.bf16.mxu0 0
        %5357 = vmatpush1.bf16.msra.mxu0 0
        %5358 = vmatprep.subr.bf16.mxu0 0
        %5359 = vmatpush1.bf16.msra.mxu0 0
        %5360 = vmatprep.subr.bf16.mxu0 0
        %5361 = vmatpush1.bf16.msra.mxu0 0
        %5362 = vmatprep.subr.bf16.mxu0 0
        %5363 = vmatpush1.bf16.msra.mxu0 0
        %5364 = vmatprep.subr.bf16.mxu0 0
        %5365 = vmatpush1.bf16.msra.mxu0 0
        %5366 = vmatprep.subr.bf16.mxu0 0
        %5367 = vmatpush1.bf16.msra.mxu0 0
        %5368 = vmatprep.subr.bf16.mxu0 0
        %5369 = vmatpush1.bf16.msra.mxu0 0
        %5370 = vmatprep.subr.bf16.mxu0 0
        %5371 = vmatpush1.bf16.msra.mxu0 0
        %5372 = vmatprep.subr.bf16.mxu0 0
        %5373 = vmatpush1.bf16.msra.mxu0 0
        %5374 = vmatprep.subr.bf16.mxu0 0
        %5375 = vmatpush1.bf16.msra.mxu0 0
        %5376 = vmatprep.subr.bf16.mxu0 0
        %5377 = vmatpush1.bf16.msra.mxu0 0
        %5378 = vmatprep.subr.bf16.mxu0 0
        %5379 = vmatpush1.bf16.msra.mxu0 0
        %5380 = vmatprep.mubr.bf16.mxu0 0
        %5381 = vmatmul.mubr.bf16.gmra.mrb[0].mxu0 %v5346
        %v5382 = vpop.f32.mrb[0].mxu0
        %v5383 = vadd.f32 0.0, %v5382
        %v5384 = vpop.f32.mrb[0].mxu0
        %v5385 = vpop.f32.mrb[0].mxu0
        %v5386 = vadd.f32 0.0, %v5385
        %v5387 = vpop.f32.mrb[0].mxu0
        %5388 = vdwg.mxu0
        %5389 = vrot.lane.b32.xlu0 %v1726, 48
        %v5390 = vpop.permute.xlu0 %5389
        %v5393 = vsel %vm775, %v5243, 0
        %5395 = vmatprep.subr.bf16.mxu0 0
        %5396 = vmatpush1.bf16.msra.mxu0 %v5390
        %5397 = vmatprep.subr.bf16.mxu0 0
        %5398 = vmatpush1.bf16.msra.mxu0 0
        %5399 = vmatprep.subr.bf16.mxu0 0
        %5400 = vmatpush1.bf16.msra.mxu0 0
        %5401 = vmatprep.subr.bf16.mxu0 0
        %5402 = vmatpush1.bf16.msra.mxu0 0
        %5403 = vmatprep.subr.bf16.mxu0 0
        %5404 = vmatpush1.bf16.msra.mxu0 0
        %5405 = vmatprep.subr.bf16.mxu0 0
        %5406 = vmatpush1.bf16.msra.mxu0 0
        %5407 = vmatprep.subr.bf16.mxu0 0
        %5408 = vmatpush1.bf16.msra.mxu0 0
        %5409 = vmatprep.subr.bf16.mxu0 0
        %5410 = vmatpush1.bf16.msra.mxu0 0
        %5411 = vmatprep.subr.bf16.mxu0 0
        %5412 = vmatpush1.bf16.msra.mxu0 0
        %5413 = vmatprep.subr.bf16.mxu0 0
        %5414 = vmatpush1.bf16.msra.mxu0 0
        %5415 = vmatprep.subr.bf16.mxu0 0
        %5416 = vmatpush1.bf16.msra.mxu0 0
        %5417 = vmatprep.subr.bf16.mxu0 0
        %5418 = vmatpush1.bf16.msra.mxu0 0
        %5419 = vmatprep.subr.bf16.mxu0 0
        %5420 = vmatpush1.bf16.msra.mxu0 0
        %5421 = vmatprep.subr.bf16.mxu0 0
        %5422 = vmatpush1.bf16.msra.mxu0 0
        %5423 = vmatprep.subr.bf16.mxu0 0
        %5424 = vmatpush1.bf16.msra.mxu0 0
        %5425 = vmatprep.subr.bf16.mxu0 0
        %5426 = vmatpush1.bf16.msra.mxu0 0
        %5427 = vmatprep.mubr.bf16.mxu0 0
        %5428 = vmatmul.mubr.bf16.gmra.mrb[0].mxu0 %v5393
        %v5429 = vpop.f32.mrb[0].mxu0
        %v5430 = vadd.f32 0.0, %v5429
        %v5431 = vpop.f32.mrb[0].mxu0
        %v5432 = vpop.f32.mrb[0].mxu0
        %v5433 = vadd.f32 0.0, %v5432
        %v5434 = vpop.f32.mrb[0].mxu0
        %5435 = vdwg.mxu0
        %5436 = vrot.lane.b32.xlu0 %v1727, 48
        %v5437 = vpop.permute.xlu0 %5436
        %v5440 = vsel %vm775, %v5244, 0
        %5442 = vmatprep.subr.bf16.mxu0 0
        %5443 = vmatpush1.bf16.msra.mxu0 %v5437
        %5444 = vmatprep.subr.bf16.mxu0 0
        %5445 = vmatpush1.bf16.msra.mxu0 0
        %5446 = vmatprep.subr.bf16.mxu0 0
        %5447 = vmatpush1.bf16.msra.mxu0 0
        %5448 = vmatprep.subr.bf16.mxu0 0
        %5449 = vmatpush1.bf16.msra.mxu0 0
        %5450 = vmatprep.subr.bf16.mxu0 0
        %5451 = vmatpush1.bf16.msra.mxu0 0
        %5452 = vmatprep.subr.bf16.mxu0 0
        %5453 = vmatpush1.bf16.msra.mxu0 0
        %5454 = vmatprep.subr.bf16.mxu0 0
        %5455 = vmatpush1.bf16.msra.mxu0 0
        %5456 = vmatprep.subr.bf16.mxu0 0
        %5457 = vmatpush1.bf16.msra.mxu0 0
        %5458 = vmatprep.subr.bf16.mxu0 0
        %5459 = vmatpush1.bf16.msra.mxu0 0
        %5460 = vmatprep.subr.bf16.mxu0 0
        %5461 = vmatpush1.bf16.msra.mxu0 0
        %5462 = vmatprep.subr.bf16.mxu0 0
        %5463 = vmatpush1.bf16.msra.mxu0 0
        %5464 = vmatprep.subr.bf16.mxu0 0
        %5465 = vmatpush1.bf16.msra.mxu0 0
        %5466 = vmatprep.subr.bf16.mxu0 0
        %5467 = vmatpush1.bf16.msra.mxu0 0
        %5468 = vmatprep.subr.bf16.mxu0 0
        %5469 = vmatpush1.bf16.msra.mxu0 0
        %5470 = vmatprep.subr.bf16.mxu0 0
        %5471 = vmatpush1.bf16.msra.mxu0 0
        %5472 = vmatprep.subr.bf16.mxu0 0
        %5473 = vmatpush1.bf16.msra.mxu0 0
        %5474 = vmatprep.mubr.bf16.mxu0 0
        %5475 = vmatmul.mubr.bf16.gmra.mrb[0].mxu0 %v5440
        %v5476 = vpop.f32.mrb[0].mxu0
        %v5477 = vadd.f32 0.0, %v5476
        %v5478 = vpop.f32.mrb[0].mxu0
        %v5479 = vpop.f32.mrb[0].mxu0
        %v5480 = vadd.f32 0.0, %v5479
        %v5481 = vpop.f32.mrb[0].mxu0
        %5482 = vdwg.mxu0
        %5483 = vrot.lane.b32.xlu0 %v1728, 48
        %v5484 = vpop.permute.xlu0 %5483
        %v5487 = vsel %vm775, %v5245, 0
        %5489 = vmatprep.subr.bf16.mxu0 0
        %5490 = vmatpush1.bf16.msra.mxu0 %v5484
        %5491 = vmatprep.subr.bf16.mxu0 0
        %5492 = vmatpush1.bf16.msra.mxu0 0
        %5493 = vmatprep.subr.bf16.mxu0 0
        %5494 = vmatpush1.bf16.msra.mxu0 0
        %5495 = vmatprep.subr.bf16.mxu0 0
        %5496 = vmatpush1.bf16.msra.mxu0 0
        %5497 = vmatprep.subr.bf16.mxu0 0
        %5498 = vmatpush1.bf16.msra.mxu0 0
        %5499 = vmatprep.subr.bf16.mxu0 0
        %5500 = vmatpush1.bf16.msra.mxu0 0
        %5501 = vmatprep.subr.bf16.mxu0 0
        %5502 = vmatpush1.bf16.msra.mxu0 0
        %5503 = vmatprep.subr.bf16.mxu0 0
        %5504 = vmatpush1.bf16.msra.mxu0 0
        %5505 = vmatprep.subr.bf16.mxu0 0
        %5506 = vmatpush1.bf16.msra.mxu0 0
        %5507 = vmatprep.subr.bf16.mxu0 0
        %5508 = vmatpush1.bf16.msra.mxu0 0
        %5509 = vmatprep.subr.bf16.mxu0 0
        %5510 = vmatpush1.bf16.msra.mxu0 0
        %5511 = vmatprep.subr.bf16.mxu0 0
        %5512 = vmatpush1.bf16.msra.mxu0 0
        %5513 = vmatprep.subr.bf16.mxu0 0
        %5514 = vmatpush1.bf16.msra.mxu0 0
        %5515 = vmatprep.subr.bf16.mxu0 0
        %5516 = vmatpush1.bf16.msra.mxu0 0
        %5517 = vmatprep.subr.bf16.mxu0 0
        %5518 = vmatpush1.bf16.msra.mxu0 0
        %5519 = vmatprep.subr.bf16.mxu0 0
        %5520 = vmatpush1.bf16.msra.mxu0 0
        %5521 = vmatprep.mubr.bf16.mxu0 0
        %5522 = vmatmul.mubr.bf16.gmra.mrb[0].mxu0 %v5487
        %v5523 = vpop.f32.mrb[0].mxu0
        %v5524 = vadd.f32 0.0, %v5523
        %v5525 = vpop.f32.mrb[0].mxu0
        %v5526 = vpop.f32.mrb[0].mxu0
        %v5527 = vadd.f32 0.0, %v5526
        %v5528 = vpop.f32.mrb[0].mxu0
        %5529 = vdwg.mxu0
        %5530 = vrot.lane.b32.xlu0 %v1729, 48
        %v5531 = vpop.permute.xlu0 %5530
        %v5534 = vsel %vm775, %v5246, 0
        %5536 = vmatprep.subr.bf16.mxu0 0
        %5537 = vmatpush1.bf16.msra.mxu0 %v5531
        %5538 = vmatprep.subr.bf16.mxu0 0
        %5539 = vmatpush1.bf16.msra.mxu0 0
        %5540 = vmatprep.subr.bf16.mxu0 0
        %5541 = vmatpush1.bf16.msra.mxu0 0
        %5542 = vmatprep.subr.bf16.mxu0 0
        %5543 = vmatpush1.bf16.msra.mxu0 0
        %5544 = vmatprep.subr.bf16.mxu0 0
        %5545 = vmatpush1.bf16.msra.mxu0 0
        %5546 = vmatprep.subr.bf16.mxu0 0
        %5547 = vmatpush1.bf16.msra.mxu0 0
        %5548 = vmatprep.subr.bf16.mxu0 0
        %5549 = vmatpush1.bf16.msra.mxu0 0
        %5550 = vmatprep.subr.bf16.mxu0 0
        %5551 = vmatpush1.bf16.msra.mxu0 0
        %5552 = vmatprep.subr.bf16.mxu0 0
        %5553 = vmatpush1.bf16.msra.mxu0 0
        %5554 = vmatprep.subr.bf16.mxu0 0
        %5555 = vmatpush1.bf16.msra.mxu0 0
        %5556 = vmatprep.subr.bf16.mxu0 0
        %5557 = vmatpush1.bf16.msra.mxu0 0
        %5558 = vmatprep.subr.bf16.mxu0 0
        %5559 = vmatpush1.bf16.msra.mxu0 0
        %5560 = vmatprep.subr.bf16.mxu0 0
        %5561 = vmatpush1.bf16.msra.mxu0 0
        %5562 = vmatprep.subr.bf16.mxu0 0
        %5563 = vmatpush1.bf16.msra.mxu0 0
        %5564 = vmatprep.subr.bf16.mxu0 0
        %5565 = vmatpush1.bf16.msra.mxu0 0
        %5566 = vmatprep.subr.bf16.mxu0 0
        %5567 = vmatpush1.bf16.msra.mxu0 0
        %5568 = vmatprep.mubr.bf16.mxu0 0
        %5569 = vmatmul.mubr.bf16.gmra.mrb[0].mxu0 %v5534
        %v5570 = vpop.f32.mrb[0].mxu0
        %v5571 = vadd.f32 0.0, %v5570
        %v5572 = vpop.f32.mrb[0].mxu0
        %v5573 = vpop.f32.mrb[0].mxu0
        %v5574 = vadd.f32 0.0, %v5573
        %v5575 = vpop.f32.mrb[0].mxu0
        %5576 = vdwg.mxu0
        %5577 = vrot.lane.b32.xlu0 %v1730, 48
        %v5578 = vpop.permute.xlu0 %5577
        %v5581 = vsel %vm775, %v5247, 0
        %5583 = vmatprep.subr.bf16.mxu0 0
        %5584 = vmatpush1.bf16.msra.mxu0 %v5578
        %5585 = vmatprep.subr.bf16.mxu0 0
        %5586 = vmatpush1.bf16.msra.mxu0 0
        %5587 = vmatprep.subr.bf16.mxu0 0
        %5588 = vmatpush1.bf16.msra.mxu0 0
        %5589 = vmatprep.subr.bf16.mxu0 0
        %5590 = vmatpush1.bf16.msra.mxu0 0
        %5591 = vmatprep.subr.bf16.mxu0 0
        %5592 = vmatpush1.bf16.msra.mxu0 0
        %5593 = vmatprep.subr.bf16.mxu0 0
        %5594 = vmatpush1.bf16.msra.mxu0 0
        %5595 = vmatprep.subr.bf16.mxu0 0
        %5596 = vmatpush1.bf16.msra.mxu0 0
        %5597 = vmatprep.subr.bf16.mxu0 0
        %5598 = vmatpush1.bf16.msra.mxu0 0
        %5599 = vmatprep.subr.bf16.mxu0 0
        %5600 = vmatpush1.bf16.msra.mxu0 0
        %5601 = vmatprep.subr.bf16.mxu0 0
        %5602 = vmatpush1.bf16.msra.mxu0 0
        %5603 = vmatprep.subr.bf16.mxu0 0
        %5604 = vmatpush1.bf16.msra.mxu0 0
        %5605 = vmatprep.subr.bf16.mxu0 0
        %5606 = vmatpush1.bf16.msra.mxu0 0
        %5607 = vmatprep.subr.bf16.mxu0 0
        %5608 = vmatpush1.bf16.msra.mxu0 0
        %5609 = vmatprep.subr.bf16.mxu0 0
        %5610 = vmatpush1.bf16.msra.mxu0 0
        %5611 = vmatprep.subr.bf16.mxu0 0
        %5612 = vmatpush1.bf16.msra.mxu0 0
        %5613 = vmatprep.subr.bf16.mxu0 0
        %5614 = vmatpush1.bf16.msra.mxu0 0
        %5615 = vmatprep.mubr.bf16.mxu0 0
        %5616 = vmatmul.mubr.bf16.gmra.mrb[0].mxu0 %v5581
        %v5617 = vpop.f32.mrb[0].mxu0
        %v5618 = vadd.f32 0.0, %v5617
        %v5619 = vpop.f32.mrb[0].mxu0
        %v5620 = vpop.f32.mrb[0].mxu0
        %v5621 = vadd.f32 0.0, %v5620
        %v5622 = vpop.f32.mrb[0].mxu0
        %5623 = vdwg.mxu0
        %5640 = vrot.lane.b32.xlu0 %v5289, 16
        %v5641 = vpop.permute.xlu0 %5640
        %5642 = vrot.lane.b32.xlu0 %v5292, 16
        %v5643 = vpop.permute.xlu0 %5642
        %5644 = vrot.lane.b32.xlu0 %v5336, 16
        %v5645 = vpop.permute.xlu0 %5644
        %5646 = vrot.lane.b32.xlu0 %v5339, 16
        %v5647 = vpop.permute.xlu0 %5646
        %5648 = vrot.lane.b32.xlu0 %v5383, 16
        %v5649 = vpop.permute.xlu0 %5648
        %5650 = vrot.lane.b32.xlu0 %v5386, 16
        %v5651 = vpop.permute.xlu0 %5650
        %5652 = vrot.lane.b32.xlu0 %v5430, 16
        %v5653 = vpop.permute.xlu0 %5652
        %5654 = vrot.lane.b32.xlu0 %v5433, 16
        %v5655 = vpop.permute.xlu0 %5654
        %5656 = vrot.lane.b32.xlu0 %v5477, 16
        %v5657 = vpop.permute.xlu0 %5656
        %5658 = vrot.lane.b32.xlu0 %v5480, 16
        %v5659 = vpop.permute.xlu0 %5658
        %5660 = vrot.lane.b32.xlu0 %v5524, 16
        %v5661 = vpop.permute.xlu0 %5660
        %5662 = vrot.lane.b32.xlu0 %v5527, 16
        %v5663 = vpop.permute.xlu0 %5662
        %5664 = vrot.lane.b32.xlu0 %v5571, 16
        %v5665 = vpop.permute.xlu0 %5664
        %5666 = vrot.lane.b32.xlu0 %v5574, 16
        %v5667 = vpop.permute.xlu0 %5666
        %5668 = vrot.lane.b32.xlu0 %v5618, 16
        %v5669 = vpop.permute.xlu0 %5668
        %5670 = vrot.lane.b32.xlu0 %v5621, 16
        %v5671 = vpop.permute.xlu0 %5670
        %vm5688 = vcmask 195712
        %5689 = vst.msk [vmem:[#allocation2] sm:$0xff] %vm5688, %v5641
        %5690 = vst.msk [vmem:[#allocation2 + $0x8] sm:$0xff] %vm5688, %v5643
        %5691 = vst.msk [vmem:[#allocation2 + $0x10] sm:$0xff] %vm5688, %v5645
        %5692 = vst.msk [vmem:[#allocation2 + $0x18] sm:$0xff] %vm5688, %v5647
        %5693 = vst.msk [vmem:[#allocation2 + $0x20] sm:$0xff] %vm5688, %v5649
        %5694 = vst.msk [vmem:[#allocation2 + $0x28] sm:$0xff] %vm5688, %v5651
        %5695 = vst.msk [vmem:[#allocation2 + $0x30] sm:$0xff] %vm5688, %v5653
        %5696 = vst.msk [vmem:[#allocation2 + $0x38] sm:$0xff] %vm5688, %v5655
        %5697 = vst.msk [vmem:[#allocation2 + $0x40] sm:$0xff] %vm5688, %v5657
        %5698 = vst.msk [vmem:[#allocation2 + $0x48] sm:$0xff] %vm5688, %v5659
        %5699 = vst.msk [vmem:[#allocation2 + $0x50] sm:$0xff] %vm5688, %v5661
        %5700 = vst.msk [vmem:[#allocation2 + $0x58] sm:$0xff] %vm5688, %v5663
        %5701 = vst.msk [vmem:[#allocation2 + $0x60] sm:$0xff] %vm5688, %v5665
        %5702 = vst.msk [vmem:[#allocation2 + $0x68] sm:$0xff] %vm5688, %v5667
        %5703 = vst.msk [vmem:[#allocation2 + $0x70] sm:$0xff] %vm5688, %v5669
        %5704 = vst.msk [vmem:[#allocation2 + $0x78] sm:$0xff] %vm5688, %v5671
        %5705 = vrot.lane.b32.xlu0 %v1723, 104
        %v5706 = vpop.permute.xlu0 %5705
        %5707 = vrot.lane.b32.xlu0 %v1723, 72
        %v5708 = vpop.permute.xlu0 %5707
        %v5710 = vsel %vm1734, %v5706, 0
        %v5713 = vsel %vm1734, %v5708, 0
        %5715 = vmatprep.subr.bf16.mxu0 0
        %5716 = vmatpush1.bf16.xpose.msra.mxu0 %v5713
        %5717 = vmatprep.subr.bf16.mxu0 0
        %5718 = vmatpush1.bf16.xpose.msra.mxu0 0
        %5719 = vmatprep.subr.bf16.mxu0 0
        %5720 = vmatpush1.bf16.xpose.msra.mxu0 0
        %5721 = vmatprep.subr.bf16.mxu0 0
        %5722 = vmatpush1.bf16.xpose.msra.mxu0 0
        %5723 = vmatprep.subr.bf16.mxu0 0
        %5724 = vmatpush1.bf16.xpose.msra.mxu0 0
        %5725 = vmatprep.subr.bf16.mxu0 0
        %5726 = vmatpush1.bf16.xpose.msra.mxu0 0
        %5727 = vmatprep.subr.bf16.mxu0 0
        %5728 = vmatpush1.bf16.xpose.msra.mxu0 0
        %5729 = vmatprep.subr.bf16.mxu0 0
        %5730 = vmatpush1.bf16.xpose.msra.mxu0 0
        %5731 = vmatprep.subr.bf16.mxu0 0
        %5732 = vmatpush1.bf16.xpose.msra.mxu0 0
        %5733 = vmatprep.subr.bf16.mxu0 0
        %5734 = vmatpush1.bf16.xpose.msra.mxu0 0
        %5735 = vmatprep.subr.bf16.mxu0 0
        %5736 = vmatpush1.bf16.xpose.msra.mxu0 0
        %5737 = vmatprep.subr.bf16.mxu0 0
        %5738 = vmatpush1.bf16.xpose.msra.mxu0 0
        %5739 = vmatprep.subr.bf16.mxu0 0
        %5740 = vmatpush1.bf16.xpose.msra.mxu0 0
        %5741 = vmatprep.subr.bf16.mxu0 0
        %5742 = vmatpush1.bf16.xpose.msra.mxu0 0
        %5743 = vmatprep.subr.bf16.mxu0 0
        %5744 = vmatpush1.bf16.xpose.msra.mxu0 0
        %5745 = vmatprep.subr.bf16.mxu0 0
        %5746 = vmatpush1.bf16.xpose.msra.mxu0 0
        %5747 = vmatprep.mubr.bf16.mxu0 0
        %5748 = vmatmul.mubr.bf16.gmra.mrb[0].mxu0 %v5710
        %v5749 = vpop.f32.mrb[0].mxu0
        %v5750 = vadd.f32 0.0, %v5749
        %v5751 = vpop.f32.mrb[0].mxu0
        %v5752 = vpop.f32.mrb[0].mxu0
        %v5753 = vadd.f32 0.0, %v5752
        %v5754 = vpop.f32.mrb[0].mxu0
        %5755 = vdwg.mxu0
        %5756 = vrot.lane.b32.xlu0 %v1724, 104
        %v5757 = vpop.permute.xlu0 %5756
        %5758 = vrot.lane.b32.xlu0 %v1724, 72
        %v5759 = vpop.permute.xlu0 %5758
        %v5761 = vsel %vm1734, %v5757, 0
        %v5764 = vsel %vm1734, %v5759, 0
        %5766 = vmatprep.subr.bf16.mxu0 0
        %5767 = vmatpush1.bf16.xpose.msra.mxu0 %v5764
        %5768 = vmatprep.subr.bf16.mxu0 0
        %5769 = vmatpush1.bf16.xpose.msra.mxu0 0
        %5770 = vmatprep.subr.bf16.mxu0 0
        %5771 = vmatpush1.bf16.xpose.msra.mxu0 0
        %5772 = vmatprep.subr.bf16.mxu0 0
        %5773 = vmatpush1.bf16.xpose.msra.mxu0 0
        %5774 = vmatprep.subr.bf16.mxu0 0
        %5775 = vmatpush1.bf16.xpose.msra.mxu0 0
        %5776 = vmatprep.subr.bf16.mxu0 0
        %5777 = vmatpush1.bf16.xpose.msra.mxu0 0
        %5778 = vmatprep.subr.bf16.mxu0 0
        %5779 = vmatpush1.bf16.xpose.msra.mxu0 0
        %5780 = vmatprep.subr.bf16.mxu0 0
        %5781 = vmatpush1.bf16.xpose.msra.mxu0 0
        %5782 = vmatprep.subr.bf16.mxu0 0
        %5783 = vmatpush1.bf16.xpose.msra.mxu0 0
        %5784 = vmatprep.subr.bf16.mxu0 0
        %5785 = vmatpush1.bf16.xpose.msra.mxu0 0
        %5786 = vmatprep.subr.bf16.mxu0 0
        %5787 = vmatpush1.bf16.xpose.msra.mxu0 0
        %5788 = vmatprep.subr.bf16.mxu0 0
        %5789 = vmatpush1.bf16.xpose.msra.mxu0 0
        %5790 = vmatprep.subr.bf16.mxu0 0
        %5791 = vmatpush1.bf16.xpose.msra.mxu0 0
        %5792 = vmatprep.subr.bf16.mxu0 0
        %5793 = vmatpush1.bf16.xpose.msra.mxu0 0
        %5794 = vmatprep.subr.bf16.mxu0 0
        %5795 = vmatpush1.bf16.xpose.msra.mxu0 0
        %5796 = vmatprep.subr.bf16.mxu0 0
        %5797 = vmatpush1.bf16.xpose.msra.mxu0 0
        %5798 = vmatprep.mubr.bf16.mxu0 0
        %5799 = vmatmul.mubr.bf16.gmra.mrb[0].mxu0 %v5761
        %v5800 = vpop.f32.mrb[0].mxu0
        %v5801 = vadd.f32 0.0, %v5800
        %v5802 = vpop.f32.mrb[0].mxu0
        %v5803 = vpop.f32.mrb[0].mxu0
        %v5804 = vadd.f32 0.0, %v5803
        %v5805 = vpop.f32.mrb[0].mxu0
        %5806 = vdwg.mxu0
        %5807 = vrot.lane.b32.xlu0 %v1725, 104
        %v5808 = vpop.permute.xlu0 %5807
        %5809 = vrot.lane.b32.xlu0 %v1725, 72
        %v5810 = vpop.permute.xlu0 %5809
        %v5812 = vsel %vm1734, %v5808, 0
        %v5815 = vsel %vm1734, %v5810, 0
        %5817 = vmatprep.subr.bf16.mxu0 0
        %5818 = vmatpush1.bf16.xpose.msra.mxu0 %v5815
        %5819 = vmatprep.subr.bf16.mxu0 0
        %5820 = vmatpush1.bf16.xpose.msra.mxu0 0
        %5821 = vmatprep.subr.bf16.mxu0 0
        %5822 = vmatpush1.bf16.xpose.msra.mxu0 0
        %5823 = vmatprep.subr.bf16.mxu0 0
        %5824 = vmatpush1.bf16.xpose.msra.mxu0 0
        %5825 = vmatprep.subr.bf16.mxu0 0
        %5826 = vmatpush1.bf16.xpose.msra.mxu0 0
        %5827 = vmatprep.subr.bf16.mxu0 0
        %5828 = vmatpush1.bf16.xpose.msra.mxu0 0
        %5829 = vmatprep.subr.bf16.mxu0 0
        %5830 = vmatpush1.bf16.xpose.msra.mxu0 0
        %5831 = vmatprep.subr.bf16.mxu0 0
        %5832 = vmatpush1.bf16.xpose.msra.mxu0 0
        %5833 = vmatprep.subr.bf16.mxu0 0
        %5834 = vmatpush1.bf16.xpose.msra.mxu0 0
        %5835 = vmatprep.subr.bf16.mxu0 0
        %5836 = vmatpush1.bf16.xpose.msra.mxu0 0
        %5837 = vmatprep.subr.bf16.mxu0 0
        %5838 = vmatpush1.bf16.xpose.msra.mxu0 0
        %5839 = vmatprep.subr.bf16.mxu0 0
        %5840 = vmatpush1.bf16.xpose.msra.mxu0 0
        %5841 = vmatprep.subr.bf16.mxu0 0
        %5842 = vmatpush1.bf16.xpose.msra.mxu0 0
        %5843 = vmatprep.subr.bf16.mxu0 0
        %5844 = vmatpush1.bf16.xpose.msra.mxu0 0
        %5845 = vmatprep.subr.bf16.mxu0 0
        %5846 = vmatpush1.bf16.xpose.msra.mxu0 0
        %5847 = vmatprep.subr.bf16.mxu0 0
        %5848 = vmatpush1.bf16.xpose.msra.mxu0 0
        %5849 = vmatprep.mubr.bf16.mxu0 0
        %5850 = vmatmul.mubr.bf16.gmra.mrb[0].mxu0 %v5812
        %v5851 = vpop.f32.mrb[0].mxu0
        %v5852 = vadd.f32 0.0, %v5851
        %v5853 = vpop.f32.mrb[0].mxu0
        %v5854 = vpop.f32.mrb[0].mxu0
        %v5855 = vadd.f32 0.0, %v5854
        %v5856 = vpop.f32.mrb[0].mxu0
        %5857 = vdwg.mxu0
        %5858 = vrot.lane.b32.xlu0 %v1726, 104
        %v5859 = vpop.permute.xlu0 %5858
        %5860 = vrot.lane.b32.xlu0 %v1726, 72
        %v5861 = vpop.permute.xlu0 %5860
        %v5863 = vsel %vm1734, %v5859, 0
        %v5866 = vsel %vm1734, %v5861, 0
        %5868 = vmatprep.subr.bf16.mxu0 0
        %5869 = vmatpush1.bf16.xpose.msra.mxu0 %v5866
        %5870 = vmatprep.subr.bf16.mxu0 0
        %5871 = vmatpush1.bf16.xpose.msra.mxu0 0
        %5872 = vmatprep.subr.bf16.mxu0 0
        %5873 = vmatpush1.bf16.xpose.msra.mxu0 0
        %5874 = vmatprep.subr.bf16.mxu0 0
        %5875 = vmatpush1.bf16.xpose.msra.mxu0 0
        %5876 = vmatprep.subr.bf16.mxu0 0
        %5877 = vmatpush1.bf16.xpose.msra.mxu0 0
        %5878 = vmatprep.subr.bf16.mxu0 0
        %5879 = vmatpush1.bf16.xpose.msra.mxu0 0
        %5880 = vmatprep.subr.bf16.mxu0 0
        %5881 = vmatpush1.bf16.xpose.msra.mxu0 0
        %5882 = vmatprep.subr.bf16.mxu0 0
        %5883 = vmatpush1.bf16.xpose.msra.mxu0 0
        %5884 = vmatprep.subr.bf16.mxu0 0
        %5885 = vmatpush1.bf16.xpose.msra.mxu0 0
        %5886 = vmatprep.subr.bf16.mxu0 0
        %5887 = vmatpush1.bf16.xpose.msra.mxu0 0
        %5888 = vmatprep.subr.bf16.mxu0 0
        %5889 = vmatpush1.bf16.xpose.msra.mxu0 0
        %5890 = vmatprep.subr.bf16.mxu0 0
        %5891 = vmatpush1.bf16.xpose.msra.mxu0 0
        %5892 = vmatprep.subr.bf16.mxu0 0
        %5893 = vmatpush1.bf16.xpose.msra.mxu0 0
        %5894 = vmatprep.subr.bf16.mxu0 0
        %5895 = vmatpush1.bf16.xpose.msra.mxu0 0
        %5896 = vmatprep.subr.bf16.mxu0 0
        %5897 = vmatpush1.bf16.xpose.msra.mxu0 0
        %5898 = vmatprep.subr.bf16.mxu0 0
        %5899 = vmatpush1.bf16.xpose.msra.mxu0 0
        %5900 = vmatprep.mubr.bf16.mxu0 0
        %5901 = vmatmul.mubr.bf16.gmra.mrb[0].mxu0 %v5863
        %v5902 = vpop.f32.mrb[0].mxu0
        %v5903 = vadd.f32 0.0, %v5902
        %v5904 = vpop.f32.mrb[0].mxu0
        %v5905 = vpop.f32.mrb[0].mxu0
        %v5906 = vadd.f32 0.0, %v5905
        %v5907 = vpop.f32.mrb[0].mxu0
        %5908 = vdwg.mxu0
        %5909 = vrot.lane.b32.xlu0 %v1727, 104
        %v5910 = vpop.permute.xlu0 %5909
        %5911 = vrot.lane.b32.xlu0 %v1727, 72
        %v5912 = vpop.permute.xlu0 %5911
        %v5914 = vsel %vm1734, %v5910, 0
        %v5917 = vsel %vm1734, %v5912, 0
        %5919 = vmatprep.subr.bf16.mxu0 0
        %5920 = vmatpush1.bf16.xpose.msra.mxu0 %v5917
        %5921 = vmatprep.subr.bf16.mxu0 0
        %5922 = vmatpush1.bf16.xpose.msra.mxu0 0
        %5923 = vmatprep.subr.bf16.mxu0 0
        %5924 = vmatpush1.bf16.xpose.msra.mxu0 0
        %5925 = vmatprep.subr.bf16.mxu0 0
        %5926 = vmatpush1.bf16.xpose.msra.mxu0 0
        %5927 = vmatprep.subr.bf16.mxu0 0
        %5928 = vmatpush1.bf16.xpose.msra.mxu0 0
        %5929 = vmatprep.subr.bf16.mxu0 0
        %5930 = vmatpush1.bf16.xpose.msra.mxu0 0
        %5931 = vmatprep.subr.bf16.mxu0 0
        %5932 = vmatpush1.bf16.xpose.msra.mxu0 0
        %5933 = vmatprep.subr.bf16.mxu0 0
        %5934 = vmatpush1.bf16.xpose.msra.mxu0 0
        %5935 = vmatprep.subr.bf16.mxu0 0
        %5936 = vmatpush1.bf16.xpose.msra.mxu0 0
        %5937 = vmatprep.subr.bf16.mxu0 0
        %5938 = vmatpush1.bf16.xpose.msra.mxu0 0
        %5939 = vmatprep.subr.bf16.mxu0 0
        %5940 = vmatpush1.bf16.xpose.msra.mxu0 0
        %5941 = vmatprep.subr.bf16.mxu0 0
        %5942 = vmatpush1.bf16.xpose.msra.mxu0 0
        %5943 = vmatprep.subr.bf16.mxu0 0
        %5944 = vmatpush1.bf16.xpose.msra.mxu0 0
        %5945 = vmatprep.subr.bf16.mxu0 0
        %5946 = vmatpush1.bf16.xpose.msra.mxu0 0
        %5947 = vmatprep.subr.bf16.mxu0 0
        %5948 = vmatpush1.bf16.xpose.msra.mxu0 0
        %5949 = vmatprep.subr.bf16.mxu0 0
        %5950 = vmatpush1.bf16.xpose.msra.mxu0 0
        %5951 = vmatprep.mubr.bf16.mxu0 0
        %5952 = vmatmul.mubr.bf16.gmra.mrb[0].mxu0 %v5914
        %v5953 = vpop.f32.mrb[0].mxu0
        %v5954 = vadd.f32 0.0, %v5953
        %v5955 = vpop.f32.mrb[0].mxu0
        %v5956 = vpop.f32.mrb[0].mxu0
        %v5957 = vadd.f32 0.0, %v5956
        %v5958 = vpop.f32.mrb[0].mxu0
        %5959 = vdwg.mxu0
        %5960 = vrot.lane.b32.xlu0 %v1728, 104
        %v5961 = vpop.permute.xlu0 %5960
        %5962 = vrot.lane.b32.xlu0 %v1728, 72
        %v5963 = vpop.permute.xlu0 %5962
        %v5965 = vsel %vm1734, %v5961, 0
        %v5968 = vsel %vm1734, %v5963, 0
        %5970 = vmatprep.subr.bf16.mxu0 0
        %5971 = vmatpush1.bf16.xpose.msra.mxu0 %v5968
        %5972 = vmatprep.subr.bf16.mxu0 0
        %5973 = vmatpush1.bf16.xpose.msra.mxu0 0
        %5974 = vmatprep.subr.bf16.mxu0 0
        %5975 = vmatpush1.bf16.xpose.msra.mxu0 0
        %5976 = vmatprep.subr.bf16.mxu0 0
        %5977 = vmatpush1.bf16.xpose.msra.mxu0 0
        %5978 = vmatprep.subr.bf16.mxu0 0
        %5979 = vmatpush1.bf16.xpose.msra.mxu0 0
        %5980 = vmatprep.subr.bf16.mxu0 0
        %5981 = vmatpush1.bf16.xpose.msra.mxu0 0
        %5982 = vmatprep.subr.bf16.mxu0 0
        %5983 = vmatpush1.bf16.xpose.msra.mxu0 0
        %5984 = vmatprep.subr.bf16.mxu0 0
        %5985 = vmatpush1.bf16.xpose.msra.mxu0 0
        %5986 = vmatprep.subr.bf16.mxu0 0
        %5987 = vmatpush1.bf16.xpose.msra.mxu0 0
        %5988 = vmatprep.subr.bf16.mxu0 0
        %5989 = vmatpush1.bf16.xpose.msra.mxu0 0
        %5990 = vmatprep.subr.bf16.mxu0 0
        %5991 = vmatpush1.bf16.xpose.msra.mxu0 0
        %5992 = vmatprep.subr.bf16.mxu0 0
        %5993 = vmatpush1.bf16.xpose.msra.mxu0 0
        %5994 = vmatprep.subr.bf16.mxu0 0
        %5995 = vmatpush1.bf16.xpose.msra.mxu0 0
        %5996 = vmatprep.subr.bf16.mxu0 0
        %5997 = vmatpush1.bf16.xpose.msra.mxu0 0
        %5998 = vmatprep.subr.bf16.mxu0 0
        %5999 = vmatpush1.bf16.xpose.msra.mxu0 0
        %6000 = vmatprep.subr.bf16.mxu0 0
        %6001 = vmatpush1.bf16.xpose.msra.mxu0 0
        %6002 = vmatprep.mubr.bf16.mxu0 0
        %6003 = vmatmul.mubr.bf16.gmra.mrb[0].mxu0 %v5965
        %v6004 = vpop.f32.mrb[0].mxu0
        %v6005 = vadd.f32 0.0, %v6004
        %v6006 = vpop.f32.mrb[0].mxu0
        %v6007 = vpop.f32.mrb[0].mxu0
        %v6008 = vadd.f32 0.0, %v6007
        %v6009 = vpop.f32.mrb[0].mxu0
        %6010 = vdwg.mxu0
        %6011 = vrot.lane.b32.xlu0 %v1729, 104
        %v6012 = vpop.permute.xlu0 %6011
        %6013 = vrot.lane.b32.xlu0 %v1729, 72
        %v6014 = vpop.permute.xlu0 %6013
        %v6016 = vsel %vm1734, %v6012, 0
        %v6019 = vsel %vm1734, %v6014, 0
        %6021 = vmatprep.subr.bf16.mxu0 0
        %6022 = vmatpush1.bf16.xpose.msra.mxu0 %v6019
        %6023 = vmatprep.subr.bf16.mxu0 0
        %6024 = vmatpush1.bf16.xpose.msra.mxu0 0
        %6025 = vmatprep.subr.bf16.mxu0 0
        %6026 = vmatpush1.bf16.xpose.msra.mxu0 0
        %6027 = vmatprep.subr.bf16.mxu0 0
        %6028 = vmatpush1.bf16.xpose.msra.mxu0 0
        %6029 = vmatprep.subr.bf16.mxu0 0
        %6030 = vmatpush1.bf16.xpose.msra.mxu0 0
        %6031 = vmatprep.subr.bf16.mxu0 0
        %6032 = vmatpush1.bf16.xpose.msra.mxu0 0
        %6033 = vmatprep.subr.bf16.mxu0 0
        %6034 = vmatpush1.bf16.xpose.msra.mxu0 0
        %6035 = vmatprep.subr.bf16.mxu0 0
        %6036 = vmatpush1.bf16.xpose.msra.mxu0 0
        %6037 = vmatprep.subr.bf16.mxu0 0
        %6038 = vmatpush1.bf16.xpose.msra.mxu0 0
        %6039 = vmatprep.subr.bf16.mxu0 0
        %6040 = vmatpush1.bf16.xpose.msra.mxu0 0
        %6041 = vmatprep.subr.bf16.mxu0 0
        %6042 = vmatpush1.bf16.xpose.msra.mxu0 0
        %6043 = vmatprep.subr.bf16.mxu0 0
        %6044 = vmatpush1.bf16.xpose.msra.mxu0 0
        %6045 = vmatprep.subr.bf16.mxu0 0
        %6046 = vmatpush1.bf16.xpose.msra.mxu0 0
        %6047 = vmatprep.subr.bf16.mxu0 0
        %6048 = vmatpush1.bf16.xpose.msra.mxu0 0
        %6049 = vmatprep.subr.bf16.mxu0 0
        %6050 = vmatpush1.bf16.xpose.msra.mxu0 0
        %6051 = vmatprep.subr.bf16.mxu0 0
        %6052 = vmatpush1.bf16.xpose.msra.mxu0 0
        %6053 = vmatprep.mubr.bf16.mxu0 0
        %6054 = vmatmul.mubr.bf16.gmra.mrb[0].mxu0 %v6016
        %v6055 = vpop.f32.mrb[0].mxu0
        %v6056 = vadd.f32 0.0, %v6055
        %v6057 = vpop.f32.mrb[0].mxu0
        %v6058 = vpop.f32.mrb[0].mxu0
        %v6059 = vadd.f32 0.0, %v6058
        %v6060 = vpop.f32.mrb[0].mxu0
        %6061 = vdwg.mxu0
        %6062 = vrot.lane.b32.xlu0 %v1730, 104
        %v6063 = vpop.permute.xlu0 %6062
        %6064 = vrot.lane.b32.xlu0 %v1730, 72
        %v6065 = vpop.permute.xlu0 %6064
        %v6067 = vsel %vm1734, %v6063, 0
        %v6070 = vsel %vm1734, %v6065, 0
        %6072 = vmatprep.subr.bf16.mxu0 0
        %6073 = vmatpush1.bf16.xpose.msra.mxu0 %v6070
        %6074 = vmatprep.subr.bf16.mxu0 0
        %6075 = vmatpush1.bf16.xpose.msra.mxu0 0
        %6076 = vmatprep.subr.bf16.mxu0 0
        %6077 = vmatpush1.bf16.xpose.msra.mxu0 0
        %6078 = vmatprep.subr.bf16.mxu0 0
        %6079 = vmatpush1.bf16.xpose.msra.mxu0 0
        %6080 = vmatprep.subr.bf16.mxu0 0
        %6081 = vmatpush1.bf16.xpose.msra.mxu0 0
        %6082 = vmatprep.subr.bf16.mxu0 0
        %6083 = vmatpush1.bf16.xpose.msra.mxu0 0
        %6084 = vmatprep.subr.bf16.mxu0 0
        %6085 = vmatpush1.bf16.xpose.msra.mxu0 0
        %6086 = vmatprep.subr.bf16.mxu0 0
        %6087 = vmatpush1.bf16.xpose.msra.mxu0 0
        %6088 = vmatprep.subr.bf16.mxu0 0
        %6089 = vmatpush1.bf16.xpose.msra.mxu0 0
        %6090 = vmatprep.subr.bf16.mxu0 0
        %6091 = vmatpush1.bf16.xpose.msra.mxu0 0
        %6092 = vmatprep.subr.bf16.mxu0 0
        %6093 = vmatpush1.bf16.xpose.msra.mxu0 0
        %6094 = vmatprep.subr.bf16.mxu0 0
        %6095 = vmatpush1.bf16.xpose.msra.mxu0 0
        %6096 = vmatprep.subr.bf16.mxu0 0
        %6097 = vmatpush1.bf16.xpose.msra.mxu0 0
        %6098 = vmatprep.subr.bf16.mxu0 0
        %6099 = vmatpush1.bf16.xpose.msra.mxu0 0
        %6100 = vmatprep.subr.bf16.mxu0 0
        %6101 = vmatpush1.bf16.xpose.msra.mxu0 0
        %6102 = vmatprep.subr.bf16.mxu0 0
        %6103 = vmatpush1.bf16.xpose.msra.mxu0 0
        %6104 = vmatprep.mubr.bf16.mxu0 0
        %6105 = vmatmul.mubr.bf16.gmra.mrb[0].mxu0 %v6067
        %v6106 = vpop.f32.mrb[0].mxu0
        %v6107 = vadd.f32 0.0, %v6106
        %v6108 = vpop.f32.mrb[0].mxu0
        %v6109 = vpop.f32.mrb[0].mxu0
        %v6110 = vadd.f32 0.0, %v6109
        %v6111 = vpop.f32.mrb[0].mxu0
        %6112 = vdwg.mxu0
        %v6113 = vmul.f32 %v5750, 0.35355338
        %v6114 = vmul.f32 %v5753, 0.35355338
        %v6115 = vmul.f32 %v5801, 0.35355338
        %v6116 = vmul.f32 %v5804, 0.35355338
        %v6117 = vmul.f32 %v5852, 0.35355338
        %v6118 = vmul.f32 %v5855, 0.35355338
        %v6119 = vmul.f32 %v5903, 0.35355338
        %v6120 = vmul.f32 %v5906, 0.35355338
        %v6121 = vmul.f32 %v5954, 0.35355338
        %v6122 = vmul.f32 %v5957, 0.35355338
        %v6123 = vmul.f32 %v6005, 0.35355338
        %v6124 = vmul.f32 %v6008, 0.35355338
        %v6125 = vmul.f32 %v6056, 0.35355338
        %v6126 = vmul.f32 %v6059, 0.35355338
        %v6127 = vmul.f32 %v6107, 0.35355338
        %v6128 = vmul.f32 %v6110, 0.35355338
        %v6129 = vadd.f32 %v6113, %v736
        %v6130 = vadd.f32 %v6114, %v737
        %v6131 = vadd.f32 %v6115, %v738
        %v6132 = vadd.f32 %v6116, %v739
        %v6133 = vadd.f32 %v6117, %v740
        %v6134 = vadd.f32 %v6118, %v741
        %v6135 = vadd.f32 %v6119, %v742
        %v6136 = vadd.f32 %v6120, %v743
        %v6137 = vadd.f32 %v6121, %v744
        %v6138 = vadd.f32 %v6122, %v745
        %v6139 = vadd.f32 %v6123, %v746
        %v6140 = vadd.f32 %v6124, %v747
        %v6141 = vadd.f32 %v6125, %v748
        %v6142 = vadd.f32 %v6126, %v749
        %v6143 = vadd.f32 %v6127, %v750
        %v6144 = vadd.f32 %v6128, %v751
        %v6145 = vsel %vm775, %v6129, -inf
        %6146 = vmax.xlane.f32.xlu0 %v6145
        %v6147 = vpop.xlane.xlu0 %6146
        %v6148 = vsel %vm775, %v6130, -inf
        %6149 = vmax.xlane.f32.xlu0 %v6148
        %v6150 = vpop.xlane.xlu0 %6149
        %v6151 = vsel %vm775, %v6131, -inf
        %6152 = vmax.xlane.f32.xlu0 %v6151
        %v6153 = vpop.xlane.xlu0 %6152
        %v6154 = vsel %vm775, %v6132, -inf
        %6155 = vmax.xlane.f32.xlu0 %v6154
        %v6156 = vpop.xlane.xlu0 %6155
        %v6157 = vsel %vm775, %v6133, -inf
        %6158 = vmax.xlane.f32.xlu0 %v6157
        %v6159 = vpop.xlane.xlu0 %6158
        %v6160 = vsel %vm775, %v6134, -inf
        %6161 = vmax.xlane.f32.xlu0 %v6160
        %v6162 = vpop.xlane.xlu0 %6161
        %v6163 = vsel %vm775, %v6135, -inf
        %6164 = vmax.xlane.f32.xlu0 %v6163
        %v6165 = vpop.xlane.xlu0 %6164
        %v6166 = vsel %vm775, %v6136, -inf
        %6167 = vmax.xlane.f32.xlu0 %v6166
        %v6168 = vpop.xlane.xlu0 %6167
        %v6169 = vsel %vm775, %v6137, -inf
        %6170 = vmax.xlane.f32.xlu0 %v6169
        %v6171 = vpop.xlane.xlu0 %6170
        %v6172 = vsel %vm775, %v6138, -inf
        %6173 = vmax.xlane.f32.xlu0 %v6172
        %v6174 = vpop.xlane.xlu0 %6173
        %v6175 = vsel %vm775, %v6139, -inf
        %6176 = vmax.xlane.f32.xlu0 %v6175
        %v6177 = vpop.xlane.xlu0 %6176
        %v6178 = vsel %vm775, %v6140, -inf
        %6179 = vmax.xlane.f32.xlu0 %v6178
        %v6180 = vpop.xlane.xlu0 %6179
        %v6181 = vsel %vm775, %v6141, -inf
        %6182 = vmax.xlane.f32.xlu0 %v6181
        %v6183 = vpop.xlane.xlu0 %6182
        %v6184 = vsel %vm775, %v6142, -inf
        %6185 = vmax.xlane.f32.xlu0 %v6184
        %v6186 = vpop.xlane.xlu0 %6185
        %v6187 = vsel %vm775, %v6143, -inf
        %6188 = vmax.xlane.f32.xlu0 %v6187
        %v6189 = vpop.xlane.xlu0 %6188
        %v6190 = vsel %vm775, %v6144, -inf
        %6191 = vmax.xlane.f32.xlu0 %v6190
        %v6192 = vpop.xlane.xlu0 %6191
        %v6193 = vsub.f32 %v6129, %v6147
        %v6194 = vsub.f32 %v6130, %v6150
        %v6195 = vsub.f32 %v6131, %v6153
        %v6196 = vsub.f32 %v6132, %v6156
        %v6197 = vsub.f32 %v6133, %v6159
        %v6198 = vsub.f32 %v6134, %v6162
        %v6199 = vsub.f32 %v6135, %v6165
        %v6200 = vsub.f32 %v6136, %v6168
        %v6201 = vsub.f32 %v6137, %v6171
        %v6202 = vsub.f32 %v6138, %v6174
        %v6203 = vsub.f32 %v6139, %v6177
        %v6204 = vsub.f32 %v6140, %v6180
        %v6205 = vsub.f32 %v6141, %v6183
        %v6206 = vsub.f32 %v6142, %v6186
        %v6207 = vsub.f32 %v6143, %v6189
        %v6208 = vsub.f32 %v6144, %v6192
        %v6209 = vmul.f32 %v6193, 1.442695
        %v6210 = vpow.pop %v6209
        %v6211 = vmul.f32 %v6194, 1.442695
        %v6212 = vpow.pop %v6211
        %v6213 = vmul.f32 %v6195, 1.442695
        %v6214 = vpow.pop %v6213
        %v6215 = vmul.f32 %v6196, 1.442695
        %v6216 = vpow.pop %v6215
        %v6217 = vmul.f32 %v6197, 1.442695
        %v6218 = vpow.pop %v6217
        %v6219 = vmul.f32 %v6198, 1.442695
        %v6220 = vpow.pop %v6219
        %v6221 = vmul.f32 %v6199, 1.442695
        %v6222 = vpow.pop %v6221
        %v6223 = vmul.f32 %v6200, 1.442695
        %v6224 = vpow.pop %v6223
        %v6225 = vmul.f32 %v6201, 1.442695
        %v6226 = vpow.pop %v6225
        %v6227 = vmul.f32 %v6202, 1.442695
        %v6228 = vpow.pop %v6227
        %v6229 = vmul.f32 %v6203, 1.442695
        %v6230 = vpow.pop %v6229
        %v6231 = vmul.f32 %v6204, 1.442695
        %v6232 = vpow.pop %v6231
        %v6233 = vmul.f32 %v6205, 1.442695
        %v6234 = vpow.pop %v6233
        %v6235 = vmul.f32 %v6206, 1.442695
        %v6236 = vpow.pop %v6235
        %v6237 = vmul.f32 %v6207, 1.442695
        %v6238 = vpow.pop %v6237
        %v6239 = vmul.f32 %v6208, 1.442695
        %v6240 = vpow.pop %v6239
        %v6241 = vsel %vm775, %v6210, 0.0
        %6242 = vadd.xlane.f32.xlu0 %v6241
        %v6243 = vpop.xlane.xlu0 %6242
        %v6244 = vsel %vm775, %v6212, 0.0
        %6245 = vadd.xlane.f32.xlu0 %v6244
        %v6246 = vpop.xlane.xlu0 %6245
        %v6247 = vsel %vm775, %v6214, 0.0
        %6248 = vadd.xlane.f32.xlu0 %v6247
        %v6249 = vpop.xlane.xlu0 %6248
        %v6250 = vsel %vm775, %v6216, 0.0
        %6251 = vadd.xlane.f32.xlu0 %v6250
        %v6252 = vpop.xlane.xlu0 %6251
        %v6253 = vsel %vm775, %v6218, 0.0
        %6254 = vadd.xlane.f32.xlu0 %v6253
        %v6255 = vpop.xlane.xlu0 %6254
        %v6256 = vsel %vm775, %v6220, 0.0
        %6257 = vadd.xlane.f32.xlu0 %v6256
        %v6258 = vpop.xlane.xlu0 %6257
        %v6259 = vsel %vm775, %v6222, 0.0
        %6260 = vadd.xlane.f32.xlu0 %v6259
        %v6261 = vpop.xlane.xlu0 %6260
        %v6262 = vsel %vm775, %v6224, 0.0
        %6263 = vadd.xlane.f32.xlu0 %v6262
        %v6264 = vpop.xlane.xlu0 %6263
        %v6265 = vsel %vm775, %v6226, 0.0
        %6266 = vadd.xlane.f32.xlu0 %v6265
        %v6267 = vpop.xlane.xlu0 %6266
        %v6268 = vsel %vm775, %v6228, 0.0
        %6269 = vadd.xlane.f32.xlu0 %v6268
        %v6270 = vpop.xlane.xlu0 %6269
        %v6271 = vsel %vm775, %v6230, 0.0
        %6272 = vadd.xlane.f32.xlu0 %v6271
        %v6273 = vpop.xlane.xlu0 %6272
        %v6274 = vsel %vm775, %v6232, 0.0
        %6275 = vadd.xlane.f32.xlu0 %v6274
        %v6276 = vpop.xlane.xlu0 %6275
        %v6277 = vsel %vm775, %v6234, 0.0
        %6278 = vadd.xlane.f32.xlu0 %v6277
        %v6279 = vpop.xlane.xlu0 %6278
        %v6280 = vsel %vm775, %v6236, 0.0
        %6281 = vadd.xlane.f32.xlu0 %v6280
        %v6282 = vpop.xlane.xlu0 %6281
        %v6283 = vsel %vm775, %v6238, 0.0
        %6284 = vadd.xlane.f32.xlu0 %v6283
        %v6285 = vpop.xlane.xlu0 %6284
        %v6286 = vsel %vm775, %v6240, 0.0
        %6287 = vadd.xlane.f32.xlu0 %v6286
        %v6288 = vpop.xlane.xlu0 %6287
        %v6289 = vrcp.pop %v6243
        %v6290 = vrcp.pop %v6246
        %v6291 = vrcp.pop %v6249
        %v6292 = vrcp.pop %v6252
        %v6293 = vrcp.pop %v6255
        %v6294 = vrcp.pop %v6258
        %v6295 = vrcp.pop %v6261
        %v6296 = vrcp.pop %v6264
        %v6297 = vrcp.pop %v6267
        %v6298 = vrcp.pop %v6270
        %v6299 = vrcp.pop %v6273
        %v6300 = vrcp.pop %v6276
        %v6301 = vrcp.pop %v6279
        %v6302 = vrcp.pop %v6282
        %v6303 = vrcp.pop %v6285
        %v6304 = vrcp.pop %v6288
        %v6305 = vmul.f32 %v6210, %v6289
        %v6306 = vmul.f32 %v6212, %v6290
        %v6307 = vmul.f32 %v6214, %v6291
        %v6308 = vmul.f32 %v6216, %v6292
        %v6309 = vmul.f32 %v6218, %v6293
        %v6310 = vmul.f32 %v6220, %v6294
        %v6311 = vmul.f32 %v6222, %v6295
        %v6312 = vmul.f32 %v6224, %v6296
        %v6313 = vmul.f32 %v6226, %v6297
        %v6314 = vmul.f32 %v6228, %v6298
        %v6315 = vmul.f32 %v6230, %v6299
        %v6316 = vmul.f32 %v6232, %v6300
        %v6317 = vmul.f32 %v6234, %v6301
        %v6318 = vmul.f32 %v6236, %v6302
        %v6319 = vmul.f32 %v6238, %v6303
        %v6320 = vmul.f32 %v6240, %v6304
        %v6321 = vmul.f32 %v2340, %v6305
        %v6322 = vmul.f32 %v2340, %v6306
        %v6323 = vmul.f32 %v2340, %v6307
        %v6324 = vmul.f32 %v2340, %v6308
        %v6325 = vmul.f32 %v2340, %v6309
        %v6326 = vmul.f32 %v2340, %v6310
        %v6327 = vmul.f32 %v2340, %v6311
        %v6328 = vmul.f32 %v2340, %v6312
        %v6329 = vmul.f32 %v2340, %v6313
        %v6330 = vmul.f32 %v2340, %v6314
        %v6331 = vmul.f32 %v2340, %v6315
        %v6332 = vmul.f32 %v2340, %v6316
        %v6333 = vmul.f32 %v2340, %v6317
        %v6334 = vmul.f32 %v2340, %v6318
        %v6335 = vmul.f32 %v2340, %v6319
        %v6336 = vmul.f32 %v2340, %v6320
        %v6337 = vadd.f32 %v6321, %v1562
        %v6338 = vadd.f32 %v6322, %v1563
        %v6339 = vadd.f32 %v6323, %v1564
        %v6340 = vadd.f32 %v6324, %v1565
        %v6341 = vadd.f32 %v6325, %v1566
        %v6342 = vadd.f32 %v6326, %v1567
        %v6343 = vadd.f32 %v6327, %v1568
        %v6344 = vadd.f32 %v6328, %v1569
        %v6345 = vadd.f32 %v6329, %v1570
        %v6346 = vadd.f32 %v6330, %v1571
        %v6347 = vadd.f32 %v6331, %v1572
        %v6348 = vadd.f32 %v6332, %v1573
        %v6349 = vadd.f32 %v6333, %v1574
        %v6350 = vadd.f32 %v6334, %v1575
        %v6351 = vadd.f32 %v6335, %v1576
        %v6352 = vadd.f32 %v6336, %v1577
        %v6353 = vsel %vm775, %v6337, -inf
        %6354 = vmax.xlane.f32.xlu0 %v6353
        %v6355 = vpop.xlane.xlu0 %6354
        %v6356 = vsel %vm775, %v6338, -inf
        %6357 = vmax.xlane.f32.xlu0 %v6356
        %v6358 = vpop.xlane.xlu0 %6357
        %v6359 = vsel %vm775, %v6339, -inf
        %6360 = vmax.xlane.f32.xlu0 %v6359
        %v6361 = vpop.xlane.xlu0 %6360
        %v6362 = vsel %vm775, %v6340, -inf
        %6363 = vmax.xlane.f32.xlu0 %v6362
        %v6364 = vpop.xlane.xlu0 %6363
        %v6365 = vsel %vm775, %v6341, -inf
        %6366 = vmax.xlane.f32.xlu0 %v6365
        %v6367 = vpop.xlane.xlu0 %6366
        %v6368 = vsel %vm775, %v6342, -inf
        %6369 = vmax.xlane.f32.xlu0 %v6368
        %v6370 = vpop.xlane.xlu0 %6369
        %v6371 = vsel %vm775, %v6343, -inf
        %6372 = vmax.xlane.f32.xlu0 %v6371
        %v6373 = vpop.xlane.xlu0 %6372
        %v6374 = vsel %vm775, %v6344, -inf
        %6375 = vmax.xlane.f32.xlu0 %v6374
        %v6376 = vpop.xlane.xlu0 %6375
        %v6377 = vsel %vm775, %v6345, -inf
        %6378 = vmax.xlane.f32.xlu0 %v6377
        %v6379 = vpop.xlane.xlu0 %6378
        %v6380 = vsel %vm775, %v6346, -inf
        %6381 = vmax.xlane.f32.xlu0 %v6380
        %v6382 = vpop.xlane.xlu0 %6381
        %v6383 = vsel %vm775, %v6347, -inf
        %6384 = vmax.xlane.f32.xlu0 %v6383
        %v6385 = vpop.xlane.xlu0 %6384
        %v6386 = vsel %vm775, %v6348, -inf
        %6387 = vmax.xlane.f32.xlu0 %v6386
        %v6388 = vpop.xlane.xlu0 %6387
        %v6389 = vsel %vm775, %v6349, -inf
        %6390 = vmax.xlane.f32.xlu0 %v6389
        %v6391 = vpop.xlane.xlu0 %6390
        %v6392 = vsel %vm775, %v6350, -inf
        %6393 = vmax.xlane.f32.xlu0 %v6392
        %v6394 = vpop.xlane.xlu0 %6393
        %v6395 = vsel %vm775, %v6351, -inf
        %6396 = vmax.xlane.f32.xlu0 %v6395
        %v6397 = vpop.xlane.xlu0 %6396
        %v6398 = vsel %vm775, %v6352, -inf
        %6399 = vmax.xlane.f32.xlu0 %v6398
        %v6400 = vpop.xlane.xlu0 %6399
        %v6401 = vsub.f32 %v6337, %v6355
        %v6402 = vsub.f32 %v6338, %v6358
        %v6403 = vsub.f32 %v6339, %v6361
        %v6404 = vsub.f32 %v6340, %v6364
        %v6405 = vsub.f32 %v6341, %v6367
        %v6406 = vsub.f32 %v6342, %v6370
        %v6407 = vsub.f32 %v6343, %v6373
        %v6408 = vsub.f32 %v6344, %v6376
        %v6409 = vsub.f32 %v6345, %v6379
        %v6410 = vsub.f32 %v6346, %v6382
        %v6411 = vsub.f32 %v6347, %v6385
        %v6412 = vsub.f32 %v6348, %v6388
        %v6413 = vsub.f32 %v6349, %v6391
        %v6414 = vsub.f32 %v6350, %v6394
        %v6415 = vsub.f32 %v6351, %v6397
        %v6416 = vsub.f32 %v6352, %v6400
        %v6417 = vmul.f32 %v6401, 1.442695
        %v6418 = vpow.pop %v6417
        %v6419 = vmul.f32 %v6402, 1.442695
        %v6420 = vpow.pop %v6419
        %v6421 = vmul.f32 %v6403, 1.442695
        %v6422 = vpow.pop %v6421
        %v6423 = vmul.f32 %v6404, 1.442695
        %v6424 = vpow.pop %v6423
        %v6425 = vmul.f32 %v6405, 1.442695
        %v6426 = vpow.pop %v6425
        %v6427 = vmul.f32 %v6406, 1.442695
        %v6428 = vpow.pop %v6427
        %v6429 = vmul.f32 %v6407, 1.442695
        %v6430 = vpow.pop %v6429
        %v6431 = vmul.f32 %v6408, 1.442695
        %v6432 = vpow.pop %v6431
        %v6433 = vmul.f32 %v6409, 1.442695
        %v6434 = vpow.pop %v6433
        %v6435 = vmul.f32 %v6410, 1.442695
        %v6436 = vpow.pop %v6435
        %v6437 = vmul.f32 %v6411, 1.442695
        %v6438 = vpow.pop %v6437
        %v6439 = vmul.f32 %v6412, 1.442695
        %v6440 = vpow.pop %v6439
        %v6441 = vmul.f32 %v6413, 1.442695
        %v6442 = vpow.pop %v6441
        %v6443 = vmul.f32 %v6414, 1.442695
        %v6444 = vpow.pop %v6443
        %v6445 = vmul.f32 %v6415, 1.442695
        %v6446 = vpow.pop %v6445
        %v6447 = vmul.f32 %v6416, 1.442695
        %v6448 = vpow.pop %v6447
        %v6449 = vsel %vm775, %v6418, 0.0
        %6450 = vadd.xlane.f32.xlu0 %v6449
        %v6451 = vpop.xlane.xlu0 %6450
        %v6452 = vsel %vm775, %v6420, 0.0
        %6453 = vadd.xlane.f32.xlu0 %v6452
        %v6454 = vpop.xlane.xlu0 %6453
        %v6455 = vsel %vm775, %v6422, 0.0
        %6456 = vadd.xlane.f32.xlu0 %v6455
        %v6457 = vpop.xlane.xlu0 %6456
        %v6458 = vsel %vm775, %v6424, 0.0
        %6459 = vadd.xlane.f32.xlu0 %v6458
        %v6460 = vpop.xlane.xlu0 %6459
        %v6461 = vsel %vm775, %v6426, 0.0
        %6462 = vadd.xlane.f32.xlu0 %v6461
        %v6463 = vpop.xlane.xlu0 %6462
        %v6464 = vsel %vm775, %v6428, 0.0
        %6465 = vadd.xlane.f32.xlu0 %v6464
        %v6466 = vpop.xlane.xlu0 %6465
        %v6467 = vsel %vm775, %v6430, 0.0
        %6468 = vadd.xlane.f32.xlu0 %v6467
        %v6469 = vpop.xlane.xlu0 %6468
        %v6470 = vsel %vm775, %v6432, 0.0
        %6471 = vadd.xlane.f32.xlu0 %v6470
        %v6472 = vpop.xlane.xlu0 %6471
        %v6473 = vsel %vm775, %v6434, 0.0
        %6474 = vadd.xlane.f32.xlu0 %v6473
        %v6475 = vpop.xlane.xlu0 %6474
        %v6476 = vsel %vm775, %v6436, 0.0
        %6477 = vadd.xlane.f32.xlu0 %v6476
        %v6478 = vpop.xlane.xlu0 %6477
        %v6479 = vsel %vm775, %v6438, 0.0
        %6480 = vadd.xlane.f32.xlu0 %v6479
        %v6481 = vpop.xlane.xlu0 %6480
        %v6482 = vsel %vm775, %v6440, 0.0
        %6483 = vadd.xlane.f32.xlu0 %v6482
        %v6484 = vpop.xlane.xlu0 %6483
        %v6485 = vsel %vm775, %v6442, 0.0
        %6486 = vadd.xlane.f32.xlu0 %v6485
        %v6487 = vpop.xlane.xlu0 %6486
        %v6488 = vsel %vm775, %v6444, 0.0
        %6489 = vadd.xlane.f32.xlu0 %v6488
        %v6490 = vpop.xlane.xlu0 %6489
        %v6491 = vsel %vm775, %v6446, 0.0
        %6492 = vadd.xlane.f32.xlu0 %v6491
        %v6493 = vpop.xlane.xlu0 %6492
        %v6494 = vsel %vm775, %v6448, 0.0
        %6495 = vadd.xlane.f32.xlu0 %v6494
        %v6496 = vpop.xlane.xlu0 %6495
        %v6497 = vrcp.pop %v6451
        %v6498 = vrcp.pop %v6454
        %v6499 = vrcp.pop %v6457
        %v6500 = vrcp.pop %v6460
        %v6501 = vrcp.pop %v6463
        %v6502 = vrcp.pop %v6466
        %v6503 = vrcp.pop %v6469
        %v6504 = vrcp.pop %v6472
        %v6505 = vrcp.pop %v6475
        %v6506 = vrcp.pop %v6478
        %v6507 = vrcp.pop %v6481
        %v6508 = vrcp.pop %v6484
        %v6509 = vrcp.pop %v6487
        %v6510 = vrcp.pop %v6490
        %v6511 = vrcp.pop %v6493
        %v6512 = vrcp.pop %v6496
        %v6513 = vmul.f32 %v6418, %v6497
        %v6514 = vmul.f32 %v6420, %v6498
        %v6515 = vmul.f32 %v6422, %v6499
        %v6516 = vmul.f32 %v6424, %v6500
        %v6517 = vmul.f32 %v6426, %v6501
        %v6518 = vmul.f32 %v6428, %v6502
        %v6519 = vmul.f32 %v6430, %v6503
        %v6520 = vmul.f32 %v6432, %v6504
        %v6521 = vmul.f32 %v6434, %v6505
        %v6522 = vmul.f32 %v6436, %v6506
        %v6523 = vmul.f32 %v6438, %v6507
        %v6524 = vmul.f32 %v6440, %v6508
        %v6525 = vmul.f32 %v6442, %v6509
        %v6526 = vmul.f32 %v6444, %v6510
        %v6527 = vmul.f32 %v6446, %v6511
        %v6528 = vmul.f32 %v6448, %v6512
        %6545 = vrot.lane.b32.xlu0 %v6513, 48
        %v6546 = vpop.permute.xlu0 %6545
        %6547 = vrot.lane.b32.xlu0 %v6514, 48
        %v6548 = vpop.permute.xlu0 %6547
        %6549 = vrot.lane.b32.xlu0 %v6515, 48
        %v6550 = vpop.permute.xlu0 %6549
        %6551 = vrot.lane.b32.xlu0 %v6516, 48
        %v6552 = vpop.permute.xlu0 %6551
        %6553 = vrot.lane.b32.xlu0 %v6517, 48
        %v6554 = vpop.permute.xlu0 %6553
        %6555 = vrot.lane.b32.xlu0 %v6518, 48
        %v6556 = vpop.permute.xlu0 %6555
        %6557 = vrot.lane.b32.xlu0 %v6519, 48
        %v6558 = vpop.permute.xlu0 %6557
        %6559 = vrot.lane.b32.xlu0 %v6520, 48
        %v6560 = vpop.permute.xlu0 %6559
        %6561 = vrot.lane.b32.xlu0 %v6521, 48
        %v6562 = vpop.permute.xlu0 %6561
        %6563 = vrot.lane.b32.xlu0 %v6522, 48
        %v6564 = vpop.permute.xlu0 %6563
        %6565 = vrot.lane.b32.xlu0 %v6523, 48
        %v6566 = vpop.permute.xlu0 %6565
        %6567 = vrot.lane.b32.xlu0 %v6524, 48
        %v6568 = vpop.permute.xlu0 %6567
        %6569 = vrot.lane.b32.xlu0 %v6525, 48
        %v6570 = vpop.permute.xlu0 %6569
        %6571 = vrot.lane.b32.xlu0 %v6526, 48
        %v6572 = vpop.permute.xlu0 %6571
        %6573 = vrot.lane.b32.xlu0 %v6527, 48
        %v6574 = vpop.permute.xlu0 %6573
        %6575 = vrot.lane.b32.xlu0 %v6528, 48
        %v6576 = vpop.permute.xlu0 %6575
        %vm6593 = vcmask 523648
        %6594 = vst.msk [vmem:[%s664] sm:$0xff] %vm6593, %v6546
        %6595 = vst.msk [vmem:[%s664 + $0x8] sm:$0xff] %vm6593, %v6548
        %6596 = vst.msk [vmem:[%s664 + $0x10] sm:$0xff] %vm6593, %v6550
        %6597 = vst.msk [vmem:[%s664 + $0x18] sm:$0xff] %vm6593, %v6552
        %6598 = vst.msk [vmem:[%s664 + $0x20] sm:$0xff] %vm6593, %v6554
        %6599 = vst.msk [vmem:[%s664 + $0x28] sm:$0xff] %vm6593, %v6556
        %6600 = vst.msk [vmem:[%s664 + $0x30] sm:$0xff] %vm6593, %v6558
        %6601 = vst.msk [vmem:[%s664 + $0x38] sm:$0xff] %vm6593, %v6560
        %6602 = vst.msk [vmem:[%s664 + $0x40] sm:$0xff] %vm6593, %v6562
        %6603 = vst.msk [vmem:[%s664 + $0x48] sm:$0xff] %vm6593, %v6564
        %6604 = vst.msk [vmem:[%s664 + $0x50] sm:$0xff] %vm6593, %v6566
        %6605 = vst.msk [vmem:[%s664 + $0x58] sm:$0xff] %vm6593, %v6568
        %6606 = vst.msk [vmem:[%s664 + $0x60] sm:$0xff] %vm6593, %v6570
        %6607 = vst.msk [vmem:[%s664 + $0x68] sm:$0xff] %vm6593, %v6572
        %6608 = vst.msk [vmem:[%s664 + $0x70] sm:$0xff] %vm6593, %v6574
        %6609 = vst.msk [vmem:[%s664 + $0x78] sm:$0xff] %vm6593, %v6576
        %v6610 = vpack.c.bf16 %v6514, %v6513
        %v6611 = vpack.c.bf16 %v6516, %v6515
        %v6612 = vpack.c.bf16 %v6518, %v6517
        %v6613 = vpack.c.bf16 %v6520, %v6519
        %v6614 = vpack.c.bf16 %v6522, %v6521
        %v6615 = vpack.c.bf16 %v6524, %v6523
        %v6616 = vpack.c.bf16 %v6526, %v6525
        %v6617 = vpack.c.bf16 %v6528, %v6527
        %6618 = vrot.lane.b32.xlu0 %v1723, 40
        %v6619 = vpop.permute.xlu0 %6618
        %v6622 = vsel %vm775, %v6610, 0
        %6624 = vmatprep.subr.bf16.mxu0 0
        %6625 = vmatpush1.bf16.msra.mxu0 %v6619
        %6626 = vmatprep.subr.bf16.mxu0 0
        %6627 = vmatpush1.bf16.msra.mxu0 0
        %6628 = vmatprep.subr.bf16.mxu0 0
        %6629 = vmatpush1.bf16.msra.mxu0 0
        %6630 = vmatprep.subr.bf16.mxu0 0
        %6631 = vmatpush1.bf16.msra.mxu0 0
        %6632 = vmatprep.subr.bf16.mxu0 0
        %6633 = vmatpush1.bf16.msra.mxu0 0
        %6634 = vmatprep.subr.bf16.mxu0 0
        %6635 = vmatpush1.bf16.msra.mxu0 0
        %6636 = vmatprep.subr.bf16.mxu0 0
        %6637 = vmatpush1.bf16.msra.mxu0 0
        %6638 = vmatprep.subr.bf16.mxu0 0
        %6639 = vmatpush1.bf16.msra.mxu0 0
        %6640 = vmatprep.subr.bf16.mxu0 0
        %6641 = vmatpush1.bf16.msra.mxu0 0
        %6642 = vmatprep.subr.bf16.mxu0 0
        %6643 = vmatpush1.bf16.msra.mxu0 0
        %6644 = vmatprep.subr.bf16.mxu0 0
        %6645 = vmatpush1.bf16.msra.mxu0 0
        %6646 = vmatprep.subr.bf16.mxu0 0
        %6647 = vmatpush1.bf16.msra.mxu0 0
        %6648 = vmatprep.subr.bf16.mxu0 0
        %6649 = vmatpush1.bf16.msra.mxu0 0
        %6650 = vmatprep.subr.bf16.mxu0 0
        %6651 = vmatpush1.bf16.msra.mxu0 0
        %6652 = vmatprep.subr.bf16.mxu0 0
        %6653 = vmatpush1.bf16.msra.mxu0 0
        %6654 = vmatprep.subr.bf16.mxu0 0
        %6655 = vmatpush1.bf16.msra.mxu0 0
        %6656 = vmatprep.mubr.bf16.mxu0 0
        %6657 = vmatmul.mubr.bf16.gmra.mrb[0].mxu0 %v6622
        %v6658 = vpop.f32.mrb[0].mxu0
        %v6659 = vadd.f32 0.0, %v6658
        %v6660 = vpop.f32.mrb[0].mxu0
        %v6661 = vpop.f32.mrb[0].mxu0
        %v6662 = vadd.f32 0.0, %v6661
        %v6663 = vpop.f32.mrb[0].mxu0
        %6664 = vdwg.mxu0
        %6665 = vrot.lane.b32.xlu0 %v1724, 40
        %v6666 = vpop.permute.xlu0 %6665
        %v6669 = vsel %vm775, %v6611, 0
        %6671 = vmatprep.subr.bf16.mxu0 0
        %6672 = vmatpush1.bf16.msra.mxu0 %v6666
        %6673 = vmatprep.subr.bf16.mxu0 0
        %6674 = vmatpush1.bf16.msra.mxu0 0
        %6675 = vmatprep.subr.bf16.mxu0 0
        %6676 = vmatpush1.bf16.msra.mxu0 0
        %6677 = vmatprep.subr.bf16.mxu0 0
        %6678 = vmatpush1.bf16.msra.mxu0 0
        %6679 = vmatprep.subr.bf16.mxu0 0
        %6680 = vmatpush1.bf16.msra.mxu0 0
        %6681 = vmatprep.subr.bf16.mxu0 0
        %6682 = vmatpush1.bf16.msra.mxu0 0
        %6683 = vmatprep.subr.bf16.mxu0 0
        %6684 = vmatpush1.bf16.msra.mxu0 0
        %6685 = vmatprep.subr.bf16.mxu0 0
        %6686 = vmatpush1.bf16.msra.mxu0 0
        %6687 = vmatprep.subr.bf16.mxu0 0
        %6688 = vmatpush1.bf16.msra.mxu0 0
        %6689 = vmatprep.subr.bf16.mxu0 0
        %6690 = vmatpush1.bf16.msra.mxu0 0
        %6691 = vmatprep.subr.bf16.mxu0 0
        %6692 = vmatpush1.bf16.msra.mxu0 0
        %6693 = vmatprep.subr.bf16.mxu0 0
        %6694 = vmatpush1.bf16.msra.mxu0 0
        %6695 = vmatprep.subr.bf16.mxu0 0
        %6696 = vmatpush1.bf16.msra.mxu0 0
        %6697 = vmatprep.subr.bf16.mxu0 0
        %6698 = vmatpush1.bf16.msra.mxu0 0
        %6699 = vmatprep.subr.bf16.mxu0 0
        %6700 = vmatpush1.bf16.msra.mxu0 0
        %6701 = vmatprep.subr.bf16.mxu0 0
        %6702 = vmatpush1.bf16.msra.mxu0 0
        %6703 = vmatprep.mubr.bf16.mxu0 0
        %6704 = vmatmul.mubr.bf16.gmra.mrb[0].mxu0 %v6669
        %v6705 = vpop.f32.mrb[0].mxu0
        %v6706 = vadd.f32 0.0, %v6705
        %v6707 = vpop.f32.mrb[0].mxu0
        %v6708 = vpop.f32.mrb[0].mxu0
        %v6709 = vadd.f32 0.0, %v6708
        %v6710 = vpop.f32.mrb[0].mxu0
        %6711 = vdwg.mxu0
        %6712 = vrot.lane.b32.xlu0 %v1725, 40
        %v6713 = vpop.permute.xlu0 %6712
        %v6716 = vsel %vm775, %v6612, 0
        %6718 = vmatprep.subr.bf16.mxu0 0
        %6719 = vmatpush1.bf16.msra.mxu0 %v6713
        %6720 = vmatprep.subr.bf16.mxu0 0
        %6721 = vmatpush1.bf16.msra.mxu0 0
        %6722 = vmatprep.subr.bf16.mxu0 0
        %6723 = vmatpush1.bf16.msra.mxu0 0
        %6724 = vmatprep.subr.bf16.mxu0 0
        %6725 = vmatpush1.bf16.msra.mxu0 0
        %6726 = vmatprep.subr.bf16.mxu0 0
        %6727 = vmatpush1.bf16.msra.mxu0 0
        %6728 = vmatprep.subr.bf16.mxu0 0
        %6729 = vmatpush1.bf16.msra.mxu0 0
        %6730 = vmatprep.subr.bf16.mxu0 0
        %6731 = vmatpush1.bf16.msra.mxu0 0
        %6732 = vmatprep.subr.bf16.mxu0 0
        %6733 = vmatpush1.bf16.msra.mxu0 0
        %6734 = vmatprep.subr.bf16.mxu0 0
        %6735 = vmatpush1.bf16.msra.mxu0 0
        %6736 = vmatprep.subr.bf16.mxu0 0
        %6737 = vmatpush1.bf16.msra.mxu0 0
        %6738 = vmatprep.subr.bf16.mxu0 0
        %6739 = vmatpush1.bf16.msra.mxu0 0
        %6740 = vmatprep.subr.bf16.mxu0 0
        %6741 = vmatpush1.bf16.msra.mxu0 0
        %6742 = vmatprep.subr.bf16.mxu0 0
        %6743 = vmatpush1.bf16.msra.mxu0 0
        %6744 = vmatprep.subr.bf16.mxu0 0
        %6745 = vmatpush1.bf16.msra.mxu0 0
        %6746 = vmatprep.subr.bf16.mxu0 0
        %6747 = vmatpush1.bf16.msra.mxu0 0
        %6748 = vmatprep.subr.bf16.mxu0 0
        %6749 = vmatpush1.bf16.msra.mxu0 0
        %6750 = vmatprep.mubr.bf16.mxu0 0
        %6751 = vmatmul.mubr.bf16.gmra.mrb[0].mxu0 %v6716
        %v6752 = vpop.f32.mrb[0].mxu0
        %v6753 = vadd.f32 0.0, %v6752
        %v6754 = vpop.f32.mrb[0].mxu0
        %v6755 = vpop.f32.mrb[0].mxu0
        %v6756 = vadd.f32 0.0, %v6755
        %v6757 = vpop.f32.mrb[0].mxu0
        %6758 = vdwg.mxu0
        %6759 = vrot.lane.b32.xlu0 %v1726, 40
        %v6760 = vpop.permute.xlu0 %6759
        %v6763 = vsel %vm775, %v6613, 0
        %6765 = vmatprep.subr.bf16.mxu0 0
        %6766 = vmatpush1.bf16.msra.mxu0 %v6760
        %6767 = vmatprep.subr.bf16.mxu0 0
        %6768 = vmatpush1.bf16.msra.mxu0 0
        %6769 = vmatprep.subr.bf16.mxu0 0
        %6770 = vmatpush1.bf16.msra.mxu0 0
        %6771 = vmatprep.subr.bf16.mxu0 0
        %6772 = vmatpush1.bf16.msra.mxu0 0
        %6773 = vmatprep.subr.bf16.mxu0 0
        %6774 = vmatpush1.bf16.msra.mxu0 0
        %6775 = vmatprep.subr.bf16.mxu0 0
        %6776 = vmatpush1.bf16.msra.mxu0 0
        %6777 = vmatprep.subr.bf16.mxu0 0
        %6778 = vmatpush1.bf16.msra.mxu0 0
        %6779 = vmatprep.subr.bf16.mxu0 0
        %6780 = vmatpush1.bf16.msra.mxu0 0
        %6781 = vmatprep.subr.bf16.mxu0 0
        %6782 = vmatpush1.bf16.msra.mxu0 0
        %6783 = vmatprep.subr.bf16.mxu0 0
        %6784 = vmatpush1.bf16.msra.mxu0 0
        %6785 = vmatprep.subr.bf16.mxu0 0
        %6786 = vmatpush1.bf16.msra.mxu0 0
        %6787 = vmatprep.subr.bf16.mxu0 0
        %6788 = vmatpush1.bf16.msra.mxu0 0
        %6789 = vmatprep.subr.bf16.mxu0 0
        %6790 = vmatpush1.bf16.msra.mxu0 0
        %6791 = vmatprep.subr.bf16.mxu0 0
        %6792 = vmatpush1.bf16.msra.mxu0 0
        %6793 = vmatprep.subr.bf16.mxu0 0
        %6794 = vmatpush1.bf16.msra.mxu0 0
        %6795 = vmatprep.subr.bf16.mxu0 0
        %6796 = vmatpush1.bf16.msra.mxu0 0
        %6797 = vmatprep.mubr.bf16.mxu0 0
        %6798 = vmatmul.mubr.bf16.gmra.mrb[0].mxu0 %v6763
        %v6799 = vpop.f32.mrb[0].mxu0
        %v6800 = vadd.f32 0.0, %v6799
        %v6801 = vpop.f32.mrb[0].mxu0
        %v6802 = vpop.f32.mrb[0].mxu0
        %v6803 = vadd.f32 0.0, %v6802
        %v6804 = vpop.f32.mrb[0].mxu0
        %6805 = vdwg.mxu0
        %6806 = vrot.lane.b32.xlu0 %v1727, 40
        %v6807 = vpop.permute.xlu0 %6806
        %v6810 = vsel %vm775, %v6614, 0
        %6812 = vmatprep.subr.bf16.mxu0 0
        %6813 = vmatpush1.bf16.msra.mxu0 %v6807
        %6814 = vmatprep.subr.bf16.mxu0 0
        %6815 = vmatpush1.bf16.msra.mxu0 0
        %6816 = vmatprep.subr.bf16.mxu0 0
        %6817 = vmatpush1.bf16.msra.mxu0 0
        %6818 = vmatprep.subr.bf16.mxu0 0
        %6819 = vmatpush1.bf16.msra.mxu0 0
        %6820 = vmatprep.subr.bf16.mxu0 0
        %6821 = vmatpush1.bf16.msra.mxu0 0
        %6822 = vmatprep.subr.bf16.mxu0 0
        %6823 = vmatpush1.bf16.msra.mxu0 0
        %6824 = vmatprep.subr.bf16.mxu0 0
        %6825 = vmatpush1.bf16.msra.mxu0 0
        %6826 = vmatprep.subr.bf16.mxu0 0
        %6827 = vmatpush1.bf16.msra.mxu0 0
        %6828 = vmatprep.subr.bf16.mxu0 0
        %6829 = vmatpush1.bf16.msra.mxu0 0
        %6830 = vmatprep.subr.bf16.mxu0 0
        %6831 = vmatpush1.bf16.msra.mxu0 0
        %6832 = vmatprep.subr.bf16.mxu0 0
        %6833 = vmatpush1.bf16.msra.mxu0 0
        %6834 = vmatprep.subr.bf16.mxu0 0
        %6835 = vmatpush1.bf16.msra.mxu0 0
        %6836 = vmatprep.subr.bf16.mxu0 0
        %6837 = vmatpush1.bf16.msra.mxu0 0
        %6838 = vmatprep.subr.bf16.mxu0 0
        %6839 = vmatpush1.bf16.msra.mxu0 0
        %6840 = vmatprep.subr.bf16.mxu0 0
        %6841 = vmatpush1.bf16.msra.mxu0 0
        %6842 = vmatprep.subr.bf16.mxu0 0
        %6843 = vmatpush1.bf16.msra.mxu0 0
        %6844 = vmatprep.mubr.bf16.mxu0 0
        %6845 = vmatmul.mubr.bf16.gmra.mrb[0].mxu0 %v6810
        %v6846 = vpop.f32.mrb[0].mxu0
        %v6847 = vadd.f32 0.0, %v6846
        %v6848 = vpop.f32.mrb[0].mxu0
        %v6849 = vpop.f32.mrb[0].mxu0
        %v6850 = vadd.f32 0.0, %v6849
        %v6851 = vpop.f32.mrb[0].mxu0
        %6852 = vdwg.mxu0
        %6853 = vrot.lane.b32.xlu0 %v1728, 40
        %v6854 = vpop.permute.xlu0 %6853
        %v6857 = vsel %vm775, %v6615, 0
        %6859 = vmatprep.subr.bf16.mxu0 0
        %6860 = vmatpush1.bf16.msra.mxu0 %v6854
        %6861 = vmatprep.subr.bf16.mxu0 0
        %6862 = vmatpush1.bf16.msra.mxu0 0
        %6863 = vmatprep.subr.bf16.mxu0 0
        %6864 = vmatpush1.bf16.msra.mxu0 0
        %6865 = vmatprep.subr.bf16.mxu0 0
        %6866 = vmatpush1.bf16.msra.mxu0 0
        %6867 = vmatprep.subr.bf16.mxu0 0
        %6868 = vmatpush1.bf16.msra.mxu0 0
        %6869 = vmatprep.subr.bf16.mxu0 0
        %6870 = vmatpush1.bf16.msra.mxu0 0
        %6871 = vmatprep.subr.bf16.mxu0 0
        %6872 = vmatpush1.bf16.msra.mxu0 0
        %6873 = vmatprep.subr.bf16.mxu0 0
        %6874 = vmatpush1.bf16.msra.mxu0 0
        %6875 = vmatprep.subr.bf16.mxu0 0
        %6876 = vmatpush1.bf16.msra.mxu0 0
        %6877 = vmatprep.subr.bf16.mxu0 0
        %6878 = vmatpush1.bf16.msra.mxu0 0
        %6879 = vmatprep.subr.bf16.mxu0 0
        %6880 = vmatpush1.bf16.msra.mxu0 0
        %6881 = vmatprep.subr.bf16.mxu0 0
        %6882 = vmatpush1.bf16.msra.mxu0 0
        %6883 = vmatprep.subr.bf16.mxu0 0
        %6884 = vmatpush1.bf16.msra.mxu0 0
        %6885 = vmatprep.subr.bf16.mxu0 0
        %6886 = vmatpush1.bf16.msra.mxu0 0
        %6887 = vmatprep.subr.bf16.mxu0 0
        %6888 = vmatpush1.bf16.msra.mxu0 0
        %6889 = vmatprep.subr.bf16.mxu0 0
        %6890 = vmatpush1.bf16.msra.mxu0 0
        %6891 = vmatprep.mubr.bf16.mxu0 0
        %6892 = vmatmul.mubr.bf16.gmra.mrb[0].mxu0 %v6857
        %v6893 = vpop.f32.mrb[0].mxu0
        %v6894 = vadd.f32 0.0, %v6893
        %v6895 = vpop.f32.mrb[0].mxu0
        %v6896 = vpop.f32.mrb[0].mxu0
        %v6897 = vadd.f32 0.0, %v6896
        %v6898 = vpop.f32.mrb[0].mxu0
        %6899 = vdwg.mxu0
        %6900 = vrot.lane.b32.xlu0 %v1729, 40
        %v6901 = vpop.permute.xlu0 %6900
        %v6904 = vsel %vm775, %v6616, 0
        %6906 = vmatprep.subr.bf16.mxu0 0
        %6907 = vmatpush1.bf16.msra.mxu0 %v6901
        %6908 = vmatprep.subr.bf16.mxu0 0
        %6909 = vmatpush1.bf16.msra.mxu0 0
        %6910 = vmatprep.subr.bf16.mxu0 0
        %6911 = vmatpush1.bf16.msra.mxu0 0
        %6912 = vmatprep.subr.bf16.mxu0 0
        %6913 = vmatpush1.bf16.msra.mxu0 0
        %6914 = vmatprep.subr.bf16.mxu0 0
        %6915 = vmatpush1.bf16.msra.mxu0 0
        %6916 = vmatprep.subr.bf16.mxu0 0
        %6917 = vmatpush1.bf16.msra.mxu0 0
        %6918 = vmatprep.subr.bf16.mxu0 0
        %6919 = vmatpush1.bf16.msra.mxu0 0
        %6920 = vmatprep.subr.bf16.mxu0 0
        %6921 = vmatpush1.bf16.msra.mxu0 0
        %6922 = vmatprep.subr.bf16.mxu0 0
        %6923 = vmatpush1.bf16.msra.mxu0 0
        %6924 = vmatprep.subr.bf16.mxu0 0
        %6925 = vmatpush1.bf16.msra.mxu0 0
        %6926 = vmatprep.subr.bf16.mxu0 0
        %6927 = vmatpush1.bf16.msra.mxu0 0
        %6928 = vmatprep.subr.bf16.mxu0 0
        %6929 = vmatpush1.bf16.msra.mxu0 0
        %6930 = vmatprep.subr.bf16.mxu0 0
        %6931 = vmatpush1.bf16.msra.mxu0 0
        %6932 = vmatprep.subr.bf16.mxu0 0
        %6933 = vmatpush1.bf16.msra.mxu0 0
        %6934 = vmatprep.subr.bf16.mxu0 0
        %6935 = vmatpush1.bf16.msra.mxu0 0
        %6936 = vmatprep.subr.bf16.mxu0 0
        %6937 = vmatpush1.bf16.msra.mxu0 0
        %6938 = vmatprep.mubr.bf16.mxu0 0
        %6939 = vmatmul.mubr.bf16.gmra.mrb[0].mxu0 %v6904
        %v6940 = vpop.f32.mrb[0].mxu0
        %v6941 = vadd.f32 0.0, %v6940
        %v6942 = vpop.f32.mrb[0].mxu0
        %v6943 = vpop.f32.mrb[0].mxu0
        %v6944 = vadd.f32 0.0, %v6943
        %v6945 = vpop.f32.mrb[0].mxu0
        %6946 = vdwg.mxu0
        %6947 = vrot.lane.b32.xlu0 %v1730, 40
        %v6948 = vpop.permute.xlu0 %6947
        %v6951 = vsel %vm775, %v6617, 0
        %6953 = vmatprep.subr.bf16.mxu0 0
        %6954 = vmatpush1.bf16.msra.mxu0 %v6948
        %6955 = vmatprep.subr.bf16.mxu0 0
        %6956 = vmatpush1.bf16.msra.mxu0 0
        %6957 = vmatprep.subr.bf16.mxu0 0
        %6958 = vmatpush1.bf16.msra.mxu0 0
        %6959 = vmatprep.subr.bf16.mxu0 0
        %6960 = vmatpush1.bf16.msra.mxu0 0
        %6961 = vmatprep.subr.bf16.mxu0 0
        %6962 = vmatpush1.bf16.msra.mxu0 0
        %6963 = vmatprep.subr.bf16.mxu0 0
        %6964 = vmatpush1.bf16.msra.mxu0 0
        %6965 = vmatprep.subr.bf16.mxu0 0
        %6966 = vmatpush1.bf16.msra.mxu0 0
        %6967 = vmatprep.subr.bf16.mxu0 0
        %6968 = vmatpush1.bf16.msra.mxu0 0
        %6969 = vmatprep.subr.bf16.mxu0 0
        %6970 = vmatpush1.bf16.msra.mxu0 0
        %6971 = vmatprep.subr.bf16.mxu0 0
        %6972 = vmatpush1.bf16.msra.mxu0 0
        %6973 = vmatprep.subr.bf16.mxu0 0
        %6974 = vmatpush1.bf16.msra.mxu0 0
        %6975 = vmatprep.subr.bf16.mxu0 0
        %6976 = vmatpush1.bf16.msra.mxu0 0
        %6977 = vmatprep.subr.bf16.mxu0 0
        %6978 = vmatpush1.bf16.msra.mxu0 0
        %6979 = vmatprep.subr.bf16.mxu0 0
        %6980 = vmatpush1.bf16.msra.mxu0 0
        %6981 = vmatprep.subr.bf16.mxu0 0
        %6982 = vmatpush1.bf16.msra.mxu0 0
        %6983 = vmatprep.subr.bf16.mxu0 0
        %6984 = vmatpush1.bf16.msra.mxu0 0
        %6985 = vmatprep.mubr.bf16.mxu0 0
        %6986 = vmatmul.mubr.bf16.gmra.mrb[0].mxu0 %v6951
        %v6987 = vpop.f32.mrb[0].mxu0
        %v6988 = vadd.f32 0.0, %v6987
        %v6989 = vpop.f32.mrb[0].mxu0
        %v6990 = vpop.f32.mrb[0].mxu0
        %v6991 = vadd.f32 0.0, %v6990
        %v6992 = vpop.f32.mrb[0].mxu0
        %6993 = vdwg.mxu0
        %7010 = vrot.lane.b32.xlu0 %v6659, 24
        %v7011 = vpop.permute.xlu0 %7010
        %7012 = vrot.lane.b32.xlu0 %v6662, 24
        %v7013 = vpop.permute.xlu0 %7012
        %7014 = vrot.lane.b32.xlu0 %v6706, 24
        %v7015 = vpop.permute.xlu0 %7014
        %7016 = vrot.lane.b32.xlu0 %v6709, 24
        %v7017 = vpop.permute.xlu0 %7016
        %7018 = vrot.lane.b32.xlu0 %v6753, 24
        %v7019 = vpop.permute.xlu0 %7018
        %7020 = vrot.lane.b32.xlu0 %v6756, 24
        %v7021 = vpop.permute.xlu0 %7020
        %7022 = vrot.lane.b32.xlu0 %v6800, 24
        %v7023 = vpop.permute.xlu0 %7022
        %7024 = vrot.lane.b32.xlu0 %v6803, 24
        %v7025 = vpop.permute.xlu0 %7024
        %7026 = vrot.lane.b32.xlu0 %v6847, 24
        %v7027 = vpop.permute.xlu0 %7026
        %7028 = vrot.lane.b32.xlu0 %v6850, 24
        %v7029 = vpop.permute.xlu0 %7028
        %7030 = vrot.lane.b32.xlu0 %v6894, 24
        %v7031 = vpop.permute.xlu0 %7030
        %7032 = vrot.lane.b32.xlu0 %v6897, 24
        %v7033 = vpop.permute.xlu0 %7032
        %7034 = vrot.lane.b32.xlu0 %v6941, 24
        %v7035 = vpop.permute.xlu0 %7034
        %7036 = vrot.lane.b32.xlu0 %v6944, 24
        %v7037 = vpop.permute.xlu0 %7036
        %7038 = vrot.lane.b32.xlu0 %v6988, 24
        %v7039 = vpop.permute.xlu0 %7038
        %7040 = vrot.lane.b32.xlu0 %v6991, 24
        %v7041 = vpop.permute.xlu0 %7040
        %vm7058 = vcmask 261312
        %7059 = vst.msk [vmem:[#allocation2] sm:$0xff] %vm7058, %v7011
        %7060 = vst.msk [vmem:[#allocation2 + $0x8] sm:$0xff] %vm7058, %v7013
        %7061 = vst.msk [vmem:[#allocation2 + $0x10] sm:$0xff] %vm7058, %v7015
        %7062 = vst.msk [vmem:[#allocation2 + $0x18] sm:$0xff] %vm7058, %v7017
        %7063 = vst.msk [vmem:[#allocation2 + $0x20] sm:$0xff] %vm7058, %v7019
        %7064 = vst.msk [vmem:[#allocation2 + $0x28] sm:$0xff] %vm7058, %v7021
        %7065 = vst.msk [vmem:[#allocation2 + $0x30] sm:$0xff] %vm7058, %v7023
        %7066 = vst.msk [vmem:[#allocation2 + $0x38] sm:$0xff] %vm7058, %v7025
        %7067 = vst.msk [vmem:[#allocation2 + $0x40] sm:$0xff] %vm7058, %v7027
        %7068 = vst.msk [vmem:[#allocation2 + $0x48] sm:$0xff] %vm7058, %v7029
        %7069 = vst.msk [vmem:[#allocation2 + $0x50] sm:$0xff] %vm7058, %v7031
        %7070 = vst.msk [vmem:[#allocation2 + $0x58] sm:$0xff] %vm7058, %v7033
        %7071 = vst.msk [vmem:[#allocation2 + $0x60] sm:$0xff] %vm7058, %v7035
        %7072 = vst.msk [vmem:[#allocation2 + $0x68] sm:$0xff] %vm7058, %v7037
        %7073 = vst.msk [vmem:[#allocation2 + $0x70] sm:$0xff] %vm7058, %v7039
        %7074 = vst.msk [vmem:[#allocation2 + $0x78] sm:$0xff] %vm7058, %v7041
        %v7075 = vld [vmem:[#allocation2] sm:$0xff]
        %v7076 = vld [vmem:[#allocation2 + $0x8] sm:$0xff]
        %v7077 = vld [vmem:[#allocation2 + $0x10] sm:$0xff]
        %v7078 = vld [vmem:[#allocation2 + $0x18] sm:$0xff]
        %v7079 = vld [vmem:[#allocation2 + $0x20] sm:$0xff]
        %v7080 = vld [vmem:[#allocation2 + $0x28] sm:$0xff]
        %v7081 = vld [vmem:[#allocation2 + $0x30] sm:$0xff]
        %v7082 = vld [vmem:[#allocation2 + $0x38] sm:$0xff]
        %v7083 = vld [vmem:[#allocation2 + $0x40] sm:$0xff]
        %v7084 = vld [vmem:[#allocation2 + $0x48] sm:$0xff]
        %v7085 = vld [vmem:[#allocation2 + $0x50] sm:$0xff]
        %v7086 = vld [vmem:[#allocation2 + $0x58] sm:$0xff]
        %v7087 = vld [vmem:[#allocation2 + $0x60] sm:$0xff]
        %v7088 = vld [vmem:[#allocation2 + $0x68] sm:$0xff]
        %v7089 = vld [vmem:[#allocation2 + $0x70] sm:$0xff]
        %v7090 = vld [vmem:[#allocation2 + $0x78] sm:$0xff]
        %v7091 = vpack.c.bf16 %v7076, %v7075
        %v7092 = vpack.c.bf16 %v7078, %v7077
        %v7093 = vpack.c.bf16 %v7080, %v7079
        %v7094 = vpack.c.bf16 %v7082, %v7081
        %v7095 = vpack.c.bf16 %v7084, %v7083
        %v7096 = vpack.c.bf16 %v7086, %v7085
        %v7097 = vpack.c.bf16 %v7088, %v7087
        %v7098 = vpack.c.bf16 %v7090, %v7089
        %v7099 = vld [vmem:[%s10] sm:$0xf]
        %v7100 = vld [vmem:[%s10 + $0x4] sm:$0xf]
        %v7101 = vld [vmem:[%s10 + $0x8] sm:$0xf]
        %v7102 = vld [vmem:[%s10 + $0xc] sm:$0xf]
        %v7107 = vunpack.c.l.b16 %v7099
        %v7108 = vunpack.c.l.b16 %v7100
        %v7109 = vunpack.c.l.b16 %v7101
        %v7110 = vunpack.c.l.b16 %v7102
        %v7111 = vpack.c.b16 %v7108, %v7107
        %v7112 = vpack.c.b16 %v7110, %v7109
        %v7116 = vsel %vm933, %v7091, 0
        %v7119 = vsel %vm933, %v7092, 0
        %v7122 = vsel %vm933, %v7093, 0
        %v7125 = vsel %vm933, %v7094, 0
        %v7128 = vsel %vm933, %v7095, 0
        %v7131 = vsel %vm933, %v7096, 0
        %v7134 = vsel %vm933, %v7097, 0
        %v7137 = vsel %vm933, %v7098, 0
        %7139 = vmatprep.subr.bf16.mxu0 0
        %7140 = vmatpush1.bf16.msra.mxu0 %v7111
        %7141 = vmatprep.subr.bf16.mxu0 0
        %7142 = vmatpush1.bf16.msra.mxu0 %v7112
        %7143 = vmatprep.subr.bf16.mxu0 0
        %7144 = vmatpush1.bf16.msra.mxu0 0
        %7145 = vmatprep.subr.bf16.mxu0 0
        %7146 = vmatpush1.bf16.msra.mxu0 0
        %7147 = vmatprep.subr.bf16.mxu0 0
        %7148 = vmatpush1.bf16.msra.mxu0 0
        %7149 = vmatprep.subr.bf16.mxu0 0
        %7150 = vmatpush1.bf16.msra.mxu0 0
        %7151 = vmatprep.subr.bf16.mxu0 0
        %7152 = vmatpush1.bf16.msra.mxu0 0
        %7153 = vmatprep.subr.bf16.mxu0 0
        %7154 = vmatpush1.bf16.msra.mxu0 0
        %7155 = vmatprep.subr.bf16.mxu0 0
        %7156 = vmatpush1.bf16.msra.mxu0 0
        %7157 = vmatprep.subr.bf16.mxu0 0
        %7158 = vmatpush1.bf16.msra.mxu0 0
        %7159 = vmatprep.subr.bf16.mxu0 0
        %7160 = vmatpush1.bf16.msra.mxu0 0
        %7161 = vmatprep.subr.bf16.mxu0 0
        %7162 = vmatpush1.bf16.msra.mxu0 0
        %7163 = vmatprep.subr.bf16.mxu0 0
        %7164 = vmatpush1.bf16.msra.mxu0 0
        %7165 = vmatprep.subr.bf16.mxu0 0
        %7166 = vmatpush1.bf16.msra.mxu0 0
        %7167 = vmatprep.subr.bf16.mxu0 0
        %7168 = vmatpush1.bf16.msra.mxu0 0
        %7169 = vmatprep.subr.bf16.mxu0 0
        %7170 = vmatpush1.bf16.msra.mxu0 0
        %7171 = vmatprep.mubr.bf16.mxu0 0
        %7172 = vmatmul.mubr.bf16.gmra.mrb[0].mxu0 %v7116
        %v7173 = vpop.f32.mrb[0].mxu0
        %v7174 = vadd.f32 0.0, %v7173
        %v7175 = vpop.f32.mrb[0].mxu0
        %v7176 = vpop.f32.mrb[0].mxu0
        %v7177 = vadd.f32 0.0, %v7176
        %v7178 = vpop.f32.mrb[0].mxu0
        %7179 = vmatprep.mubr.bf16.mxu0 0
        %7180 = vmatmul.mubr.bf16.gmra.mrb[0].mxu0 %v7119
        %v7181 = vpop.f32.mrb[0].mxu0
        %v7182 = vadd.f32 0.0, %v7181
        %v7183 = vpop.f32.mrb[0].mxu0
        %v7184 = vpop.f32.mrb[0].mxu0
        %v7185 = vadd.f32 0.0, %v7184
        %v7186 = vpop.f32.mrb[0].mxu0
        %7187 = vmatprep.mubr.bf16.mxu0 0
        %7188 = vmatmul.mubr.bf16.gmra.mrb[0].mxu0 %v7122
        %v7189 = vpop.f32.mrb[0].mxu0
        %v7190 = vadd.f32 0.0, %v7189
        %v7191 = vpop.f32.mrb[0].mxu0
        %v7192 = vpop.f32.mrb[0].mxu0
        %v7193 = vadd.f32 0.0, %v7192
        %v7194 = vpop.f32.mrb[0].mxu0
        %7195 = vmatprep.mubr.bf16.mxu0 0
        %7196 = vmatmul.mubr.bf16.gmra.mrb[0].mxu0 %v7125
        %v7197 = vpop.f32.mrb[0].mxu0
        %v7198 = vadd.f32 0.0, %v7197
        %v7199 = vpop.f32.mrb[0].mxu0
        %v7200 = vpop.f32.mrb[0].mxu0
        %v7201 = vadd.f32 0.0, %v7200
        %v7202 = vpop.f32.mrb[0].mxu0
        %7203 = vmatprep.mubr.bf16.mxu0 0
        %7204 = vmatmul.mubr.bf16.gmra.mrb[0].mxu0 %v7128
        %v7205 = vpop.f32.mrb[0].mxu0
        %v7206 = vadd.f32 0.0, %v7205
        %v7207 = vpop.f32.mrb[0].mxu0
        %v7208 = vpop.f32.mrb[0].mxu0
        %v7209 = vadd.f32 0.0, %v7208
        %v7210 = vpop.f32.mrb[0].mxu0
        %7211 = vmatprep.mubr.bf16.mxu0 0
        %7212 = vmatmul.mubr.bf16.gmra.mrb[0].mxu0 %v7131
        %v7213 = vpop.f32.mrb[0].mxu0
        %v7214 = vadd.f32 0.0, %v7213
        %v7215 = vpop.f32.mrb[0].mxu0
        %v7216 = vpop.f32.mrb[0].mxu0
        %v7217 = vadd.f32 0.0, %v7216
        %v7218 = vpop.f32.mrb[0].mxu0
        %7219 = vmatprep.mubr.bf16.mxu0 0
        %7220 = vmatmul.mubr.bf16.gmra.mrb[0].mxu0 %v7134
        %v7221 = vpop.f32.mrb[0].mxu0
        %v7222 = vadd.f32 0.0, %v7221
        %v7223 = vpop.f32.mrb[0].mxu0
        %v7224 = vpop.f32.mrb[0].mxu0
        %v7225 = vadd.f32 0.0, %v7224
        %v7226 = vpop.f32.mrb[0].mxu0
        %7227 = vmatprep.mubr.bf16.mxu0 0
        %7228 = vmatmul.mubr.bf16.gmra.mrb[0].mxu0 %v7137
        %v7229 = vpop.f32.mrb[0].mxu0
        %v7230 = vadd.f32 0.0, %v7229
        %v7231 = vpop.f32.mrb[0].mxu0
        %v7232 = vpop.f32.mrb[0].mxu0
        %v7233 = vadd.f32 0.0, %v7232
        %v7234 = vpop.f32.mrb[0].mxu0
        %7235 = vdwg.mxu0
        %v7236 = vadd.f32 %v915, %v7174
        %v7237 = vadd.f32 %v916, %v7177
        %v7238 = vadd.f32 %v917, %v7182
        %v7239 = vadd.f32 %v918, %v7185
        %v7240 = vadd.f32 %v919, %v7190
        %v7241 = vadd.f32 %v920, %v7193
        %v7242 = vadd.f32 %v921, %v7198
        %v7243 = vadd.f32 %v922, %v7201
        %v7244 = vadd.f32 %v923, %v7206
        %v7245 = vadd.f32 %v924, %v7209
        %v7246 = vadd.f32 %v925, %v7214
        %v7247 = vadd.f32 %v926, %v7217
        %v7248 = vadd.f32 %v927, %v7222
        %v7249 = vadd.f32 %v928, %v7225
        %v7250 = vadd.f32 %v929, %v7230
        %v7251 = vadd.f32 %v930, %v7233
        %v7252 = vld [vmem:[%s7] sm:$0x1]
        %v7253 = vld [vmem:[%s8] sm:$0x1]
        %v7254 = vsel %vm933, %v7236, 0.0
        %7255 = vadd.xlane.f32.xlu0 %v7254
        %v7256 = vpop.xlane.xlu0 %7255
        %v7257 = vsel %vm933, %v7237, 0.0
        %7258 = vadd.xlane.f32.xlu0 %v7257
        %v7259 = vpop.xlane.xlu0 %7258
        %v7260 = vsel %vm933, %v7238, 0.0
        %7261 = vadd.xlane.f32.xlu0 %v7260
        %v7262 = vpop.xlane.xlu0 %7261
        %v7263 = vsel %vm933, %v7239, 0.0
        %7264 = vadd.xlane.f32.xlu0 %v7263
        %v7265 = vpop.xlane.xlu0 %7264
        %v7266 = vsel %vm933, %v7240, 0.0
        %7267 = vadd.xlane.f32.xlu0 %v7266
        %v7268 = vpop.xlane.xlu0 %7267
        %v7269 = vsel %vm933, %v7241, 0.0
        %7270 = vadd.xlane.f32.xlu0 %v7269
        %v7271 = vpop.xlane.xlu0 %7270
        %v7272 = vsel %vm933, %v7242, 0.0
        %7273 = vadd.xlane.f32.xlu0 %v7272
        %v7274 = vpop.xlane.xlu0 %7273
        %v7275 = vsel %vm933, %v7243, 0.0
        %7276 = vadd.xlane.f32.xlu0 %v7275
        %v7277 = vpop.xlane.xlu0 %7276
        %v7278 = vsel %vm933, %v7244, 0.0
        %7279 = vadd.xlane.f32.xlu0 %v7278
        %v7280 = vpop.xlane.xlu0 %7279
        %v7281 = vsel %vm933, %v7245, 0.0
        %7282 = vadd.xlane.f32.xlu0 %v7281
        %v7283 = vpop.xlane.xlu0 %7282
        %v7284 = vsel %vm933, %v7246, 0.0
        %7285 = vadd.xlane.f32.xlu0 %v7284
        %v7286 = vpop.xlane.xlu0 %7285
        %v7287 = vsel %vm933, %v7247, 0.0
        %7288 = vadd.xlane.f32.xlu0 %v7287
        %v7289 = vpop.xlane.xlu0 %7288
        %v7290 = vsel %vm933, %v7248, 0.0
        %7291 = vadd.xlane.f32.xlu0 %v7290
        %v7292 = vpop.xlane.xlu0 %7291
        %v7293 = vsel %vm933, %v7249, 0.0
        %7294 = vadd.xlane.f32.xlu0 %v7293
        %v7295 = vpop.xlane.xlu0 %7294
        %v7296 = vsel %vm933, %v7250, 0.0
        %7297 = vadd.xlane.f32.xlu0 %v7296
        %v7298 = vpop.xlane.xlu0 %7297
        %v7299 = vsel %vm933, %v7251, 0.0
        %7300 = vadd.xlane.f32.xlu0 %v7299
        %v7301 = vpop.xlane.xlu0 %7300
        %v7302 = vmul.f32 %v7256, %v982
        %v7303 = vmul.f32 %v7259, %v982
        %v7304 = vmul.f32 %v7262, %v982
        %v7305 = vmul.f32 %v7265, %v982
        %v7306 = vmul.f32 %v7268, %v982
        %v7307 = vmul.f32 %v7271, %v982
        %v7308 = vmul.f32 %v7274, %v982
        %v7309 = vmul.f32 %v7277, %v982
        %v7310 = vmul.f32 %v7280, %v982
        %v7311 = vmul.f32 %v7283, %v982
        %v7312 = vmul.f32 %v7286, %v982
        %v7313 = vmul.f32 %v7289, %v982
        %v7314 = vmul.f32 %v7292, %v982
        %v7315 = vmul.f32 %v7295, %v982
        %v7316 = vmul.f32 %v7298, %v982
        %v7317 = vmul.f32 %v7301, %v982
        %v7318 = vsub.f32 %v7236, %v7302
        %v7319 = vsub.f32 %v7237, %v7303
        %v7320 = vsub.f32 %v7238, %v7304
        %v7321 = vsub.f32 %v7239, %v7305
        %v7322 = vsub.f32 %v7240, %v7306
        %v7323 = vsub.f32 %v7241, %v7307
        %v7324 = vsub.f32 %v7242, %v7308
        %v7325 = vsub.f32 %v7243, %v7309
        %v7326 = vsub.f32 %v7244, %v7310
        %v7327 = vsub.f32 %v7245, %v7311
        %v7328 = vsub.f32 %v7246, %v7312
        %v7329 = vsub.f32 %v7247, %v7313
        %v7330 = vsub.f32 %v7248, %v7314
        %v7331 = vsub.f32 %v7249, %v7315
        %v7332 = vsub.f32 %v7250, %v7316
        %v7333 = vsub.f32 %v7251, %v7317
        %v7334 = vmul.f32 %v7318, %v7318
        %v7335 = vmul.f32 %v7319, %v7319
        %v7336 = vmul.f32 %v7320, %v7320
        %v7337 = vmul.f32 %v7321, %v7321
        %v7338 = vmul.f32 %v7322, %v7322
        %v7339 = vmul.f32 %v7323, %v7323
        %v7340 = vmul.f32 %v7324, %v7324
        %v7341 = vmul.f32 %v7325, %v7325
        %v7342 = vmul.f32 %v7326, %v7326
        %v7343 = vmul.f32 %v7327, %v7327
        %v7344 = vmul.f32 %v7328, %v7328
        %v7345 = vmul.f32 %v7329, %v7329
        %v7346 = vmul.f32 %v7330, %v7330
        %v7347 = vmul.f32 %v7331, %v7331
        %v7348 = vmul.f32 %v7332, %v7332
        %v7349 = vmul.f32 %v7333, %v7333
        %v7350 = vsel %vm933, %v7334, 0.0
        %7351 = vadd.xlane.f32.xlu0 %v7350
        %v7352 = vpop.xlane.xlu0 %7351
        %v7353 = vsel %vm933, %v7335, 0.0
        %7354 = vadd.xlane.f32.xlu0 %v7353
        %v7355 = vpop.xlane.xlu0 %7354
        %v7356 = vsel %vm933, %v7336, 0.0
        %7357 = vadd.xlane.f32.xlu0 %v7356
        %v7358 = vpop.xlane.xlu0 %7357
        %v7359 = vsel %vm933, %v7337, 0.0
        %7360 = vadd.xlane.f32.xlu0 %v7359
        %v7361 = vpop.xlane.xlu0 %7360
        %v7362 = vsel %vm933, %v7338, 0.0
        %7363 = vadd.xlane.f32.xlu0 %v7362
        %v7364 = vpop.xlane.xlu0 %7363
        %v7365 = vsel %vm933, %v7339, 0.0
        %7366 = vadd.xlane.f32.xlu0 %v7365
        %v7367 = vpop.xlane.xlu0 %7366
        %v7368 = vsel %vm933, %v7340, 0.0
        %7369 = vadd.xlane.f32.xlu0 %v7368
        %v7370 = vpop.xlane.xlu0 %7369
        %v7371 = vsel %vm933, %v7341, 0.0
        %7372 = vadd.xlane.f32.xlu0 %v7371
        %v7373 = vpop.xlane.xlu0 %7372
        %v7374 = vsel %vm933, %v7342, 0.0
        %7375 = vadd.xlane.f32.xlu0 %v7374
        %v7376 = vpop.xlane.xlu0 %7375
        %v7377 = vsel %vm933, %v7343, 0.0
        %7378 = vadd.xlane.f32.xlu0 %v7377
        %v7379 = vpop.xlane.xlu0 %7378
        %v7380 = vsel %vm933, %v7344, 0.0
        %7381 = vadd.xlane.f32.xlu0 %v7380
        %v7382 = vpop.xlane.xlu0 %7381
        %v7383 = vsel %vm933, %v7345, 0.0
        %7384 = vadd.xlane.f32.xlu0 %v7383
        %v7385 = vpop.xlane.xlu0 %7384
        %v7386 = vsel %vm933, %v7346, 0.0
        %7387 = vadd.xlane.f32.xlu0 %v7386
        %v7388 = vpop.xlane.xlu0 %7387
        %v7389 = vsel %vm933, %v7347, 0.0
        %7390 = vadd.xlane.f32.xlu0 %v7389
        %v7391 = vpop.xlane.xlu0 %7390
        %v7392 = vsel %vm933, %v7348, 0.0
        %7393 = vadd.xlane.f32.xlu0 %v7392
        %v7394 = vpop.xlane.xlu0 %7393
        %v7395 = vsel %vm933, %v7349, 0.0
        %7396 = vadd.xlane.f32.xlu0 %v7395
        %v7397 = vpop.xlane.xlu0 %7396
        %v7398 = vmul.f32 %v7352, 0.032258064
        %v7399 = vmul.f32 %v7355, 0.032258064
        %v7400 = vmul.f32 %v7358, 0.032258064
        %v7401 = vmul.f32 %v7361, 0.032258064
        %v7402 = vmul.f32 %v7364, 0.032258064
        %v7403 = vmul.f32 %v7367, 0.032258064
        %v7404 = vmul.f32 %v7370, 0.032258064
        %v7405 = vmul.f32 %v7373, 0.032258064
        %v7406 = vmul.f32 %v7376, 0.032258064
        %v7407 = vmul.f32 %v7379, 0.032258064
        %v7408 = vmul.f32 %v7382, 0.032258064
        %v7409 = vmul.f32 %v7385, 0.032258064
        %v7410 = vmul.f32 %v7388, 0.032258064
        %v7411 = vmul.f32 %v7391, 0.032258064
        %v7412 = vmul.f32 %v7394, 0.032258064
        %v7413 = vmul.f32 %v7397, 0.032258064
        %v7415 = vlaneseq
        %v7416 = vshrl.u32 %v7415, 7
        %v7417 = vsub.s32 0, %v7416
        %v7418 = vrot.slane %v7252, %v7417
        %v7420 = vmul.f32 %v7418, %v7318
        %v7421 = vmul.f32 %v7418, %v7319
        %v7422 = vmul.f32 %v7418, %v7320
        %v7423 = vmul.f32 %v7418, %v7321
        %v7424 = vmul.f32 %v7418, %v7322
        %v7425 = vmul.f32 %v7418, %v7323
        %v7426 = vmul.f32 %v7418, %v7324
        %v7427 = vmul.f32 %v7418, %v7325
        %v7428 = vmul.f32 %v7418, %v7326
        %v7429 = vmul.f32 %v7418, %v7327
        %v7430 = vmul.f32 %v7418, %v7328
        %v7431 = vmul.f32 %v7418, %v7329
        %v7432 = vmul.f32 %v7418, %v7330
        %v7433 = vmul.f32 %v7418, %v7331
        %v7434 = vmul.f32 %v7418, %v7332
        %v7435 = vmul.f32 %v7418, %v7333
        %v7436 = vrsqrt.pop %v7398
        %v7437 = vmul.f32 %v7398, %v7436
        %vm7438 = vcmp.eq.f32.partialorder %v7398, inf
        %v7439 = vsel %vm7438, %v7398, %v7437
        %vm7440 = vcmp.eq.f32.partialorder %v7398, 0.0
        %v7441 = vand.u32 %v7398, 2147483648
        %v7442 = vsel %vm7440, %v7441, %v7439
        %v7443 = vrsqrt.pop %v7399
        %v7444 = vmul.f32 %v7399, %v7443
        %vm7445 = vcmp.eq.f32.partialorder %v7399, inf
        %v7446 = vsel %vm7445, %v7399, %v7444
        %vm7447 = vcmp.eq.f32.partialorder %v7399, 0.0
        %v7448 = vand.u32 %v7399, 2147483648
        %v7449 = vsel %vm7447, %v7448, %v7446
        %v7450 = vrsqrt.pop %v7400
        %v7451 = vmul.f32 %v7400, %v7450
        %vm7452 = vcmp.eq.f32.partialorder %v7400, inf
        %v7453 = vsel %vm7452, %v7400, %v7451
        %vm7454 = vcmp.eq.f32.partialorder %v7400, 0.0
        %v7455 = vand.u32 %v7400, 2147483648
        %v7456 = vsel %vm7454, %v7455, %v7453
        %v7457 = vrsqrt.pop %v7401
        %v7458 = vmul.f32 %v7401, %v7457
        %vm7459 = vcmp.eq.f32.partialorder %v7401, inf
        %v7460 = vsel %vm7459, %v7401, %v7458
        %vm7461 = vcmp.eq.f32.partialorder %v7401, 0.0
        %v7462 = vand.u32 %v7401, 2147483648
        %v7463 = vsel %vm7461, %v7462, %v7460
        %v7464 = vrsqrt.pop %v7402
        %v7465 = vmul.f32 %v7402, %v7464
        %vm7466 = vcmp.eq.f32.partialorder %v7402, inf
        %v7467 = vsel %vm7466, %v7402, %v7465
        %vm7468 = vcmp.eq.f32.partialorder %v7402, 0.0
        %v7469 = vand.u32 %v7402, 2147483648
        %v7470 = vsel %vm7468, %v7469, %v7467
        %v7471 = vrsqrt.pop %v7403
        %v7472 = vmul.f32 %v7403, %v7471
        %vm7473 = vcmp.eq.f32.partialorder %v7403, inf
        %v7474 = vsel %vm7473, %v7403, %v7472
        %vm7475 = vcmp.eq.f32.partialorder %v7403, 0.0
        %v7476 = vand.u32 %v7403, 2147483648
        %v7477 = vsel %vm7475, %v7476, %v7474
        %v7478 = vrsqrt.pop %v7404
        %v7479 = vmul.f32 %v7404, %v7478
        %vm7480 = vcmp.eq.f32.partialorder %v7404, inf
        %v7481 = vsel %vm7480, %v7404, %v7479
        %vm7482 = vcmp.eq.f32.partialorder %v7404, 0.0
        %v7483 = vand.u32 %v7404, 2147483648
        %v7484 = vsel %vm7482, %v7483, %v7481
        %v7485 = vrsqrt.pop %v7405
        %v7486 = vmul.f32 %v7405, %v7485
        %vm7487 = vcmp.eq.f32.partialorder %v7405, inf
        %v7488 = vsel %vm7487, %v7405, %v7486
        %vm7489 = vcmp.eq.f32.partialorder %v7405, 0.0
        %v7490 = vand.u32 %v7405, 2147483648
        %v7491 = vsel %vm7489, %v7490, %v7488
        %v7492 = vrsqrt.pop %v7406
        %v7493 = vmul.f32 %v7406, %v7492
        %vm7494 = vcmp.eq.f32.partialorder %v7406, inf
        %v7495 = vsel %vm7494, %v7406, %v7493
        %vm7496 = vcmp.eq.f32.partialorder %v7406, 0.0
        %v7497 = vand.u32 %v7406, 2147483648
        %v7498 = vsel %vm7496, %v7497, %v7495
        %v7499 = vrsqrt.pop %v7407
        %v7500 = vmul.f32 %v7407, %v7499
        %vm7501 = vcmp.eq.f32.partialorder %v7407, inf
        %v7502 = vsel %vm7501, %v7407, %v7500
        %vm7503 = vcmp.eq.f32.partialorder %v7407, 0.0
        %v7504 = vand.u32 %v7407, 2147483648
        %v7505 = vsel %vm7503, %v7504, %v7502
        %v7506 = vrsqrt.pop %v7408
        %v7507 = vmul.f32 %v7408, %v7506
        %vm7508 = vcmp.eq.f32.partialorder %v7408, inf
        %v7509 = vsel %vm7508, %v7408, %v7507
        %vm7510 = vcmp.eq.f32.partialorder %v7408, 0.0
        %v7511 = vand.u32 %v7408, 2147483648
        %v7512 = vsel %vm7510, %v7511, %v7509
        %v7513 = vrsqrt.pop %v7409
        %v7514 = vmul.f32 %v7409, %v7513
        %vm7515 = vcmp.eq.f32.partialorder %v7409, inf
        %v7516 = vsel %vm7515, %v7409, %v7514
        %vm7517 = vcmp.eq.f32.partialorder %v7409, 0.0
        %v7518 = vand.u32 %v7409, 2147483648
        %v7519 = vsel %vm7517, %v7518, %v7516
        %v7520 = vrsqrt.pop %v7410
        %v7521 = vmul.f32 %v7410, %v7520
        %vm7522 = vcmp.eq.f32.partialorder %v7410, inf
        %v7523 = vsel %vm7522, %v7410, %v7521
        %vm7524 = vcmp.eq.f32.partialorder %v7410, 0.0
        %v7525 = vand.u32 %v7410, 2147483648
        %v7526 = vsel %vm7524, %v7525, %v7523
        %v7527 = vrsqrt.pop %v7411
        %v7528 = vmul.f32 %v7411, %v7527
        %vm7529 = vcmp.eq.f32.partialorder %v7411, inf
        %v7530 = vsel %vm7529, %v7411, %v7528
        %vm7531 = vcmp.eq.f32.partialorder %v7411, 0.0
        %v7532 = vand.u32 %v7411, 2147483648
        %v7533 = vsel %vm7531, %v7532, %v7530
        %v7534 = vrsqrt.pop %v7412
        %v7535 = vmul.f32 %v7412, %v7534
        %vm7536 = vcmp.eq.f32.partialorder %v7412, inf
        %v7537 = vsel %vm7536, %v7412, %v7535
        %vm7538 = vcmp.eq.f32.partialorder %v7412, 0.0
        %v7539 = vand.u32 %v7412, 2147483648
        %v7540 = vsel %vm7538, %v7539, %v7537
        %v7541 = vrsqrt.pop %v7413
        %v7542 = vmul.f32 %v7413, %v7541
        %vm7543 = vcmp.eq.f32.partialorder %v7413, inf
        %v7544 = vsel %vm7543, %v7413, %v7542
        %vm7545 = vcmp.eq.f32.partialorder %v7413, 0.0
        %v7546 = vand.u32 %v7413, 2147483648
        %v7547 = vsel %vm7545, %v7546, %v7544
        %v7548 = vadd.f32 %v7442, 1e-06
        %v7549 = vadd.f32 %v7449, 1e-06
        %v7550 = vadd.f32 %v7456, 1e-06
        %v7551 = vadd.f32 %v7463, 1e-06
        %v7552 = vadd.f32 %v7470, 1e-06
        %v7553 = vadd.f32 %v7477, 1e-06
        %v7554 = vadd.f32 %v7484, 1e-06
        %v7555 = vadd.f32 %v7491, 1e-06
        %v7556 = vadd.f32 %v7498, 1e-06
        %v7557 = vadd.f32 %v7505, 1e-06
        %v7558 = vadd.f32 %v7512, 1e-06
        %v7559 = vadd.f32 %v7519, 1e-06
        %v7560 = vadd.f32 %v7526, 1e-06
        %v7561 = vadd.f32 %v7533, 1e-06
        %v7562 = vadd.f32 %v7540, 1e-06
        %v7563 = vadd.f32 %v7547, 1e-06
        %v7564 = vrcp.pop %v7548
        %v7565 = vmul.f32 %v7420, %v7564
        %v7566 = vrcp.pop %v7549
        %v7567 = vmul.f32 %v7421, %v7566
        %v7568 = vrcp.pop %v7550
        %v7569 = vmul.f32 %v7422, %v7568
        %v7570 = vrcp.pop %v7551
        %v7571 = vmul.f32 %v7423, %v7570
        %v7572 = vrcp.pop %v7552
        %v7573 = vmul.f32 %v7424, %v7572
        %v7574 = vrcp.pop %v7553
        %v7575 = vmul.f32 %v7425, %v7574
        %v7576 = vrcp.pop %v7554
        %v7577 = vmul.f32 %v7426, %v7576
        %v7578 = vrcp.pop %v7555
        %v7579 = vmul.f32 %v7427, %v7578
        %v7580 = vrcp.pop %v7556
        %v7581 = vmul.f32 %v7428, %v7580
        %v7582 = vrcp.pop %v7557
        %v7583 = vmul.f32 %v7429, %v7582
        %v7584 = vrcp.pop %v7558
        %v7585 = vmul.f32 %v7430, %v7584
        %v7586 = vrcp.pop %v7559
        %v7587 = vmul.f32 %v7431, %v7586
        %v7588 = vrcp.pop %v7560
        %v7589 = vmul.f32 %v7432, %v7588
        %v7590 = vrcp.pop %v7561
        %v7591 = vmul.f32 %v7433, %v7590
        %v7592 = vrcp.pop %v7562
        %v7593 = vmul.f32 %v7434, %v7592
        %v7594 = vrcp.pop %v7563
        %v7595 = vmul.f32 %v7435, %v7594
        %v7597 = vlaneseq
        %v7598 = vshrl.u32 %v7597, 7
        %v7599 = vsub.s32 0, %v7598
        %v7600 = vrot.slane %v7253, %v7599
        %v7602 = vadd.f32 %v7565, %v7600
        %v7603 = vadd.f32 %v7567, %v7600
        %v7604 = vadd.f32 %v7569, %v7600
        %v7605 = vadd.f32 %v7571, %v7600
        %v7606 = vadd.f32 %v7573, %v7600
        %v7607 = vadd.f32 %v7575, %v7600
        %v7608 = vadd.f32 %v7577, %v7600
        %v7609 = vadd.f32 %v7579, %v7600
        %v7610 = vadd.f32 %v7581, %v7600
        %v7611 = vadd.f32 %v7583, %v7600
        %v7612 = vadd.f32 %v7585, %v7600
        %v7613 = vadd.f32 %v7587, %v7600
        %v7614 = vadd.f32 %v7589, %v7600
        %v7615 = vadd.f32 %v7591, %v7600
        %v7616 = vadd.f32 %v7593, %v7600
        %v7617 = vadd.f32 %v7595, %v7600
        %v7618 = vpack.c.bf16 %v7603, %v7602
        %v7619 = vpack.c.bf16 %v7605, %v7604
        %v7620 = vpack.c.bf16 %v7607, %v7606
        %v7621 = vpack.c.bf16 %v7609, %v7608
        %v7622 = vpack.c.bf16 %v7611, %v7610
        %v7623 = vpack.c.bf16 %v7613, %v7612
        %v7624 = vpack.c.bf16 %v7615, %v7614
        %v7625 = vpack.c.bf16 %v7617, %v7616
        %v7626 = vld [vmem:[%s11] sm:$0xf]
        %v7627 = vld [vmem:[%s11 + $0x4] sm:$0xf]
        %v7628 = vld [vmem:[%s11 + $0x8] sm:$0xf]
        %v7629 = vld [vmem:[%s11 + $0xc] sm:$0xf]
        %v7634 = vunpack.c.l.b16 %v7626
        %v7635 = vunpack.c.l.b16 %v7627
        %v7636 = vunpack.c.l.b16 %v7628
        %v7637 = vunpack.c.l.b16 %v7629
        %v7638 = vpack.c.b16 %v7635, %v7634
        %v7639 = vpack.c.b16 %v7637, %v7636
        %v7643 = vsel %vm933, %v7618, 0
        %v7646 = vsel %vm933, %v7619, 0
        %v7649 = vsel %vm933, %v7620, 0
        %v7652 = vsel %vm933, %v7621, 0
        %v7655 = vsel %vm933, %v7622, 0
        %v7658 = vsel %vm933, %v7623, 0
        %v7661 = vsel %vm933, %v7624, 0
        %v7664 = vsel %vm933, %v7625, 0
        %7666 = vmatprep.subr.bf16.mxu0 0
        %7667 = vmatpush1.bf16.msra.mxu0 %v7638
        %7668 = vmatprep.subr.bf16.mxu0 0
        %7669 = vmatpush1.bf16.msra.mxu0 %v7639
        %7670 = vmatprep.subr.bf16.mxu0 0
        %7671 = vmatpush1.bf16.msra.mxu0 0
        %7672 = vmatprep.subr.bf16.mxu0 0
        %7673 = vmatpush1.bf16.msra.mxu0 0
        %7674 = vmatprep.subr.bf16.mxu0 0
        %7675 = vmatpush1.bf16.msra.mxu0 0
        %7676 = vmatprep.subr.bf16.mxu0 0
        %7677 = vmatpush1.bf16.msra.mxu0 0
        %7678 = vmatprep.subr.bf16.mxu0 0
        %7679 = vmatpush1.bf16.msra.mxu0 0
        %7680 = vmatprep.subr.bf16.mxu0 0
        %7681 = vmatpush1.bf16.msra.mxu0 0
        %7682 = vmatprep.subr.bf16.mxu0 0
        %7683 = vmatpush1.bf16.msra.mxu0 0
        %7684 = vmatprep.subr.bf16.mxu0 0
        %7685 = vmatpush1.bf16.msra.mxu0 0
        %7686 = vmatprep.subr.bf16.mxu0 0
        %7687 = vmatpush1.bf16.msra.mxu0 0
        %7688 = vmatprep.subr.bf16.mxu0 0
        %7689 = vmatpush1.bf16.msra.mxu0 0
        %7690 = vmatprep.subr.bf16.mxu0 0
        %7691 = vmatpush1.bf16.msra.mxu0 0
        %7692 = vmatprep.subr.bf16.mxu0 0
        %7693 = vmatpush1.bf16.msra.mxu0 0
        %7694 = vmatprep.subr.bf16.mxu0 0
        %7695 = vmatpush1.bf16.msra.mxu0 0
        %7696 = vmatprep.subr.bf16.mxu0 0
        %7697 = vmatpush1.bf16.msra.mxu0 0
        %7698 = vmatprep.mubr.bf16.mxu0 0
        %7699 = vmatmul.mubr.bf16.gmra.mrb[0].mxu0 %v7643
        %v7700 = vpop.f32.mrb[0].mxu0
        %v7701 = vadd.f32 0.0, %v7700
        %v7702 = vpop.f32.mrb[0].mxu0
        %v7703 = vpop.f32.mrb[0].mxu0
        %v7704 = vadd.f32 0.0, %v7703
        %v7705 = vpop.f32.mrb[0].mxu0
        %7706 = vmatprep.mubr.bf16.mxu0 0
        %7707 = vmatmul.mubr.bf16.gmra.mrb[0].mxu0 %v7646
        %v7708 = vpop.f32.mrb[0].mxu0
        %v7709 = vadd.f32 0.0, %v7708
        %v7710 = vpop.f32.mrb[0].mxu0
        %v7711 = vpop.f32.mrb[0].mxu0
        %v7712 = vadd.f32 0.0, %v7711
        %v7713 = vpop.f32.mrb[0].mxu0
        %7714 = vmatprep.mubr.bf16.mxu0 0
        %7715 = vmatmul.mubr.bf16.gmra.mrb[0].mxu0 %v7649
        %v7716 = vpop.f32.mrb[0].mxu0
        %v7717 = vadd.f32 0.0, %v7716
        %v7718 = vpop.f32.mrb[0].mxu0
        %v7719 = vpop.f32.mrb[0].mxu0
        %v7720 = vadd.f32 0.0, %v7719
        %v7721 = vpop.f32.mrb[0].mxu0
        %7722 = vmatprep.mubr.bf16.mxu0 0
        %7723 = vmatmul.mubr.bf16.gmra.mrb[0].mxu0 %v7652
        %v7724 = vpop.f32.mrb[0].mxu0
        %v7725 = vadd.f32 0.0, %v7724
        %v7726 = vpop.f32.mrb[0].mxu0
        %v7727 = vpop.f32.mrb[0].mxu0
        %v7728 = vadd.f32 0.0, %v7727
        %v7729 = vpop.f32.mrb[0].mxu0
        %7730 = vmatprep.mubr.bf16.mxu0 0
        %7731 = vmatmul.mubr.bf16.gmra.mrb[0].mxu0 %v7655
        %v7732 = vpop.f32.mrb[0].mxu0
        %v7733 = vadd.f32 0.0, %v7732
        %v7734 = vpop.f32.mrb[0].mxu0
        %v7735 = vpop.f32.mrb[0].mxu0
        %v7736 = vadd.f32 0.0, %v7735
        %v7737 = vpop.f32.mrb[0].mxu0
        %7738 = vmatprep.mubr.bf16.mxu0 0
        %7739 = vmatmul.mubr.bf16.gmra.mrb[0].mxu0 %v7658
        %v7740 = vpop.f32.mrb[0].mxu0
        %v7741 = vadd.f32 0.0, %v7740
        %v7742 = vpop.f32.mrb[0].mxu0
        %v7743 = vpop.f32.mrb[0].mxu0
        %v7744 = vadd.f32 0.0, %v7743
        %v7745 = vpop.f32.mrb[0].mxu0
        %7746 = vmatprep.mubr.bf16.mxu0 0
        %7747 = vmatmul.mubr.bf16.gmra.mrb[0].mxu0 %v7661
        %v7748 = vpop.f32.mrb[0].mxu0
        %v7749 = vadd.f32 0.0, %v7748
        %v7750 = vpop.f32.mrb[0].mxu0
        %v7751 = vpop.f32.mrb[0].mxu0
        %v7752 = vadd.f32 0.0, %v7751
        %v7753 = vpop.f32.mrb[0].mxu0
        %7754 = vmatprep.mubr.bf16.mxu0 0
        %7755 = vmatmul.mubr.bf16.gmra.mrb[0].mxu0 %v7664
        %v7756 = vpop.f32.mrb[0].mxu0
        %v7757 = vadd.f32 0.0, %v7756
        %v7758 = vpop.f32.mrb[0].mxu0
        %v7759 = vpop.f32.mrb[0].mxu0
        %v7760 = vadd.f32 0.0, %v7759
        %v7761 = vpop.f32.mrb[0].mxu0
        %7762 = vdwg.mxu0
        %v7763 = vmax.f32 %v7701, 0.0
        %v7764 = vmax.f32 %v7704, 0.0
        %v7765 = vmax.f32 %v7709, 0.0
        %v7766 = vmax.f32 %v7712, 0.0
        %v7767 = vmax.f32 %v7717, 0.0
        %v7768 = vmax.f32 %v7720, 0.0
        %v7769 = vmax.f32 %v7725, 0.0
        %v7770 = vmax.f32 %v7728, 0.0
        %v7771 = vmax.f32 %v7733, 0.0
        %v7772 = vmax.f32 %v7736, 0.0
        %v7773 = vmax.f32 %v7741, 0.0
        %v7774 = vmax.f32 %v7744, 0.0
        %v7775 = vmax.f32 %v7749, 0.0
        %v7776 = vmax.f32 %v7752, 0.0
        %v7777 = vmax.f32 %v7757, 0.0
        %v7778 = vmax.f32 %v7760, 0.0
        %v7779 = vpack.c.bf16 %v7764, %v7763
        %v7780 = vpack.c.bf16 %v7766, %v7765
        %v7781 = vpack.c.bf16 %v7768, %v7767
        %v7782 = vpack.c.bf16 %v7770, %v7769
        %v7783 = vpack.c.bf16 %v7772, %v7771
        %v7784 = vpack.c.bf16 %v7774, %v7773
        %v7785 = vpack.c.bf16 %v7776, %v7775
        %v7786 = vpack.c.bf16 %v7778, %v7777
        %v7787 = vld [vmem:[%s12] sm:$0xf]
        %v7788 = vld [vmem:[%s12 + $0x4] sm:$0xf]
        %v7789 = vld [vmem:[%s12 + $0x8] sm:$0xf]
        %v7790 = vld [vmem:[%s12 + $0xc] sm:$0xf]
        %v7791 = vld [vmem:[%s12 + $0x10] sm:$0xf]
        %v7792 = vld [vmem:[%s12 + $0x14] sm:$0xf]
        %v7793 = vld [vmem:[%s12 + $0x18] sm:$0xf]
        %v7794 = vld [vmem:[%s12 + $0x1c] sm:$0xf]
        %v7803 = vunpack.c.l.b16 %v7787
        %v7804 = vunpack.c.l.b16 %v7788
        %v7805 = vunpack.c.l.b16 %v7789
        %v7806 = vunpack.c.l.b16 %v7790
        %v7807 = vunpack.c.l.b16 %v7791
        %v7808 = vunpack.c.l.b16 %v7792
        %v7809 = vunpack.c.l.b16 %v7793
        %v7810 = vunpack.c.l.b16 %v7794
        %v7811 = vpack.c.b16 %v7804, %v7803
        %v7812 = vpack.c.b16 %v7806, %v7805
        %v7813 = vpack.c.b16 %v7808, %v7807
        %v7814 = vpack.c.b16 %v7810, %v7809
        %vm7819 = vcmask 523264
        %v7821 = vsel %vm7819, %v7779, 0
        %v7824 = vsel %vm7819, %v7780, 0
        %v7827 = vsel %vm7819, %v7781, 0
        %v7830 = vsel %vm7819, %v7782, 0
        %v7833 = vsel %vm7819, %v7783, 0
        %v7836 = vsel %vm7819, %v7784, 0
        %v7839 = vsel %vm7819, %v7785, 0
        %v7842 = vsel %vm7819, %v7786, 0
        %7844 = vmatprep.subr.bf16.mxu0 0
        %7845 = vmatpush1.bf16.msra.mxu0 %v7811
        %7846 = vmatprep.subr.bf16.mxu0 0
        %7847 = vmatpush1.bf16.msra.mxu0 %v7812
        %7848 = vmatprep.subr.bf16.mxu0 0
        %7849 = vmatpush1.bf16.msra.mxu0 %v7813
        %7850 = vmatprep.subr.bf16.mxu0 0
        %7851 = vmatpush1.bf16.msra.mxu0 %v7814
        %7852 = vmatprep.subr.bf16.mxu0 0
        %7853 = vmatpush1.bf16.msra.mxu0 0
        %7854 = vmatprep.subr.bf16.mxu0 0
        %7855 = vmatpush1.bf16.msra.mxu0 0
        %7856 = vmatprep.subr.bf16.mxu0 0
        %7857 = vmatpush1.bf16.msra.mxu0 0
        %7858 = vmatprep.subr.bf16.mxu0 0
        %7859 = vmatpush1.bf16.msra.mxu0 0
        %7860 = vmatprep.subr.bf16.mxu0 0
        %7861 = vmatpush1.bf16.msra.mxu0 0
        %7862 = vmatprep.subr.bf16.mxu0 0
        %7863 = vmatpush1.bf16.msra.mxu0 0
        %7864 = vmatprep.subr.bf16.mxu0 0
        %7865 = vmatpush1.bf16.msra.mxu0 0
        %7866 = vmatprep.subr.bf16.mxu0 0
        %7867 = vmatpush1.bf16.msra.mxu0 0
        %7868 = vmatprep.subr.bf16.mxu0 0
        %7869 = vmatpush1.bf16.msra.mxu0 0
        %7870 = vmatprep.subr.bf16.mxu0 0
        %7871 = vmatpush1.bf16.msra.mxu0 0
        %7872 = vmatprep.subr.bf16.mxu0 0
        %7873 = vmatpush1.bf16.msra.mxu0 0
        %7874 = vmatprep.subr.bf16.mxu0 0
        %7875 = vmatpush1.bf16.msra.mxu0 0
        %7876 = vmatprep.mubr.bf16.mxu0 0
        %7877 = vmatmul.mubr.bf16.gmra.mrb[0].mxu0 %v7821
        %v7878 = vpop.f32.mrb[0].mxu0
        %v7879 = vadd.f32 0.0, %v7878
        %v7880 = vpop.f32.mrb[0].mxu0
        %v7881 = vpop.f32.mrb[0].mxu0
        %v7882 = vadd.f32 0.0, %v7881
        %v7883 = vpop.f32.mrb[0].mxu0
        %7884 = vmatprep.mubr.bf16.mxu0 0
        %7885 = vmatmul.mubr.bf16.gmra.mrb[0].mxu0 %v7824
        %v7886 = vpop.f32.mrb[0].mxu0
        %v7887 = vadd.f32 0.0, %v7886
        %v7888 = vpop.f32.mrb[0].mxu0
        %v7889 = vpop.f32.mrb[0].mxu0
        %v7890 = vadd.f32 0.0, %v7889
        %v7891 = vpop.f32.mrb[0].mxu0
        %7892 = vmatprep.mubr.bf16.mxu0 0
        %7893 = vmatmul.mubr.bf16.gmra.mrb[0].mxu0 %v7827
        %v7894 = vpop.f32.mrb[0].mxu0
        %v7895 = vadd.f32 0.0, %v7894
        %v7896 = vpop.f32.mrb[0].mxu0
        %v7897 = vpop.f32.mrb[0].mxu0
        %v7898 = vadd.f32 0.0, %v7897
        %v7899 = vpop.f32.mrb[0].mxu0
        %7900 = vmatprep.mubr.bf16.mxu0 0
        %7901 = vmatmul.mubr.bf16.gmra.mrb[0].mxu0 %v7830
        %v7902 = vpop.f32.mrb[0].mxu0
        %v7903 = vadd.f32 0.0, %v7902
        %v7904 = vpop.f32.mrb[0].mxu0
        %v7905 = vpop.f32.mrb[0].mxu0
        %v7906 = vadd.f32 0.0, %v7905
        %v7907 = vpop.f32.mrb[0].mxu0
        %7908 = vmatprep.mubr.bf16.mxu0 0
        %7909 = vmatmul.mubr.bf16.gmra.mrb[0].mxu0 %v7833
        %v7910 = vpop.f32.mrb[0].mxu0
        %v7911 = vadd.f32 0.0, %v7910
        %v7912 = vpop.f32.mrb[0].mxu0
        %v7913 = vpop.f32.mrb[0].mxu0
        %v7914 = vadd.f32 0.0, %v7913
        %v7915 = vpop.f32.mrb[0].mxu0
        %7916 = vmatprep.mubr.bf16.mxu0 0
        %7917 = vmatmul.mubr.bf16.gmra.mrb[0].mxu0 %v7836
        %v7918 = vpop.f32.mrb[0].mxu0
        %v7919 = vadd.f32 0.0, %v7918
        %v7920 = vpop.f32.mrb[0].mxu0
        %v7921 = vpop.f32.mrb[0].mxu0
        %v7922 = vadd.f32 0.0, %v7921
        %v7923 = vpop.f32.mrb[0].mxu0
        %7924 = vmatprep.mubr.bf16.mxu0 0
        %7925 = vmatmul.mubr.bf16.gmra.mrb[0].mxu0 %v7839
        %v7926 = vpop.f32.mrb[0].mxu0
        %v7927 = vadd.f32 0.0, %v7926
        %v7928 = vpop.f32.mrb[0].mxu0
        %v7929 = vpop.f32.mrb[0].mxu0
        %v7930 = vadd.f32 0.0, %v7929
        %v7931 = vpop.f32.mrb[0].mxu0
        %7932 = vmatprep.mubr.bf16.mxu0 0
        %7933 = vmatmul.mubr.bf16.gmra.mrb[0].mxu0 %v7842
        %v7934 = vpop.f32.mrb[0].mxu0
        %v7935 = vadd.f32 0.0, %v7934
        %v7936 = vpop.f32.mrb[0].mxu0
        %v7937 = vpop.f32.mrb[0].mxu0
        %v7938 = vadd.f32 0.0, %v7937
        %v7939 = vpop.f32.mrb[0].mxu0
        %7940 = vdwg.mxu0
        %v7941 = vadd.f32 %v7236, %v7879
        %v7942 = vadd.f32 %v7237, %v7882
        %v7943 = vadd.f32 %v7238, %v7887
        %v7944 = vadd.f32 %v7239, %v7890
        %v7945 = vadd.f32 %v7240, %v7895
        %v7946 = vadd.f32 %v7241, %v7898
        %v7947 = vadd.f32 %v7242, %v7903
        %v7948 = vadd.f32 %v7243, %v7906
        %v7949 = vadd.f32 %v7244, %v7911
        %v7950 = vadd.f32 %v7245, %v7914
        %v7951 = vadd.f32 %v7246, %v7919
        %v7952 = vadd.f32 %v7247, %v7922
        %v7953 = vadd.f32 %v7248, %v7927
        %v7954 = vadd.f32 %v7249, %v7930
        %v7955 = vadd.f32 %v7250, %v7935
        %v7956 = vadd.f32 %v7251, %v7938
        %v7957 = vld [vmem:[%s13] sm:$0x1]
        %v7958 = vld [vmem:[%s14] sm:$0x1]
        %v7959 = vsel %vm933, %v7941, 0.0
        %7960 = vadd.xlane.f32.xlu0 %v7959
        %v7961 = vpop.xlane.xlu0 %7960
        %v7962 = vsel %vm933, %v7942, 0.0
        %7963 = vadd.xlane.f32.xlu0 %v7962
        %v7964 = vpop.xlane.xlu0 %7963
        %v7965 = vsel %vm933, %v7943, 0.0
        %7966 = vadd.xlane.f32.xlu0 %v7965
        %v7967 = vpop.xlane.xlu0 %7966
        %v7968 = vsel %vm933, %v7944, 0.0
        %7969 = vadd.xlane.f32.xlu0 %v7968
        %v7970 = vpop.xlane.xlu0 %7969
        %v7971 = vsel %vm933, %v7945, 0.0
        %7972 = vadd.xlane.f32.xlu0 %v7971
        %v7973 = vpop.xlane.xlu0 %7972
        %v7974 = vsel %vm933, %v7946, 0.0
        %7975 = vadd.xlane.f32.xlu0 %v7974
        %v7976 = vpop.xlane.xlu0 %7975
        %v7977 = vsel %vm933, %v7947, 0.0
        %7978 = vadd.xlane.f32.xlu0 %v7977
        %v7979 = vpop.xlane.xlu0 %7978
        %v7980 = vsel %vm933, %v7948, 0.0
        %7981 = vadd.xlane.f32.xlu0 %v7980
        %v7982 = vpop.xlane.xlu0 %7981
        %v7983 = vsel %vm933, %v7949, 0.0
        %7984 = vadd.xlane.f32.xlu0 %v7983
        %v7985 = vpop.xlane.xlu0 %7984
        %v7986 = vsel %vm933, %v7950, 0.0
        %7987 = vadd.xlane.f32.xlu0 %v7986
        %v7988 = vpop.xlane.xlu0 %7987
        %v7989 = vsel %vm933, %v7951, 0.0
        %7990 = vadd.xlane.f32.xlu0 %v7989
        %v7991 = vpop.xlane.xlu0 %7990
        %v7992 = vsel %vm933, %v7952, 0.0
        %7993 = vadd.xlane.f32.xlu0 %v7992
        %v7994 = vpop.xlane.xlu0 %7993
        %v7995 = vsel %vm933, %v7953, 0.0
        %7996 = vadd.xlane.f32.xlu0 %v7995
        %v7997 = vpop.xlane.xlu0 %7996
        %v7998 = vsel %vm933, %v7954, 0.0
        %7999 = vadd.xlane.f32.xlu0 %v7998
        %v8000 = vpop.xlane.xlu0 %7999
        %v8001 = vsel %vm933, %v7955, 0.0
        %8002 = vadd.xlane.f32.xlu0 %v8001
        %v8003 = vpop.xlane.xlu0 %8002
        %v8004 = vsel %vm933, %v7956, 0.0
        %8005 = vadd.xlane.f32.xlu0 %v8004
        %v8006 = vpop.xlane.xlu0 %8005
        %v8007 = vmul.f32 %v7961, %v982
        %v8008 = vmul.f32 %v7964, %v982
        %v8009 = vmul.f32 %v7967, %v982
        %v8010 = vmul.f32 %v7970, %v982
        %v8011 = vmul.f32 %v7973, %v982
        %v8012 = vmul.f32 %v7976, %v982
        %v8013 = vmul.f32 %v7979, %v982
        %v8014 = vmul.f32 %v7982, %v982
        %v8015 = vmul.f32 %v7985, %v982
        %v8016 = vmul.f32 %v7988, %v982
        %v8017 = vmul.f32 %v7991, %v982
        %v8018 = vmul.f32 %v7994, %v982
        %v8019 = vmul.f32 %v7997, %v982
        %v8020 = vmul.f32 %v8000, %v982
        %v8021 = vmul.f32 %v8003, %v982
        %v8022 = vmul.f32 %v8006, %v982
        %v8023 = vsub.f32 %v7941, %v8007
        %v8024 = vsub.f32 %v7942, %v8008
        %v8025 = vsub.f32 %v7943, %v8009
        %v8026 = vsub.f32 %v7944, %v8010
        %v8027 = vsub.f32 %v7945, %v8011
        %v8028 = vsub.f32 %v7946, %v8012
        %v8029 = vsub.f32 %v7947, %v8013
        %v8030 = vsub.f32 %v7948, %v8014
        %v8031 = vsub.f32 %v7949, %v8015
        %v8032 = vsub.f32 %v7950, %v8016
        %v8033 = vsub.f32 %v7951, %v8017
        %v8034 = vsub.f32 %v7952, %v8018
        %v8035 = vsub.f32 %v7953, %v8019
        %v8036 = vsub.f32 %v7954, %v8020
        %v8037 = vsub.f32 %v7955, %v8021
        %v8038 = vsub.f32 %v7956, %v8022
        %v8039 = vmul.f32 %v8023, %v8023
        %v8040 = vmul.f32 %v8024, %v8024
        %v8041 = vmul.f32 %v8025, %v8025
        %v8042 = vmul.f32 %v8026, %v8026
        %v8043 = vmul.f32 %v8027, %v8027
        %v8044 = vmul.f32 %v8028, %v8028
        %v8045 = vmul.f32 %v8029, %v8029
        %v8046 = vmul.f32 %v8030, %v8030
        %v8047 = vmul.f32 %v8031, %v8031
        %v8048 = vmul.f32 %v8032, %v8032
        %v8049 = vmul.f32 %v8033, %v8033
        %v8050 = vmul.f32 %v8034, %v8034
        %v8051 = vmul.f32 %v8035, %v8035
        %v8052 = vmul.f32 %v8036, %v8036
        %v8053 = vmul.f32 %v8037, %v8037
        %v8054 = vmul.f32 %v8038, %v8038
        %v8055 = vsel %vm933, %v8039, 0.0
        %8056 = vadd.xlane.f32.xlu0 %v8055
        %v8057 = vpop.xlane.xlu0 %8056
        %v8058 = vsel %vm933, %v8040, 0.0
        %8059 = vadd.xlane.f32.xlu0 %v8058
        %v8060 = vpop.xlane.xlu0 %8059
        %v8061 = vsel %vm933, %v8041, 0.0
        %8062 = vadd.xlane.f32.xlu0 %v8061
        %v8063 = vpop.xlane.xlu0 %8062
        %v8064 = vsel %vm933, %v8042, 0.0
        %8065 = vadd.xlane.f32.xlu0 %v8064
        %v8066 = vpop.xlane.xlu0 %8065
        %v8067 = vsel %vm933, %v8043, 0.0
        %8068 = vadd.xlane.f32.xlu0 %v8067
        %v8069 = vpop.xlane.xlu0 %8068
        %v8070 = vsel %vm933, %v8044, 0.0
        %8071 = vadd.xlane.f32.xlu0 %v8070
        %v8072 = vpop.xlane.xlu0 %8071
        %v8073 = vsel %vm933, %v8045, 0.0
        %8074 = vadd.xlane.f32.xlu0 %v8073
        %v8075 = vpop.xlane.xlu0 %8074
        %v8076 = vsel %vm933, %v8046, 0.0
        %8077 = vadd.xlane.f32.xlu0 %v8076
        %v8078 = vpop.xlane.xlu0 %8077
        %v8079 = vsel %vm933, %v8047, 0.0
        %8080 = vadd.xlane.f32.xlu0 %v8079
        %v8081 = vpop.xlane.xlu0 %8080
        %v8082 = vsel %vm933, %v8048, 0.0
        %8083 = vadd.xlane.f32.xlu0 %v8082
        %v8084 = vpop.xlane.xlu0 %8083
        %v8085 = vsel %vm933, %v8049, 0.0
        %8086 = vadd.xlane.f32.xlu0 %v8085
        %v8087 = vpop.xlane.xlu0 %8086
        %v8088 = vsel %vm933, %v8050, 0.0
        %8089 = vadd.xlane.f32.xlu0 %v8088
        %v8090 = vpop.xlane.xlu0 %8089
        %v8091 = vsel %vm933, %v8051, 0.0
        %8092 = vadd.xlane.f32.xlu0 %v8091
        %v8093 = vpop.xlane.xlu0 %8092
        %v8094 = vsel %vm933, %v8052, 0.0
        %8095 = vadd.xlane.f32.xlu0 %v8094
        %v8096 = vpop.xlane.xlu0 %8095
        %v8097 = vsel %vm933, %v8053, 0.0
        %8098 = vadd.xlane.f32.xlu0 %v8097
        %v8099 = vpop.xlane.xlu0 %8098
        %v8100 = vsel %vm933, %v8054, 0.0
        %8101 = vadd.xlane.f32.xlu0 %v8100
        %v8102 = vpop.xlane.xlu0 %8101
        %v8103 = vmul.f32 %v8057, 0.032258064
        %v8104 = vmul.f32 %v8060, 0.032258064
        %v8105 = vmul.f32 %v8063, 0.032258064
        %v8106 = vmul.f32 %v8066, 0.032258064
        %v8107 = vmul.f32 %v8069, 0.032258064
        %v8108 = vmul.f32 %v8072, 0.032258064
        %v8109 = vmul.f32 %v8075, 0.032258064
        %v8110 = vmul.f32 %v8078, 0.032258064
        %v8111 = vmul.f32 %v8081, 0.032258064
        %v8112 = vmul.f32 %v8084, 0.032258064
        %v8113 = vmul.f32 %v8087, 0.032258064
        %v8114 = vmul.f32 %v8090, 0.032258064
        %v8115 = vmul.f32 %v8093, 0.032258064
        %v8116 = vmul.f32 %v8096, 0.032258064
        %v8117 = vmul.f32 %v8099, 0.032258064
        %v8118 = vmul.f32 %v8102, 0.032258064
        %v8120 = vlaneseq
        %v8121 = vshrl.u32 %v8120, 7
        %v8122 = vsub.s32 0, %v8121
        %v8123 = vrot.slane %v7957, %v8122
        %v8125 = vmul.f32 %v8123, %v8023
        %v8126 = vmul.f32 %v8123, %v8024
        %v8127 = vmul.f32 %v8123, %v8025
        %v8128 = vmul.f32 %v8123, %v8026
        %v8129 = vmul.f32 %v8123, %v8027
        %v8130 = vmul.f32 %v8123, %v8028
        %v8131 = vmul.f32 %v8123, %v8029
        %v8132 = vmul.f32 %v8123, %v8030
        %v8133 = vmul.f32 %v8123, %v8031
        %v8134 = vmul.f32 %v8123, %v8032
        %v8135 = vmul.f32 %v8123, %v8033
        %v8136 = vmul.f32 %v8123, %v8034
        %v8137 = vmul.f32 %v8123, %v8035
        %v8138 = vmul.f32 %v8123, %v8036
        %v8139 = vmul.f32 %v8123, %v8037
        %v8140 = vmul.f32 %v8123, %v8038
        %v8141 = vrsqrt.pop %v8103
        %v8142 = vmul.f32 %v8103, %v8141
        %vm8143 = vcmp.eq.f32.partialorder %v8103, inf
        %v8144 = vsel %vm8143, %v8103, %v8142
        %vm8145 = vcmp.eq.f32.partialorder %v8103, 0.0
        %v8146 = vand.u32 %v8103, 2147483648
        %v8147 = vsel %vm8145, %v8146, %v8144
        %v8148 = vrsqrt.pop %v8104
        %v8149 = vmul.f32 %v8104, %v8148
        %vm8150 = vcmp.eq.f32.partialorder %v8104, inf
        %v8151 = vsel %vm8150, %v8104, %v8149
        %vm8152 = vcmp.eq.f32.partialorder %v8104, 0.0
        %v8153 = vand.u32 %v8104, 2147483648
        %v8154 = vsel %vm8152, %v8153, %v8151
        %v8155 = vrsqrt.pop %v8105
        %v8156 = vmul.f32 %v8105, %v8155
        %vm8157 = vcmp.eq.f32.partialorder %v8105, inf
        %v8158 = vsel %vm8157, %v8105, %v8156
        %vm8159 = vcmp.eq.f32.partialorder %v8105, 0.0
        %v8160 = vand.u32 %v8105, 2147483648
        %v8161 = vsel %vm8159, %v8160, %v8158
        %v8162 = vrsqrt.pop %v8106
        %v8163 = vmul.f32 %v8106, %v8162
        %vm8164 = vcmp.eq.f32.partialorder %v8106, inf
        %v8165 = vsel %vm8164, %v8106, %v8163
        %vm8166 = vcmp.eq.f32.partialorder %v8106, 0.0
        %v8167 = vand.u32 %v8106, 2147483648
        %v8168 = vsel %vm8166, %v8167, %v8165
        %v8169 = vrsqrt.pop %v8107
        %v8170 = vmul.f32 %v8107, %v8169
        %vm8171 = vcmp.eq.f32.partialorder %v8107, inf
        %v8172 = vsel %vm8171, %v8107, %v8170
        %vm8173 = vcmp.eq.f32.partialorder %v8107, 0.0
        %v8174 = vand.u32 %v8107, 2147483648
        %v8175 = vsel %vm8173, %v8174, %v8172
        %v8176 = vrsqrt.pop %v8108
        %v8177 = vmul.f32 %v8108, %v8176
        %vm8178 = vcmp.eq.f32.partialorder %v8108, inf
        %v8179 = vsel %vm8178, %v8108, %v8177
        %vm8180 = vcmp.eq.f32.partialorder %v8108, 0.0
        %v8181 = vand.u32 %v8108, 2147483648
        %v8182 = vsel %vm8180, %v8181, %v8179
        %v8183 = vrsqrt.pop %v8109
        %v8184 = vmul.f32 %v8109, %v8183
        %vm8185 = vcmp.eq.f32.partialorder %v8109, inf
        %v8186 = vsel %vm8185, %v8109, %v8184
        %vm8187 = vcmp.eq.f32.partialorder %v8109, 0.0
        %v8188 = vand.u32 %v8109, 2147483648
        %v8189 = vsel %vm8187, %v8188, %v8186
        %v8190 = vrsqrt.pop %v8110
        %v8191 = vmul.f32 %v8110, %v8190
        %vm8192 = vcmp.eq.f32.partialorder %v8110, inf
        %v8193 = vsel %vm8192, %v8110, %v8191
        %vm8194 = vcmp.eq.f32.partialorder %v8110, 0.0
        %v8195 = vand.u32 %v8110, 2147483648
        %v8196 = vsel %vm8194, %v8195, %v8193
        %v8197 = vrsqrt.pop %v8111
        %v8198 = vmul.f32 %v8111, %v8197
        %vm8199 = vcmp.eq.f32.partialorder %v8111, inf
        %v8200 = vsel %vm8199, %v8111, %v8198
        %vm8201 = vcmp.eq.f32.partialorder %v8111, 0.0
        %v8202 = vand.u32 %v8111, 2147483648
        %v8203 = vsel %vm8201, %v8202, %v8200
        %v8204 = vrsqrt.pop %v8112
        %v8205 = vmul.f32 %v8112, %v8204
        %vm8206 = vcmp.eq.f32.partialorder %v8112, inf
        %v8207 = vsel %vm8206, %v8112, %v8205
        %vm8208 = vcmp.eq.f32.partialorder %v8112, 0.0
        %v8209 = vand.u32 %v8112, 2147483648
        %v8210 = vsel %vm8208, %v8209, %v8207
        %v8211 = vrsqrt.pop %v8113
        %v8212 = vmul.f32 %v8113, %v8211
        %vm8213 = vcmp.eq.f32.partialorder %v8113, inf
        %v8214 = vsel %vm8213, %v8113, %v8212
        %vm8215 = vcmp.eq.f32.partialorder %v8113, 0.0
        %v8216 = vand.u32 %v8113, 2147483648
        %v8217 = vsel %vm8215, %v8216, %v8214
        %v8218 = vrsqrt.pop %v8114
        %v8219 = vmul.f32 %v8114, %v8218
        %vm8220 = vcmp.eq.f32.partialorder %v8114, inf
        %v8221 = vsel %vm8220, %v8114, %v8219
        %vm8222 = vcmp.eq.f32.partialorder %v8114, 0.0
        %v8223 = vand.u32 %v8114, 2147483648
        %v8224 = vsel %vm8222, %v8223, %v8221
        %v8225 = vrsqrt.pop %v8115
        %v8226 = vmul.f32 %v8115, %v8225
        %vm8227 = vcmp.eq.f32.partialorder %v8115, inf
        %v8228 = vsel %vm8227, %v8115, %v8226
        %vm8229 = vcmp.eq.f32.partialorder %v8115, 0.0
        %v8230 = vand.u32 %v8115, 2147483648
        %v8231 = vsel %vm8229, %v8230, %v8228
        %v8232 = vrsqrt.pop %v8116
        %v8233 = vmul.f32 %v8116, %v8232
        %vm8234 = vcmp.eq.f32.partialorder %v8116, inf
        %v8235 = vsel %vm8234, %v8116, %v8233
        %vm8236 = vcmp.eq.f32.partialorder %v8116, 0.0
        %v8237 = vand.u32 %v8116, 2147483648
        %v8238 = vsel %vm8236, %v8237, %v8235
        %v8239 = vrsqrt.pop %v8117
        %v8240 = vmul.f32 %v8117, %v8239
        %vm8241 = vcmp.eq.f32.partialorder %v8117, inf
        %v8242 = vsel %vm8241, %v8117, %v8240
        %vm8243 = vcmp.eq.f32.partialorder %v8117, 0.0
        %v8244 = vand.u32 %v8117, 2147483648
        %v8245 = vsel %vm8243, %v8244, %v8242
        %v8246 = vrsqrt.pop %v8118
        %v8247 = vmul.f32 %v8118, %v8246
        %vm8248 = vcmp.eq.f32.partialorder %v8118, inf
        %v8249 = vsel %vm8248, %v8118, %v8247
        %vm8250 = vcmp.eq.f32.partialorder %v8118, 0.0
        %v8251 = vand.u32 %v8118, 2147483648
        %v8252 = vsel %vm8250, %v8251, %v8249
        %v8253 = vadd.f32 %v8147, 1e-06
        %v8254 = vadd.f32 %v8154, 1e-06
        %v8255 = vadd.f32 %v8161, 1e-06
        %v8256 = vadd.f32 %v8168, 1e-06
        %v8257 = vadd.f32 %v8175, 1e-06
        %v8258 = vadd.f32 %v8182, 1e-06
        %v8259 = vadd.f32 %v8189, 1e-06
        %v8260 = vadd.f32 %v8196, 1e-06
        %v8261 = vadd.f32 %v8203, 1e-06
        %v8262 = vadd.f32 %v8210, 1e-06
        %v8263 = vadd.f32 %v8217, 1e-06
        %v8264 = vadd.f32 %v8224, 1e-06
        %v8265 = vadd.f32 %v8231, 1e-06
        %v8266 = vadd.f32 %v8238, 1e-06
        %v8267 = vadd.f32 %v8245, 1e-06
        %v8268 = vadd.f32 %v8252, 1e-06
        %v8269 = vrcp.pop %v8253
        %v8270 = vmul.f32 %v8125, %v8269
        %v8271 = vrcp.pop %v8254
        %v8272 = vmul.f32 %v8126, %v8271
        %v8273 = vrcp.pop %v8255
        %v8274 = vmul.f32 %v8127, %v8273
        %v8275 = vrcp.pop %v8256
        %v8276 = vmul.f32 %v8128, %v8275
        %v8277 = vrcp.pop %v8257
        %v8278 = vmul.f32 %v8129, %v8277
        %v8279 = vrcp.pop %v8258
        %v8280 = vmul.f32 %v8130, %v8279
        %v8281 = vrcp.pop %v8259
        %v8282 = vmul.f32 %v8131, %v8281
        %v8283 = vrcp.pop %v8260
        %v8284 = vmul.f32 %v8132, %v8283
        %v8285 = vrcp.pop %v8261
        %v8286 = vmul.f32 %v8133, %v8285
        %v8287 = vrcp.pop %v8262
        %v8288 = vmul.f32 %v8134, %v8287
        %v8289 = vrcp.pop %v8263
        %v8290 = vmul.f32 %v8135, %v8289
        %v8291 = vrcp.pop %v8264
        %v8292 = vmul.f32 %v8136, %v8291
        %v8293 = vrcp.pop %v8265
        %v8294 = vmul.f32 %v8137, %v8293
        %v8295 = vrcp.pop %v8266
        %v8296 = vmul.f32 %v8138, %v8295
        %v8297 = vrcp.pop %v8267
        %v8298 = vmul.f32 %v8139, %v8297
        %v8299 = vrcp.pop %v8268
        %v8300 = vmul.f32 %v8140, %v8299
        %v8302 = vlaneseq
        %v8303 = vshrl.u32 %v8302, 7
        %v8304 = vsub.s32 0, %v8303
        %v8305 = vrot.slane %v7958, %v8304
        %v8307 = vadd.f32 %v8270, %v8305
        %v8308 = vadd.f32 %v8272, %v8305
        %v8309 = vadd.f32 %v8274, %v8305
        %v8310 = vadd.f32 %v8276, %v8305
        %v8311 = vadd.f32 %v8278, %v8305
        %v8312 = vadd.f32 %v8280, %v8305
        %v8313 = vadd.f32 %v8282, %v8305
        %v8314 = vadd.f32 %v8284, %v8305
        %v8315 = vadd.f32 %v8286, %v8305
        %v8316 = vadd.f32 %v8288, %v8305
        %v8317 = vadd.f32 %v8290, %v8305
        %v8318 = vadd.f32 %v8292, %v8305
        %v8319 = vadd.f32 %v8294, %v8305
        %v8320 = vadd.f32 %v8296, %v8305
        %v8321 = vadd.f32 %v8298, %v8305
        %v8322 = vadd.f32 %v8300, %v8305
        %8323 = vst.msk [vmem:[%s684] sm:$0xff] %vm933, %v8307
        %8324 = vst.msk [vmem:[%s684 + $0x8] sm:$0xff] %vm933, %v8308
        %8325 = vst.msk [vmem:[%s684 + $0x10] sm:$0xff] %vm933, %v8309
        %8326 = vst.msk [vmem:[%s684 + $0x18] sm:$0xff] %vm933, %v8310
        %8327 = vst.msk [vmem:[%s684 + $0x20] sm:$0xff] %vm933, %v8311
        %8328 = vst.msk [vmem:[%s684 + $0x28] sm:$0xff] %vm933, %v8312
        %8329 = vst.msk [vmem:[%s684 + $0x30] sm:$0xff] %vm933, %v8313
        %8330 = vst.msk [vmem:[%s684 + $0x38] sm:$0xff] %vm933, %v8314
        %8331 = vst.msk [vmem:[%s684 + $0x40] sm:$0xff] %vm933, %v8315
        %8332 = vst.msk [vmem:[%s684 + $0x48] sm:$0xff] %vm933, %v8316
        %8333 = vst.msk [vmem:[%s684 + $0x50] sm:$0xff] %vm933, %v8317
        %8334 = vst.msk [vmem:[%s684 + $0x58] sm:$0xff] %vm933, %v8318
        %8335 = vst.msk [vmem:[%s684 + $0x60] sm:$0xff] %vm933, %v8319
        %8336 = vst.msk [vmem:[%s684 + $0x68] sm:$0xff] %vm933, %v8320
        %8337 = vst.msk [vmem:[%s684 + $0x70] sm:$0xff] %vm933, %v8321
        %8338 = vst.msk [vmem:[%s684 + $0x78] sm:$0xff] %vm933, %v8322
        %s8339 = smul.u32 16, %s39
        %p8340 = scmp.lt.s32.totalorder %s8339, 31
        %s8341 = scalar_select %p8340, %s8339, 31
        %s8342 = smul.addr %s8341, 8
        %s8343 = scalar_lea.vmem %s16, %s8342
        %s8344 = sand.u32 %s429, 1
        %s8345 = scalar_lea.sflag [#allocation5], %s8344
        %s8346 = sand.u32 %s429, 1
        %s8347 = smul.addr %s8346, 128
        %s8348 = scalar_lea.vmem [#allocation10], %s8347
        // Predicated region
        $region97: #{tpu_custom_call.1} parent=83 // pred_check
          %p8349 = pneg %p413
        $region98: #{tpu_custom_call.1} parent=83 // pred_check_branch
          %8351 = sbr.rel (%p8349) target = $region100
        $region99: #{tpu_custom_call.1} parent=83 // pred_region
          %s8352 = smul.u32 16, %s39
        $region100: #{tpu_custom_call.1} parent=83 // pred_fallthru
          _
        // Predicated region
        $region101: #{tpu_custom_call.1} parent=83 // pred_check
          %p8353 = pneg %p439
        $region102: #{tpu_custom_call.1} parent=83 // pred_check_branch
          %8355 = sbr.rel (%p8353) target = $region104
        $region103: #{tpu_custom_call.1} parent=83 // pred_region
          %s8356 = smul.u32 8, %s39
          %s8358 = ssub.s32 2048, 2048
          %8359 = vsyncadd %s8345, %s8358
          %s8360 = smul.addr %s8356, 2
          %s8361 = smul.addr %s8360, 128
          %s8362 = scalar_lea.hbm %s17, %s8361
          %s8363 = sshll.u32 %s8348, 4
          %s8364 = int_to_ptr.vmem [resolvable:$true] %s8363
          %8369 = dma.vmem_to_hbm [thread:$0]  %s8364, 2048, %s8362, %s8345, 128, 128, 8
        $region104: #{tpu_custom_call.1} parent=83 // pred_fallthru
          _
      $region84: #{tpu_custom_call.1} parent=5 // pred_fallthru
        _
      %p8370 = scmp.le.s32.totalorder 2, %s34
      // Predicated region
      $region105: #{tpu_custom_call.1} parent=5 // pred_check
        %p8371 = pneg %p8370
      $region106: #{tpu_custom_call.1} parent=5 // pred_check_branch
        %8373 = sbr.rel (%p8371) target = $region108
      $region107: #{tpu_custom_call.1} parent=5 // pred_region
        %s8374 = ssub.s32 %s34, 2
        // Predicated region
        $region109: #{tpu_custom_call.1} parent=107 // pred_check
          %p8375 = pneg %p419
        $region110: #{tpu_custom_call.1} parent=107 // pred_check_branch
          %8377 = sbr.rel (%p8375) target = $region112
        $region111: #{tpu_custom_call.1} parent=107 // pred_region
          %s8378 = smul.u32 16, %s40
          %p8379 = scmp.lt.s32.totalorder %s8378, 31
          %s8380 = scalar_select %p8379, %s8378, 31
          %s8381 = smul.addr %s8380, 8
          %s8382 = scalar_lea.vmem %s16, %s8381
        $region112: #{tpu_custom_call.1} parent=107 // pred_fallthru
          _
        // Predicated region
        $region113: #{tpu_custom_call.1} parent=107 // pred_check
          %p8383 = pneg %p445
        $region114: #{tpu_custom_call.1} parent=107 // pred_check_branch
          %8385 = sbr.rel (%p8383) target = $region116
        $region115: #{tpu_custom_call.1} parent=107 // pred_region
          %s8386 = sand.u32 %s430, 1
          %s8387 = scalar_lea.sflag [#allocation5], %s8386
          %s8388 = sand.u32 %s430, 1
          %s8389 = smul.addr %s8388, 128
          %s8390 = scalar_lea.vmem [#allocation10], %s8389
          %8391 = dma.done %s8387, 2048
        $region116: #{tpu_custom_call.1} parent=107 // pred_fallthru
          _
      $region108: #{tpu_custom_call.1} parent=5 // pred_fallthru
        _
    $region6: #{tpu_custom_call.1} parent=1 // loop_footer
      %s38 = sadd.s32 1, %s34
    $region7: #{tpu_custom_call.1} parent=1 // loop_footer_branch
      %33 = sbr.rel target = $region3
    $region8: #{tpu_custom_call.1} parent=1 // loop_exit
      _
    %8392 = vsyncpa [#allocation4], 1
    %s8393 = scalar_lea.sflag [#allocation4], 1
    %8394 = vsyncpa %s8393, 1
    %8395 = vsyncpa [#allocation8], 1
    %s8396 = scalar_lea.sflag [#allocation8], 1
    %8397 = vsyncpa %s8396, 1
    %8398 = vsyncpa [#allocation5], 1
    %s8399 = scalar_lea.sflag [#allocation5], 1
    %8400 = vsyncpa %s8399, 1
    %8401 = vsyncpa [#allocation6], 1
    %s8402 = scalar_lea.sflag [#allocation6], 1
    %8403 = vsyncpa %s8402, 1

</llo_original>
